<compile_context>
chip_gen: v7x
topology: tpu7x:2x2x1
jax: 0.10.0
libtpu: 0.0.40
codegen_flags: <defaults>
</compile_context>

<pallas_src>
import jax
import jax.numpy as jnp
from jax import lax
from jax.experimental import pallas as pl
from jax.experimental.pallas import tpu as pltpu


# ---------------------------------------------------------------------------------------------
# Flat-row geometry.  x is 28x28 flattened row-major (row index r = h*28 + w).  This wrap-around
# trick is valid ONLY for this exact 28x28 / 3x3 / 3x3 / 2x2-pool geometry: junk rows (w >= 24)
# only ever feed junk rows, and the pool never reads them.
# ---------------------------------------------------------------------------------------------
IMG = 28
N_Y1C = 23 * IMG + 23 + 1 + 2 * IMG   # 724: dx-expanded conv1 rows read by conv2 (max 667+56)
N_Z = 23 * IMG + 23 + 1               # 668: conv2 flat rows up to output pixel (23, 23)
N_MH = 56 * 11 + 2 * 11 + 1           # 639: pooled-max rows up to pooled pixel (11, 11)
assert (N_Y1C, N_Z, N_MH) == (724, 668, 639)

# 15 input taps (3 row shifts x 5 column shifts) feeding the dx-expanded conv1 matmul.
OFFS15 = tuple(28 * dy + d for dy in range(3) for d in range(5))


# ---------------------------------------------------------------------------------------------
# Kernel A: conv1 + ReLU + conv2 + ReLU + 2x2 max-pool, BLK images per grid step
# ---------------------------------------------------------------------------------------------

def _make_conv_pool_kernel(blk, batch):
    evenly = (batch % blk == 0)

    def kernel(p1_ref, w1c_ref, b1c_ref, w2_ref, b2_ref, out_ref,
               y1c_ref, z_ref, mh_ref):
        if evenly:
            n_imgs = blk
        else:
            n_imgs = jnp.minimum(blk, batch - pl.program_id(0) * blk)

        def one_image(b, carry):
            # conv1 (+bias+relu), dx-expanded: y1c[r, dx*32+c] = relu(conv1[r+dx, c] + b1[c])
            y = jnp.dot(p1_ref[b], w1c_ref[...], preferred_element_type=jnp.float32)
            y1c_ref[...] = jnp.maximum(y + b1c_ref[...], 0.0).astype(jnp.bfloat16)

            # conv2: three dy-taps of K=96 accumulated in registers, one dense f32 store.
            z = jnp.dot(y1c_ref[0:N_Z, :], w2_ref[0],
                        preferred_element_type=jnp.float32)
            z = z + jnp.dot(y1c_ref[28:28 + N_Z, :], w2_ref[1],
                            preferred_element_type=jnp.float32)
            z = z + jnp.dot(y1c_ref[56:56 + N_Z, :], w2_ref[2],
                            preferred_element_type=jnp.float32)
            z_ref[...] = z

            # 2x2 stride-2 max pool: 4 shifted full-slab reads, 3 dense maxima.
            # pooled(i, j) = mh[56*i + 2*j]
            mv0 = jnp.maximum(z_ref[0:N_MH, :], z_ref[1:1 + N_MH, :])
            mv1 = jnp.maximum(z_ref[28:28 + N_MH, :], z_ref[29:29 + N_MH, :])
            mh_ref[...] = jnp.maximum(mv0, mv1)

            # Gather the 144 kept rows lane-densely: output row 6i+q packs pooled pixels
            # (i, 2q) and (i, 2q+1) into lanes [0:64) and [64:128)  ->  NHWC flatten order.
            left = jnp.concatenate(
                [mh_ref[pl.ds(56 * i, 6, stride=4), :] for i in range(12)], axis=0)
            right = jnp.concatenate(
                [mh_ref[pl.ds(56 * i + 2, 6, stride=4), :] for i in range(12)], axis=0)
            packed = jnp.concatenate([left, right], axis=-1) + b2_ref[...]   # (72, 128)
            out_ref[b] = jnp.maximum(packed, 0.0).astype(out_ref.dtype)
            return carry

        lax.fori_loop(0, n_imgs, one_image, 0)

    return kernel


def conv_pool(p1x, w1c, b1c, w2, b2, *, blk=8):
    B = p1x.shape[0]
    blk = max(1, min(blk, B))
    return pl.pallas_call(
        _make_conv_pool_kernel(blk, B),
        out_shape=jax.ShapeDtypeStruct((B, 72, 128), jnp.bfloat16),
        grid=(pl.cdiv(B, blk),),
        in_specs=[
            pl.BlockSpec((blk, N_Y1C, 15), lambda g: (g, 0, 0)),   # conv1 taps, BLK images
            pl.BlockSpec((15, 96), lambda g: (0, 0)),              # dx-expanded conv1 weight
            pl.BlockSpec((1, 96), lambda g: (0, 0)),               # conv1 bias (tiled x3)
            pl.BlockSpec((3, 96, 64), lambda g: (0, 0, 0)),        # conv2 weight per dy tap
            pl.BlockSpec((1, 128), lambda g: (0, 0)),              # conv2 bias (tiled x2)
        ],
        out_specs=pl.BlockSpec((blk, 72, 128), lambda g: (g, 0, 0)),
        scratch_shapes=[
            pltpu.VMEM((N_Y1C, 96), jnp.bfloat16),   # y1c = dx-expanded relu(conv1), bf16
            pltpu.VMEM((N_Z, 64), jnp.float32),      # conv2 pre-activation (single store)
            pltpu.VMEM((N_MH, 64), jnp.float32),     # pooled-max slab
        ],
        compiler_params=pltpu.CompilerParams(dimension_semantics=("parallel",)),
    )(p1x, w1c, b1c, w2, b2)


# ---------------------------------------------------------------------------------------------
# Kernel B: fc1 + ReLU + fc2 (padded to 128 lanes) + log_softmax, M-tiled
# ---------------------------------------------------------------------------------------------

def _fc_head_kernel(x_ref, w1_ref, b1_ref, w2_ref, b2_ref, o_ref):
    h = jnp.dot(x_ref[...], w1_ref[...], preferred_element_type=jnp.float32)
    h = jnp.maximum(h + b1_ref[...], 0.0)
    logits = jnp.dot(h.astype(jnp.bfloat16), w2_ref[...],
                     preferred_element_type=jnp.float32) + b2_ref[...]
    m = jnp.max(logits, axis=-1, keepdims=True)
    s = logits - m
    lse = jnp.log(jnp.sum(jnp.exp(s), axis=-1, keepdims=True))
    o_ref[...] = (s - lse).astype(o_ref.dtype)


def fc_head(x, w1, b1, w2, b2, *, tile_m=256):
    M, K = x.shape
    N1 = w1.shape[1]
    N2 = w2.shape[1]                 # 128 (10 real classes + padding lanes)
    tm = min(tile_m, M)              # keep well under VMEM on v5e/v6e/v7x
    return pl.pallas_call(
        _fc_head_kernel,
        out_shape=jax.ShapeDtypeStruct((M, N2), jnp.float32),
        grid=(pl.cdiv(M, tm),),
        in_specs=[
            pl.BlockSpec((tm, K), lambda i: (i, 0)),
            pl.BlockSpec((K, N1), lambda i: (0, 0)),
            pl.BlockSpec((1, N1), lambda i: (0, 0)),
            pl.BlockSpec((N1, N2), lambda i: (0, 0)),
            pl.BlockSpec((1, N2), lambda i: (0, 0)),
        ],
        out_specs=pl.BlockSpec((tm, N2), lambda i: (i, 0)),
        compiler_params=pltpu.CompilerParams(dimension_semantics=("parallel",)),
    )(x, w1, b1, w2, b2)


# ---------------------------------------------------------------------------------------------
# Parameter preparation (done ONCE, outside the jitted forward)
# ---------------------------------------------------------------------------------------------

def init_params(key):
    ks = jax.random.split(key, 8)
    scale = 0.05
    return {
        "conv1_w": scale * jax.random.normal(ks[0], (32, 1, 3, 3), jnp.float32),
        "conv1_b": scale * jax.random.normal(ks[1], (32,), jnp.float32),
        "conv2_w": scale * jax.random.normal(ks[2], (64, 32, 3, 3), jnp.float32),
        "conv2_b": scale * jax.random.normal(ks[3], (64,), jnp.float32),
        "fc1_w":   scale * jax.random.normal(ks[4], (128, 9216), jnp.float32),
        "fc1_b":   scale * jax.random.normal(ks[5], (128,), jnp.float32),
        "fc2_w":   scale * jax.random.normal(ks[6], (10, 128), jnp.float32),
        "fc2_b":   scale * jax.random.normal(ks[7], (10,), jnp.float32),
    }


def prepare_params(params):
    """Hoisted weight layout work (runs eagerly, once)."""
    # dx-expanded conv1 weight: y1c[r, dx*32+c] needs w1c[(dy,d), dx*32+c] = K1[c, dy, d-dx]
    k1 = params["conv1_w"].reshape(32, 3, 3)           # (cout, dy, dx)
    w1c = jnp.zeros((15, 96), jnp.float32)
    for dy in range(3):
        for d in range(5):
            for dx in range(3):
                dxp = d - dx
                if 0 <= dxp <= 2:
                    w1c = w1c.at[dy * 5 + d, dx * 32:(dx + 1) * 32].set(k1[:, dy, dxp])
    b1c = jnp.tile(params["conv1_b"].reshape(1, 32), (1, 3))                     # (1, 96)

    # conv2 weight split per dy tap, rows ordered (dx, cin) to match the y1c column layout.
    w2 = jnp.transpose(params["conv2_w"], (2, 3, 1, 0)).reshape(3, 96, 64)       # (dy, dx*32+cin, cout)
    b2 = jnp.tile(params["conv2_b"].reshape(1, 64), (1, 2))                      # (1, 128)

    # fc1 rows permuted so the kernel's NHWC (h, w, c) flatten matches torch's NCHW flatten.
    fc1_w = (params["fc1_w"].reshape(128, 64, 12, 12)
             .transpose(2, 3, 1, 0).reshape(9216, 128))                          # rows: h*768+w*64+c

    # fc2 padded to 128 output lanes: zero weights, -1e30 bias so pads vanish in log_softmax.
    fc2_w = jnp.zeros((128, 128), jnp.float32).at[:, :10].set(params["fc2_w"].T)
    fc2_b = jnp.full((1, 128), -1e30, jnp.float32).at[0, :10].set(params["fc2_b"])

    return {
        "w1c": w1c.astype(jnp.bfloat16),
        "b1c": b1c.astype(jnp.float32),
        "w2": w2.astype(jnp.bfloat16),
        "b2": b2.astype(jnp.float32),
        "fc1_w": fc1_w.astype(jnp.bfloat16),
        "fc1_b": params["fc1_b"].reshape(1, 128).astype(jnp.float32),
        "fc2_w": fc2_w.astype(jnp.bfloat16),
        "fc2_b": fc2_b,
    }


# ---------------------------------------------------------------------------------------------
# Forward
# ---------------------------------------------------------------------------------------------

def net_forward(x_nchw, prep):
    B = x_nchw.shape[0]
    xf = x_nchw.reshape(B, IMG * IMG).astype(jnp.bfloat16)
    # conv1 "im2col" over 15 taps (3 row-shifts x 5 col-shifts) -> a few KiB per image.
    p1x = jnp.stack([xf[:, o:o + N_Y1C] for o in OFFS15], axis=-1)       # (B, 724, 15) bf16

    pooled = conv_pool(p1x, prep["w1c"], prep["b1c"], prep["w2"], prep["b2"])  # (B, 72, 128)
    flat = pooled.reshape(B, 72 * 128)   # contiguous NHWC flatten; fc1_w pre-permuted to match

    logp = fc_head(flat, prep["fc1_w"], prep["fc1_b"], prep["fc2_w"], prep["fc2_b"])
    return logp[:, :10]                  # drop the padded log-softmax lanes


# ---------------------------------------------------------------------------------------------
# Pure-JAX reference (f32) for correctness
# ---------------------------------------------------------------------------------------------

def net_reference(x, params):
    y = lax.conv_general_dilated(x, params["conv1_w"], (1, 1), "VALID",
                                 dimension_numbers=("NCHW", "OIHW", "NCHW"))
    y = jax.nn.relu(y + params["conv1_b"].reshape(1, -1, 1, 1))
    y = lax.conv_general_dilated(y, params["conv2_w"], (1, 1), "VALID",
                                 dimension_numbers=("NCHW", "OIHW", "NCHW"))
    y = jax.nn.relu(y + params["conv2_b"].reshape(1, -1, 1, 1))
    B, C, H, W = y.shape
    y = y.reshape(B, C, H // 2, 2, W // 2, 2).max(axis=(3, 5))
    y = y.reshape(B, -1)
    y = jax.nn.relu(y @ params["fc1_w"].T + params["fc1_b"])
    y = y @ params["fc2_w"].T + params["fc2_b"]
    return jax.nn.log_softmax(y, axis=-1)


if __name__ == "__main__":
    key = jax.random.PRNGKey(0)
    kx, kp = jax.random.split(key)
    # MNIST-shaped input: fc1's 9216 = 64 * 12 * 12 forces 1x28x28 spatial input.
    x = jax.random.normal(kx, (2, 1, 28, 28), jnp.float32)
    params = init_params(kp)
    prep = prepare_params(params)

    out = jax.jit(net_forward)(x, prep)
    out = jax.block_until_ready(out)

    assert out.shape == (2, 10)
    assert out.dtype == jnp.float32
    # log_softmax rows must sum to 1 in probability space
    assert bool(jnp.allclose(jnp.sum(jnp.exp(out), axis=1), 1.0, atol=1e-4))
    # parity with the f32 reference (loose tolerance for bf16 MXU operands)
    ref = net_reference(x, params)
    err = float(jnp.max(jnp.abs(out - ref)))
    assert bool(jnp.allclose(out, ref, atol=1e-1)), f"max abs err vs reference: {err}"
    print("KERNEL_OK")
</pallas_src>

<mosaic_0001>
module attributes {stable_mosaic.version = 11 : i64} {
  func.func @kernel(%arg0: i32, %arg1: memref<2x724x15xbf16, #tpu.memory_space<vmem>>, %arg2: memref<15x96xbf16, #tpu.memory_space<vmem>>, %arg3: memref<1x96xf32, #tpu.memory_space<vmem>>, %arg4: memref<3x96x64xbf16, #tpu.memory_space<vmem>>, %arg5: memref<1x128xf32, #tpu.memory_space<vmem>>, %arg6: memref<2x72x128xbf16, #tpu.memory_space<vmem>>, %arg7: memref<724x96xbf16, #tpu.memory_space<vmem>>, %arg8: memref<668x64xf32, #tpu.memory_space<vmem>>, %arg9: memref<639x64xf32, #tpu.memory_space<vmem>>) attributes {dimension_semantics = [#tpu.dimension_semantics<parallel>], iteration_bounds = array<i64: 1>, scalar_prefetch = 0 : i64, scratch_operands = 3 : i64, tpu.core_type = #tpu.core_type<tc>, window_params = [{transform_indices = @transform_0, window_bounds = array<i64: 2, 724, 15>}, {pipeline_mode = #tpu.pipeline_mode<synchronous>, transform_indices = @transform_1, window_bounds = array<i64: 15, 96>}, {pipeline_mode = #tpu.pipeline_mode<synchronous>, transform_indices = @transform_2, window_bounds = array<i64: 1, 96>}, {pipeline_mode = #tpu.pipeline_mode<synchronous>, transform_indices = @transform_3, window_bounds = array<i64: 3, 96, 64>}, {pipeline_mode = #tpu.pipeline_mode<synchronous>, transform_indices = @transform_4, window_bounds = array<i64: 1, 128>}, {transform_indices = @transform_5, window_bounds = array<i64: 2, 72, 128>}]} {
    %c0_i32 = arith.constant 0 : i32
    %c2_i32 = arith.constant 2 : i32
    %0 = arith.addi %c0_i32, %c2_i32 : i32
    %c1_i32 = arith.constant 1 : i32
    scf.for %arg10 = %c0_i32 to %0 step %c1_i32  : i32 {
      %1 = arith.index_cast %arg10 : i32 to index
      %c0 = arith.constant 0 : index
      %c0_1 = arith.constant 0 : index
      %2 = vector.load %arg1[%1, %c0, %c0_1] : memref<2x724x15xbf16, #tpu.memory_space<vmem>>, vector<1x724x15xbf16>
      %3 = vector.shape_cast %2 : vector<1x724x15xbf16> to vector<724x15xbf16>
      %c0_2 = arith.constant 0 : index
      %c0_3 = arith.constant 0 : index
      %4 = vector.load %arg2[%c0_2, %c0_3] : memref<15x96xbf16, #tpu.memory_space<vmem>>, vector<15x96xbf16>
      %cst = arith.constant dense<0.000000e+00> : vector<724x96xf32>
      %5 = tpu.matmul %3, %4, %cst {dimension_numbers = #tpu.dot_dimension_numbers<[1], [0], [0], [1], [0, 0, 1, 1], [], []>} : vector<724x15xbf16>, vector<15x96xbf16>, vector<724x96xf32> -> vector<724x96xf32>
      %c0_4 = arith.constant 0 : index
      %c0_5 = arith.constant 0 : index
      %6 = vector.load %arg3[%c0_4, %c0_5] : memref<1x96xf32, #tpu.memory_space<vmem>>, vector<1x96xf32>
      %7 = vector.broadcast %6 : vector<1x96xf32> to vector<724x96xf32>
      %8 = arith.addf %5, %7 : vector<724x96xf32>
      %cst_6 = arith.constant 0.000000e+00 : f32
      %9 = vector.broadcast %cst_6 : f32 to vector<724x96xf32>
      %10 = arith.maximumf %8, %9 : vector<724x96xf32>
      %11 = arith.truncf %10 : vector<724x96xf32> to vector<724x96xbf16>
      %c0_7 = arith.constant 0 : index
      %c0_8 = arith.constant 0 : index
      %12 = vector.load %arg7[%c0_7, %c0_8] : memref<724x96xbf16, #tpu.memory_space<vmem>>, vector<724x96xbf16>
      tpu.vector_store %arg7[%c0_7, %c0_8], %11 {strides = array<i32>} : memref<724x96xbf16, #tpu.memory_space<vmem>>, vector<724x96xbf16>,
      %c0_9 = arith.constant 0 : index
      %c0_10 = arith.constant 0 : index
      %13 = vector.load %arg7[%c0_9, %c0_10] : memref<724x96xbf16, #tpu.memory_space<vmem>>, vector<668x96xbf16>
      %c0_11 = arith.constant 0 : index
      %c0_12 = arith.constant 0 : index
      %c0_13 = arith.constant 0 : index
      %14 = vector.load %arg4[%c0_11, %c0_12, %c0_13] : memref<3x96x64xbf16, #tpu.memory_space<vmem>>, vector<1x96x64xbf16>
      %15 = vector.shape_cast %14 : vector<1x96x64xbf16> to vector<96x64xbf16>
      %cst_14 = arith.constant dense<0.000000e+00> : vector<668x64xf32>
      %16 = tpu.matmul %13, %15, %cst_14 {dimension_numbers = #tpu.dot_dimension_numbers<[1], [0], [0], [1], [0, 0, 1, 1], [], []>} : vector<668x96xbf16>, vector<96x64xbf16>, vector<668x64xf32> -> vector<668x64xf32>
      %c28 = arith.constant 28 : index
      %c0_15 = arith.constant 0 : index
      %17 = vector.load %arg7[%c28, %c0_15] : memref<724x96xbf16, #tpu.memory_space<vmem>>, vector<668x96xbf16>
      %c1 = arith.constant 1 : index
      %c0_16 = arith.constant 0 : index
      %c0_17 = arith.constant 0 : index
      %18 = vector.load %arg4[%c1, %c0_16, %c0_17] : memref<3x96x64xbf16, #tpu.memory_space<vmem>>, vector<1x96x64xbf16>
      %19 = vector.shape_cast %18 : vector<1x96x64xbf16> to vector<96x64xbf16>
      %cst_18 = arith.constant dense<0.000000e+00> : vector<668x64xf32>
      %20 = tpu.matmul %17, %19, %cst_18 {dimension_numbers = #tpu.dot_dimension_numbers<[1], [0], [0], [1], [0, 0, 1, 1], [], []>} : vector<668x96xbf16>, vector<96x64xbf16>, vector<668x64xf32> -> vector<668x64xf32>
      %21 = arith.addf %16, %20 : vector<668x64xf32>
      %c56 = arith.constant 56 : index
      %c0_19 = arith.constant 0 : index
      %22 = vector.load %arg7[%c56, %c0_19] : memref<724x96xbf16, #tpu.memory_space<vmem>>, vector<668x96xbf16>
      %c2 = arith.constant 2 : index
      %c0_20 = arith.constant 0 : index
      %c0_21 = arith.constant 0 : index
      %23 = vector.load %arg4[%c2, %c0_20, %c0_21] : memref<3x96x64xbf16, #tpu.memory_space<vmem>>, vector<1x96x64xbf16>
      %24 = vector.shape_cast %23 : vector<1x96x64xbf16> to vector<96x64xbf16>
      %cst_22 = arith.constant dense<0.000000e+00> : vector<668x64xf32>
      %25 = tpu.matmul %22, %24, %cst_22 {dimension_numbers = #tpu.dot_dimension_numbers<[1], [0], [0], [1], [0, 0, 1, 1], [], []>} : vector<668x96xbf16>, vector<96x64xbf16>, vector<668x64xf32> -> vector<668x64xf32>
      %26 = arith.addf %21, %25 : vector<668x64xf32>
      %c0_23 = arith.constant 0 : index
      %c0_24 = arith.constant 0 : index
      %27 = vector.load %arg8[%c0_23, %c0_24] : memref<668x64xf32, #tpu.memory_space<vmem>>, vector<668x64xf32>
      tpu.vector_store %arg8[%c0_23, %c0_24], %26 {strides = array<i32>} : memref<668x64xf32, #tpu.memory_space<vmem>>, vector<668x64xf32>,
      %c0_25 = arith.constant 0 : index
      %c0_26 = arith.constant 0 : index
      %28 = vector.load %arg8[%c0_25, %c0_26] : memref<668x64xf32, #tpu.memory_space<vmem>>, vector<639x64xf32>
      %c1_27 = arith.constant 1 : index
      %c0_28 = arith.constant 0 : index
      %29 = vector.load %arg8[%c1_27, %c0_28] : memref<668x64xf32, #tpu.memory_space<vmem>>, vector<639x64xf32>
      %30 = arith.maximumf %28, %29 : vector<639x64xf32>
      %c28_29 = arith.constant 28 : index
      %c0_30 = arith.constant 0 : index
      %31 = vector.load %arg8[%c28_29, %c0_30] : memref<668x64xf32, #tpu.memory_space<vmem>>, vector<639x64xf32>
      %c29 = arith.constant 29 : index
      %c0_31 = arith.constant 0 : index
      %32 = vector.load %arg8[%c29, %c0_31] : memref<668x64xf32, #tpu.memory_space<vmem>>, vector<639x64xf32>
      %33 = arith.maximumf %31, %32 : vector<639x64xf32>
      %34 = arith.maximumf %30, %33 : vector<639x64xf32>
      %c0_32 = arith.constant 0 : index
      %c0_33 = arith.constant 0 : index
      %35 = vector.load %arg9[%c0_32, %c0_33] : memref<639x64xf32, #tpu.memory_space<vmem>>, vector<639x64xf32>
      tpu.vector_store %arg9[%c0_32, %c0_33], %34 {strides = array<i32>} : memref<639x64xf32, #tpu.memory_space<vmem>>, vector<639x64xf32>,
      %c0_34 = arith.constant 0 : index
      %c0_35 = arith.constant 0 : index
      %36 = tpu.strided_load %arg9[%c0_34, %c0_35] {strides = array<i32: 4, 1>} : memref<639x64xf32, #tpu.memory_space<vmem>>, vector<6x64xf32>
      %c56_36 = arith.constant 56 : index
      %c0_37 = arith.constant 0 : index
      %37 = tpu.strided_load %arg9[%c56_36, %c0_37] {strides = array<i32: 4, 1>} : memref<639x64xf32, #tpu.memory_space<vmem>>, vector<6x64xf32>
      %c112 = arith.constant 112 : index
      %c0_38 = arith.constant 0 : index
      %38 = tpu.strided_load %arg9[%c112, %c0_38] {strides = array<i32: 4, 1>} : memref<639x64xf32, #tpu.memory_space<vmem>>, vector<6x64xf32>
      %c168 = arith.constant 168 : index
      %c0_39 = arith.constant 0 : index
      %39 = tpu.strided_load %arg9[%c168, %c0_39] {strides = array<i32: 4, 1>} : memref<639x64xf32, #tpu.memory_space<vmem>>, vector<6x64xf32>
      %c224 = arith.constant 224 : index
      %c0_40 = arith.constant 0 : index
      %40 = tpu.strided_load %arg9[%c224, %c0_40] {strides = array<i32: 4, 1>} : memref<639x64xf32, #tpu.memory_space<vmem>>, vector<6x64xf32>
      %c280 = arith.constant 280 : index
      %c0_41 = arith.constant 0 : index
      %41 = tpu.strided_load %arg9[%c280, %c0_41] {strides = array<i32: 4, 1>} : memref<639x64xf32, #tpu.memory_space<vmem>>, vector<6x64xf32>
      %c336 = arith.constant 336 : index
      %c0_42 = arith.constant 0 : index
      %42 = tpu.strided_load %arg9[%c336, %c0_42] {strides = array<i32: 4, 1>} : memref<639x64xf32, #tpu.memory_space<vmem>>, vector<6x64xf32>
      %c392 = arith.constant 392 : index
      %c0_43 = arith.constant 0 : index
      %43 = tpu.strided_load %arg9[%c392, %c0_43] {strides = array<i32: 4, 1>} : memref<639x64xf32, #tpu.memory_space<vmem>>, vector<6x64xf32>
      %c448 = arith.constant 448 : index
      %c0_44 = arith.constant 0 : index
      %44 = tpu.strided_load %arg9[%c448, %c0_44] {strides = array<i32: 4, 1>} : memref<639x64xf32, #tpu.memory_space<vmem>>, vector<6x64xf32>
      %c504 = arith.constant 504 : index
      %c0_45 = arith.constant 0 : index
      %45 = tpu.strided_load %arg9[%c504, %c0_45] {strides = array<i32: 4, 1>} : memref<639x64xf32, #tpu.memory_space<vmem>>, vector<6x64xf32>
      %c560 = arith.constant 560 : index
      %c0_46 = arith.constant 0 : index
      %46 = tpu.strided_load %arg9[%c560, %c0_46] {strides = array<i32: 4, 1>} : memref<639x64xf32, #tpu.memory_space<vmem>>, vector<6x64xf32>
      %c616 = arith.constant 616 : index
      %c0_47 = arith.constant 0 : index
      %47 = tpu.strided_load %arg9[%c616, %c0_47] {strides = array<i32: 4, 1>} : memref<639x64xf32, #tpu.memory_space<vmem>>, vector<6x64xf32>
      %48 = tpu.concatenate %36, %37, %38, %39, %40, %41, %42, %43, %44, %45, %46, %47 in 0 : vector<6x64xf32>, vector<6x64xf32>, vector<6x64xf32>, vector<6x64xf32>, vector<6x64xf32>, vector<6x64xf32>, vector<6x64xf32>, vector<6x64xf32>, vector<6x64xf32>, vector<6x64xf32>, vector<6x64xf32>, vector<6x64xf32> -> vector<72x64xf32>
      %c2_48 = arith.constant 2 : index
      %c0_49 = arith.constant 0 : index
      %49 = tpu.strided_load %arg9[%c2_48, %c0_49] {strides = array<i32: 4, 1>} : memref<639x64xf32, #tpu.memory_space<vmem>>, vector<6x64xf32>
      %c58 = arith.constant 58 : index
      %c0_50 = arith.constant 0 : index
      %50 = tpu.strided_load %arg9[%c58, %c0_50] {strides = array<i32: 4, 1>} : memref<639x64xf32, #tpu.memory_space<vmem>>, vector<6x64xf32>
      %c114 = arith.constant 114 : index
      %c0_51 = arith.constant 0 : index
      %51 = tpu.strided_load %arg9[%c114, %c0_51] {strides = array<i32: 4, 1>} : memref<639x64xf32, #tpu.memory_space<vmem>>, vector<6x64xf32>
      %c170 = arith.constant 170 : index
      %c0_52 = arith.constant 0 : index
      %52 = tpu.strided_load %arg9[%c170, %c0_52] {strides = array<i32: 4, 1>} : memref<639x64xf32, #tpu.memory_space<vmem>>, vector<6x64xf32>
      %c226 = arith.constant 226 : index
      %c0_53 = arith.constant 0 : index
      %53 = tpu.strided_load %arg9[%c226, %c0_53] {strides = array<i32: 4, 1>} : memref<639x64xf32, #tpu.memory_space<vmem>>, vector<6x64xf32>
      %c282 = arith.constant 282 : index
      %c0_54 = arith.constant 0 : index
      %54 = tpu.strided_load %arg9[%c282, %c0_54] {strides = array<i32: 4, 1>} : memref<639x64xf32, #tpu.memory_space<vmem>>, vector<6x64xf32>
      %c338 = arith.constant 338 : index
      %c0_55 = arith.constant 0 : index
      %55 = tpu.strided_load %arg9[%c338, %c0_55] {strides = array<i32: 4, 1>} : memref<639x64xf32, #tpu.memory_space<vmem>>, vector<6x64xf32>
      %c394 = arith.constant 394 : index
      %c0_56 = arith.constant 0 : index
      %56 = tpu.strided_load %arg9[%c394, %c0_56] {strides = array<i32: 4, 1>} : memref<639x64xf32, #tpu.memory_space<vmem>>, vector<6x64xf32>
      %c450 = arith.constant 450 : index
      %c0_57 = arith.constant 0 : index
      %57 = tpu.strided_load %arg9[%c450, %c0_57] {strides = array<i32: 4, 1>} : memref<639x64xf32, #tpu.memory_space<vmem>>, vector<6x64xf32>
      %c506 = arith.constant 506 : index
      %c0_58 = arith.constant 0 : index
      %58 = tpu.strided_load %arg9[%c506, %c0_58] {strides = array<i32: 4, 1>} : memref<639x64xf32, #tpu.memory_space<vmem>>, vector<6x64xf32>
      %c562 = arith.constant 562 : index
      %c0_59 = arith.constant 0 : index
      %59 = tpu.strided_load %arg9[%c562, %c0_59] {strides = array<i32: 4, 1>} : memref<639x64xf32, #tpu.memory_space<vmem>>, vector<6x64xf32>
      %c618 = arith.constant 618 : index
      %c0_60 = arith.constant 0 : index
      %60 = tpu.strided_load %arg9[%c618, %c0_60] {strides = array<i32: 4, 1>} : memref<639x64xf32, #tpu.memory_space<vmem>>, vector<6x64xf32>
      %61 = tpu.concatenate %49, %50, %51, %52, %53, %54, %55, %56, %57, %58, %59, %60 in 0 : vector<6x64xf32>, vector<6x64xf32>, vector<6x64xf32>, vector<6x64xf32>, vector<6x64xf32>, vector<6x64xf32>, vector<6x64xf32>, vector<6x64xf32>, vector<6x64xf32>, vector<6x64xf32>, vector<6x64xf32>, vector<6x64xf32> -> vector<72x64xf32>
      %62 = tpu.concatenate %48, %61 in 1 : vector<72x64xf32>, vector<72x64xf32> -> vector<72x128xf32>
      %c0_61 = arith.constant 0 : index
      %c0_62 = arith.constant 0 : index
      %63 = vector.load %arg5[%c0_61, %c0_62] : memref<1x128xf32, #tpu.memory_space<vmem>>, vector<1x128xf32>
      %64 = vector.broadcast %63 : vector<1x128xf32> to vector<72x128xf32>
      %65 = arith.addf %62, %64 : vector<72x128xf32>
      %cst_63 = arith.constant 0.000000e+00 : f32
      %66 = vector.broadcast %cst_63 : f32 to vector<72x128xf32>
      %67 = arith.maximumf %65, %66 : vector<72x128xf32>
      %68 = arith.truncf %67 : vector<72x128xf32> to vector<72x128xbf16>
      %69 = arith.index_cast %arg10 : i32 to index
      %c0_64 = arith.constant 0 : index
      %c0_65 = arith.constant 0 : index
      %70 = vector.load %arg6[%69, %c0_64, %c0_65] : memref<2x72x128xbf16, #tpu.memory_space<vmem>>, vector<1x72x128xbf16>
      %71 = vector.shape_cast %70 : vector<1x72x128xbf16> to vector<72x128xbf16>
      %72 = vector.shape_cast %68 : vector<72x128xbf16> to vector<1x72x128xbf16>
      tpu.vector_store %arg6[%69, %c0_64, %c0_65], %72 {strides = array<i32>} : memref<2x72x128xbf16, #tpu.memory_space<vmem>>, vector<1x72x128xbf16>,
    }
    %c2_i32_0 = arith.constant 2 : i32
    return
  }
  func.func @transform_0(%arg0: i32) -> (i32, i32, i32) {
    %c0_i32 = arith.constant 0 : i32
    %c0_i32_0 = arith.constant 0 : i32
    %c0_i32_1 = arith.constant 0 : i32
    return %arg0, %c0_i32, %c0_i32_0 : i32, i32, i32
  }
  func.func @transform_1(%arg0: i32) -> (i32, i32) {
    %c0_i32 = arith.constant 0 : i32
    %c0_i32_0 = arith.constant 0 : i32
    %c0_i32_1 = arith.constant 0 : i32
    return %c0_i32, %c0_i32_0 : i32, i32
  }
  func.func @transform_2(%arg0: i32) -> (i32, i32) {
    %c0_i32 = arith.constant 0 : i32
    %c0_i32_0 = arith.constant 0 : i32
    %c0_i32_1 = arith.constant 0 : i32
    return %c0_i32, %c0_i32_0 : i32, i32
  }
  func.func @transform_3(%arg0: i32) -> (i32, i32, i32) {
    %c0_i32 = arith.constant 0 : i32
    %c0_i32_0 = arith.constant 0 : i32
    %c0_i32_1 = arith.constant 0 : i32
    %c0_i32_2 = arith.constant 0 : i32
    return %c0_i32, %c0_i32_0, %c0_i32_1 : i32, i32, i32
  }
  func.func @transform_4(%arg0: i32) -> (i32, i32) {
    %c0_i32 = arith.constant 0 : i32
    %c0_i32_0 = arith.constant 0 : i32
    %c0_i32_1 = arith.constant 0 : i32
    return %c0_i32, %c0_i32_0 : i32, i32
  }
  func.func @transform_5(%arg0: i32) -> (i32, i32, i32) {
    %c0_i32 = arith.constant 0 : i32
    %c0_i32_0 = arith.constant 0 : i32
    %c0_i32_1 = arith.constant 0 : i32
    return %arg0, %c0_i32, %c0_i32_0 : i32, i32, i32
  }
}

module attributes {stable_mosaic.version = 11 : i64} {
  func.func @_fc_head_kernel(%arg0: i32, %arg1: memref<2x9216xbf16, #tpu.memory_space<vmem>>, %arg2: memref<9216x128xbf16, #tpu.memory_space<vmem>>, %arg3: memref<1x128xf32, #tpu.memory_space<vmem>>, %arg4: memref<128x128xbf16, #tpu.memory_space<vmem>>, %arg5: memref<1x128xf32, #tpu.memory_space<vmem>>, %arg6: memref<2x128xf32, #tpu.memory_space<vmem>>) attributes {dimension_semantics = [#tpu.dimension_semantics<parallel>], iteration_bounds = array<i64: 1>, scalar_prefetch = 0 : i64, scratch_operands = 0 : i64, tpu.core_type = #tpu.core_type<tc>, window_params = [{transform_indices = @transform_0, window_bounds = array<i64: 2, 9216>}, {pipeline_mode = #tpu.pipeline_mode<synchronous>, transform_indices = @transform_1, window_bounds = array<i64: 9216, 128>}, {pipeline_mode = #tpu.pipeline_mode<synchronous>, transform_indices = @transform_2, window_bounds = array<i64: 1, 128>}, {pipeline_mode = #tpu.pipeline_mode<synchronous>, transform_indices = @transform_3, window_bounds = array<i64: 128, 128>}, {pipeline_mode = #tpu.pipeline_mode<synchronous>, transform_indices = @transform_4, window_bounds = array<i64: 1, 128>}, {transform_indices = @transform_5, window_bounds = array<i64: 2, 128>}]} {
    %c0 = arith.constant 0 : index
    %c0_0 = arith.constant 0 : index
    %0 = vector.load %arg1[%c0, %c0_0] : memref<2x9216xbf16, #tpu.memory_space<vmem>>, vector<2x9216xbf16>
    %c0_1 = arith.constant 0 : index
    %c0_2 = arith.constant 0 : index
    %1 = vector.load %arg2[%c0_1, %c0_2] : memref<9216x128xbf16, #tpu.memory_space<vmem>>, vector<9216x128xbf16>
    %cst = arith.constant dense<0.000000e+00> : vector<2x128xf32>
    %2 = tpu.matmul %0, %1, %cst {dimension_numbers = #tpu.dot_dimension_numbers<[1], [0], [0], [1], [0, 0, 1, 1], [], []>} : vector<2x9216xbf16>, vector<9216x128xbf16>, vector<2x128xf32> -> vector<2x128xf32>
    %c0_3 = arith.constant 0 : index
    %c0_4 = arith.constant 0 : index
    %3 = vector.load %arg3[%c0_3, %c0_4] : memref<1x128xf32, #tpu.memory_space<vmem>>, vector<1x128xf32>
    %4 = vector.broadcast %3 : vector<1x128xf32> to vector<2x128xf32>
    %5 = arith.addf %2, %4 : vector<2x128xf32>
    %cst_5 = arith.constant 0.000000e+00 : f32
    %6 = vector.broadcast %cst_5 : f32 to vector<2x128xf32>
    %7 = arith.maximumf %5, %6 : vector<2x128xf32>
    %8 = arith.truncf %7 : vector<2x128xf32> to vector<2x128xbf16>
    %c0_6 = arith.constant 0 : index
    %c0_7 = arith.constant 0 : index
    %9 = vector.load %arg4[%c0_6, %c0_7] : memref<128x128xbf16, #tpu.memory_space<vmem>>, vector<128x128xbf16>
    %cst_8 = arith.constant dense<0.000000e+00> : vector<2x128xf32>
    %10 = tpu.matmul %8, %9, %cst_8 {dimension_numbers = #tpu.dot_dimension_numbers<[1], [0], [0], [1], [0, 0, 1, 1], [], []>} : vector<2x128xbf16>, vector<128x128xbf16>, vector<2x128xf32> -> vector<2x128xf32>
    %c0_9 = arith.constant 0 : index
    %c0_10 = arith.constant 0 : index
    %11 = vector.load %arg5[%c0_9, %c0_10] : memref<1x128xf32, #tpu.memory_space<vmem>>, vector<1x128xf32>
    %12 = vector.broadcast %11 : vector<1x128xf32> to vector<2x128xf32>
    %13 = arith.addf %10, %12 : vector<2x128xf32>
    %cst_11 = arith.constant dense<0xFF800000> : vector<2xf32>
    %14 = vector.multi_reduction <maximumf>, %13, %cst_11 [1] : vector<2x128xf32> to vector<2xf32>
    %15 = vector.shape_cast %14 : vector<2xf32> to vector<2x1xf32>
    %16 = vector.broadcast %15 : vector<2x1xf32> to vector<2x128xf32>
    %17 = arith.subf %13, %16 : vector<2x128xf32>
    %18 = math.exp %17 : vector<2x128xf32>
    %cst_12 = arith.constant dense<0.000000e+00> : vector<2xf32>
    %19 = vector.multi_reduction <add>, %18, %cst_12 [1] : vector<2x128xf32> to vector<2xf32>
    %20 = vector.shape_cast %19 : vector<2xf32> to vector<2x1xf32>
    %21 = math.log %20 : vector<2x1xf32>
    %22 = vector.broadcast %21 : vector<2x1xf32> to vector<2x128xf32>
    %23 = arith.subf %17, %22 : vector<2x128xf32>
    %c0_13 = arith.constant 0 : index
    %c0_14 = arith.constant 0 : index
    %24 = vector.load %arg6[%c0_13, %c0_14] : memref<2x128xf32, #tpu.memory_space<vmem>>, vector<2x128xf32>
    tpu.vector_store %arg6[%c0_13, %c0_14], %23 {strides = array<i32>} : memref<2x128xf32, #tpu.memory_space<vmem>>, vector<2x128xf32>,
    return
  }
  func.func @transform_0(%arg0: i32) -> (i32, i32) {
    %c0_i32 = arith.constant 0 : i32
    %c0_i32_0 = arith.constant 0 : i32
    return %arg0, %c0_i32 : i32, i32
  }
  func.func @transform_1(%arg0: i32) -> (i32, i32) {
    %c0_i32 = arith.constant 0 : i32
    %c0_i32_0 = arith.constant 0 : i32
    %c0_i32_1 = arith.constant 0 : i32
    return %c0_i32, %c0_i32_0 : i32, i32
  }
  func.func @transform_2(%arg0: i32) -> (i32, i32) {
    %c0_i32 = arith.constant 0 : i32
    %c0_i32_0 = arith.constant 0 : i32
    %c0_i32_1 = arith.constant 0 : i32
    return %c0_i32, %c0_i32_0 : i32, i32
  }
  func.func @transform_3(%arg0: i32) -> (i32, i32) {
    %c0_i32 = arith.constant 0 : i32
    %c0_i32_0 = arith.constant 0 : i32
    %c0_i32_1 = arith.constant 0 : i32
    return %c0_i32, %c0_i32_0 : i32, i32
  }
  func.func @transform_4(%arg0: i32) -> (i32, i32) {
    %c0_i32 = arith.constant 0 : i32
    %c0_i32_0 = arith.constant 0 : i32
    %c0_i32_1 = arith.constant 0 : i32
    return %c0_i32, %c0_i32_0 : i32, i32
  }
  func.func @transform_5(%arg0: i32) -> (i32, i32) {
    %c0_i32 = arith.constant 0 : i32
    %c0_i32_0 = arith.constant 0 : i32
    return %arg0, %c0_i32 : i32, i32
  }
}

</mosaic_0001>

<llo_original>
// kernel: net_forward.2
$region0: #{net_forward.2}
  #allocation0 [shape = 'u32[]', space=smem, size = 0x4, offset = 0x4, fixed_abs, tag = 'smem constant byte address 0x4 - core index']
  #allocation1 [shape = 'u32[144,128]{1,0:T(1,128)}', space=vmem, size = 0x12000, scoped, tag = 'internal scratch']
  #allocation2 [shape = 'bf16[724,96]{1,0:T(8,128)(2,1)}', space=vmem, size = 0x2d800, scoped, tag = 'scratch operand']
  #allocation3 [shape = 'f32[668,64]{1,0:T(8,128)}', space=vmem, size = 0x54000, scoped, tag = 'scratch operand']
  #allocation4 [shape = 'f32[639,64]{1,0:T(8,128)}', space=vmem, size = 0x50000, scoped, tag = 'scratch operand']
  %s0 = inlined_call_operand.vmem [shape: bf16[2,724,15], index: 0, kind: input, shape index: {}]
  %s1 = inlined_call_operand.hbm [shape: bf16[15,96], index: 1, kind: input, shape index: {}]
  %s2 = inlined_call_operand.hbm [shape: f32[1,96], index: 2, kind: input, shape index: {}]
  %s3 = inlined_call_operand.vmem [shape: bf16[3,96,64], index: 3, kind: input, shape index: {}]
  %s4 = inlined_call_operand.hbm [shape: f32[1,128], index: 4, kind: input, shape index: {}]
  %s5 = inlined_call_operand.vmem [shape: bf16[2,72,128], index: 5, kind: output, shape index: {}]
  %s6 = sld [smem:[#allocation0]]
  $region49: #{net_forward.2} parent=0
    _
  %s8 = ssub.s32 1, %s6
  %s9 = scalar_select 0, %s8, %s6
  $region1: #{net_forward.2} parent=0
    #allocation5 [shape = 'u8[4096]{0}', space=vmem, size = 0x1000, scoped, tag = 'input window, operand 1, single buffered']
    #allocation6 [shape = 's32[1]{0}', space=sflag, size = 0x4, scoped, tag = 'scoped memory for net_forward.2']
    #allocation7 [shape = 'u8[512]{0}', space=vmem, size = 0x400, scoped, tag = 'input window, operand 2, single buffered']
    #allocation8 [shape = 's32[1]{0}', space=sflag, size = 0x4, scoped, tag = 'scoped memory for net_forward.2']
    #allocation9 [shape = 'u8[512]{0}', space=vmem, size = 0x400, scoped, tag = 'input window, operand 4, single buffered']
    %10 = vsyncpa [#allocation6], 0
    %11 = vsyncpa [#allocation8], 0
    // Predicated region
    $region2: #{net_forward.2} parent=1 // pred_check
      _
    $region3: #{net_forward.2} parent=1 // pred_check_branch
      %13 = sbr.rel (0) target = $region5
    $region4: #{net_forward.2} parent=1 // pred_region
      _
    $region5: #{net_forward.2} parent=1 // pred_fallthru
      _
    // Predicated region
    $region6: #{net_forward.2} parent=1 // pred_check
      _
    $region7: #{net_forward.2} parent=1 // pred_check_branch
      %15 = sbr.rel (0) target = $region9
    $region8: #{net_forward.2} parent=1 // pred_region
      %s17 = ssub.s32 128, 128
      %18 = vsyncadd [#allocation6], %s17
      %s19 = sshll.u32 [#allocation5], 4
      %s20 = int_to_ptr.vmem [resolvable:$true] %s19
      %25 = dma.hbm_to_vmem [thread:$0]  %s1, 128, %s20, [#allocation6], 64, 64, 4
    $region9: #{net_forward.2} parent=1 // pred_fallthru
      _
    // Predicated region
    $region10: #{net_forward.2} parent=1 // pred_check
      _
    $region11: #{net_forward.2} parent=1 // pred_check_branch
      %27 = sbr.rel (0) target = $region13
    $region12: #{net_forward.2} parent=1 // pred_region
      %s29 = ssub.s32 16, 16
      %30 = vsyncadd [#allocation8], %s29
      %s32 = sshll.u32 [#allocation7], 4
      %s33 = int_to_ptr.vmem [resolvable:$true] %s32
      %35 = dma.hbm_to_vmem [thread:$0]  %s2, 16, %s33, [#allocation8]
    $region13: #{net_forward.2} parent=1 // pred_fallthru
      _
    // Predicated region
    $region14: #{net_forward.2} parent=1 // pred_check
      _
    $region15: #{net_forward.2} parent=1 // pred_check_branch
      %37 = sbr.rel (0) target = $region17
    $region16: #{net_forward.2} parent=1 // pred_region
      _
    $region17: #{net_forward.2} parent=1 // pred_fallthru
      _
    // Predicated region
    $region18: #{net_forward.2} parent=1 // pred_check
      _
    $region19: #{net_forward.2} parent=1 // pred_check_branch
      %39 = sbr.rel (0) target = $region21
    $region20: #{net_forward.2} parent=1 // pred_region
      %s41 = ssub.s32 16, 16
      %42 = vsyncadd [#allocation8], %s41
      %s44 = sshll.u32 [#allocation9], 4
      %s45 = int_to_ptr.vmem [resolvable:$true] %s44
      %47 = dma.hbm_to_vmem [thread:$0]  %s4, 16, %s45, [#allocation8]
    $region21: #{net_forward.2} parent=1 // pred_fallthru
      _
    // Predicated region
    $region22: #{net_forward.2} parent=1 // pred_check
      _
    $region23: #{net_forward.2} parent=1 // pred_check_branch
      %49 = sbr.rel (0) target = $region25
    $region24: #{net_forward.2} parent=1 // pred_region
      %50 = dma.done [#allocation6], 128
    $region25: #{net_forward.2} parent=1 // pred_fallthru
      _
    // Predicated region
    $region26: #{net_forward.2} parent=1 // pred_check
      _
    $region27: #{net_forward.2} parent=1 // pred_check_branch
      %52 = sbr.rel (0) target = $region29
    $region28: #{net_forward.2} parent=1 // pred_region
      %53 = dma.done [#allocation8], 16
    $region29: #{net_forward.2} parent=1 // pred_fallthru
      _
    // Predicated region
    $region30: #{net_forward.2} parent=1 // pred_check
      _
    $region31: #{net_forward.2} parent=1 // pred_check_branch
      %55 = sbr.rel (0) target = $region33
    $region32: #{net_forward.2} parent=1 // pred_region
      %56 = dma.done [#allocation8], 16
    $region33: #{net_forward.2} parent=1 // pred_fallthru
      _
    loop: start=0, step=1, limit=2
    $region34: #{net_forward.2} parent=1 // loop_pre_header
      _
    $region35: #{net_forward.2} parent=1 // loop_header
      %s59 = sphi 0, %s63
      %p60 = scmp.ge.s32.totalorder %s59, 2
    $region36: #{net_forward.2} parent=1 // loop_header_branch
      %62 = sbr.rel (%p60) target = $region40
    $region37: #{net_forward.2} parent=1 // loop_body
      %s64 = smul.u32 %s59, 91
      %s65 = smul.addr %s64, 4
      %s66 = scalar_lea.vmem %s0, %s65
      %v67 = vld [vmem:[%s66] sm:$0xf]
      %v68 = vld [vmem:[%s66 + $0x4] sm:$0xf]
      %v69 = vld [vmem:[%s66 + $0x8] sm:$0xf]
      %v70 = vld [vmem:[%s66 + $0xc] sm:$0xf]
      %v71 = vld [vmem:[%s66 + $0x10] sm:$0xf]
      %v72 = vld [vmem:[%s66 + $0x14] sm:$0xf]
      %v73 = vld [vmem:[%s66 + $0x18] sm:$0xf]
      %v74 = vld [vmem:[%s66 + $0x1c] sm:$0xf]
      %v75 = vld [vmem:[%s66 + $0x20] sm:$0xf]
      %v76 = vld [vmem:[%s66 + $0x24] sm:$0xf]
      %v77 = vld [vmem:[%s66 + $0x28] sm:$0xf]
      %v78 = vld [vmem:[%s66 + $0x2c] sm:$0xf]
      %v79 = vld [vmem:[%s66 + $0x30] sm:$0xf]
      %v80 = vld [vmem:[%s66 + $0x34] sm:$0xf]
      %v81 = vld [vmem:[%s66 + $0x38] sm:$0xf]
      %v82 = vld [vmem:[%s66 + $0x3c] sm:$0xf]
      %v83 = vld [vmem:[%s66 + $0x40] sm:$0xf]
      %v84 = vld [vmem:[%s66 + $0x44] sm:$0xf]
      %v85 = vld [vmem:[%s66 + $0x48] sm:$0xf]
      %v86 = vld [vmem:[%s66 + $0x4c] sm:$0xf]
      %v87 = vld [vmem:[%s66 + $0x50] sm:$0xf]
      %v88 = vld [vmem:[%s66 + $0x54] sm:$0xf]
      %v89 = vld [vmem:[%s66 + $0x58] sm:$0xf]
      %v90 = vld [vmem:[%s66 + $0x5c] sm:$0xf]
      %v91 = vld [vmem:[%s66 + $0x60] sm:$0xf]
      %v92 = vld [vmem:[%s66 + $0x64] sm:$0xf]
      %v93 = vld [vmem:[%s66 + $0x68] sm:$0xf]
      %v94 = vld [vmem:[%s66 + $0x6c] sm:$0xf]
      %v95 = vld [vmem:[%s66 + $0x70] sm:$0xf]
      %v96 = vld [vmem:[%s66 + $0x74] sm:$0xf]
      %v97 = vld [vmem:[%s66 + $0x78] sm:$0xf]
      %v98 = vld [vmem:[%s66 + $0x7c] sm:$0xf]
      %v99 = vld [vmem:[%s66 + $0x80] sm:$0xf]
      %v100 = vld [vmem:[%s66 + $0x84] sm:$0xf]
      %v101 = vld [vmem:[%s66 + $0x88] sm:$0xf]
      %v102 = vld [vmem:[%s66 + $0x8c] sm:$0xf]
      %v103 = vld [vmem:[%s66 + $0x90] sm:$0xf]
      %v104 = vld [vmem:[%s66 + $0x94] sm:$0xf]
      %v105 = vld [vmem:[%s66 + $0x98] sm:$0xf]
      %v106 = vld [vmem:[%s66 + $0x9c] sm:$0xf]
      %v107 = vld [vmem:[%s66 + $0xa0] sm:$0xf]
      %v108 = vld [vmem:[%s66 + $0xa4] sm:$0xf]
      %v109 = vld [vmem:[%s66 + $0xa8] sm:$0xf]
      %v110 = vld [vmem:[%s66 + $0xac] sm:$0xf]
      %v111 = vld [vmem:[%s66 + $0xb0] sm:$0xf]
      %v112 = vld [vmem:[%s66 + $0xb4] sm:$0xf]
      %v113 = vld [vmem:[%s66 + $0xb8] sm:$0xf]
      %v114 = vld [vmem:[%s66 + $0xbc] sm:$0xf]
      %v115 = vld [vmem:[%s66 + $0xc0] sm:$0xf]
      %v116 = vld [vmem:[%s66 + $0xc4] sm:$0xf]
      %v117 = vld [vmem:[%s66 + $0xc8] sm:$0xf]
      %v118 = vld [vmem:[%s66 + $0xcc] sm:$0xf]
      %v119 = vld [vmem:[%s66 + $0xd0] sm:$0xf]
      %v120 = vld [vmem:[%s66 + $0xd4] sm:$0xf]
      %v121 = vld [vmem:[%s66 + $0xd8] sm:$0xf]
      %v122 = vld [vmem:[%s66 + $0xdc] sm:$0xf]
      %v123 = vld [vmem:[%s66 + $0xe0] sm:$0xf]
      %v124 = vld [vmem:[%s66 + $0xe4] sm:$0xf]
      %v125 = vld [vmem:[%s66 + $0xe8] sm:$0xf]
      %v126 = vld [vmem:[%s66 + $0xec] sm:$0xf]
      %v127 = vld [vmem:[%s66 + $0xf0] sm:$0xf]
      %v128 = vld [vmem:[%s66 + $0xf4] sm:$0xf]
      %v129 = vld [vmem:[%s66 + $0xf8] sm:$0xf]
      %v130 = vld [vmem:[%s66 + $0xfc] sm:$0xf]
      %v131 = vld [vmem:[%s66 + $0x100] sm:$0xf]
      %v132 = vld [vmem:[%s66 + $0x104] sm:$0xf]
      %v133 = vld [vmem:[%s66 + $0x108] sm:$0xf]
      %v134 = vld [vmem:[%s66 + $0x10c] sm:$0xf]
      %v135 = vld [vmem:[%s66 + $0x110] sm:$0xf]
      %v136 = vld [vmem:[%s66 + $0x114] sm:$0xf]
      %v137 = vld [vmem:[%s66 + $0x118] sm:$0xf]
      %v138 = vld [vmem:[%s66 + $0x11c] sm:$0xf]
      %v139 = vld [vmem:[%s66 + $0x120] sm:$0xf]
      %v140 = vld [vmem:[%s66 + $0x124] sm:$0xf]
      %v141 = vld [vmem:[%s66 + $0x128] sm:$0xf]
      %v142 = vld [vmem:[%s66 + $0x12c] sm:$0xf]
      %v143 = vld [vmem:[%s66 + $0x130] sm:$0xf]
      %v144 = vld [vmem:[%s66 + $0x134] sm:$0xf]
      %v145 = vld [vmem:[%s66 + $0x138] sm:$0xf]
      %v146 = vld [vmem:[%s66 + $0x13c] sm:$0xf]
      %v147 = vld [vmem:[%s66 + $0x140] sm:$0xf]
      %v148 = vld [vmem:[%s66 + $0x144] sm:$0xf]
      %v149 = vld [vmem:[%s66 + $0x148] sm:$0xf]
      %v150 = vld [vmem:[%s66 + $0x14c] sm:$0xf]
      %v151 = vld [vmem:[%s66 + $0x150] sm:$0xf]
      %v152 = vld [vmem:[%s66 + $0x154] sm:$0xf]
      %v153 = vld [vmem:[%s66 + $0x158] sm:$0xf]
      %v154 = vld [vmem:[%s66 + $0x15c] sm:$0xf]
      %v155 = vld [vmem:[%s66 + $0x160] sm:$0xf]
      %v156 = vld [vmem:[%s66 + $0x164] sm:$0xf]
      %v157 = vld [vmem:[%s66 + $0x168] sm:$0x3]
      %v158 = vld [vmem:[#allocation5] sm:$0xf]
      %v159 = vld [vmem:[#allocation5 + $0x4] sm:$0xf]
      %v160 = vld [vmem:[#allocation7] sm:$0x1]
      %v162 = vlaneseq
      %v163 = vshrl.u32 %v162, 7
      %v164 = vsub.s32 0, %v163
      %v165 = vrot.slane %v160, %v164
      %v258 = vunpack.c.l.b16 %v67
      %v259 = vunpack.c.l.b16 %v68
      %v260 = vunpack.c.l.b16 %v69
      %v261 = vunpack.c.l.b16 %v70
      %v262 = vunpack.c.l.b16 %v71
      %v263 = vunpack.c.l.b16 %v72
      %v264 = vunpack.c.l.b16 %v73
      %v265 = vunpack.c.l.b16 %v74
      %v266 = vunpack.c.l.b16 %v75
      %v267 = vunpack.c.l.b16 %v76
      %v268 = vunpack.c.l.b16 %v77
      %v269 = vunpack.c.l.b16 %v78
      %v270 = vunpack.c.l.b16 %v79
      %v271 = vunpack.c.l.b16 %v80
      %v272 = vunpack.c.l.b16 %v81
      %v273 = vunpack.c.l.b16 %v82
      %v274 = vunpack.c.l.b16 %v83
      %v275 = vunpack.c.l.b16 %v84
      %v276 = vunpack.c.l.b16 %v85
      %v277 = vunpack.c.l.b16 %v86
      %v278 = vunpack.c.l.b16 %v87
      %v279 = vunpack.c.l.b16 %v88
      %v280 = vunpack.c.l.b16 %v89
      %v281 = vunpack.c.l.b16 %v90
      %v282 = vunpack.c.l.b16 %v91
      %v283 = vunpack.c.l.b16 %v92
      %v284 = vunpack.c.l.b16 %v93
      %v285 = vunpack.c.l.b16 %v94
      %v286 = vunpack.c.l.b16 %v95
      %v287 = vunpack.c.l.b16 %v96
      %v288 = vunpack.c.l.b16 %v97
      %v289 = vunpack.c.l.b16 %v98
      %v290 = vunpack.c.l.b16 %v99
      %v291 = vunpack.c.l.b16 %v100
      %v292 = vunpack.c.l.b16 %v101
      %v293 = vunpack.c.l.b16 %v102
      %v294 = vunpack.c.l.b16 %v103
      %v295 = vunpack.c.l.b16 %v104
      %v296 = vunpack.c.l.b16 %v105
      %v297 = vunpack.c.l.b16 %v106
      %v298 = vunpack.c.l.b16 %v107
      %v299 = vunpack.c.l.b16 %v108
      %v300 = vunpack.c.l.b16 %v109
      %v301 = vunpack.c.l.b16 %v110
      %v302 = vunpack.c.l.b16 %v111
      %v303 = vunpack.c.l.b16 %v112
      %v304 = vunpack.c.l.b16 %v113
      %v305 = vunpack.c.l.b16 %v114
      %v306 = vunpack.c.l.b16 %v115
      %v307 = vunpack.c.l.b16 %v116
      %v308 = vunpack.c.l.b16 %v117
      %v309 = vunpack.c.l.b16 %v118
      %v310 = vunpack.c.l.b16 %v119
      %v311 = vunpack.c.l.b16 %v120
      %v312 = vunpack.c.l.b16 %v121
      %v313 = vunpack.c.l.b16 %v122
      %v314 = vunpack.c.l.b16 %v123
      %v315 = vunpack.c.l.b16 %v124
      %v316 = vunpack.c.l.b16 %v125
      %v317 = vunpack.c.l.b16 %v126
      %v318 = vunpack.c.l.b16 %v127
      %v319 = vunpack.c.l.b16 %v128
      %v320 = vunpack.c.l.b16 %v129
      %v321 = vunpack.c.l.b16 %v130
      %v322 = vunpack.c.l.b16 %v131
      %v323 = vunpack.c.l.b16 %v132
      %v324 = vunpack.c.l.b16 %v133
      %v325 = vunpack.c.l.b16 %v134
      %v326 = vunpack.c.l.b16 %v135
      %v327 = vunpack.c.l.b16 %v136
      %v328 = vunpack.c.l.b16 %v137
      %v329 = vunpack.c.l.b16 %v138
      %v330 = vunpack.c.l.b16 %v139
      %v331 = vunpack.c.l.b16 %v140
      %v332 = vunpack.c.l.b16 %v141
      %v333 = vunpack.c.l.b16 %v142
      %v334 = vunpack.c.l.b16 %v143
      %v335 = vunpack.c.l.b16 %v144
      %v336 = vunpack.c.l.b16 %v145
      %v337 = vunpack.c.l.b16 %v146
      %v338 = vunpack.c.l.b16 %v147
      %v339 = vunpack.c.l.b16 %v148
      %v340 = vunpack.c.l.b16 %v149
      %v341 = vunpack.c.l.b16 %v150
      %v342 = vunpack.c.l.b16 %v151
      %v343 = vunpack.c.l.b16 %v152
      %v344 = vunpack.c.l.b16 %v153
      %v345 = vunpack.c.l.b16 %v154
      %v346 = vunpack.c.l.b16 %v155
      %v347 = vunpack.c.l.b16 %v156
      %v348 = vunpack.c.l.b16 %v157
      %v349 = vpack.c.b16 %v259, %v258
      %v350 = vpack.c.b16 %v261, %v260
      %v351 = vpack.c.b16 %v263, %v262
      %v352 = vpack.c.b16 %v265, %v264
      %v353 = vpack.c.b16 %v267, %v266
      %v354 = vpack.c.b16 %v269, %v268
      %v355 = vpack.c.b16 %v271, %v270
      %v356 = vpack.c.b16 %v273, %v272
      %v357 = vpack.c.b16 %v275, %v274
      %v358 = vpack.c.b16 %v277, %v276
      %v359 = vpack.c.b16 %v279, %v278
      %v360 = vpack.c.b16 %v281, %v280
      %v361 = vpack.c.b16 %v283, %v282
      %v362 = vpack.c.b16 %v285, %v284
      %v363 = vpack.c.b16 %v287, %v286
      %v364 = vpack.c.b16 %v289, %v288
      %v365 = vpack.c.b16 %v291, %v290
      %v366 = vpack.c.b16 %v293, %v292
      %v367 = vpack.c.b16 %v295, %v294
      %v368 = vpack.c.b16 %v297, %v296
      %v369 = vpack.c.b16 %v299, %v298
      %v370 = vpack.c.b16 %v301, %v300
      %v371 = vpack.c.b16 %v303, %v302
      %v372 = vpack.c.b16 %v305, %v304
      %v373 = vpack.c.b16 %v307, %v306
      %v374 = vpack.c.b16 %v309, %v308
      %v375 = vpack.c.b16 %v311, %v310
      %v376 = vpack.c.b16 %v313, %v312
      %v377 = vpack.c.b16 %v315, %v314
      %v378 = vpack.c.b16 %v317, %v316
      %v379 = vpack.c.b16 %v319, %v318
      %v380 = vpack.c.b16 %v321, %v320
      %v381 = vpack.c.b16 %v323, %v322
      %v382 = vpack.c.b16 %v325, %v324
      %v383 = vpack.c.b16 %v327, %v326
      %v384 = vpack.c.b16 %v329, %v328
      %v385 = vpack.c.b16 %v331, %v330
      %v386 = vpack.c.b16 %v333, %v332
      %v387 = vpack.c.b16 %v335, %v334
      %v388 = vpack.c.b16 %v337, %v336
      %v389 = vpack.c.b16 %v339, %v338
      %v390 = vpack.c.b16 %v341, %v340
      %v391 = vpack.c.b16 %v343, %v342
      %v392 = vpack.c.b16 %v345, %v344
      %v393 = vpack.c.b16 %v347, %v346
      %v394 = vpack.c.b16 %v348, %v348
      %v397 = vunpack.c.l.b16 %v158
      %v398 = vunpack.c.l.b16 %v159
      %v399 = vpack.c.b16 %v398, %v397
      %vm400 = vcmask 121856
      %v402 = vsel %vm400, %v349, 0
      %v405 = vsel %vm400, %v350, 0
      %v408 = vsel %vm400, %v351, 0
      %v411 = vsel %vm400, %v352, 0
      %v414 = vsel %vm400, %v353, 0
      %v417 = vsel %vm400, %v354, 0
      %v420 = vsel %vm400, %v355, 0
      %v423 = vsel %vm400, %v356, 0
      %v426 = vsel %vm400, %v357, 0
      %v429 = vsel %vm400, %v358, 0
      %v432 = vsel %vm400, %v359, 0
      %v435 = vsel %vm400, %v360, 0
      %v438 = vsel %vm400, %v361, 0
      %v441 = vsel %vm400, %v362, 0
      %v444 = vsel %vm400, %v363, 0
      %v447 = vsel %vm400, %v364, 0
      %v450 = vsel %vm400, %v365, 0
      %v453 = vsel %vm400, %v366, 0
      %v456 = vsel %vm400, %v367, 0
      %v459 = vsel %vm400, %v368, 0
      %v462 = vsel %vm400, %v369, 0
      %v465 = vsel %vm400, %v370, 0
      %v468 = vsel %vm400, %v371, 0
      %v471 = vsel %vm400, %v372, 0
      %v474 = vsel %vm400, %v373, 0
      %v477 = vsel %vm400, %v374, 0
      %v480 = vsel %vm400, %v375, 0
      %v483 = vsel %vm400, %v376, 0
      %v486 = vsel %vm400, %v377, 0
      %v489 = vsel %vm400, %v378, 0
      %v492 = vsel %vm400, %v379, 0
      %v495 = vsel %vm400, %v380, 0
      %v498 = vsel %vm400, %v381, 0
      %v501 = vsel %vm400, %v382, 0
      %v504 = vsel %vm400, %v383, 0
      %v507 = vsel %vm400, %v384, 0
      %v510 = vsel %vm400, %v385, 0
      %v513 = vsel %vm400, %v386, 0
      %v516 = vsel %vm400, %v387, 0
      %v519 = vsel %vm400, %v388, 0
      %v522 = vsel %vm400, %v389, 0
      %v525 = vsel %vm400, %v390, 0
      %v528 = vsel %vm400, %v391, 0
      %v531 = vsel %vm400, %v392, 0
      %v534 = vsel %vm400, %v393, 0
      %v537 = vsel %vm400, %v394, 0
      %vm539 = vcmask 1046528
      %vm540 = vcmask 1047552
      %v541 = vsel %vm539, 4294967295, 65535
      %v542 = vsel %vm540, %v541, 0
      %v544 = vand.u32 %v399, %v542
      %546 = vmatprep.subr.bf16.mxu0 0
      %547 = vmatpush1.bf16.msra.mxu0 %v544
      %548 = vmatprep.subr.bf16.mxu0 0
      %549 = vmatpush1.bf16.msra.mxu0 0
      %550 = vmatprep.subr.bf16.mxu0 0
      %551 = vmatpush1.bf16.msra.mxu0 0
      %552 = vmatprep.subr.bf16.mxu0 0
      %553 = vmatpush1.bf16.msra.mxu0 0
      %554 = vmatprep.subr.bf16.mxu0 0
      %555 = vmatpush1.bf16.msra.mxu0 0
      %556 = vmatprep.subr.bf16.mxu0 0
      %557 = vmatpush1.bf16.msra.mxu0 0
      %558 = vmatprep.subr.bf16.mxu0 0
      %559 = vmatpush1.bf16.msra.mxu0 0
      %560 = vmatprep.subr.bf16.mxu0 0
      %561 = vmatpush1.bf16.msra.mxu0 0
      %562 = vmatprep.subr.bf16.mxu0 0
      %563 = vmatpush1.bf16.msra.mxu0 0
      %564 = vmatprep.subr.bf16.mxu0 0
      %565 = vmatpush1.bf16.msra.mxu0 0
      %566 = vmatprep.subr.bf16.mxu0 0
      %567 = vmatpush1.bf16.msra.mxu0 0
      %568 = vmatprep.subr.bf16.mxu0 0
      %569 = vmatpush1.bf16.msra.mxu0 0
      %570 = vmatprep.subr.bf16.mxu0 0
      %571 = vmatpush1.bf16.msra.mxu0 0
      %572 = vmatprep.subr.bf16.mxu0 0
      %573 = vmatpush1.bf16.msra.mxu0 0
      %574 = vmatprep.subr.bf16.mxu0 0
      %575 = vmatpush1.bf16.msra.mxu0 0
      %576 = vmatprep.subr.bf16.mxu0 0
      %577 = vmatpush1.bf16.msra.mxu0 0
      %578 = vmatprep.mubr.bf16.mxu0 0
      %579 = vmatmul.mubr.bf16.gmra.mrb[0].mxu0 %v402
      %v580 = vpop.f32.mrb[0].mxu0
      %v581 = vadd.f32 %v165, %v580
      %v582 = vpop.f32.mrb[0].mxu0
      %v583 = vpop.f32.mrb[0].mxu0
      %v584 = vadd.f32 %v165, %v583
      %v585 = vpop.f32.mrb[0].mxu0
      %586 = vmatprep.mubr.bf16.mxu0 0
      %587 = vmatmul.mubr.bf16.gmra.mrb[0].mxu0 %v405
      %v588 = vpop.f32.mrb[0].mxu0
      %v589 = vadd.f32 %v165, %v588
      %v590 = vpop.f32.mrb[0].mxu0
      %v591 = vpop.f32.mrb[0].mxu0
      %v592 = vadd.f32 %v165, %v591
      %v593 = vpop.f32.mrb[0].mxu0
      %594 = vmatprep.mubr.bf16.mxu0 0
      %595 = vmatmul.mubr.bf16.gmra.mrb[0].mxu0 %v408
      %v596 = vpop.f32.mrb[0].mxu0
      %v597 = vadd.f32 %v165, %v596
      %v598 = vpop.f32.mrb[0].mxu0
      %v599 = vpop.f32.mrb[0].mxu0
      %v600 = vadd.f32 %v165, %v599
      %v601 = vpop.f32.mrb[0].mxu0
      %602 = vmatprep.mubr.bf16.mxu0 0
      %603 = vmatmul.mubr.bf16.gmra.mrb[0].mxu0 %v411
      %v604 = vpop.f32.mrb[0].mxu0
      %v605 = vadd.f32 %v165, %v604
      %v606 = vpop.f32.mrb[0].mxu0
      %v607 = vpop.f32.mrb[0].mxu0
      %v608 = vadd.f32 %v165, %v607
      %v609 = vpop.f32.mrb[0].mxu0
      %610 = vmatprep.mubr.bf16.mxu0 0
      %611 = vmatmul.mubr.bf16.gmra.mrb[0].mxu0 %v414
      %v612 = vpop.f32.mrb[0].mxu0
      %v613 = vadd.f32 %v165, %v612
      %v614 = vpop.f32.mrb[0].mxu0
      %v615 = vpop.f32.mrb[0].mxu0
      %v616 = vadd.f32 %v165, %v615
      %v617 = vpop.f32.mrb[0].mxu0
      %618 = vmatprep.mubr.bf16.mxu0 0
      %619 = vmatmul.mubr.bf16.gmra.mrb[0].mxu0 %v417
      %v620 = vpop.f32.mrb[0].mxu0
      %v621 = vadd.f32 %v165, %v620
      %v622 = vpop.f32.mrb[0].mxu0
      %v623 = vpop.f32.mrb[0].mxu0
      %v624 = vadd.f32 %v165, %v623
      %v625 = vpop.f32.mrb[0].mxu0
      %626 = vmatprep.mubr.bf16.mxu0 0
      %627 = vmatmul.mubr.bf16.gmra.mrb[0].mxu0 %v420
      %v628 = vpop.f32.mrb[0].mxu0
      %v629 = vadd.f32 %v165, %v628
      %v630 = vpop.f32.mrb[0].mxu0
      %v631 = vpop.f32.mrb[0].mxu0
      %v632 = vadd.f32 %v165, %v631
      %v633 = vpop.f32.mrb[0].mxu0
      %634 = vmatprep.mubr.bf16.mxu0 0
      %635 = vmatmul.mubr.bf16.gmra.mrb[0].mxu0 %v423
      %v636 = vpop.f32.mrb[0].mxu0
      %v637 = vadd.f32 %v165, %v636
      %v638 = vpop.f32.mrb[0].mxu0
      %v639 = vpop.f32.mrb[0].mxu0
      %v640 = vadd.f32 %v165, %v639
      %v641 = vpop.f32.mrb[0].mxu0
      %642 = vmatprep.mubr.bf16.mxu0 0
      %643 = vmatmul.mubr.bf16.gmra.mrb[0].mxu0 %v426
      %v644 = vpop.f32.mrb[0].mxu0
      %v645 = vadd.f32 %v165, %v644
      %v646 = vpop.f32.mrb[0].mxu0
      %v647 = vpop.f32.mrb[0].mxu0
      %v648 = vadd.f32 %v165, %v647
      %v649 = vpop.f32.mrb[0].mxu0
      %650 = vmatprep.mubr.bf16.mxu0 0
      %651 = vmatmul.mubr.bf16.gmra.mrb[0].mxu0 %v429
      %v652 = vpop.f32.mrb[0].mxu0
      %v653 = vadd.f32 %v165, %v652
      %v654 = vpop.f32.mrb[0].mxu0
      %v655 = vpop.f32.mrb[0].mxu0
      %v656 = vadd.f32 %v165, %v655
      %v657 = vpop.f32.mrb[0].mxu0
      %658 = vmatprep.mubr.bf16.mxu0 0
      %659 = vmatmul.mubr.bf16.gmra.mrb[0].mxu0 %v432
      %v660 = vpop.f32.mrb[0].mxu0
      %v661 = vadd.f32 %v165, %v660
      %v662 = vpop.f32.mrb[0].mxu0
      %v663 = vpop.f32.mrb[0].mxu0
      %v664 = vadd.f32 %v165, %v663
      %v665 = vpop.f32.mrb[0].mxu0
      %666 = vmatprep.mubr.bf16.mxu0 0
      %667 = vmatmul.mubr.bf16.gmra.mrb[0].mxu0 %v435
      %v668 = vpop.f32.mrb[0].mxu0
      %v669 = vadd.f32 %v165, %v668
      %v670 = vpop.f32.mrb[0].mxu0
      %v671 = vpop.f32.mrb[0].mxu0
      %v672 = vadd.f32 %v165, %v671
      %v673 = vpop.f32.mrb[0].mxu0
      %674 = vmatprep.mubr.bf16.mxu0 0
      %675 = vmatmul.mubr.bf16.gmra.mrb[0].mxu0 %v438
      %v676 = vpop.f32.mrb[0].mxu0
      %v677 = vadd.f32 %v165, %v676
      %v678 = vpop.f32.mrb[0].mxu0
      %v679 = vpop.f32.mrb[0].mxu0
      %v680 = vadd.f32 %v165, %v679
      %v681 = vpop.f32.mrb[0].mxu0
      %682 = vmatprep.mubr.bf16.mxu0 0
      %683 = vmatmul.mubr.bf16.gmra.mrb[0].mxu0 %v441
      %v684 = vpop.f32.mrb[0].mxu0
      %v685 = vadd.f32 %v165, %v684
      %v686 = vpop.f32.mrb[0].mxu0
      %v687 = vpop.f32.mrb[0].mxu0
      %v688 = vadd.f32 %v165, %v687
      %v689 = vpop.f32.mrb[0].mxu0
      %690 = vmatprep.mubr.bf16.mxu0 0
      %691 = vmatmul.mubr.bf16.gmra.mrb[0].mxu0 %v444
      %v692 = vpop.f32.mrb[0].mxu0
      %v693 = vadd.f32 %v165, %v692
      %v694 = vpop.f32.mrb[0].mxu0
      %v695 = vpop.f32.mrb[0].mxu0
      %v696 = vadd.f32 %v165, %v695
      %v697 = vpop.f32.mrb[0].mxu0
      %698 = vmatprep.mubr.bf16.mxu0 0
      %699 = vmatmul.mubr.bf16.gmra.mrb[0].mxu0 %v447
      %v700 = vpop.f32.mrb[0].mxu0
      %v701 = vadd.f32 %v165, %v700
      %v702 = vpop.f32.mrb[0].mxu0
      %v703 = vpop.f32.mrb[0].mxu0
      %v704 = vadd.f32 %v165, %v703
      %v705 = vpop.f32.mrb[0].mxu0
      %706 = vmatprep.mubr.bf16.mxu0 0
      %707 = vmatmul.mubr.bf16.gmra.mrb[0].mxu0 %v450
      %v708 = vpop.f32.mrb[0].mxu0
      %v709 = vadd.f32 %v165, %v708
      %v710 = vpop.f32.mrb[0].mxu0
      %v711 = vpop.f32.mrb[0].mxu0
      %v712 = vadd.f32 %v165, %v711
      %v713 = vpop.f32.mrb[0].mxu0
      %714 = vmatprep.mubr.bf16.mxu0 0
      %715 = vmatmul.mubr.bf16.gmra.mrb[0].mxu0 %v453
      %v716 = vpop.f32.mrb[0].mxu0
      %v717 = vadd.f32 %v165, %v716
      %v718 = vpop.f32.mrb[0].mxu0
      %v719 = vpop.f32.mrb[0].mxu0
      %v720 = vadd.f32 %v165, %v719
      %v721 = vpop.f32.mrb[0].mxu0
      %722 = vmatprep.mubr.bf16.mxu0 0
      %723 = vmatmul.mubr.bf16.gmra.mrb[0].mxu0 %v456
      %v724 = vpop.f32.mrb[0].mxu0
      %v725 = vadd.f32 %v165, %v724
      %v726 = vpop.f32.mrb[0].mxu0
      %v727 = vpop.f32.mrb[0].mxu0
      %v728 = vadd.f32 %v165, %v727
      %v729 = vpop.f32.mrb[0].mxu0
      %730 = vmatprep.mubr.bf16.mxu0 0
      %731 = vmatmul.mubr.bf16.gmra.mrb[0].mxu0 %v459
      %v732 = vpop.f32.mrb[0].mxu0
      %v733 = vadd.f32 %v165, %v732
      %v734 = vpop.f32.mrb[0].mxu0
      %v735 = vpop.f32.mrb[0].mxu0
      %v736 = vadd.f32 %v165, %v735
      %v737 = vpop.f32.mrb[0].mxu0
      %738 = vmatprep.mubr.bf16.mxu0 0
      %739 = vmatmul.mubr.bf16.gmra.mrb[0].mxu0 %v462
      %v740 = vpop.f32.mrb[0].mxu0
      %v741 = vadd.f32 %v165, %v740
      %v742 = vpop.f32.mrb[0].mxu0
      %v743 = vpop.f32.mrb[0].mxu0
      %v744 = vadd.f32 %v165, %v743
      %v745 = vpop.f32.mrb[0].mxu0
      %746 = vmatprep.mubr.bf16.mxu0 0
      %747 = vmatmul.mubr.bf16.gmra.mrb[0].mxu0 %v465
      %v748 = vpop.f32.mrb[0].mxu0
      %v749 = vadd.f32 %v165, %v748
      %v750 = vpop.f32.mrb[0].mxu0
      %v751 = vpop.f32.mrb[0].mxu0
      %v752 = vadd.f32 %v165, %v751
      %v753 = vpop.f32.mrb[0].mxu0
      %754 = vmatprep.mubr.bf16.mxu0 0
      %755 = vmatmul.mubr.bf16.gmra.mrb[0].mxu0 %v468
      %v756 = vpop.f32.mrb[0].mxu0
      %v757 = vadd.f32 %v165, %v756
      %v758 = vpop.f32.mrb[0].mxu0
      %v759 = vpop.f32.mrb[0].mxu0
      %v760 = vadd.f32 %v165, %v759
      %v761 = vpop.f32.mrb[0].mxu0
      %762 = vmatprep.mubr.bf16.mxu0 0
      %763 = vmatmul.mubr.bf16.gmra.mrb[0].mxu0 %v471
      %v764 = vpop.f32.mrb[0].mxu0
      %v765 = vadd.f32 %v165, %v764
      %v766 = vpop.f32.mrb[0].mxu0
      %v767 = vpop.f32.mrb[0].mxu0
      %v768 = vadd.f32 %v165, %v767
      %v769 = vpop.f32.mrb[0].mxu0
      %770 = vmatprep.mubr.bf16.mxu0 0
      %771 = vmatmul.mubr.bf16.gmra.mrb[0].mxu0 %v474
      %v772 = vpop.f32.mrb[0].mxu0
      %v773 = vadd.f32 %v165, %v772
      %v774 = vpop.f32.mrb[0].mxu0
      %v775 = vpop.f32.mrb[0].mxu0
      %v776 = vadd.f32 %v165, %v775
      %v777 = vpop.f32.mrb[0].mxu0
      %778 = vmatprep.mubr.bf16.mxu0 0
      %779 = vmatmul.mubr.bf16.gmra.mrb[0].mxu0 %v477
      %v780 = vpop.f32.mrb[0].mxu0
      %v781 = vadd.f32 %v165, %v780
      %v782 = vpop.f32.mrb[0].mxu0
      %v783 = vpop.f32.mrb[0].mxu0
      %v784 = vadd.f32 %v165, %v783
      %v785 = vpop.f32.mrb[0].mxu0
      %786 = vmatprep.mubr.bf16.mxu0 0
      %787 = vmatmul.mubr.bf16.gmra.mrb[0].mxu0 %v480
      %v788 = vpop.f32.mrb[0].mxu0
      %v789 = vadd.f32 %v165, %v788
      %v790 = vpop.f32.mrb[0].mxu0
      %v791 = vpop.f32.mrb[0].mxu0
      %v792 = vadd.f32 %v165, %v791
      %v793 = vpop.f32.mrb[0].mxu0
      %794 = vmatprep.mubr.bf16.mxu0 0
      %795 = vmatmul.mubr.bf16.gmra.mrb[0].mxu0 %v483
      %v796 = vpop.f32.mrb[0].mxu0
      %v797 = vadd.f32 %v165, %v796
      %v798 = vpop.f32.mrb[0].mxu0
      %v799 = vpop.f32.mrb[0].mxu0
      %v800 = vadd.f32 %v165, %v799
      %v801 = vpop.f32.mrb[0].mxu0
      %802 = vmatprep.mubr.bf16.mxu0 0
      %803 = vmatmul.mubr.bf16.gmra.mrb[0].mxu0 %v486
      %v804 = vpop.f32.mrb[0].mxu0
      %v805 = vadd.f32 %v165, %v804
      %v806 = vpop.f32.mrb[0].mxu0
      %v807 = vpop.f32.mrb[0].mxu0
      %v808 = vadd.f32 %v165, %v807
      %v809 = vpop.f32.mrb[0].mxu0
      %810 = vmatprep.mubr.bf16.mxu0 0
      %811 = vmatmul.mubr.bf16.gmra.mrb[0].mxu0 %v489
      %v812 = vpop.f32.mrb[0].mxu0
      %v813 = vadd.f32 %v165, %v812
      %v814 = vpop.f32.mrb[0].mxu0
      %v815 = vpop.f32.mrb[0].mxu0
      %v816 = vadd.f32 %v165, %v815
      %v817 = vpop.f32.mrb[0].mxu0
      %818 = vmatprep.mubr.bf16.mxu0 0
      %819 = vmatmul.mubr.bf16.gmra.mrb[0].mxu0 %v492
      %v820 = vpop.f32.mrb[0].mxu0
      %v821 = vadd.f32 %v165, %v820
      %v822 = vpop.f32.mrb[0].mxu0
      %v823 = vpop.f32.mrb[0].mxu0
      %v824 = vadd.f32 %v165, %v823
      %v825 = vpop.f32.mrb[0].mxu0
      %826 = vmatprep.mubr.bf16.mxu0 0
      %827 = vmatmul.mubr.bf16.gmra.mrb[0].mxu0 %v495
      %v828 = vpop.f32.mrb[0].mxu0
      %v829 = vadd.f32 %v165, %v828
      %v830 = vpop.f32.mrb[0].mxu0
      %v831 = vpop.f32.mrb[0].mxu0
      %v832 = vadd.f32 %v165, %v831
      %v833 = vpop.f32.mrb[0].mxu0
      %834 = vmatprep.mubr.bf16.mxu0 0
      %835 = vmatmul.mubr.bf16.gmra.mrb[0].mxu0 %v498
      %v836 = vpop.f32.mrb[0].mxu0
      %v837 = vadd.f32 %v165, %v836
      %v838 = vpop.f32.mrb[0].mxu0
      %v839 = vpop.f32.mrb[0].mxu0
      %v840 = vadd.f32 %v165, %v839
      %v841 = vpop.f32.mrb[0].mxu0
      %842 = vmatprep.mubr.bf16.mxu0 0
      %843 = vmatmul.mubr.bf16.gmra.mrb[0].mxu0 %v501
      %v844 = vpop.f32.mrb[0].mxu0
      %v845 = vadd.f32 %v165, %v844
      %v846 = vpop.f32.mrb[0].mxu0
      %v847 = vpop.f32.mrb[0].mxu0
      %v848 = vadd.f32 %v165, %v847
      %v849 = vpop.f32.mrb[0].mxu0
      %850 = vmatprep.mubr.bf16.mxu0 0
      %851 = vmatmul.mubr.bf16.gmra.mrb[0].mxu0 %v504
      %v852 = vpop.f32.mrb[0].mxu0
      %v853 = vadd.f32 %v165, %v852
      %v854 = vpop.f32.mrb[0].mxu0
      %v855 = vpop.f32.mrb[0].mxu0
      %v856 = vadd.f32 %v165, %v855
      %v857 = vpop.f32.mrb[0].mxu0
      %858 = vmatprep.mubr.bf16.mxu0 0
      %859 = vmatmul.mubr.bf16.gmra.mrb[0].mxu0 %v507
      %v860 = vpop.f32.mrb[0].mxu0
      %v861 = vadd.f32 %v165, %v860
      %v862 = vpop.f32.mrb[0].mxu0
      %v863 = vpop.f32.mrb[0].mxu0
      %v864 = vadd.f32 %v165, %v863
      %v865 = vpop.f32.mrb[0].mxu0
      %866 = vmatprep.mubr.bf16.mxu0 0
      %867 = vmatmul.mubr.bf16.gmra.mrb[0].mxu0 %v510
      %v868 = vpop.f32.mrb[0].mxu0
      %v869 = vadd.f32 %v165, %v868
      %v870 = vpop.f32.mrb[0].mxu0
      %v871 = vpop.f32.mrb[0].mxu0
      %v872 = vadd.f32 %v165, %v871
      %v873 = vpop.f32.mrb[0].mxu0
      %874 = vmatprep.mubr.bf16.mxu0 0
      %875 = vmatmul.mubr.bf16.gmra.mrb[0].mxu0 %v513
      %v876 = vpop.f32.mrb[0].mxu0
      %v877 = vadd.f32 %v165, %v876
      %v878 = vpop.f32.mrb[0].mxu0
      %v879 = vpop.f32.mrb[0].mxu0
      %v880 = vadd.f32 %v165, %v879
      %v881 = vpop.f32.mrb[0].mxu0
      %882 = vmatprep.mubr.bf16.mxu0 0
      %883 = vmatmul.mubr.bf16.gmra.mrb[0].mxu0 %v516
      %v884 = vpop.f32.mrb[0].mxu0
      %v885 = vadd.f32 %v165, %v884
      %v886 = vpop.f32.mrb[0].mxu0
      %v887 = vpop.f32.mrb[0].mxu0
      %v888 = vadd.f32 %v165, %v887
      %v889 = vpop.f32.mrb[0].mxu0
      %890 = vmatprep.mubr.bf16.mxu0 0
      %891 = vmatmul.mubr.bf16.gmra.mrb[0].mxu0 %v519
      %v892 = vpop.f32.mrb[0].mxu0
      %v893 = vadd.f32 %v165, %v892
      %v894 = vpop.f32.mrb[0].mxu0
      %v895 = vpop.f32.mrb[0].mxu0
      %v896 = vadd.f32 %v165, %v895
      %v897 = vpop.f32.mrb[0].mxu0
      %898 = vmatprep.mubr.bf16.mxu0 0
      %899 = vmatmul.mubr.bf16.gmra.mrb[0].mxu0 %v522
      %v900 = vpop.f32.mrb[0].mxu0
      %v901 = vadd.f32 %v165, %v900
      %v902 = vpop.f32.mrb[0].mxu0
      %v903 = vpop.f32.mrb[0].mxu0
      %v904 = vadd.f32 %v165, %v903
      %v905 = vpop.f32.mrb[0].mxu0
      %906 = vmatprep.mubr.bf16.mxu0 0
      %907 = vmatmul.mubr.bf16.gmra.mrb[0].mxu0 %v525
      %v908 = vpop.f32.mrb[0].mxu0
      %v909 = vadd.f32 %v165, %v908
      %v910 = vpop.f32.mrb[0].mxu0
      %v911 = vpop.f32.mrb[0].mxu0
      %v912 = vadd.f32 %v165, %v911
      %v913 = vpop.f32.mrb[0].mxu0
      %914 = vmatprep.mubr.bf16.mxu0 0
      %915 = vmatmul.mubr.bf16.gmra.mrb[0].mxu0 %v528
      %v916 = vpop.f32.mrb[0].mxu0
      %v917 = vadd.f32 %v165, %v916
      %v918 = vpop.f32.mrb[0].mxu0
      %v919 = vpop.f32.mrb[0].mxu0
      %v920 = vadd.f32 %v165, %v919
      %v921 = vpop.f32.mrb[0].mxu0
      %922 = vmatprep.mubr.bf16.mxu0 0
      %923 = vmatmul.mubr.bf16.gmra.mrb[0].mxu0 %v531
      %v924 = vpop.f32.mrb[0].mxu0
      %v925 = vadd.f32 %v165, %v924
      %v926 = vpop.f32.mrb[0].mxu0
      %v927 = vpop.f32.mrb[0].mxu0
      %v928 = vadd.f32 %v165, %v927
      %v929 = vpop.f32.mrb[0].mxu0
      %930 = vmatprep.mubr.bf16.mxu0 0
      %931 = vmatmul.mubr.bf16.gmra.mrb[0].mxu0 %v534
      %v932 = vpop.f32.mrb[0].mxu0
      %v933 = vadd.f32 %v165, %v932
      %v934 = vpop.f32.mrb[0].mxu0
      %v935 = vpop.f32.mrb[0].mxu0
      %v936 = vadd.f32 %v165, %v935
      %v937 = vpop.f32.mrb[0].mxu0
      %938 = vmatprep.mubr.bf16.mxu0 0
      %939 = vmatmul.mubr.bf16.gmra.mrb[0].mxu0 %v537
      %v940 = vpop.f32.mrb[0].mxu0
      %v941 = vadd.f32 %v165, %v940
      %v942 = vpop.f32.mrb[0].mxu0
      %v943 = vpop.f32.mrb[0].mxu0
      %v944 = vpop.f32.mrb[0].mxu0
      %945 = vdwg.mxu0
      %v946 = vmax.f32 %v581, 0.0
      %v947 = vmax.f32 %v584, 0.0
      %v948 = vmax.f32 %v589, 0.0
      %v949 = vmax.f32 %v592, 0.0
      %v950 = vmax.f32 %v597, 0.0
      %v951 = vmax.f32 %v600, 0.0
      %v952 = vmax.f32 %v605, 0.0
      %v953 = vmax.f32 %v608, 0.0
      %v954 = vmax.f32 %v613, 0.0
      %v955 = vmax.f32 %v616, 0.0
      %v956 = vmax.f32 %v621, 0.0
      %v957 = vmax.f32 %v624, 0.0
      %v958 = vmax.f32 %v629, 0.0
      %v959 = vmax.f32 %v632, 0.0
      %v960 = vmax.f32 %v637, 0.0
      %v961 = vmax.f32 %v640, 0.0
      %v962 = vmax.f32 %v645, 0.0
      %v963 = vmax.f32 %v648, 0.0
      %v964 = vmax.f32 %v653, 0.0
      %v965 = vmax.f32 %v656, 0.0
      %v966 = vmax.f32 %v661, 0.0
      %v967 = vmax.f32 %v664, 0.0
      %v968 = vmax.f32 %v669, 0.0
      %v969 = vmax.f32 %v672, 0.0
      %v970 = vmax.f32 %v677, 0.0
      %v971 = vmax.f32 %v680, 0.0
      %v972 = vmax.f32 %v685, 0.0
      %v973 = vmax.f32 %v688, 0.0
      %v974 = vmax.f32 %v693, 0.0
      %v975 = vmax.f32 %v696, 0.0
      %v976 = vmax.f32 %v701, 0.0
      %v977 = vmax.f32 %v704, 0.0
      %v978 = vmax.f32 %v709, 0.0
      %v979 = vmax.f32 %v712, 0.0
      %v980 = vmax.f32 %v717, 0.0
      %v981 = vmax.f32 %v720, 0.0
      %v982 = vmax.f32 %v725, 0.0
      %v983 = vmax.f32 %v728, 0.0
      %v984 = vmax.f32 %v733, 0.0
      %v985 = vmax.f32 %v736, 0.0
      %v986 = vmax.f32 %v741, 0.0
      %v987 = vmax.f32 %v744, 0.0
      %v988 = vmax.f32 %v749, 0.0
      %v989 = vmax.f32 %v752, 0.0
      %v990 = vmax.f32 %v757, 0.0
      %v991 = vmax.f32 %v760, 0.0
      %v992 = vmax.f32 %v765, 0.0
      %v993 = vmax.f32 %v768, 0.0
      %v994 = vmax.f32 %v773, 0.0
      %v995 = vmax.f32 %v776, 0.0
      %v996 = vmax.f32 %v781, 0.0
      %v997 = vmax.f32 %v784, 0.0
      %v998 = vmax.f32 %v789, 0.0
      %v999 = vmax.f32 %v792, 0.0
      %v1000 = vmax.f32 %v797, 0.0
      %v1001 = vmax.f32 %v800, 0.0
      %v1002 = vmax.f32 %v805, 0.0
      %v1003 = vmax.f32 %v808, 0.0
      %v1004 = vmax.f32 %v813, 0.0
      %v1005 = vmax.f32 %v816, 0.0
      %v1006 = vmax.f32 %v821, 0.0
      %v1007 = vmax.f32 %v824, 0.0
      %v1008 = vmax.f32 %v829, 0.0
      %v1009 = vmax.f32 %v832, 0.0
      %v1010 = vmax.f32 %v837, 0.0
      %v1011 = vmax.f32 %v840, 0.0
      %v1012 = vmax.f32 %v845, 0.0
      %v1013 = vmax.f32 %v848, 0.0
      %v1014 = vmax.f32 %v853, 0.0
      %v1015 = vmax.f32 %v856, 0.0
      %v1016 = vmax.f32 %v861, 0.0
      %v1017 = vmax.f32 %v864, 0.0
      %v1018 = vmax.f32 %v869, 0.0
      %v1019 = vmax.f32 %v872, 0.0
      %v1020 = vmax.f32 %v877, 0.0
      %v1021 = vmax.f32 %v880, 0.0
      %v1022 = vmax.f32 %v885, 0.0
      %v1023 = vmax.f32 %v888, 0.0
      %v1024 = vmax.f32 %v893, 0.0
      %v1025 = vmax.f32 %v896, 0.0
      %v1026 = vmax.f32 %v901, 0.0
      %v1027 = vmax.f32 %v904, 0.0
      %v1028 = vmax.f32 %v909, 0.0
      %v1029 = vmax.f32 %v912, 0.0
      %v1030 = vmax.f32 %v917, 0.0
      %v1031 = vmax.f32 %v920, 0.0
      %v1032 = vmax.f32 %v925, 0.0
      %v1033 = vmax.f32 %v928, 0.0
      %v1034 = vmax.f32 %v933, 0.0
      %v1035 = vmax.f32 %v936, 0.0
      %v1036 = vmax.f32 %v941, 0.0
      %v1037 = vpack.c.bf16 %v947, %v946
      %v1038 = vpack.c.bf16 %v949, %v948
      %v1039 = vpack.c.bf16 %v951, %v950
      %v1040 = vpack.c.bf16 %v953, %v952
      %v1041 = vpack.c.bf16 %v955, %v954
      %v1042 = vpack.c.bf16 %v957, %v956
      %v1043 = vpack.c.bf16 %v959, %v958
      %v1044 = vpack.c.bf16 %v961, %v960
      %v1045 = vpack.c.bf16 %v963, %v962
      %v1046 = vpack.c.bf16 %v965, %v964
      %v1047 = vpack.c.bf16 %v967, %v966
      %v1048 = vpack.c.bf16 %v969, %v968
      %v1049 = vpack.c.bf16 %v971, %v970
      %v1050 = vpack.c.bf16 %v973, %v972
      %v1051 = vpack.c.bf16 %v975, %v974
      %v1052 = vpack.c.bf16 %v977, %v976
      %v1053 = vpack.c.bf16 %v979, %v978
      %v1054 = vpack.c.bf16 %v981, %v980
      %v1055 = vpack.c.bf16 %v983, %v982
      %v1056 = vpack.c.bf16 %v985, %v984
      %v1057 = vpack.c.bf16 %v987, %v986
      %v1058 = vpack.c.bf16 %v989, %v988
      %v1059 = vpack.c.bf16 %v991, %v990
      %v1060 = vpack.c.bf16 %v993, %v992
      %v1061 = vpack.c.bf16 %v995, %v994
      %v1062 = vpack.c.bf16 %v997, %v996
      %v1063 = vpack.c.bf16 %v999, %v998
      %v1064 = vpack.c.bf16 %v1001, %v1000
      %v1065 = vpack.c.bf16 %v1003, %v1002
      %v1066 = vpack.c.bf16 %v1005, %v1004
      %v1067 = vpack.c.bf16 %v1007, %v1006
      %v1068 = vpack.c.bf16 %v1009, %v1008
      %v1069 = vpack.c.bf16 %v1011, %v1010
      %v1070 = vpack.c.bf16 %v1013, %v1012
      %v1071 = vpack.c.bf16 %v1015, %v1014
      %v1072 = vpack.c.bf16 %v1017, %v1016
      %v1073 = vpack.c.bf16 %v1019, %v1018
      %v1074 = vpack.c.bf16 %v1021, %v1020
      %v1075 = vpack.c.bf16 %v1023, %v1022
      %v1076 = vpack.c.bf16 %v1025, %v1024
      %v1077 = vpack.c.bf16 %v1027, %v1026
      %v1078 = vpack.c.bf16 %v1029, %v1028
      %v1079 = vpack.c.bf16 %v1031, %v1030
      %v1080 = vpack.c.bf16 %v1033, %v1032
      %v1081 = vpack.c.bf16 %v1035, %v1034
      %v1082 = vpack.c.bf16 %v1036, %v1036
      %v1129 = vunpack.c.l.b16 %v1037
      %v1130 = vunpack.c.h.b16 %v1037
      %v1131 = vunpack.c.l.b16 %v1038
      %v1132 = vunpack.c.h.b16 %v1038
      %v1133 = vunpack.c.l.b16 %v1039
      %v1134 = vunpack.c.h.b16 %v1039
      %v1135 = vunpack.c.l.b16 %v1040
      %v1136 = vunpack.c.h.b16 %v1040
      %v1137 = vunpack.c.l.b16 %v1041
      %v1138 = vunpack.c.h.b16 %v1041
      %v1139 = vunpack.c.l.b16 %v1042
      %v1140 = vunpack.c.h.b16 %v1042
      %v1141 = vunpack.c.l.b16 %v1043
      %v1142 = vunpack.c.h.b16 %v1043
      %v1143 = vunpack.c.l.b16 %v1044
      %v1144 = vunpack.c.h.b16 %v1044
      %v1145 = vunpack.c.l.b16 %v1045
      %v1146 = vunpack.c.h.b16 %v1045
      %v1147 = vunpack.c.l.b16 %v1046
      %v1148 = vunpack.c.h.b16 %v1046
      %v1149 = vunpack.c.l.b16 %v1047
      %v1150 = vunpack.c.h.b16 %v1047
      %v1151 = vunpack.c.l.b16 %v1048
      %v1152 = vunpack.c.h.b16 %v1048
      %v1153 = vunpack.c.l.b16 %v1049
      %v1154 = vunpack.c.h.b16 %v1049
      %v1155 = vunpack.c.l.b16 %v1050
      %v1156 = vunpack.c.h.b16 %v1050
      %v1157 = vunpack.c.l.b16 %v1051
      %v1158 = vunpack.c.h.b16 %v1051
      %v1159 = vunpack.c.l.b16 %v1052
      %v1160 = vunpack.c.h.b16 %v1052
      %v1161 = vunpack.c.l.b16 %v1053
      %v1162 = vunpack.c.h.b16 %v1053
      %v1163 = vunpack.c.l.b16 %v1054
      %v1164 = vunpack.c.h.b16 %v1054
      %v1165 = vunpack.c.l.b16 %v1055
      %v1166 = vunpack.c.h.b16 %v1055
      %v1167 = vunpack.c.l.b16 %v1056
      %v1168 = vunpack.c.h.b16 %v1056
      %v1169 = vunpack.c.l.b16 %v1057
      %v1170 = vunpack.c.h.b16 %v1057
      %v1171 = vunpack.c.l.b16 %v1058
      %v1172 = vunpack.c.h.b16 %v1058
      %v1173 = vunpack.c.l.b16 %v1059
      %v1174 = vunpack.c.h.b16 %v1059
      %v1175 = vunpack.c.l.b16 %v1060
      %v1176 = vunpack.c.h.b16 %v1060
      %v1177 = vunpack.c.l.b16 %v1061
      %v1178 = vunpack.c.h.b16 %v1061
      %v1179 = vunpack.c.l.b16 %v1062
      %v1180 = vunpack.c.h.b16 %v1062
      %v1181 = vunpack.c.l.b16 %v1063
      %v1182 = vunpack.c.h.b16 %v1063
      %v1183 = vunpack.c.l.b16 %v1064
      %v1184 = vunpack.c.h.b16 %v1064
      %v1185 = vunpack.c.l.b16 %v1065
      %v1186 = vunpack.c.h.b16 %v1065
      %v1187 = vunpack.c.l.b16 %v1066
      %v1188 = vunpack.c.h.b16 %v1066
      %v1189 = vunpack.c.l.b16 %v1067
      %v1190 = vunpack.c.h.b16 %v1067
      %v1191 = vunpack.c.l.b16 %v1068
      %v1192 = vunpack.c.h.b16 %v1068
      %v1193 = vunpack.c.l.b16 %v1069
      %v1194 = vunpack.c.h.b16 %v1069
      %v1195 = vunpack.c.l.b16 %v1070
      %v1196 = vunpack.c.h.b16 %v1070
      %v1197 = vunpack.c.l.b16 %v1071
      %v1198 = vunpack.c.h.b16 %v1071
      %v1199 = vunpack.c.l.b16 %v1072
      %v1200 = vunpack.c.h.b16 %v1072
      %v1201 = vunpack.c.l.b16 %v1073
      %v1202 = vunpack.c.h.b16 %v1073
      %v1203 = vunpack.c.l.b16 %v1074
      %v1204 = vunpack.c.h.b16 %v1074
      %v1205 = vunpack.c.l.b16 %v1075
      %v1206 = vunpack.c.h.b16 %v1075
      %v1207 = vunpack.c.l.b16 %v1076
      %v1208 = vunpack.c.h.b16 %v1076
      %v1209 = vunpack.c.l.b16 %v1077
      %v1210 = vunpack.c.h.b16 %v1077
      %v1211 = vunpack.c.l.b16 %v1078
      %v1212 = vunpack.c.h.b16 %v1078
      %v1213 = vunpack.c.l.b16 %v1079
      %v1214 = vunpack.c.h.b16 %v1079
      %v1215 = vunpack.c.l.b16 %v1080
      %v1216 = vunpack.c.h.b16 %v1080
      %v1217 = vunpack.c.l.b16 %v1081
      %v1218 = vunpack.c.h.b16 %v1081
      %v1219 = vunpack.c.l.b16 %v1082
      %v1220 = vpack.c.b16 %v1129, %v1129
      %v1221 = vpack.c.b16 %v1130, %v1130
      %v1222 = vpack.c.b16 %v1131, %v1131
      %v1223 = vpack.c.b16 %v1132, %v1132
      %v1224 = vpack.c.b16 %v1133, %v1133
      %v1225 = vpack.c.b16 %v1134, %v1134
      %v1226 = vpack.c.b16 %v1135, %v1135
      %v1227 = vpack.c.b16 %v1136, %v1136
      %v1228 = vpack.c.b16 %v1137, %v1137
      %v1229 = vpack.c.b16 %v1138, %v1138
      %v1230 = vpack.c.b16 %v1139, %v1139
      %v1231 = vpack.c.b16 %v1140, %v1140
      %v1232 = vpack.c.b16 %v1141, %v1141
      %v1233 = vpack.c.b16 %v1142, %v1142
      %v1234 = vpack.c.b16 %v1143, %v1143
      %v1235 = vpack.c.b16 %v1144, %v1144
      %v1236 = vpack.c.b16 %v1145, %v1145
      %v1237 = vpack.c.b16 %v1146, %v1146
      %v1238 = vpack.c.b16 %v1147, %v1147
      %v1239 = vpack.c.b16 %v1148, %v1148
      %v1240 = vpack.c.b16 %v1149, %v1149
      %v1241 = vpack.c.b16 %v1150, %v1150
      %v1242 = vpack.c.b16 %v1151, %v1151
      %v1243 = vpack.c.b16 %v1152, %v1152
      %v1244 = vpack.c.b16 %v1153, %v1153
      %v1245 = vpack.c.b16 %v1154, %v1154
      %v1246 = vpack.c.b16 %v1155, %v1155
      %v1247 = vpack.c.b16 %v1156, %v1156
      %v1248 = vpack.c.b16 %v1157, %v1157
      %v1249 = vpack.c.b16 %v1158, %v1158
      %v1250 = vpack.c.b16 %v1159, %v1159
      %v1251 = vpack.c.b16 %v1160, %v1160
      %v1252 = vpack.c.b16 %v1161, %v1161
      %v1253 = vpack.c.b16 %v1162, %v1162
      %v1254 = vpack.c.b16 %v1163, %v1163
      %v1255 = vpack.c.b16 %v1164, %v1164
      %v1256 = vpack.c.b16 %v1165, %v1165
      %v1257 = vpack.c.b16 %v1166, %v1166
      %v1258 = vpack.c.b16 %v1167, %v1167
      %v1259 = vpack.c.b16 %v1168, %v1168
      %v1260 = vpack.c.b16 %v1169, %v1169
      %v1261 = vpack.c.b16 %v1170, %v1170
      %v1262 = vpack.c.b16 %v1171, %v1171
      %v1263 = vpack.c.b16 %v1172, %v1172
      %v1264 = vpack.c.b16 %v1173, %v1173
      %v1265 = vpack.c.b16 %v1174, %v1174
      %v1266 = vpack.c.b16 %v1175, %v1175
      %v1267 = vpack.c.b16 %v1176, %v1176
      %v1268 = vpack.c.b16 %v1177, %v1177
      %v1269 = vpack.c.b16 %v1178, %v1178
      %v1270 = vpack.c.b16 %v1179, %v1179
      %v1271 = vpack.c.b16 %v1180, %v1180
      %v1272 = vpack.c.b16 %v1181, %v1181
      %v1273 = vpack.c.b16 %v1182, %v1182
      %v1274 = vpack.c.b16 %v1183, %v1183
      %v1275 = vpack.c.b16 %v1184, %v1184
      %v1276 = vpack.c.b16 %v1185, %v1185
      %v1277 = vpack.c.b16 %v1186, %v1186
      %v1278 = vpack.c.b16 %v1187, %v1187
      %v1279 = vpack.c.b16 %v1188, %v1188
      %v1280 = vpack.c.b16 %v1189, %v1189
      %v1281 = vpack.c.b16 %v1190, %v1190
      %v1282 = vpack.c.b16 %v1191, %v1191
      %v1283 = vpack.c.b16 %v1192, %v1192
      %v1284 = vpack.c.b16 %v1193, %v1193
      %v1285 = vpack.c.b16 %v1194, %v1194
      %v1286 = vpack.c.b16 %v1195, %v1195
      %v1287 = vpack.c.b16 %v1196, %v1196
      %v1288 = vpack.c.b16 %v1197, %v1197
      %v1289 = vpack.c.b16 %v1198, %v1198
      %v1290 = vpack.c.b16 %v1199, %v1199
      %v1291 = vpack.c.b16 %v1200, %v1200
      %v1292 = vpack.c.b16 %v1201, %v1201
      %v1293 = vpack.c.b16 %v1202, %v1202
      %v1294 = vpack.c.b16 %v1203, %v1203
      %v1295 = vpack.c.b16 %v1204, %v1204
      %v1296 = vpack.c.b16 %v1205, %v1205
      %v1297 = vpack.c.b16 %v1206, %v1206
      %v1298 = vpack.c.b16 %v1207, %v1207
      %v1299 = vpack.c.b16 %v1208, %v1208
      %v1300 = vpack.c.b16 %v1209, %v1209
      %v1301 = vpack.c.b16 %v1210, %v1210
      %v1302 = vpack.c.b16 %v1211, %v1211
      %v1303 = vpack.c.b16 %v1212, %v1212
      %v1304 = vpack.c.b16 %v1213, %v1213
      %v1305 = vpack.c.b16 %v1214, %v1214
      %v1306 = vpack.c.b16 %v1215, %v1215
      %v1307 = vpack.c.b16 %v1216, %v1216
      %v1308 = vpack.c.b16 %v1217, %v1217
      %v1309 = vpack.c.b16 %v1218, %v1218
      %v1310 = vpack.c.b16 %v1219, %v1219
      %vm1402 = vcmask 781312
      %1403 = vst.msk [vmem:[#allocation2] sm:$0xf] %vm1402, %v1220
      %1404 = vst.msk [vmem:[#allocation2 + $0x4] sm:$0xf] %vm1402, %v1221
      %1405 = vst.msk [vmem:[#allocation2 + $0x8] sm:$0xf] %vm1402, %v1222
      %1406 = vst.msk [vmem:[#allocation2 + $0xc] sm:$0xf] %vm1402, %v1223
      %1407 = vst.msk [vmem:[#allocation2 + $0x10] sm:$0xf] %vm1402, %v1224
      %1408 = vst.msk [vmem:[#allocation2 + $0x14] sm:$0xf] %vm1402, %v1225
      %1409 = vst.msk [vmem:[#allocation2 + $0x18] sm:$0xf] %vm1402, %v1226
      %1410 = vst.msk [vmem:[#allocation2 + $0x1c] sm:$0xf] %vm1402, %v1227
      %1411 = vst.msk [vmem:[#allocation2 + $0x20] sm:$0xf] %vm1402, %v1228
      %1412 = vst.msk [vmem:[#allocation2 + $0x24] sm:$0xf] %vm1402, %v1229
      %1413 = vst.msk [vmem:[#allocation2 + $0x28] sm:$0xf] %vm1402, %v1230
      %1414 = vst.msk [vmem:[#allocation2 + $0x2c] sm:$0xf] %vm1402, %v1231
      %1415 = vst.msk [vmem:[#allocation2 + $0x30] sm:$0xf] %vm1402, %v1232
      %1416 = vst.msk [vmem:[#allocation2 + $0x34] sm:$0xf] %vm1402, %v1233
      %1417 = vst.msk [vmem:[#allocation2 + $0x38] sm:$0xf] %vm1402, %v1234
      %1418 = vst.msk [vmem:[#allocation2 + $0x3c] sm:$0xf] %vm1402, %v1235
      %1419 = vst.msk [vmem:[#allocation2 + $0x40] sm:$0xf] %vm1402, %v1236
      %1420 = vst.msk [vmem:[#allocation2 + $0x44] sm:$0xf] %vm1402, %v1237
      %1421 = vst.msk [vmem:[#allocation2 + $0x48] sm:$0xf] %vm1402, %v1238
      %1422 = vst.msk [vmem:[#allocation2 + $0x4c] sm:$0xf] %vm1402, %v1239
      %1423 = vst.msk [vmem:[#allocation2 + $0x50] sm:$0xf] %vm1402, %v1240
      %1424 = vst.msk [vmem:[#allocation2 + $0x54] sm:$0xf] %vm1402, %v1241
      %1425 = vst.msk [vmem:[#allocation2 + $0x58] sm:$0xf] %vm1402, %v1242
      %1426 = vst.msk [vmem:[#allocation2 + $0x5c] sm:$0xf] %vm1402, %v1243
      %1427 = vst.msk [vmem:[#allocation2 + $0x60] sm:$0xf] %vm1402, %v1244
      %1428 = vst.msk [vmem:[#allocation2 + $0x64] sm:$0xf] %vm1402, %v1245
      %1429 = vst.msk [vmem:[#allocation2 + $0x68] sm:$0xf] %vm1402, %v1246
      %1430 = vst.msk [vmem:[#allocation2 + $0x6c] sm:$0xf] %vm1402, %v1247
      %1431 = vst.msk [vmem:[#allocation2 + $0x70] sm:$0xf] %vm1402, %v1248
      %1432 = vst.msk [vmem:[#allocation2 + $0x74] sm:$0xf] %vm1402, %v1249
      %1433 = vst.msk [vmem:[#allocation2 + $0x78] sm:$0xf] %vm1402, %v1250
      %1434 = vst.msk [vmem:[#allocation2 + $0x7c] sm:$0xf] %vm1402, %v1251
      %1435 = vst.msk [vmem:[#allocation2 + $0x80] sm:$0xf] %vm1402, %v1252
      %1436 = vst.msk [vmem:[#allocation2 + $0x84] sm:$0xf] %vm1402, %v1253
      %1437 = vst.msk [vmem:[#allocation2 + $0x88] sm:$0xf] %vm1402, %v1254
      %1438 = vst.msk [vmem:[#allocation2 + $0x8c] sm:$0xf] %vm1402, %v1255
      %1439 = vst.msk [vmem:[#allocation2 + $0x90] sm:$0xf] %vm1402, %v1256
      %1440 = vst.msk [vmem:[#allocation2 + $0x94] sm:$0xf] %vm1402, %v1257
      %1441 = vst.msk [vmem:[#allocation2 + $0x98] sm:$0xf] %vm1402, %v1258
      %1442 = vst.msk [vmem:[#allocation2 + $0x9c] sm:$0xf] %vm1402, %v1259
      %1443 = vst.msk [vmem:[#allocation2 + $0xa0] sm:$0xf] %vm1402, %v1260
      %1444 = vst.msk [vmem:[#allocation2 + $0xa4] sm:$0xf] %vm1402, %v1261
      %1445 = vst.msk [vmem:[#allocation2 + $0xa8] sm:$0xf] %vm1402, %v1262
      %1446 = vst.msk [vmem:[#allocation2 + $0xac] sm:$0xf] %vm1402, %v1263
      %1447 = vst.msk [vmem:[#allocation2 + $0xb0] sm:$0xf] %vm1402, %v1264
      %1448 = vst.msk [vmem:[#allocation2 + $0xb4] sm:$0xf] %vm1402, %v1265
      %1449 = vst.msk [vmem:[#allocation2 + $0xb8] sm:$0xf] %vm1402, %v1266
      %1450 = vst.msk [vmem:[#allocation2 + $0xbc] sm:$0xf] %vm1402, %v1267
      %1451 = vst.msk [vmem:[#allocation2 + $0xc0] sm:$0xf] %vm1402, %v1268
      %1452 = vst.msk [vmem:[#allocation2 + $0xc4] sm:$0xf] %vm1402, %v1269
      %1453 = vst.msk [vmem:[#allocation2 + $0xc8] sm:$0xf] %vm1402, %v1270
      %1454 = vst.msk [vmem:[#allocation2 + $0xcc] sm:$0xf] %vm1402, %v1271
      %1455 = vst.msk [vmem:[#allocation2 + $0xd0] sm:$0xf] %vm1402, %v1272
      %1456 = vst.msk [vmem:[#allocation2 + $0xd4] sm:$0xf] %vm1402, %v1273
      %1457 = vst.msk [vmem:[#allocation2 + $0xd8] sm:$0xf] %vm1402, %v1274
      %1458 = vst.msk [vmem:[#allocation2 + $0xdc] sm:$0xf] %vm1402, %v1275
      %1459 = vst.msk [vmem:[#allocation2 + $0xe0] sm:$0xf] %vm1402, %v1276
      %1460 = vst.msk [vmem:[#allocation2 + $0xe4] sm:$0xf] %vm1402, %v1277
      %1461 = vst.msk [vmem:[#allocation2 + $0xe8] sm:$0xf] %vm1402, %v1278
      %1462 = vst.msk [vmem:[#allocation2 + $0xec] sm:$0xf] %vm1402, %v1279
      %1463 = vst.msk [vmem:[#allocation2 + $0xf0] sm:$0xf] %vm1402, %v1280
      %1464 = vst.msk [vmem:[#allocation2 + $0xf4] sm:$0xf] %vm1402, %v1281
      %1465 = vst.msk [vmem:[#allocation2 + $0xf8] sm:$0xf] %vm1402, %v1282
      %1466 = vst.msk [vmem:[#allocation2 + $0xfc] sm:$0xf] %vm1402, %v1283
      %1467 = vst.msk [vmem:[#allocation2 + $0x100] sm:$0xf] %vm1402, %v1284
      %1468 = vst.msk [vmem:[#allocation2 + $0x104] sm:$0xf] %vm1402, %v1285
      %1469 = vst.msk [vmem:[#allocation2 + $0x108] sm:$0xf] %vm1402, %v1286
      %1470 = vst.msk [vmem:[#allocation2 + $0x10c] sm:$0xf] %vm1402, %v1287
      %1471 = vst.msk [vmem:[#allocation2 + $0x110] sm:$0xf] %vm1402, %v1288
      %1472 = vst.msk [vmem:[#allocation2 + $0x114] sm:$0xf] %vm1402, %v1289
      %1473 = vst.msk [vmem:[#allocation2 + $0x118] sm:$0xf] %vm1402, %v1290
      %1474 = vst.msk [vmem:[#allocation2 + $0x11c] sm:$0xf] %vm1402, %v1291
      %1475 = vst.msk [vmem:[#allocation2 + $0x120] sm:$0xf] %vm1402, %v1292
      %1476 = vst.msk [vmem:[#allocation2 + $0x124] sm:$0xf] %vm1402, %v1293
      %1477 = vst.msk [vmem:[#allocation2 + $0x128] sm:$0xf] %vm1402, %v1294
      %1478 = vst.msk [vmem:[#allocation2 + $0x12c] sm:$0xf] %vm1402, %v1295
      %1479 = vst.msk [vmem:[#allocation2 + $0x130] sm:$0xf] %vm1402, %v1296
      %1480 = vst.msk [vmem:[#allocation2 + $0x134] sm:$0xf] %vm1402, %v1297
      %1481 = vst.msk [vmem:[#allocation2 + $0x138] sm:$0xf] %vm1402, %v1298
      %1482 = vst.msk [vmem:[#allocation2 + $0x13c] sm:$0xf] %vm1402, %v1299
      %1483 = vst.msk [vmem:[#allocation2 + $0x140] sm:$0xf] %vm1402, %v1300
      %1484 = vst.msk [vmem:[#allocation2 + $0x144] sm:$0xf] %vm1402, %v1301
      %1485 = vst.msk [vmem:[#allocation2 + $0x148] sm:$0xf] %vm1402, %v1302
      %1486 = vst.msk [vmem:[#allocation2 + $0x14c] sm:$0xf] %vm1402, %v1303
      %1487 = vst.msk [vmem:[#allocation2 + $0x150] sm:$0xf] %vm1402, %v1304
      %1488 = vst.msk [vmem:[#allocation2 + $0x154] sm:$0xf] %vm1402, %v1305
      %1489 = vst.msk [vmem:[#allocation2 + $0x158] sm:$0xf] %vm1402, %v1306
      %1490 = vst.msk [vmem:[#allocation2 + $0x15c] sm:$0xf] %vm1402, %v1307
      %1491 = vst.msk [vmem:[#allocation2 + $0x160] sm:$0xf] %vm1402, %v1308
      %1492 = vst.msk [vmem:[#allocation2 + $0x164] sm:$0xf] %vm1402, %v1309
      %vm1493 = vcmask 779264
      %1494 = vst.msk [vmem:[#allocation2 + $0x168] sm:$0x3] %vm1493, %v1310
      %v1495 = vld [vmem:[#allocation2] sm:$0xf]
      %v1496 = vld [vmem:[#allocation2 + $0x4] sm:$0xf]
      %v1497 = vld [vmem:[#allocation2 + $0x8] sm:$0xf]
      %v1498 = vld [vmem:[#allocation2 + $0xc] sm:$0xf]
      %v1499 = vld [vmem:[#allocation2 + $0x10] sm:$0xf]
      %v1500 = vld [vmem:[#allocation2 + $0x14] sm:$0xf]
      %v1501 = vld [vmem:[#allocation2 + $0x18] sm:$0xf]
      %v1502 = vld [vmem:[#allocation2 + $0x1c] sm:$0xf]
      %v1503 = vld [vmem:[#allocation2 + $0x20] sm:$0xf]
      %v1504 = vld [vmem:[#allocation2 + $0x24] sm:$0xf]
      %v1505 = vld [vmem:[#allocation2 + $0x28] sm:$0xf]
      %v1506 = vld [vmem:[#allocation2 + $0x2c] sm:$0xf]
      %v1507 = vld [vmem:[#allocation2 + $0x30] sm:$0xf]
      %v1508 = vld [vmem:[#allocation2 + $0x34] sm:$0xf]
      %v1509 = vld [vmem:[#allocation2 + $0x38] sm:$0xf]
      %v1510 = vld [vmem:[#allocation2 + $0x3c] sm:$0xf]
      %v1511 = vld [vmem:[#allocation2 + $0x40] sm:$0xf]
      %v1512 = vld [vmem:[#allocation2 + $0x44] sm:$0xf]
      %v1513 = vld [vmem:[#allocation2 + $0x48] sm:$0xf]
      %v1514 = vld [vmem:[#allocation2 + $0x4c] sm:$0xf]
      %v1515 = vld [vmem:[#allocation2 + $0x50] sm:$0xf]
      %v1516 = vld [vmem:[#allocation2 + $0x54] sm:$0xf]
      %v1517 = vld [vmem:[#allocation2 + $0x58] sm:$0xf]
      %v1518 = vld [vmem:[#allocation2 + $0x5c] sm:$0xf]
      %v1519 = vld [vmem:[#allocation2 + $0x60] sm:$0xf]
      %v1520 = vld [vmem:[#allocation2 + $0x64] sm:$0xf]
      %v1521 = vld [vmem:[#allocation2 + $0x68] sm:$0xf]
      %v1522 = vld [vmem:[#allocation2 + $0x6c] sm:$0xf]
      %v1523 = vld [vmem:[#allocation2 + $0x70] sm:$0xf]
      %v1524 = vld [vmem:[#allocation2 + $0x74] sm:$0xf]
      %v1525 = vld [vmem:[#allocation2 + $0x78] sm:$0xf]
      %v1526 = vld [vmem:[#allocation2 + $0x7c] sm:$0xf]
      %v1527 = vld [vmem:[#allocation2 + $0x80] sm:$0xf]
      %v1528 = vld [vmem:[#allocation2 + $0x84] sm:$0xf]
      %v1529 = vld [vmem:[#allocation2 + $0x88] sm:$0xf]
      %v1530 = vld [vmem:[#allocation2 + $0x8c] sm:$0xf]
      %v1531 = vld [vmem:[#allocation2 + $0x90] sm:$0xf]
      %v1532 = vld [vmem:[#allocation2 + $0x94] sm:$0xf]
      %v1533 = vld [vmem:[#allocation2 + $0x98] sm:$0xf]
      %v1534 = vld [vmem:[#allocation2 + $0x9c] sm:$0xf]
      %v1535 = vld [vmem:[#allocation2 + $0xa0] sm:$0xf]
      %v1536 = vld [vmem:[#allocation2 + $0xa4] sm:$0xf]
      %v1537 = vld [vmem:[#allocation2 + $0xa8] sm:$0xf]
      %v1538 = vld [vmem:[#allocation2 + $0xac] sm:$0xf]
      %v1539 = vld [vmem:[#allocation2 + $0xb0] sm:$0xf]
      %v1540 = vld [vmem:[#allocation2 + $0xb4] sm:$0xf]
      %v1541 = vld [vmem:[#allocation2 + $0xb8] sm:$0xf]
      %v1542 = vld [vmem:[#allocation2 + $0xbc] sm:$0xf]
      %v1543 = vld [vmem:[#allocation2 + $0xc0] sm:$0xf]
      %v1544 = vld [vmem:[#allocation2 + $0xc4] sm:$0xf]
      %v1545 = vld [vmem:[#allocation2 + $0xc8] sm:$0xf]
      %v1546 = vld [vmem:[#allocation2 + $0xcc] sm:$0xf]
      %v1547 = vld [vmem:[#allocation2 + $0xd0] sm:$0xf]
      %v1548 = vld [vmem:[#allocation2 + $0xd4] sm:$0xf]
      %v1549 = vld [vmem:[#allocation2 + $0xd8] sm:$0xf]
      %v1550 = vld [vmem:[#allocation2 + $0xdc] sm:$0xf]
      %v1551 = vld [vmem:[#allocation2 + $0xe0] sm:$0xf]
      %v1552 = vld [vmem:[#allocation2 + $0xe4] sm:$0xf]
      %v1553 = vld [vmem:[#allocation2 + $0xe8] sm:$0xf]
      %v1554 = vld [vmem:[#allocation2 + $0xec] sm:$0xf]
      %v1555 = vld [vmem:[#allocation2 + $0xf0] sm:$0xf]
      %v1556 = vld [vmem:[#allocation2 + $0xf4] sm:$0xf]
      %v1557 = vld [vmem:[#allocation2 + $0xf8] sm:$0xf]
      %v1558 = vld [vmem:[#allocation2 + $0xfc] sm:$0xf]
      %v1559 = vld [vmem:[#allocation2 + $0x100] sm:$0xf]
      %v1560 = vld [vmem:[#allocation2 + $0x104] sm:$0xf]
      %v1561 = vld [vmem:[#allocation2 + $0x108] sm:$0xf]
      %v1562 = vld [vmem:[#allocation2 + $0x10c] sm:$0xf]
      %v1563 = vld [vmem:[#allocation2 + $0x110] sm:$0xf]
      %v1564 = vld [vmem:[#allocation2 + $0x114] sm:$0xf]
      %v1565 = vld [vmem:[#allocation2 + $0x118] sm:$0xf]
      %v1566 = vld [vmem:[#allocation2 + $0x11c] sm:$0xf]
      %v1567 = vld [vmem:[#allocation2 + $0x120] sm:$0xf]
      %v1568 = vld [vmem:[#allocation2 + $0x124] sm:$0xf]
      %v1569 = vld [vmem:[#allocation2 + $0x128] sm:$0xf]
      %v1570 = vld [vmem:[#allocation2 + $0x12c] sm:$0xf]
      %v1571 = vld [vmem:[#allocation2 + $0x130] sm:$0xf]
      %v1572 = vld [vmem:[#allocation2 + $0x134] sm:$0xf]
      %v1573 = vld [vmem:[#allocation2 + $0x138] sm:$0xf]
      %v1574 = vld [vmem:[#allocation2 + $0x13c] sm:$0xf]
      %v1575 = vld [vmem:[#allocation2 + $0x140] sm:$0xf]
      %v1576 = vld [vmem:[#allocation2 + $0x144] sm:$0xf]
      %v1577 = vld [vmem:[#allocation2 + $0x148] sm:$0xf]
      %v1578 = vld [vmem:[#allocation2 + $0x14c] sm:$0x3]
      %v1579 = vld [vmem:[%s3] sm:$0xf]
      %v1580 = vld [vmem:[%s3 + $0x4] sm:$0xf]
      %v1581 = vld [vmem:[%s3 + $0x8] sm:$0xf]
      %v1582 = vld [vmem:[%s3 + $0xc] sm:$0xf]
      %v1583 = vld [vmem:[%s3 + $0x10] sm:$0xf]
      %v1584 = vld [vmem:[%s3 + $0x14] sm:$0xf]
      %v1585 = vld [vmem:[%s3 + $0x18] sm:$0xf]
      %v1586 = vld [vmem:[%s3 + $0x1c] sm:$0xf]
      %v1587 = vld [vmem:[%s3 + $0x20] sm:$0xf]
      %v1588 = vld [vmem:[%s3 + $0x24] sm:$0xf]
      %v1589 = vld [vmem:[%s3 + $0x28] sm:$0xf]
      %v1590 = vld [vmem:[%s3 + $0x2c] sm:$0xf]
      %v1591 = vld [vmem:[#allocation2 + $0xc] sm:$0xc]
      %v1592 = vld [vmem:[#allocation2 + $0x14c] sm:$0xf]
      %v1593 = vld [vmem:[#allocation2 + $0x150] sm:$0xf]
      %v1594 = vld [vmem:[#allocation2 + $0x154] sm:$0xf]
      %v1595 = vld [vmem:[#allocation2 + $0x158] sm:$0xf]
      %s1596 = scalar_lea.vmem %s3, 48
      %v1597 = vld [vmem:[%s1596] sm:$0xf]
      %v1598 = vld [vmem:[%s1596 + $0x4] sm:$0xf]
      %v1599 = vld [vmem:[%s1596 + $0x8] sm:$0xf]
      %v1600 = vld [vmem:[%s1596 + $0xc] sm:$0xf]
      %v1601 = vld [vmem:[%s1596 + $0x10] sm:$0xf]
      %v1602 = vld [vmem:[%s1596 + $0x14] sm:$0xf]
      %v1603 = vld [vmem:[%s1596 + $0x18] sm:$0xf]
      %v1604 = vld [vmem:[%s1596 + $0x1c] sm:$0xf]
      %v1605 = vld [vmem:[%s1596 + $0x20] sm:$0xf]
      %v1606 = vld [vmem:[%s1596 + $0x24] sm:$0xf]
      %v1607 = vld [vmem:[%s1596 + $0x28] sm:$0xf]
      %v1608 = vld [vmem:[%s1596 + $0x2c] sm:$0xf]
      %v1693 = vunpack.c.l.b16 %v1591
      %v1694 = vunpack.c.l.b16 %v1499
      %v1695 = vunpack.c.l.b16 %v1500
      %v1696 = vunpack.c.l.b16 %v1501
      %v1697 = vunpack.c.l.b16 %v1502
      %v1698 = vunpack.c.l.b16 %v1503
      %v1699 = vunpack.c.l.b16 %v1504
      %v1700 = vunpack.c.l.b16 %v1505
      %v1701 = vunpack.c.l.b16 %v1506
      %v1702 = vunpack.c.l.b16 %v1507
      %v1703 = vunpack.c.l.b16 %v1508
      %v1704 = vunpack.c.l.b16 %v1509
      %v1705 = vunpack.c.l.b16 %v1510
      %v1706 = vunpack.c.l.b16 %v1511
      %v1707 = vunpack.c.l.b16 %v1512
      %v1708 = vunpack.c.l.b16 %v1513
      %v1709 = vunpack.c.l.b16 %v1514
      %v1710 = vunpack.c.l.b16 %v1515
      %v1711 = vunpack.c.l.b16 %v1516
      %v1712 = vunpack.c.l.b16 %v1517
      %v1713 = vunpack.c.l.b16 %v1518
      %v1714 = vunpack.c.l.b16 %v1519
      %v1715 = vunpack.c.l.b16 %v1520
      %v1716 = vunpack.c.l.b16 %v1521
      %v1717 = vunpack.c.l.b16 %v1522
      %v1718 = vunpack.c.l.b16 %v1523
      %v1719 = vunpack.c.l.b16 %v1524
      %v1720 = vunpack.c.l.b16 %v1525
      %v1721 = vunpack.c.l.b16 %v1526
      %v1722 = vunpack.c.l.b16 %v1527
      %v1723 = vunpack.c.l.b16 %v1528
      %v1724 = vunpack.c.l.b16 %v1529
      %v1725 = vunpack.c.l.b16 %v1530
      %v1726 = vunpack.c.l.b16 %v1531
      %v1727 = vunpack.c.l.b16 %v1532
      %v1728 = vunpack.c.l.b16 %v1533
      %v1729 = vunpack.c.l.b16 %v1534
      %v1730 = vunpack.c.l.b16 %v1535
      %v1731 = vunpack.c.l.b16 %v1536
      %v1732 = vunpack.c.l.b16 %v1537
      %v1733 = vunpack.c.l.b16 %v1538
      %v1734 = vunpack.c.l.b16 %v1539
      %v1735 = vunpack.c.l.b16 %v1540
      %v1736 = vunpack.c.l.b16 %v1541
      %v1737 = vunpack.c.l.b16 %v1542
      %v1738 = vunpack.c.l.b16 %v1543
      %v1739 = vunpack.c.l.b16 %v1544
      %v1740 = vunpack.c.l.b16 %v1545
      %v1741 = vunpack.c.l.b16 %v1546
      %v1742 = vunpack.c.l.b16 %v1547
      %v1743 = vunpack.c.l.b16 %v1548
      %v1744 = vunpack.c.l.b16 %v1549
      %v1745 = vunpack.c.l.b16 %v1550
      %v1746 = vunpack.c.l.b16 %v1551
      %v1747 = vunpack.c.l.b16 %v1552
      %v1748 = vunpack.c.l.b16 %v1553
      %v1749 = vunpack.c.l.b16 %v1554
      %v1750 = vunpack.c.l.b16 %v1555
      %v1751 = vunpack.c.l.b16 %v1556
      %v1752 = vunpack.c.l.b16 %v1557
      %v1753 = vunpack.c.l.b16 %v1558
      %v1754 = vunpack.c.l.b16 %v1559
      %v1755 = vunpack.c.l.b16 %v1560
      %v1756 = vunpack.c.l.b16 %v1561
      %v1757 = vunpack.c.l.b16 %v1562
      %v1758 = vunpack.c.l.b16 %v1563
      %v1759 = vunpack.c.l.b16 %v1564
      %v1760 = vunpack.c.l.b16 %v1565
      %v1761 = vunpack.c.l.b16 %v1566
      %v1762 = vunpack.c.l.b16 %v1567
      %v1763 = vunpack.c.l.b16 %v1568
      %v1764 = vunpack.c.l.b16 %v1569
      %v1765 = vunpack.c.l.b16 %v1570
      %v1766 = vunpack.c.l.b16 %v1571
      %v1767 = vunpack.c.l.b16 %v1572
      %v1768 = vunpack.c.l.b16 %v1573
      %v1769 = vunpack.c.l.b16 %v1574
      %v1770 = vunpack.c.l.b16 %v1575
      %v1771 = vunpack.c.l.b16 %v1576
      %v1772 = vunpack.c.l.b16 %v1577
      %v1773 = vunpack.c.l.b16 %v1592
      %v1774 = vunpack.c.l.b16 %v1593
      %v1775 = vunpack.c.l.b16 %v1594
      %v1776 = vunpack.c.l.b16 %v1595
      %v1777 = vpack.c.b16 %v1694, %v1693
      %v1778 = vpack.c.b16 %v1696, %v1695
      %v1779 = vpack.c.b16 %v1698, %v1697
      %v1780 = vpack.c.b16 %v1700, %v1699
      %v1781 = vpack.c.b16 %v1702, %v1701
      %v1782 = vpack.c.b16 %v1704, %v1703
      %v1783 = vpack.c.b16 %v1706, %v1705
      %v1784 = vpack.c.b16 %v1708, %v1707
      %v1785 = vpack.c.b16 %v1710, %v1709
      %v1786 = vpack.c.b16 %v1712, %v1711
      %v1787 = vpack.c.b16 %v1714, %v1713
      %v1788 = vpack.c.b16 %v1716, %v1715
      %v1789 = vpack.c.b16 %v1718, %v1717
      %v1790 = vpack.c.b16 %v1720, %v1719
      %v1791 = vpack.c.b16 %v1722, %v1721
      %v1792 = vpack.c.b16 %v1724, %v1723
      %v1793 = vpack.c.b16 %v1726, %v1725
      %v1794 = vpack.c.b16 %v1728, %v1727
      %v1795 = vpack.c.b16 %v1730, %v1729
      %v1796 = vpack.c.b16 %v1732, %v1731
      %v1797 = vpack.c.b16 %v1734, %v1733
      %v1798 = vpack.c.b16 %v1736, %v1735
      %v1799 = vpack.c.b16 %v1738, %v1737
      %v1800 = vpack.c.b16 %v1740, %v1739
      %v1801 = vpack.c.b16 %v1742, %v1741
      %v1802 = vpack.c.b16 %v1744, %v1743
      %v1803 = vpack.c.b16 %v1746, %v1745
      %v1804 = vpack.c.b16 %v1748, %v1747
      %v1805 = vpack.c.b16 %v1750, %v1749
      %v1806 = vpack.c.b16 %v1752, %v1751
      %v1807 = vpack.c.b16 %v1754, %v1753
      %v1808 = vpack.c.b16 %v1756, %v1755
      %v1809 = vpack.c.b16 %v1758, %v1757
      %v1810 = vpack.c.b16 %v1760, %v1759
      %v1811 = vpack.c.b16 %v1762, %v1761
      %v1812 = vpack.c.b16 %v1764, %v1763
      %v1813 = vpack.c.b16 %v1766, %v1765
      %v1814 = vpack.c.b16 %v1768, %v1767
      %v1815 = vpack.c.b16 %v1770, %v1769
      %v1816 = vpack.c.b16 %v1772, %v1771
      %v1817 = vpack.c.b16 %v1774, %v1773
      %v1818 = vpack.c.b16 %v1776, %v1775
      %vm1819 = vcmask 1045504
      %v1820 = vrot.slane %v1777, 2
      %v1821 = vrot.slane %v1778, 2
      %v1822 = vsel %vm1819, %v1820, %v1821
      %v1823 = vrot.slane %v1779, 2
      %v1824 = vsel %vm1819, %v1821, %v1823
      %v1825 = vrot.slane %v1780, 2
      %v1826 = vsel %vm1819, %v1823, %v1825
      %v1827 = vrot.slane %v1781, 2
      %v1828 = vsel %vm1819, %v1825, %v1827
      %v1829 = vrot.slane %v1782, 2
      %v1830 = vsel %vm1819, %v1827, %v1829
      %v1831 = vrot.slane %v1783, 2
      %v1832 = vsel %vm1819, %v1829, %v1831
      %v1833 = vrot.slane %v1784, 2
      %v1834 = vsel %vm1819, %v1831, %v1833
      %v1835 = vrot.slane %v1785, 2
      %v1836 = vsel %vm1819, %v1833, %v1835
      %v1837 = vrot.slane %v1786, 2
      %v1838 = vsel %vm1819, %v1835, %v1837
      %v1839 = vrot.slane %v1787, 2
      %v1840 = vsel %vm1819, %v1837, %v1839
      %v1841 = vrot.slane %v1788, 2
      %v1842 = vsel %vm1819, %v1839, %v1841
      %v1843 = vrot.slane %v1789, 2
      %v1844 = vsel %vm1819, %v1841, %v1843
      %v1845 = vrot.slane %v1790, 2
      %v1846 = vsel %vm1819, %v1843, %v1845
      %v1847 = vrot.slane %v1791, 2
      %v1848 = vsel %vm1819, %v1845, %v1847
      %v1849 = vrot.slane %v1792, 2
      %v1850 = vsel %vm1819, %v1847, %v1849
      %v1851 = vrot.slane %v1793, 2
      %v1852 = vsel %vm1819, %v1849, %v1851
      %v1853 = vrot.slane %v1794, 2
      %v1854 = vsel %vm1819, %v1851, %v1853
      %v1855 = vrot.slane %v1795, 2
      %v1856 = vsel %vm1819, %v1853, %v1855
      %v1857 = vrot.slane %v1796, 2
      %v1858 = vsel %vm1819, %v1855, %v1857
      %v1859 = vrot.slane %v1797, 2
      %v1860 = vsel %vm1819, %v1857, %v1859
      %v1861 = vrot.slane %v1798, 2
      %v1862 = vsel %vm1819, %v1859, %v1861
      %v1863 = vrot.slane %v1799, 2
      %v1864 = vsel %vm1819, %v1861, %v1863
      %v1865 = vrot.slane %v1800, 2
      %v1866 = vsel %vm1819, %v1863, %v1865
      %v1867 = vrot.slane %v1801, 2
      %v1868 = vsel %vm1819, %v1865, %v1867
      %v1869 = vrot.slane %v1802, 2
      %v1870 = vsel %vm1819, %v1867, %v1869
      %v1871 = vrot.slane %v1803, 2
      %v1872 = vsel %vm1819, %v1869, %v1871
      %v1873 = vrot.slane %v1804, 2
      %v1874 = vsel %vm1819, %v1871, %v1873
      %v1875 = vrot.slane %v1805, 2
      %v1876 = vsel %vm1819, %v1873, %v1875
      %v1877 = vrot.slane %v1806, 2
      %v1878 = vsel %vm1819, %v1875, %v1877
      %v1879 = vrot.slane %v1807, 2
      %v1880 = vsel %vm1819, %v1877, %v1879
      %v1881 = vrot.slane %v1808, 2
      %v1882 = vsel %vm1819, %v1879, %v1881
      %v1883 = vrot.slane %v1809, 2
      %v1884 = vsel %vm1819, %v1881, %v1883
      %v1885 = vrot.slane %v1810, 2
      %v1886 = vsel %vm1819, %v1883, %v1885
      %v1887 = vrot.slane %v1811, 2
      %v1888 = vsel %vm1819, %v1885, %v1887
      %v1889 = vrot.slane %v1812, 2
      %v1890 = vsel %vm1819, %v1887, %v1889
      %v1891 = vrot.slane %v1813, 2
      %v1892 = vsel %vm1819, %v1889, %v1891
      %v1893 = vrot.slane %v1814, 2
      %v1894 = vsel %vm1819, %v1891, %v1893
      %v1895 = vrot.slane %v1815, 2
      %v1896 = vsel %vm1819, %v1893, %v1895
      %v1897 = vrot.slane %v1816, 2
      %v1898 = vsel %vm1819, %v1895, %v1897
      %v1899 = vrot.slane %v1817, 2
      %v1900 = vsel %vm1819, %v1897, %v1899
      %v1901 = vrot.slane %v1818, 2
      %v1902 = vsel %vm1819, %v1899, %v1901
      %v1915 = vunpack.c.l.b16 %v1597
      %v1916 = vunpack.c.l.b16 %v1598
      %v1917 = vunpack.c.l.b16 %v1599
      %v1918 = vunpack.c.l.b16 %v1600
      %v1919 = vunpack.c.l.b16 %v1601
      %v1920 = vunpack.c.l.b16 %v1602
      %v1921 = vunpack.c.l.b16 %v1603
      %v1922 = vunpack.c.l.b16 %v1604
      %v1923 = vunpack.c.l.b16 %v1605
      %v1924 = vunpack.c.l.b16 %v1606
      %v1925 = vunpack.c.l.b16 %v1607
      %v1926 = vunpack.c.l.b16 %v1608
      %v1927 = vpack.c.b16 %v1916, %v1915
      %v1928 = vpack.c.b16 %v1918, %v1917
      %v1929 = vpack.c.b16 %v1920, %v1919
      %v1930 = vpack.c.b16 %v1922, %v1921
      %v1931 = vpack.c.b16 %v1924, %v1923
      %v1932 = vpack.c.b16 %v1926, %v1925
      %vm1939 = vcmask 785408
      %v1941 = vsel %vm1939, %v1822, 0
      %v1944 = vsel %vm1939, %v1824, 0
      %v1947 = vsel %vm1939, %v1826, 0
      %v1950 = vsel %vm1939, %v1828, 0
      %v1953 = vsel %vm1939, %v1830, 0
      %v1956 = vsel %vm1939, %v1832, 0
      %v1959 = vsel %vm1939, %v1834, 0
      %v1962 = vsel %vm1939, %v1836, 0
      %v1965 = vsel %vm1939, %v1838, 0
      %v1968 = vsel %vm1939, %v1840, 0
      %v1971 = vsel %vm1939, %v1842, 0
      %v1974 = vsel %vm1939, %v1844, 0
      %v1977 = vsel %vm1939, %v1846, 0
      %v1980 = vsel %vm1939, %v1848, 0
      %v1983 = vsel %vm1939, %v1850, 0
      %v1986 = vsel %vm1939, %v1852, 0
      %v1989 = vsel %vm1939, %v1854, 0
      %v1992 = vsel %vm1939, %v1856, 0
      %v1995 = vsel %vm1939, %v1858, 0
      %v1998 = vsel %vm1939, %v1860, 0
      %v2001 = vsel %vm1939, %v1862, 0
      %v2004 = vsel %vm1939, %v1864, 0
      %v2007 = vsel %vm1939, %v1866, 0
      %v2010 = vsel %vm1939, %v1868, 0
      %v2013 = vsel %vm1939, %v1870, 0
      %v2016 = vsel %vm1939, %v1872, 0
      %v2019 = vsel %vm1939, %v1874, 0
      %v2022 = vsel %vm1939, %v1876, 0
      %v2025 = vsel %vm1939, %v1878, 0
      %v2028 = vsel %vm1939, %v1880, 0
      %v2031 = vsel %vm1939, %v1882, 0
      %v2034 = vsel %vm1939, %v1884, 0
      %v2037 = vsel %vm1939, %v1886, 0
      %v2040 = vsel %vm1939, %v1888, 0
      %v2043 = vsel %vm1939, %v1890, 0
      %v2046 = vsel %vm1939, %v1892, 0
      %v2049 = vsel %vm1939, %v1894, 0
      %v2052 = vsel %vm1939, %v1896, 0
      %v2055 = vsel %vm1939, %v1898, 0
      %v2058 = vsel %vm1939, %v1900, 0
      %v2061 = vsel %vm1939, %v1902, 0
      %v2064 = vsel %vm1939, %v1901, 0
      %2066 = vmatprep.subr.bf16.mxu0 0
      %2067 = vmatpush1.bf16.msra.mxu0 %v1927
      %2068 = vmatprep.subr.bf16.mxu0 0
      %2069 = vmatpush1.bf16.msra.mxu0 %v1928
      %2070 = vmatprep.subr.bf16.mxu0 0
      %2071 = vmatpush1.bf16.msra.mxu0 %v1929
      %2072 = vmatprep.subr.bf16.mxu0 0
      %2073 = vmatpush1.bf16.msra.mxu0 %v1930
      %2074 = vmatprep.subr.bf16.mxu0 0
      %2075 = vmatpush1.bf16.msra.mxu0 %v1931
      %2076 = vmatprep.subr.bf16.mxu0 0
      %2077 = vmatpush1.bf16.msra.mxu0 %v1932
      %2078 = vmatprep.subr.bf16.mxu0 0
      %2079 = vmatpush1.bf16.msra.mxu0 0
      %2080 = vmatprep.subr.bf16.mxu0 0
      %2081 = vmatpush1.bf16.msra.mxu0 0
      %2082 = vmatprep.subr.bf16.mxu0 0
      %2083 = vmatpush1.bf16.msra.mxu0 0
      %2084 = vmatprep.subr.bf16.mxu0 0
      %2085 = vmatpush1.bf16.msra.mxu0 0
      %2086 = vmatprep.subr.bf16.mxu0 0
      %2087 = vmatpush1.bf16.msra.mxu0 0
      %2088 = vmatprep.subr.bf16.mxu0 0
      %2089 = vmatpush1.bf16.msra.mxu0 0
      %2090 = vmatprep.subr.bf16.mxu0 0
      %2091 = vmatpush1.bf16.msra.mxu0 0
      %2092 = vmatprep.subr.bf16.mxu0 0
      %2093 = vmatpush1.bf16.msra.mxu0 0
      %2094 = vmatprep.subr.bf16.mxu0 0
      %2095 = vmatpush1.bf16.msra.mxu0 0
      %2096 = vmatprep.subr.bf16.mxu0 0
      %2097 = vmatpush1.bf16.msra.mxu0 0
      %2098 = vmatprep.mubr.bf16.mxu0 0
      %2099 = vmatmul.mubr.bf16.gmra.mrb[0].mxu0 %v1941
      %v2100 = vpop.f32.mrb[0].mxu0
      %v2101 = vadd.f32 0.0, %v2100
      %v2102 = vpop.f32.mrb[0].mxu0
      %v2103 = vpop.f32.mrb[0].mxu0
      %v2104 = vadd.f32 0.0, %v2103
      %v2105 = vpop.f32.mrb[0].mxu0
      %2106 = vmatprep.mubr.bf16.mxu0 0
      %2107 = vmatmul.mubr.bf16.gmra.mrb[0].mxu0 %v1944
      %v2108 = vpop.f32.mrb[0].mxu0
      %v2109 = vadd.f32 0.0, %v2108
      %v2110 = vpop.f32.mrb[0].mxu0
      %v2111 = vpop.f32.mrb[0].mxu0
      %v2112 = vadd.f32 0.0, %v2111
      %v2113 = vpop.f32.mrb[0].mxu0
      %2114 = vmatprep.mubr.bf16.mxu0 0
      %2115 = vmatmul.mubr.bf16.gmra.mrb[0].mxu0 %v1947
      %v2116 = vpop.f32.mrb[0].mxu0
      %v2117 = vadd.f32 0.0, %v2116
      %v2118 = vpop.f32.mrb[0].mxu0
      %v2119 = vpop.f32.mrb[0].mxu0
      %v2120 = vadd.f32 0.0, %v2119
      %v2121 = vpop.f32.mrb[0].mxu0
      %2122 = vmatprep.mubr.bf16.mxu0 0
      %2123 = vmatmul.mubr.bf16.gmra.mrb[0].mxu0 %v1950
      %v2124 = vpop.f32.mrb[0].mxu0
      %v2125 = vadd.f32 0.0, %v2124
      %v2126 = vpop.f32.mrb[0].mxu0
      %v2127 = vpop.f32.mrb[0].mxu0
      %v2128 = vadd.f32 0.0, %v2127
      %v2129 = vpop.f32.mrb[0].mxu0
      %2130 = vmatprep.mubr.bf16.mxu0 0
      %2131 = vmatmul.mubr.bf16.gmra.mrb[0].mxu0 %v1953
      %v2132 = vpop.f32.mrb[0].mxu0
      %v2133 = vadd.f32 0.0, %v2132
      %v2134 = vpop.f32.mrb[0].mxu0
      %v2135 = vpop.f32.mrb[0].mxu0
      %v2136 = vadd.f32 0.0, %v2135
      %v2137 = vpop.f32.mrb[0].mxu0
      %2138 = vmatprep.mubr.bf16.mxu0 0
      %2139 = vmatmul.mubr.bf16.gmra.mrb[0].mxu0 %v1956
      %v2140 = vpop.f32.mrb[0].mxu0
      %v2141 = vadd.f32 0.0, %v2140
      %v2142 = vpop.f32.mrb[0].mxu0
      %v2143 = vpop.f32.mrb[0].mxu0
      %v2144 = vadd.f32 0.0, %v2143
      %v2145 = vpop.f32.mrb[0].mxu0
      %2146 = vmatprep.mubr.bf16.mxu0 0
      %2147 = vmatmul.mubr.bf16.gmra.mrb[0].mxu0 %v1959
      %v2148 = vpop.f32.mrb[0].mxu0
      %v2149 = vadd.f32 0.0, %v2148
      %v2150 = vpop.f32.mrb[0].mxu0
      %v2151 = vpop.f32.mrb[0].mxu0
      %v2152 = vadd.f32 0.0, %v2151
      %v2153 = vpop.f32.mrb[0].mxu0
      %2154 = vmatprep.mubr.bf16.mxu0 0
      %2155 = vmatmul.mubr.bf16.gmra.mrb[0].mxu0 %v1962
      %v2156 = vpop.f32.mrb[0].mxu0
      %v2157 = vadd.f32 0.0, %v2156
      %v2158 = vpop.f32.mrb[0].mxu0
      %v2159 = vpop.f32.mrb[0].mxu0
      %v2160 = vadd.f32 0.0, %v2159
      %v2161 = vpop.f32.mrb[0].mxu0
      %2162 = vmatprep.mubr.bf16.mxu0 0
      %2163 = vmatmul.mubr.bf16.gmra.mrb[0].mxu0 %v1965
      %v2164 = vpop.f32.mrb[0].mxu0
      %v2165 = vadd.f32 0.0, %v2164
      %v2166 = vpop.f32.mrb[0].mxu0
      %v2167 = vpop.f32.mrb[0].mxu0
      %v2168 = vadd.f32 0.0, %v2167
      %v2169 = vpop.f32.mrb[0].mxu0
      %2170 = vmatprep.mubr.bf16.mxu0 0
      %2171 = vmatmul.mubr.bf16.gmra.mrb[0].mxu0 %v1968
      %v2172 = vpop.f32.mrb[0].mxu0
      %v2173 = vadd.f32 0.0, %v2172
      %v2174 = vpop.f32.mrb[0].mxu0
      %v2175 = vpop.f32.mrb[0].mxu0
      %v2176 = vadd.f32 0.0, %v2175
      %v2177 = vpop.f32.mrb[0].mxu0
      %2178 = vmatprep.mubr.bf16.mxu0 0
      %2179 = vmatmul.mubr.bf16.gmra.mrb[0].mxu0 %v1971
      %v2180 = vpop.f32.mrb[0].mxu0
      %v2181 = vadd.f32 0.0, %v2180
      %v2182 = vpop.f32.mrb[0].mxu0
      %v2183 = vpop.f32.mrb[0].mxu0
      %v2184 = vadd.f32 0.0, %v2183
      %v2185 = vpop.f32.mrb[0].mxu0
      %2186 = vmatprep.mubr.bf16.mxu0 0
      %2187 = vmatmul.mubr.bf16.gmra.mrb[0].mxu0 %v1974
      %v2188 = vpop.f32.mrb[0].mxu0
      %v2189 = vadd.f32 0.0, %v2188
      %v2190 = vpop.f32.mrb[0].mxu0
      %v2191 = vpop.f32.mrb[0].mxu0
      %v2192 = vadd.f32 0.0, %v2191
      %v2193 = vpop.f32.mrb[0].mxu0
      %2194 = vmatprep.mubr.bf16.mxu0 0
      %2195 = vmatmul.mubr.bf16.gmra.mrb[0].mxu0 %v1977
      %v2196 = vpop.f32.mrb[0].mxu0
      %v2197 = vadd.f32 0.0, %v2196
      %v2198 = vpop.f32.mrb[0].mxu0
      %v2199 = vpop.f32.mrb[0].mxu0
      %v2200 = vadd.f32 0.0, %v2199
      %v2201 = vpop.f32.mrb[0].mxu0
      %2202 = vmatprep.mubr.bf16.mxu0 0
      %2203 = vmatmul.mubr.bf16.gmra.mrb[0].mxu0 %v1980
      %v2204 = vpop.f32.mrb[0].mxu0
      %v2205 = vadd.f32 0.0, %v2204
      %v2206 = vpop.f32.mrb[0].mxu0
      %v2207 = vpop.f32.mrb[0].mxu0
      %v2208 = vadd.f32 0.0, %v2207
      %v2209 = vpop.f32.mrb[0].mxu0
      %2210 = vmatprep.mubr.bf16.mxu0 0
      %2211 = vmatmul.mubr.bf16.gmra.mrb[0].mxu0 %v1983
      %v2212 = vpop.f32.mrb[0].mxu0
      %v2213 = vadd.f32 0.0, %v2212
      %v2214 = vpop.f32.mrb[0].mxu0
      %v2215 = vpop.f32.mrb[0].mxu0
      %v2216 = vadd.f32 0.0, %v2215
      %v2217 = vpop.f32.mrb[0].mxu0
      %2218 = vmatprep.mubr.bf16.mxu0 0
      %2219 = vmatmul.mubr.bf16.gmra.mrb[0].mxu0 %v1986
      %v2220 = vpop.f32.mrb[0].mxu0
      %v2221 = vadd.f32 0.0, %v2220
      %v2222 = vpop.f32.mrb[0].mxu0
      %v2223 = vpop.f32.mrb[0].mxu0
      %v2224 = vadd.f32 0.0, %v2223
      %v2225 = vpop.f32.mrb[0].mxu0
      %2226 = vmatprep.mubr.bf16.mxu0 0
      %2227 = vmatmul.mubr.bf16.gmra.mrb[0].mxu0 %v1989
      %v2228 = vpop.f32.mrb[0].mxu0
      %v2229 = vadd.f32 0.0, %v2228
      %v2230 = vpop.f32.mrb[0].mxu0
      %v2231 = vpop.f32.mrb[0].mxu0
      %v2232 = vadd.f32 0.0, %v2231
      %v2233 = vpop.f32.mrb[0].mxu0
      %2234 = vmatprep.mubr.bf16.mxu0 0
      %2235 = vmatmul.mubr.bf16.gmra.mrb[0].mxu0 %v1992
      %v2236 = vpop.f32.mrb[0].mxu0
      %v2237 = vadd.f32 0.0, %v2236
      %v2238 = vpop.f32.mrb[0].mxu0
      %v2239 = vpop.f32.mrb[0].mxu0
      %v2240 = vadd.f32 0.0, %v2239
      %v2241 = vpop.f32.mrb[0].mxu0
      %2242 = vmatprep.mubr.bf16.mxu0 0
      %2243 = vmatmul.mubr.bf16.gmra.mrb[0].mxu0 %v1995
      %v2244 = vpop.f32.mrb[0].mxu0
      %v2245 = vadd.f32 0.0, %v2244
      %v2246 = vpop.f32.mrb[0].mxu0
      %v2247 = vpop.f32.mrb[0].mxu0
      %v2248 = vadd.f32 0.0, %v2247
      %v2249 = vpop.f32.mrb[0].mxu0
      %2250 = vmatprep.mubr.bf16.mxu0 0
      %2251 = vmatmul.mubr.bf16.gmra.mrb[0].mxu0 %v1998
      %v2252 = vpop.f32.mrb[0].mxu0
      %v2253 = vadd.f32 0.0, %v2252
      %v2254 = vpop.f32.mrb[0].mxu0
      %v2255 = vpop.f32.mrb[0].mxu0
      %v2256 = vadd.f32 0.0, %v2255
      %v2257 = vpop.f32.mrb[0].mxu0
      %2258 = vmatprep.mubr.bf16.mxu0 0
      %2259 = vmatmul.mubr.bf16.gmra.mrb[0].mxu0 %v2001
      %v2260 = vpop.f32.mrb[0].mxu0
      %v2261 = vadd.f32 0.0, %v2260
      %v2262 = vpop.f32.mrb[0].mxu0
      %v2263 = vpop.f32.mrb[0].mxu0
      %v2264 = vadd.f32 0.0, %v2263
      %v2265 = vpop.f32.mrb[0].mxu0
      %2266 = vmatprep.mubr.bf16.mxu0 0
      %2267 = vmatmul.mubr.bf16.gmra.mrb[0].mxu0 %v2004
      %v2268 = vpop.f32.mrb[0].mxu0
      %v2269 = vadd.f32 0.0, %v2268
      %v2270 = vpop.f32.mrb[0].mxu0
      %v2271 = vpop.f32.mrb[0].mxu0
      %v2272 = vadd.f32 0.0, %v2271
      %v2273 = vpop.f32.mrb[0].mxu0
      %2274 = vmatprep.mubr.bf16.mxu0 0
      %2275 = vmatmul.mubr.bf16.gmra.mrb[0].mxu0 %v2007
      %v2276 = vpop.f32.mrb[0].mxu0
      %v2277 = vadd.f32 0.0, %v2276
      %v2278 = vpop.f32.mrb[0].mxu0
      %v2279 = vpop.f32.mrb[0].mxu0
      %v2280 = vadd.f32 0.0, %v2279
      %v2281 = vpop.f32.mrb[0].mxu0
      %2282 = vmatprep.mubr.bf16.mxu0 0
      %2283 = vmatmul.mubr.bf16.gmra.mrb[0].mxu0 %v2010
      %v2284 = vpop.f32.mrb[0].mxu0
      %v2285 = vadd.f32 0.0, %v2284
      %v2286 = vpop.f32.mrb[0].mxu0
      %v2287 = vpop.f32.mrb[0].mxu0
      %v2288 = vadd.f32 0.0, %v2287
      %v2289 = vpop.f32.mrb[0].mxu0
      %2290 = vmatprep.mubr.bf16.mxu0 0
      %2291 = vmatmul.mubr.bf16.gmra.mrb[0].mxu0 %v2013
      %v2292 = vpop.f32.mrb[0].mxu0
      %v2293 = vadd.f32 0.0, %v2292
      %v2294 = vpop.f32.mrb[0].mxu0
      %v2295 = vpop.f32.mrb[0].mxu0
      %v2296 = vadd.f32 0.0, %v2295
      %v2297 = vpop.f32.mrb[0].mxu0
      %2298 = vmatprep.mubr.bf16.mxu0 0
      %2299 = vmatmul.mubr.bf16.gmra.mrb[0].mxu0 %v2016
      %v2300 = vpop.f32.mrb[0].mxu0
      %v2301 = vadd.f32 0.0, %v2300
      %v2302 = vpop.f32.mrb[0].mxu0
      %v2303 = vpop.f32.mrb[0].mxu0
      %v2304 = vadd.f32 0.0, %v2303
      %v2305 = vpop.f32.mrb[0].mxu0
      %2306 = vmatprep.mubr.bf16.mxu0 0
      %2307 = vmatmul.mubr.bf16.gmra.mrb[0].mxu0 %v2019
      %v2308 = vpop.f32.mrb[0].mxu0
      %v2309 = vadd.f32 0.0, %v2308
      %v2310 = vpop.f32.mrb[0].mxu0
      %v2311 = vpop.f32.mrb[0].mxu0
      %v2312 = vadd.f32 0.0, %v2311
      %v2313 = vpop.f32.mrb[0].mxu0
      %2314 = vmatprep.mubr.bf16.mxu0 0
      %2315 = vmatmul.mubr.bf16.gmra.mrb[0].mxu0 %v2022
      %v2316 = vpop.f32.mrb[0].mxu0
      %v2317 = vadd.f32 0.0, %v2316
      %v2318 = vpop.f32.mrb[0].mxu0
      %v2319 = vpop.f32.mrb[0].mxu0
      %v2320 = vadd.f32 0.0, %v2319
      %v2321 = vpop.f32.mrb[0].mxu0
      %2322 = vmatprep.mubr.bf16.mxu0 0
      %2323 = vmatmul.mubr.bf16.gmra.mrb[0].mxu0 %v2025
      %v2324 = vpop.f32.mrb[0].mxu0
      %v2325 = vadd.f32 0.0, %v2324
      %v2326 = vpop.f32.mrb[0].mxu0
      %v2327 = vpop.f32.mrb[0].mxu0
      %v2328 = vadd.f32 0.0, %v2327
      %v2329 = vpop.f32.mrb[0].mxu0
      %2330 = vmatprep.mubr.bf16.mxu0 0
      %2331 = vmatmul.mubr.bf16.gmra.mrb[0].mxu0 %v2028
      %v2332 = vpop.f32.mrb[0].mxu0
      %v2333 = vadd.f32 0.0, %v2332
      %v2334 = vpop.f32.mrb[0].mxu0
      %v2335 = vpop.f32.mrb[0].mxu0
      %v2336 = vadd.f32 0.0, %v2335
      %v2337 = vpop.f32.mrb[0].mxu0
      %2338 = vmatprep.mubr.bf16.mxu0 0
      %2339 = vmatmul.mubr.bf16.gmra.mrb[0].mxu0 %v2031
      %v2340 = vpop.f32.mrb[0].mxu0
      %v2341 = vadd.f32 0.0, %v2340
      %v2342 = vpop.f32.mrb[0].mxu0
      %v2343 = vpop.f32.mrb[0].mxu0
      %v2344 = vadd.f32 0.0, %v2343
      %v2345 = vpop.f32.mrb[0].mxu0
      %2346 = vmatprep.mubr.bf16.mxu0 0
      %2347 = vmatmul.mubr.bf16.gmra.mrb[0].mxu0 %v2034
      %v2348 = vpop.f32.mrb[0].mxu0
      %v2349 = vadd.f32 0.0, %v2348
      %v2350 = vpop.f32.mrb[0].mxu0
      %v2351 = vpop.f32.mrb[0].mxu0
      %v2352 = vadd.f32 0.0, %v2351
      %v2353 = vpop.f32.mrb[0].mxu0
      %2354 = vmatprep.mubr.bf16.mxu0 0
      %2355 = vmatmul.mubr.bf16.gmra.mrb[0].mxu0 %v2037
      %v2356 = vpop.f32.mrb[0].mxu0
      %v2357 = vadd.f32 0.0, %v2356
      %v2358 = vpop.f32.mrb[0].mxu0
      %v2359 = vpop.f32.mrb[0].mxu0
      %v2360 = vadd.f32 0.0, %v2359
      %v2361 = vpop.f32.mrb[0].mxu0
      %2362 = vmatprep.mubr.bf16.mxu0 0
      %2363 = vmatmul.mubr.bf16.gmra.mrb[0].mxu0 %v2040
      %v2364 = vpop.f32.mrb[0].mxu0
      %v2365 = vadd.f32 0.0, %v2364
      %v2366 = vpop.f32.mrb[0].mxu0
      %v2367 = vpop.f32.mrb[0].mxu0
      %v2368 = vadd.f32 0.0, %v2367
      %v2369 = vpop.f32.mrb[0].mxu0
      %2370 = vmatprep.mubr.bf16.mxu0 0
      %2371 = vmatmul.mubr.bf16.gmra.mrb[0].mxu0 %v2043
      %v2372 = vpop.f32.mrb[0].mxu0
      %v2373 = vadd.f32 0.0, %v2372
      %v2374 = vpop.f32.mrb[0].mxu0
      %v2375 = vpop.f32.mrb[0].mxu0
      %v2376 = vadd.f32 0.0, %v2375
      %v2377 = vpop.f32.mrb[0].mxu0
      %2378 = vmatprep.mubr.bf16.mxu0 0
      %2379 = vmatmul.mubr.bf16.gmra.mrb[0].mxu0 %v2046
      %v2380 = vpop.f32.mrb[0].mxu0
      %v2381 = vadd.f32 0.0, %v2380
      %v2382 = vpop.f32.mrb[0].mxu0
      %v2383 = vpop.f32.mrb[0].mxu0
      %v2384 = vadd.f32 0.0, %v2383
      %v2385 = vpop.f32.mrb[0].mxu0
      %2386 = vmatprep.mubr.bf16.mxu0 0
      %2387 = vmatmul.mubr.bf16.gmra.mrb[0].mxu0 %v2049
      %v2388 = vpop.f32.mrb[0].mxu0
      %v2389 = vadd.f32 0.0, %v2388
      %v2390 = vpop.f32.mrb[0].mxu0
      %v2391 = vpop.f32.mrb[0].mxu0
      %v2392 = vadd.f32 0.0, %v2391
      %v2393 = vpop.f32.mrb[0].mxu0
      %2394 = vmatprep.mubr.bf16.mxu0 0
      %2395 = vmatmul.mubr.bf16.gmra.mrb[0].mxu0 %v2052
      %v2396 = vpop.f32.mrb[0].mxu0
      %v2397 = vadd.f32 0.0, %v2396
      %v2398 = vpop.f32.mrb[0].mxu0
      %v2399 = vpop.f32.mrb[0].mxu0
      %v2400 = vadd.f32 0.0, %v2399
      %v2401 = vpop.f32.mrb[0].mxu0
      %2402 = vmatprep.mubr.bf16.mxu0 0
      %2403 = vmatmul.mubr.bf16.gmra.mrb[0].mxu0 %v2055
      %v2404 = vpop.f32.mrb[0].mxu0
      %v2405 = vadd.f32 0.0, %v2404
      %v2406 = vpop.f32.mrb[0].mxu0
      %v2407 = vpop.f32.mrb[0].mxu0
      %v2408 = vadd.f32 0.0, %v2407
      %v2409 = vpop.f32.mrb[0].mxu0
      %2410 = vmatprep.mubr.bf16.mxu0 0
      %2411 = vmatmul.mubr.bf16.gmra.mrb[0].mxu0 %v2058
      %v2412 = vpop.f32.mrb[0].mxu0
      %v2413 = vadd.f32 0.0, %v2412
      %v2414 = vpop.f32.mrb[0].mxu0
      %v2415 = vpop.f32.mrb[0].mxu0
      %v2416 = vadd.f32 0.0, %v2415
      %v2417 = vpop.f32.mrb[0].mxu0
      %2418 = vmatprep.mubr.bf16.mxu0 0
      %2419 = vmatmul.mubr.bf16.gmra.mrb[0].mxu0 %v2061
      %v2420 = vpop.f32.mrb[0].mxu0
      %v2421 = vadd.f32 0.0, %v2420
      %v2422 = vpop.f32.mrb[0].mxu0
      %v2423 = vpop.f32.mrb[0].mxu0
      %v2424 = vadd.f32 0.0, %v2423
      %v2425 = vpop.f32.mrb[0].mxu0
      %2426 = vmatprep.mubr.bf16.mxu0 0
      %2427 = vmatmul.mubr.bf16.gmra.mrb[0].mxu0 %v2064
      %v2428 = vpop.f32.mrb[0].mxu0
      %v2429 = vadd.f32 0.0, %v2428
      %v2430 = vpop.f32.mrb[0].mxu0
      %v2431 = vpop.f32.mrb[0].mxu0
      %v2432 = vadd.f32 0.0, %v2431
      %v2433 = vpop.f32.mrb[0].mxu0
      %2434 = vdwg.mxu0
      %v2440 = vunpack.c.l.b16 %v1495
      %v2441 = vunpack.c.l.b16 %v1496
      %v2442 = vunpack.c.l.b16 %v1497
      %v2443 = vunpack.c.l.b16 %v1498
      %v2444 = vunpack.c.l.b16 %v1578
      %v2445 = vpack.c.b16 %v2441, %v2440
      %v2446 = vpack.c.b16 %v2443, %v2442
      %v2447 = vpack.c.b16 %v1695, %v1694
      %v2448 = vpack.c.b16 %v1697, %v1696
      %v2449 = vpack.c.b16 %v1699, %v1698
      %v2450 = vpack.c.b16 %v1701, %v1700
      %v2451 = vpack.c.b16 %v1703, %v1702
      %v2452 = vpack.c.b16 %v1705, %v1704
      %v2453 = vpack.c.b16 %v1707, %v1706
      %v2454 = vpack.c.b16 %v1709, %v1708
      %v2455 = vpack.c.b16 %v1711, %v1710
      %v2456 = vpack.c.b16 %v1713, %v1712
      %v2457 = vpack.c.b16 %v1715, %v1714
      %v2458 = vpack.c.b16 %v1717, %v1716
      %v2459 = vpack.c.b16 %v1719, %v1718
      %v2460 = vpack.c.b16 %v1721, %v1720
      %v2461 = vpack.c.b16 %v1723, %v1722
      %v2462 = vpack.c.b16 %v1725, %v1724
      %v2463 = vpack.c.b16 %v1727, %v1726
      %v2464 = vpack.c.b16 %v1729, %v1728
      %v2465 = vpack.c.b16 %v1731, %v1730
      %v2466 = vpack.c.b16 %v1733, %v1732
      %v2467 = vpack.c.b16 %v1735, %v1734
      %v2468 = vpack.c.b16 %v1737, %v1736
      %v2469 = vpack.c.b16 %v1739, %v1738
      %v2470 = vpack.c.b16 %v1741, %v1740
      %v2471 = vpack.c.b16 %v1743, %v1742
      %v2472 = vpack.c.b16 %v1745, %v1744
      %v2473 = vpack.c.b16 %v1747, %v1746
      %v2474 = vpack.c.b16 %v1749, %v1748
      %v2475 = vpack.c.b16 %v1751, %v1750
      %v2476 = vpack.c.b16 %v1753, %v1752
      %v2477 = vpack.c.b16 %v1755, %v1754
      %v2478 = vpack.c.b16 %v1757, %v1756
      %v2479 = vpack.c.b16 %v1759, %v1758
      %v2480 = vpack.c.b16 %v1761, %v1760
      %v2481 = vpack.c.b16 %v1763, %v1762
      %v2482 = vpack.c.b16 %v1765, %v1764
      %v2483 = vpack.c.b16 %v1767, %v1766
      %v2484 = vpack.c.b16 %v1769, %v1768
      %v2485 = vpack.c.b16 %v1771, %v1770
      %v2486 = vpack.c.b16 %v2444, %v1772
      %v2499 = vunpack.c.l.b16 %v1579
      %v2500 = vunpack.c.l.b16 %v1580
      %v2501 = vunpack.c.l.b16 %v1581
      %v2502 = vunpack.c.l.b16 %v1582
      %v2503 = vunpack.c.l.b16 %v1583
      %v2504 = vunpack.c.l.b16 %v1584
      %v2505 = vunpack.c.l.b16 %v1585
      %v2506 = vunpack.c.l.b16 %v1586
      %v2507 = vunpack.c.l.b16 %v1587
      %v2508 = vunpack.c.l.b16 %v1588
      %v2509 = vunpack.c.l.b16 %v1589
      %v2510 = vunpack.c.l.b16 %v1590
      %v2511 = vpack.c.b16 %v2500, %v2499
      %v2512 = vpack.c.b16 %v2502, %v2501
      %v2513 = vpack.c.b16 %v2504, %v2503
      %v2514 = vpack.c.b16 %v2506, %v2505
      %v2515 = vpack.c.b16 %v2508, %v2507
      %v2516 = vpack.c.b16 %v2510, %v2509
      %v2524 = vsel %vm1939, %v2445, 0
      %v2527 = vsel %vm1939, %v2446, 0
      %v2530 = vsel %vm1939, %v2447, 0
      %v2533 = vsel %vm1939, %v2448, 0
      %v2536 = vsel %vm1939, %v2449, 0
      %v2539 = vsel %vm1939, %v2450, 0
      %v2542 = vsel %vm1939, %v2451, 0
      %v2545 = vsel %vm1939, %v2452, 0
      %v2548 = vsel %vm1939, %v2453, 0
      %v2551 = vsel %vm1939, %v2454, 0
      %v2554 = vsel %vm1939, %v2455, 0
      %v2557 = vsel %vm1939, %v2456, 0
      %v2560 = vsel %vm1939, %v2457, 0
      %v2563 = vsel %vm1939, %v2458, 0
      %v2566 = vsel %vm1939, %v2459, 0
      %v2569 = vsel %vm1939, %v2460, 0
      %v2572 = vsel %vm1939, %v2461, 0
      %v2575 = vsel %vm1939, %v2462, 0
      %v2578 = vsel %vm1939, %v2463, 0
      %v2581 = vsel %vm1939, %v2464, 0
      %v2584 = vsel %vm1939, %v2465, 0
      %v2587 = vsel %vm1939, %v2466, 0
      %v2590 = vsel %vm1939, %v2467, 0
      %v2593 = vsel %vm1939, %v2468, 0
      %v2596 = vsel %vm1939, %v2469, 0
      %v2599 = vsel %vm1939, %v2470, 0
      %v2602 = vsel %vm1939, %v2471, 0
      %v2605 = vsel %vm1939, %v2472, 0
      %v2608 = vsel %vm1939, %v2473, 0
      %v2611 = vsel %vm1939, %v2474, 0
      %v2614 = vsel %vm1939, %v2475, 0
      %v2617 = vsel %vm1939, %v2476, 0
      %v2620 = vsel %vm1939, %v2477, 0
      %v2623 = vsel %vm1939, %v2478, 0
      %v2626 = vsel %vm1939, %v2479, 0
      %v2629 = vsel %vm1939, %v2480, 0
      %v2632 = vsel %vm1939, %v2481, 0
      %v2635 = vsel %vm1939, %v2482, 0
      %v2638 = vsel %vm1939, %v2483, 0
      %v2641 = vsel %vm1939, %v2484, 0
      %v2644 = vsel %vm1939, %v2485, 0
      %v2647 = vsel %vm1939, %v2486, 0
      %2649 = vmatprep.subr.bf16.mxu0 0
      %2650 = vmatpush1.bf16.msra.mxu0 %v2511
      %2651 = vmatprep.subr.bf16.mxu0 0
      %2652 = vmatpush1.bf16.msra.mxu0 %v2512
      %2653 = vmatprep.subr.bf16.mxu0 0
      %2654 = vmatpush1.bf16.msra.mxu0 %v2513
      %2655 = vmatprep.subr.bf16.mxu0 0
      %2656 = vmatpush1.bf16.msra.mxu0 %v2514
      %2657 = vmatprep.subr.bf16.mxu0 0
      %2658 = vmatpush1.bf16.msra.mxu0 %v2515
      %2659 = vmatprep.subr.bf16.mxu0 0
      %2660 = vmatpush1.bf16.msra.mxu0 %v2516
      %2661 = vmatprep.subr.bf16.mxu0 0
      %2662 = vmatpush1.bf16.msra.mxu0 0
      %2663 = vmatprep.subr.bf16.mxu0 0
      %2664 = vmatpush1.bf16.msra.mxu0 0
      %2665 = vmatprep.subr.bf16.mxu0 0
      %2666 = vmatpush1.bf16.msra.mxu0 0
      %2667 = vmatprep.subr.bf16.mxu0 0
      %2668 = vmatpush1.bf16.msra.mxu0 0
      %2669 = vmatprep.subr.bf16.mxu0 0
      %2670 = vmatpush1.bf16.msra.mxu0 0
      %2671 = vmatprep.subr.bf16.mxu0 0
      %2672 = vmatpush1.bf16.msra.mxu0 0
      %2673 = vmatprep.subr.bf16.mxu0 0
      %2674 = vmatpush1.bf16.msra.mxu0 0
      %2675 = vmatprep.subr.bf16.mxu0 0
      %2676 = vmatpush1.bf16.msra.mxu0 0
      %2677 = vmatprep.subr.bf16.mxu0 0
      %2678 = vmatpush1.bf16.msra.mxu0 0
      %2679 = vmatprep.subr.bf16.mxu0 0
      %2680 = vmatpush1.bf16.msra.mxu0 0
      %2681 = vmatprep.mubr.bf16.mxu0 0
      %2682 = vmatmul.mubr.bf16.gmra.mrb[0].mxu0 %v2524
      %v2683 = vpop.f32.mrb[0].mxu0
      %v2684 = vadd.f32 %v2101, %v2683
      %v2685 = vpop.f32.mrb[0].mxu0
      %v2686 = vpop.f32.mrb[0].mxu0
      %v2687 = vadd.f32 %v2104, %v2686
      %v2688 = vpop.f32.mrb[0].mxu0
      %2689 = vmatprep.mubr.bf16.mxu0 0
      %2690 = vmatmul.mubr.bf16.gmra.mrb[0].mxu0 %v2527
      %v2691 = vpop.f32.mrb[0].mxu0
      %v2692 = vadd.f32 %v2109, %v2691
      %v2693 = vpop.f32.mrb[0].mxu0
      %v2694 = vpop.f32.mrb[0].mxu0
      %v2695 = vadd.f32 %v2112, %v2694
      %v2696 = vpop.f32.mrb[0].mxu0
      %2697 = vmatprep.mubr.bf16.mxu0 0
      %2698 = vmatmul.mubr.bf16.gmra.mrb[0].mxu0 %v2530
      %v2699 = vpop.f32.mrb[0].mxu0
      %v2700 = vadd.f32 %v2117, %v2699
      %v2701 = vpop.f32.mrb[0].mxu0
      %v2702 = vpop.f32.mrb[0].mxu0
      %v2703 = vadd.f32 %v2120, %v2702
      %v2704 = vpop.f32.mrb[0].mxu0
      %2705 = vmatprep.mubr.bf16.mxu0 0
      %2706 = vmatmul.mubr.bf16.gmra.mrb[0].mxu0 %v2533
      %v2707 = vpop.f32.mrb[0].mxu0
      %v2708 = vadd.f32 %v2125, %v2707
      %v2709 = vpop.f32.mrb[0].mxu0
      %v2710 = vpop.f32.mrb[0].mxu0
      %v2711 = vadd.f32 %v2128, %v2710
      %v2712 = vpop.f32.mrb[0].mxu0
      %2713 = vmatprep.mubr.bf16.mxu0 0
      %2714 = vmatmul.mubr.bf16.gmra.mrb[0].mxu0 %v2536
      %v2715 = vpop.f32.mrb[0].mxu0
      %v2716 = vadd.f32 %v2133, %v2715
      %v2717 = vpop.f32.mrb[0].mxu0
      %v2718 = vpop.f32.mrb[0].mxu0
      %v2719 = vadd.f32 %v2136, %v2718
      %v2720 = vpop.f32.mrb[0].mxu0
      %2721 = vmatprep.mubr.bf16.mxu0 0
      %2722 = vmatmul.mubr.bf16.gmra.mrb[0].mxu0 %v2539
      %v2723 = vpop.f32.mrb[0].mxu0
      %v2724 = vadd.f32 %v2141, %v2723
      %v2725 = vpop.f32.mrb[0].mxu0
      %v2726 = vpop.f32.mrb[0].mxu0
      %v2727 = vadd.f32 %v2144, %v2726
      %v2728 = vpop.f32.mrb[0].mxu0
      %2729 = vmatprep.mubr.bf16.mxu0 0
      %2730 = vmatmul.mubr.bf16.gmra.mrb[0].mxu0 %v2542
      %v2731 = vpop.f32.mrb[0].mxu0
      %v2732 = vadd.f32 %v2149, %v2731
      %v2733 = vpop.f32.mrb[0].mxu0
      %v2734 = vpop.f32.mrb[0].mxu0
      %v2735 = vadd.f32 %v2152, %v2734
      %v2736 = vpop.f32.mrb[0].mxu0
      %2737 = vmatprep.mubr.bf16.mxu0 0
      %2738 = vmatmul.mubr.bf16.gmra.mrb[0].mxu0 %v2545
      %v2739 = vpop.f32.mrb[0].mxu0
      %v2740 = vadd.f32 %v2157, %v2739
      %v2741 = vpop.f32.mrb[0].mxu0
      %v2742 = vpop.f32.mrb[0].mxu0
      %v2743 = vadd.f32 %v2160, %v2742
      %v2744 = vpop.f32.mrb[0].mxu0
      %2745 = vmatprep.mubr.bf16.mxu0 0
      %2746 = vmatmul.mubr.bf16.gmra.mrb[0].mxu0 %v2548
      %v2747 = vpop.f32.mrb[0].mxu0
      %v2748 = vadd.f32 %v2165, %v2747
      %v2749 = vpop.f32.mrb[0].mxu0
      %v2750 = vpop.f32.mrb[0].mxu0
      %v2751 = vadd.f32 %v2168, %v2750
      %v2752 = vpop.f32.mrb[0].mxu0
      %2753 = vmatprep.mubr.bf16.mxu0 0
      %2754 = vmatmul.mubr.bf16.gmra.mrb[0].mxu0 %v2551
      %v2755 = vpop.f32.mrb[0].mxu0
      %v2756 = vadd.f32 %v2173, %v2755
      %v2757 = vpop.f32.mrb[0].mxu0
      %v2758 = vpop.f32.mrb[0].mxu0
      %v2759 = vadd.f32 %v2176, %v2758
      %v2760 = vpop.f32.mrb[0].mxu0
      %2761 = vmatprep.mubr.bf16.mxu0 0
      %2762 = vmatmul.mubr.bf16.gmra.mrb[0].mxu0 %v2554
      %v2763 = vpop.f32.mrb[0].mxu0
      %v2764 = vadd.f32 %v2181, %v2763
      %v2765 = vpop.f32.mrb[0].mxu0
      %v2766 = vpop.f32.mrb[0].mxu0
      %v2767 = vadd.f32 %v2184, %v2766
      %v2768 = vpop.f32.mrb[0].mxu0
      %2769 = vmatprep.mubr.bf16.mxu0 0
      %2770 = vmatmul.mubr.bf16.gmra.mrb[0].mxu0 %v2557
      %v2771 = vpop.f32.mrb[0].mxu0
      %v2772 = vadd.f32 %v2189, %v2771
      %v2773 = vpop.f32.mrb[0].mxu0
      %v2774 = vpop.f32.mrb[0].mxu0
      %v2775 = vadd.f32 %v2192, %v2774
      %v2776 = vpop.f32.mrb[0].mxu0
      %2777 = vmatprep.mubr.bf16.mxu0 0
      %2778 = vmatmul.mubr.bf16.gmra.mrb[0].mxu0 %v2560
      %v2779 = vpop.f32.mrb[0].mxu0
      %v2780 = vadd.f32 %v2197, %v2779
      %v2781 = vpop.f32.mrb[0].mxu0
      %v2782 = vpop.f32.mrb[0].mxu0
      %v2783 = vadd.f32 %v2200, %v2782
      %v2784 = vpop.f32.mrb[0].mxu0
      %2785 = vmatprep.mubr.bf16.mxu0 0
      %2786 = vmatmul.mubr.bf16.gmra.mrb[0].mxu0 %v2563
      %v2787 = vpop.f32.mrb[0].mxu0
      %v2788 = vadd.f32 %v2205, %v2787
      %v2789 = vpop.f32.mrb[0].mxu0
      %v2790 = vpop.f32.mrb[0].mxu0
      %v2791 = vadd.f32 %v2208, %v2790
      %v2792 = vpop.f32.mrb[0].mxu0
      %2793 = vmatprep.mubr.bf16.mxu0 0
      %2794 = vmatmul.mubr.bf16.gmra.mrb[0].mxu0 %v2566
      %v2795 = vpop.f32.mrb[0].mxu0
      %v2796 = vadd.f32 %v2213, %v2795
      %v2797 = vpop.f32.mrb[0].mxu0
      %v2798 = vpop.f32.mrb[0].mxu0
      %v2799 = vadd.f32 %v2216, %v2798
      %v2800 = vpop.f32.mrb[0].mxu0
      %2801 = vmatprep.mubr.bf16.mxu0 0
      %2802 = vmatmul.mubr.bf16.gmra.mrb[0].mxu0 %v2569
      %v2803 = vpop.f32.mrb[0].mxu0
      %v2804 = vadd.f32 %v2221, %v2803
      %v2805 = vpop.f32.mrb[0].mxu0
      %v2806 = vpop.f32.mrb[0].mxu0
      %v2807 = vadd.f32 %v2224, %v2806
      %v2808 = vpop.f32.mrb[0].mxu0
      %2809 = vmatprep.mubr.bf16.mxu0 0
      %2810 = vmatmul.mubr.bf16.gmra.mrb[0].mxu0 %v2572
      %v2811 = vpop.f32.mrb[0].mxu0
      %v2812 = vadd.f32 %v2229, %v2811
      %v2813 = vpop.f32.mrb[0].mxu0
      %v2814 = vpop.f32.mrb[0].mxu0
      %v2815 = vadd.f32 %v2232, %v2814
      %v2816 = vpop.f32.mrb[0].mxu0
      %2817 = vmatprep.mubr.bf16.mxu0 0
      %2818 = vmatmul.mubr.bf16.gmra.mrb[0].mxu0 %v2575
      %v2819 = vpop.f32.mrb[0].mxu0
      %v2820 = vadd.f32 %v2237, %v2819
      %v2821 = vpop.f32.mrb[0].mxu0
      %v2822 = vpop.f32.mrb[0].mxu0
      %v2823 = vadd.f32 %v2240, %v2822
      %v2824 = vpop.f32.mrb[0].mxu0
      %2825 = vmatprep.mubr.bf16.mxu0 0
      %2826 = vmatmul.mubr.bf16.gmra.mrb[0].mxu0 %v2578
      %v2827 = vpop.f32.mrb[0].mxu0
      %v2828 = vadd.f32 %v2245, %v2827
      %v2829 = vpop.f32.mrb[0].mxu0
      %v2830 = vpop.f32.mrb[0].mxu0
      %v2831 = vadd.f32 %v2248, %v2830
      %v2832 = vpop.f32.mrb[0].mxu0
      %2833 = vmatprep.mubr.bf16.mxu0 0
      %2834 = vmatmul.mubr.bf16.gmra.mrb[0].mxu0 %v2581
      %v2835 = vpop.f32.mrb[0].mxu0
      %v2836 = vadd.f32 %v2253, %v2835
      %v2837 = vpop.f32.mrb[0].mxu0
      %v2838 = vpop.f32.mrb[0].mxu0
      %v2839 = vadd.f32 %v2256, %v2838
      %v2840 = vpop.f32.mrb[0].mxu0
      %2841 = vmatprep.mubr.bf16.mxu0 0
      %2842 = vmatmul.mubr.bf16.gmra.mrb[0].mxu0 %v2584
      %v2843 = vpop.f32.mrb[0].mxu0
      %v2844 = vadd.f32 %v2261, %v2843
      %v2845 = vpop.f32.mrb[0].mxu0
      %v2846 = vpop.f32.mrb[0].mxu0
      %v2847 = vadd.f32 %v2264, %v2846
      %v2848 = vpop.f32.mrb[0].mxu0
      %2849 = vmatprep.mubr.bf16.mxu0 0
      %2850 = vmatmul.mubr.bf16.gmra.mrb[0].mxu0 %v2587
      %v2851 = vpop.f32.mrb[0].mxu0
      %v2852 = vadd.f32 %v2269, %v2851
      %v2853 = vpop.f32.mrb[0].mxu0
      %v2854 = vpop.f32.mrb[0].mxu0
      %v2855 = vadd.f32 %v2272, %v2854
      %v2856 = vpop.f32.mrb[0].mxu0
      %2857 = vmatprep.mubr.bf16.mxu0 0
      %2858 = vmatmul.mubr.bf16.gmra.mrb[0].mxu0 %v2590
      %v2859 = vpop.f32.mrb[0].mxu0
      %v2860 = vadd.f32 %v2277, %v2859
      %v2861 = vpop.f32.mrb[0].mxu0
      %v2862 = vpop.f32.mrb[0].mxu0
      %v2863 = vadd.f32 %v2280, %v2862
      %v2864 = vpop.f32.mrb[0].mxu0
      %2865 = vmatprep.mubr.bf16.mxu0 0
      %2866 = vmatmul.mubr.bf16.gmra.mrb[0].mxu0 %v2593
      %v2867 = vpop.f32.mrb[0].mxu0
      %v2868 = vadd.f32 %v2285, %v2867
      %v2869 = vpop.f32.mrb[0].mxu0
      %v2870 = vpop.f32.mrb[0].mxu0
      %v2871 = vadd.f32 %v2288, %v2870
      %v2872 = vpop.f32.mrb[0].mxu0
      %2873 = vmatprep.mubr.bf16.mxu0 0
      %2874 = vmatmul.mubr.bf16.gmra.mrb[0].mxu0 %v2596
      %v2875 = vpop.f32.mrb[0].mxu0
      %v2876 = vadd.f32 %v2293, %v2875
      %v2877 = vpop.f32.mrb[0].mxu0
      %v2878 = vpop.f32.mrb[0].mxu0
      %v2879 = vadd.f32 %v2296, %v2878
      %v2880 = vpop.f32.mrb[0].mxu0
      %2881 = vmatprep.mubr.bf16.mxu0 0
      %2882 = vmatmul.mubr.bf16.gmra.mrb[0].mxu0 %v2599
      %v2883 = vpop.f32.mrb[0].mxu0
      %v2884 = vadd.f32 %v2301, %v2883
      %v2885 = vpop.f32.mrb[0].mxu0
      %v2886 = vpop.f32.mrb[0].mxu0
      %v2887 = vadd.f32 %v2304, %v2886
      %v2888 = vpop.f32.mrb[0].mxu0
      %2889 = vmatprep.mubr.bf16.mxu0 0
      %2890 = vmatmul.mubr.bf16.gmra.mrb[0].mxu0 %v2602
      %v2891 = vpop.f32.mrb[0].mxu0
      %v2892 = vadd.f32 %v2309, %v2891
      %v2893 = vpop.f32.mrb[0].mxu0
      %v2894 = vpop.f32.mrb[0].mxu0
      %v2895 = vadd.f32 %v2312, %v2894
      %v2896 = vpop.f32.mrb[0].mxu0
      %2897 = vmatprep.mubr.bf16.mxu0 0
      %2898 = vmatmul.mubr.bf16.gmra.mrb[0].mxu0 %v2605
      %v2899 = vpop.f32.mrb[0].mxu0
      %v2900 = vadd.f32 %v2317, %v2899
      %v2901 = vpop.f32.mrb[0].mxu0
      %v2902 = vpop.f32.mrb[0].mxu0
      %v2903 = vadd.f32 %v2320, %v2902
      %v2904 = vpop.f32.mrb[0].mxu0
      %2905 = vmatprep.mubr.bf16.mxu0 0
      %2906 = vmatmul.mubr.bf16.gmra.mrb[0].mxu0 %v2608
      %v2907 = vpop.f32.mrb[0].mxu0
      %v2908 = vadd.f32 %v2325, %v2907
      %v2909 = vpop.f32.mrb[0].mxu0
      %v2910 = vpop.f32.mrb[0].mxu0
      %v2911 = vadd.f32 %v2328, %v2910
      %v2912 = vpop.f32.mrb[0].mxu0
      %2913 = vmatprep.mubr.bf16.mxu0 0
      %2914 = vmatmul.mubr.bf16.gmra.mrb[0].mxu0 %v2611
      %v2915 = vpop.f32.mrb[0].mxu0
      %v2916 = vadd.f32 %v2333, %v2915
      %v2917 = vpop.f32.mrb[0].mxu0
      %v2918 = vpop.f32.mrb[0].mxu0
      %v2919 = vadd.f32 %v2336, %v2918
      %v2920 = vpop.f32.mrb[0].mxu0
      %2921 = vmatprep.mubr.bf16.mxu0 0
      %2922 = vmatmul.mubr.bf16.gmra.mrb[0].mxu0 %v2614
      %v2923 = vpop.f32.mrb[0].mxu0
      %v2924 = vadd.f32 %v2341, %v2923
      %v2925 = vpop.f32.mrb[0].mxu0
      %v2926 = vpop.f32.mrb[0].mxu0
      %v2927 = vadd.f32 %v2344, %v2926
      %v2928 = vpop.f32.mrb[0].mxu0
      %2929 = vmatprep.mubr.bf16.mxu0 0
      %2930 = vmatmul.mubr.bf16.gmra.mrb[0].mxu0 %v2617
      %v2931 = vpop.f32.mrb[0].mxu0
      %v2932 = vadd.f32 %v2349, %v2931
      %v2933 = vpop.f32.mrb[0].mxu0
      %v2934 = vpop.f32.mrb[0].mxu0
      %v2935 = vadd.f32 %v2352, %v2934
      %v2936 = vpop.f32.mrb[0].mxu0
      %2937 = vmatprep.mubr.bf16.mxu0 0
      %2938 = vmatmul.mubr.bf16.gmra.mrb[0].mxu0 %v2620
      %v2939 = vpop.f32.mrb[0].mxu0
      %v2940 = vadd.f32 %v2357, %v2939
      %v2941 = vpop.f32.mrb[0].mxu0
      %v2942 = vpop.f32.mrb[0].mxu0
      %v2943 = vadd.f32 %v2360, %v2942
      %v2944 = vpop.f32.mrb[0].mxu0
      %2945 = vmatprep.mubr.bf16.mxu0 0
      %2946 = vmatmul.mubr.bf16.gmra.mrb[0].mxu0 %v2623
      %v2947 = vpop.f32.mrb[0].mxu0
      %v2948 = vadd.f32 %v2365, %v2947
      %v2949 = vpop.f32.mrb[0].mxu0
      %v2950 = vpop.f32.mrb[0].mxu0
      %v2951 = vadd.f32 %v2368, %v2950
      %v2952 = vpop.f32.mrb[0].mxu0
      %2953 = vmatprep.mubr.bf16.mxu0 0
      %2954 = vmatmul.mubr.bf16.gmra.mrb[0].mxu0 %v2626
      %v2955 = vpop.f32.mrb[0].mxu0
      %v2956 = vadd.f32 %v2373, %v2955
      %v2957 = vpop.f32.mrb[0].mxu0
      %v2958 = vpop.f32.mrb[0].mxu0
      %v2959 = vadd.f32 %v2376, %v2958
      %v2960 = vpop.f32.mrb[0].mxu0
      %2961 = vmatprep.mubr.bf16.mxu0 0
      %2962 = vmatmul.mubr.bf16.gmra.mrb[0].mxu0 %v2629
      %v2963 = vpop.f32.mrb[0].mxu0
      %v2964 = vadd.f32 %v2381, %v2963
      %v2965 = vpop.f32.mrb[0].mxu0
      %v2966 = vpop.f32.mrb[0].mxu0
      %v2967 = vadd.f32 %v2384, %v2966
      %v2968 = vpop.f32.mrb[0].mxu0
      %2969 = vmatprep.mubr.bf16.mxu0 0
      %2970 = vmatmul.mubr.bf16.gmra.mrb[0].mxu0 %v2632
      %v2971 = vpop.f32.mrb[0].mxu0
      %v2972 = vadd.f32 %v2389, %v2971
      %v2973 = vpop.f32.mrb[0].mxu0
      %v2974 = vpop.f32.mrb[0].mxu0
      %v2975 = vadd.f32 %v2392, %v2974
      %v2976 = vpop.f32.mrb[0].mxu0
      %2977 = vmatprep.mubr.bf16.mxu0 0
      %2978 = vmatmul.mubr.bf16.gmra.mrb[0].mxu0 %v2635
      %v2979 = vpop.f32.mrb[0].mxu0
      %v2980 = vadd.f32 %v2397, %v2979
      %v2981 = vpop.f32.mrb[0].mxu0
      %v2982 = vpop.f32.mrb[0].mxu0
      %v2983 = vadd.f32 %v2400, %v2982
      %v2984 = vpop.f32.mrb[0].mxu0
      %2985 = vmatprep.mubr.bf16.mxu0 0
      %2986 = vmatmul.mubr.bf16.gmra.mrb[0].mxu0 %v2638
      %v2987 = vpop.f32.mrb[0].mxu0
      %v2988 = vadd.f32 %v2405, %v2987
      %v2989 = vpop.f32.mrb[0].mxu0
      %v2990 = vpop.f32.mrb[0].mxu0
      %v2991 = vadd.f32 %v2408, %v2990
      %v2992 = vpop.f32.mrb[0].mxu0
      %2993 = vmatprep.mubr.bf16.mxu0 0
      %2994 = vmatmul.mubr.bf16.gmra.mrb[0].mxu0 %v2641
      %v2995 = vpop.f32.mrb[0].mxu0
      %v2996 = vadd.f32 %v2413, %v2995
      %v2997 = vpop.f32.mrb[0].mxu0
      %v2998 = vpop.f32.mrb[0].mxu0
      %v2999 = vadd.f32 %v2416, %v2998
      %v3000 = vpop.f32.mrb[0].mxu0
      %3001 = vmatprep.mubr.bf16.mxu0 0
      %3002 = vmatmul.mubr.bf16.gmra.mrb[0].mxu0 %v2644
      %v3003 = vpop.f32.mrb[0].mxu0
      %v3004 = vadd.f32 %v2421, %v3003
      %v3005 = vpop.f32.mrb[0].mxu0
      %v3006 = vpop.f32.mrb[0].mxu0
      %v3007 = vadd.f32 %v2424, %v3006
      %v3008 = vpop.f32.mrb[0].mxu0
      %3009 = vmatprep.mubr.bf16.mxu0 0
      %3010 = vmatmul.mubr.bf16.gmra.mrb[0].mxu0 %v2647
      %v3011 = vpop.f32.mrb[0].mxu0
      %v3012 = vadd.f32 %v2429, %v3011
      %v3013 = vpop.f32.mrb[0].mxu0
      %v3014 = vpop.f32.mrb[0].mxu0
      %v3015 = vadd.f32 %v2432, %v3014
      %v3016 = vpop.f32.mrb[0].mxu0
      %3017 = vdwg.mxu0
      %v3018 = vld [vmem:[#allocation2 + $0x1c] sm:$0xf]
      %v3019 = vld [vmem:[#allocation2 + $0x20] sm:$0xf]
      %v3020 = vld [vmem:[#allocation2 + $0x24] sm:$0xf]
      %v3021 = vld [vmem:[#allocation2 + $0x28] sm:$0xf]
      %v3022 = vld [vmem:[#allocation2 + $0x2c] sm:$0xf]
      %v3023 = vld [vmem:[#allocation2 + $0x30] sm:$0xf]
      %v3024 = vld [vmem:[#allocation2 + $0x34] sm:$0xf]
      %v3025 = vld [vmem:[#allocation2 + $0x38] sm:$0xf]
      %v3026 = vld [vmem:[#allocation2 + $0x3c] sm:$0xf]
      %v3027 = vld [vmem:[#allocation2 + $0x40] sm:$0xf]
      %v3028 = vld [vmem:[#allocation2 + $0x44] sm:$0xf]
      %v3029 = vld [vmem:[#allocation2 + $0x48] sm:$0xf]
      %v3030 = vld [vmem:[#allocation2 + $0x4c] sm:$0xf]
      %v3031 = vld [vmem:[#allocation2 + $0x50] sm:$0xf]
      %v3032 = vld [vmem:[#allocation2 + $0x54] sm:$0xf]
      %v3033 = vld [vmem:[#allocation2 + $0x58] sm:$0xf]
      %v3034 = vld [vmem:[#allocation2 + $0x5c] sm:$0xf]
      %v3035 = vld [vmem:[#allocation2 + $0x60] sm:$0xf]
      %v3036 = vld [vmem:[#allocation2 + $0x64] sm:$0xf]
      %v3037 = vld [vmem:[#allocation2 + $0x68] sm:$0xf]
      %v3038 = vld [vmem:[#allocation2 + $0x6c] sm:$0xf]
      %v3039 = vld [vmem:[#allocation2 + $0x70] sm:$0xf]
      %v3040 = vld [vmem:[#allocation2 + $0x74] sm:$0xf]
      %v3041 = vld [vmem:[#allocation2 + $0x78] sm:$0xf]
      %v3042 = vld [vmem:[#allocation2 + $0x7c] sm:$0xf]
      %v3043 = vld [vmem:[#allocation2 + $0x80] sm:$0xf]
      %v3044 = vld [vmem:[#allocation2 + $0x84] sm:$0xf]
      %v3045 = vld [vmem:[#allocation2 + $0x88] sm:$0xf]
      %v3046 = vld [vmem:[#allocation2 + $0x8c] sm:$0xf]
      %v3047 = vld [vmem:[#allocation2 + $0x90] sm:$0xf]
      %v3048 = vld [vmem:[#allocation2 + $0x94] sm:$0xf]
      %v3049 = vld [vmem:[#allocation2 + $0x98] sm:$0xf]
      %v3050 = vld [vmem:[#allocation2 + $0x9c] sm:$0xf]
      %v3051 = vld [vmem:[#allocation2 + $0xa0] sm:$0xf]
      %v3052 = vld [vmem:[#allocation2 + $0xa4] sm:$0xf]
      %v3053 = vld [vmem:[#allocation2 + $0xa8] sm:$0xf]
      %v3054 = vld [vmem:[#allocation2 + $0xac] sm:$0xf]
      %v3055 = vld [vmem:[#allocation2 + $0xb0] sm:$0xf]
      %v3056 = vld [vmem:[#allocation2 + $0xb4] sm:$0xf]
      %v3057 = vld [vmem:[#allocation2 + $0xb8] sm:$0xf]
      %v3058 = vld [vmem:[#allocation2 + $0xbc] sm:$0xf]
      %v3059 = vld [vmem:[#allocation2 + $0xc0] sm:$0xf]
      %v3060 = vld [vmem:[#allocation2 + $0xc4] sm:$0xf]
      %v3061 = vld [vmem:[#allocation2 + $0xc8] sm:$0xf]
      %v3062 = vld [vmem:[#allocation2 + $0xcc] sm:$0xf]
      %v3063 = vld [vmem:[#allocation2 + $0xd0] sm:$0xf]
      %v3064 = vld [vmem:[#allocation2 + $0xd4] sm:$0xf]
      %v3065 = vld [vmem:[#allocation2 + $0xd8] sm:$0xf]
      %v3066 = vld [vmem:[#allocation2 + $0xdc] sm:$0xf]
      %v3067 = vld [vmem:[#allocation2 + $0xe0] sm:$0xf]
      %v3068 = vld [vmem:[#allocation2 + $0xe4] sm:$0xf]
      %v3069 = vld [vmem:[#allocation2 + $0xe8] sm:$0xf]
      %v3070 = vld [vmem:[#allocation2 + $0xec] sm:$0xf]
      %v3071 = vld [vmem:[#allocation2 + $0xf0] sm:$0xf]
      %v3072 = vld [vmem:[#allocation2 + $0xf4] sm:$0xf]
      %v3073 = vld [vmem:[#allocation2 + $0xf8] sm:$0xf]
      %v3074 = vld [vmem:[#allocation2 + $0xfc] sm:$0xf]
      %v3075 = vld [vmem:[#allocation2 + $0x100] sm:$0xf]
      %v3076 = vld [vmem:[#allocation2 + $0x104] sm:$0xf]
      %v3077 = vld [vmem:[#allocation2 + $0x108] sm:$0xf]
      %v3078 = vld [vmem:[#allocation2 + $0x10c] sm:$0xf]
      %v3079 = vld [vmem:[#allocation2 + $0x110] sm:$0xf]
      %v3080 = vld [vmem:[#allocation2 + $0x114] sm:$0xf]
      %v3081 = vld [vmem:[#allocation2 + $0x118] sm:$0xf]
      %v3082 = vld [vmem:[#allocation2 + $0x11c] sm:$0xf]
      %v3083 = vld [vmem:[#allocation2 + $0x120] sm:$0xf]
      %v3084 = vld [vmem:[#allocation2 + $0x124] sm:$0xf]
      %v3085 = vld [vmem:[#allocation2 + $0x128] sm:$0xf]
      %v3086 = vld [vmem:[#allocation2 + $0x12c] sm:$0xf]
      %v3087 = vld [vmem:[#allocation2 + $0x130] sm:$0xf]
      %v3088 = vld [vmem:[#allocation2 + $0x134] sm:$0xf]
      %v3089 = vld [vmem:[#allocation2 + $0x138] sm:$0xf]
      %v3090 = vld [vmem:[#allocation2 + $0x13c] sm:$0xf]
      %v3091 = vld [vmem:[#allocation2 + $0x140] sm:$0xf]
      %v3092 = vld [vmem:[#allocation2 + $0x144] sm:$0xf]
      %v3093 = vld [vmem:[#allocation2 + $0x148] sm:$0xf]
      %v3094 = vld [vmem:[#allocation2 + $0x14c] sm:$0xf]
      %v3095 = vld [vmem:[#allocation2 + $0x150] sm:$0xf]
      %v3096 = vld [vmem:[#allocation2 + $0x154] sm:$0xf]
      %v3097 = vld [vmem:[#allocation2 + $0x158] sm:$0xf]
      %v3098 = vld [vmem:[#allocation2 + $0x15c] sm:$0xf]
      %v3099 = vld [vmem:[#allocation2 + $0x160] sm:$0xf]
      %v3100 = vld [vmem:[#allocation2 + $0x164] sm:$0xf]
      %v3101 = vld [vmem:[#allocation2 + $0x168] sm:$0x3]
      %s3102 = scalar_lea.vmem %s3, 96
      %v3103 = vld [vmem:[%s3102] sm:$0xf]
      %v3104 = vld [vmem:[%s3102 + $0x4] sm:$0xf]
      %v3105 = vld [vmem:[%s3102 + $0x8] sm:$0xf]
      %v3106 = vld [vmem:[%s3102 + $0xc] sm:$0xf]
      %v3107 = vld [vmem:[%s3102 + $0x10] sm:$0xf]
      %v3108 = vld [vmem:[%s3102 + $0x14] sm:$0xf]
      %v3109 = vld [vmem:[%s3102 + $0x18] sm:$0xf]
      %v3110 = vld [vmem:[%s3102 + $0x1c] sm:$0xf]
      %v3111 = vld [vmem:[%s3102 + $0x20] sm:$0xf]
      %v3112 = vld [vmem:[%s3102 + $0x24] sm:$0xf]
      %v3113 = vld [vmem:[%s3102 + $0x28] sm:$0xf]
      %v3114 = vld [vmem:[%s3102 + $0x2c] sm:$0xf]
      %v3199 = vunpack.c.l.b16 %v3018
      %v3200 = vunpack.c.l.b16 %v3019
      %v3201 = vunpack.c.l.b16 %v3020
      %v3202 = vunpack.c.l.b16 %v3021
      %v3203 = vunpack.c.l.b16 %v3022
      %v3204 = vunpack.c.l.b16 %v3023
      %v3205 = vunpack.c.l.b16 %v3024
      %v3206 = vunpack.c.l.b16 %v3025
      %v3207 = vunpack.c.l.b16 %v3026
      %v3208 = vunpack.c.l.b16 %v3027
      %v3209 = vunpack.c.l.b16 %v3028
      %v3210 = vunpack.c.l.b16 %v3029
      %v3211 = vunpack.c.l.b16 %v3030
      %v3212 = vunpack.c.l.b16 %v3031
      %v3213 = vunpack.c.l.b16 %v3032
      %v3214 = vunpack.c.l.b16 %v3033
      %v3215 = vunpack.c.l.b16 %v3034
      %v3216 = vunpack.c.l.b16 %v3035
      %v3217 = vunpack.c.l.b16 %v3036
      %v3218 = vunpack.c.l.b16 %v3037
      %v3219 = vunpack.c.l.b16 %v3038
      %v3220 = vunpack.c.l.b16 %v3039
      %v3221 = vunpack.c.l.b16 %v3040
      %v3222 = vunpack.c.l.b16 %v3041
      %v3223 = vunpack.c.l.b16 %v3042
      %v3224 = vunpack.c.l.b16 %v3043
      %v3225 = vunpack.c.l.b16 %v3044
      %v3226 = vunpack.c.l.b16 %v3045
      %v3227 = vunpack.c.l.b16 %v3046
      %v3228 = vunpack.c.l.b16 %v3047
      %v3229 = vunpack.c.l.b16 %v3048
      %v3230 = vunpack.c.l.b16 %v3049
      %v3231 = vunpack.c.l.b16 %v3050
      %v3232 = vunpack.c.l.b16 %v3051
      %v3233 = vunpack.c.l.b16 %v3052
      %v3234 = vunpack.c.l.b16 %v3053
      %v3235 = vunpack.c.l.b16 %v3054
      %v3236 = vunpack.c.l.b16 %v3055
      %v3237 = vunpack.c.l.b16 %v3056
      %v3238 = vunpack.c.l.b16 %v3057
      %v3239 = vunpack.c.l.b16 %v3058
      %v3240 = vunpack.c.l.b16 %v3059
      %v3241 = vunpack.c.l.b16 %v3060
      %v3242 = vunpack.c.l.b16 %v3061
      %v3243 = vunpack.c.l.b16 %v3062
      %v3244 = vunpack.c.l.b16 %v3063
      %v3245 = vunpack.c.l.b16 %v3064
      %v3246 = vunpack.c.l.b16 %v3065
      %v3247 = vunpack.c.l.b16 %v3066
      %v3248 = vunpack.c.l.b16 %v3067
      %v3249 = vunpack.c.l.b16 %v3068
      %v3250 = vunpack.c.l.b16 %v3069
      %v3251 = vunpack.c.l.b16 %v3070
      %v3252 = vunpack.c.l.b16 %v3071
      %v3253 = vunpack.c.l.b16 %v3072
      %v3254 = vunpack.c.l.b16 %v3073
      %v3255 = vunpack.c.l.b16 %v3074
      %v3256 = vunpack.c.l.b16 %v3075
      %v3257 = vunpack.c.l.b16 %v3076
      %v3258 = vunpack.c.l.b16 %v3077
      %v3259 = vunpack.c.l.b16 %v3078
      %v3260 = vunpack.c.l.b16 %v3079
      %v3261 = vunpack.c.l.b16 %v3080
      %v3262 = vunpack.c.l.b16 %v3081
      %v3263 = vunpack.c.l.b16 %v3082
      %v3264 = vunpack.c.l.b16 %v3083
      %v3265 = vunpack.c.l.b16 %v3084
      %v3266 = vunpack.c.l.b16 %v3085
      %v3267 = vunpack.c.l.b16 %v3086
      %v3268 = vunpack.c.l.b16 %v3087
      %v3269 = vunpack.c.l.b16 %v3088
      %v3270 = vunpack.c.l.b16 %v3089
      %v3271 = vunpack.c.l.b16 %v3090
      %v3272 = vunpack.c.l.b16 %v3091
      %v3273 = vunpack.c.l.b16 %v3092
      %v3274 = vunpack.c.l.b16 %v3093
      %v3275 = vunpack.c.l.b16 %v3094
      %v3276 = vunpack.c.l.b16 %v3095
      %v3277 = vunpack.c.l.b16 %v3096
      %v3278 = vunpack.c.l.b16 %v3097
      %v3279 = vunpack.c.l.b16 %v3098
      %v3280 = vunpack.c.l.b16 %v3099
      %v3281 = vunpack.c.l.b16 %v3100
      %v3282 = vunpack.c.l.b16 %v3101
      %v3283 = vpack.c.b16 %v3200, %v3199
      %v3284 = vpack.c.b16 %v3202, %v3201
      %v3285 = vpack.c.b16 %v3204, %v3203
      %v3286 = vpack.c.b16 %v3206, %v3205
      %v3287 = vpack.c.b16 %v3208, %v3207
      %v3288 = vpack.c.b16 %v3210, %v3209
      %v3289 = vpack.c.b16 %v3212, %v3211
      %v3290 = vpack.c.b16 %v3214, %v3213
      %v3291 = vpack.c.b16 %v3216, %v3215
      %v3292 = vpack.c.b16 %v3218, %v3217
      %v3293 = vpack.c.b16 %v3220, %v3219
      %v3294 = vpack.c.b16 %v3222, %v3221
      %v3295 = vpack.c.b16 %v3224, %v3223
      %v3296 = vpack.c.b16 %v3226, %v3225
      %v3297 = vpack.c.b16 %v3228, %v3227
      %v3298 = vpack.c.b16 %v3230, %v3229
      %v3299 = vpack.c.b16 %v3232, %v3231
      %v3300 = vpack.c.b16 %v3234, %v3233
      %v3301 = vpack.c.b16 %v3236, %v3235
      %v3302 = vpack.c.b16 %v3238, %v3237
      %v3303 = vpack.c.b16 %v3240, %v3239
      %v3304 = vpack.c.b16 %v3242, %v3241
      %v3305 = vpack.c.b16 %v3244, %v3243
      %v3306 = vpack.c.b16 %v3246, %v3245
      %v3307 = vpack.c.b16 %v3248, %v3247
      %v3308 = vpack.c.b16 %v3250, %v3249
      %v3309 = vpack.c.b16 %v3252, %v3251
      %v3310 = vpack.c.b16 %v3254, %v3253
      %v3311 = vpack.c.b16 %v3256, %v3255
      %v3312 = vpack.c.b16 %v3258, %v3257
      %v3313 = vpack.c.b16 %v3260, %v3259
      %v3314 = vpack.c.b16 %v3262, %v3261
      %v3315 = vpack.c.b16 %v3264, %v3263
      %v3316 = vpack.c.b16 %v3266, %v3265
      %v3317 = vpack.c.b16 %v3268, %v3267
      %v3318 = vpack.c.b16 %v3270, %v3269
      %v3319 = vpack.c.b16 %v3272, %v3271
      %v3320 = vpack.c.b16 %v3274, %v3273
      %v3321 = vpack.c.b16 %v3276, %v3275
      %v3322 = vpack.c.b16 %v3278, %v3277
      %v3323 = vpack.c.b16 %v3280, %v3279
      %v3324 = vpack.c.b16 %v3282, %v3281
      %v3337 = vunpack.c.l.b16 %v3103
      %v3338 = vunpack.c.l.b16 %v3104
      %v3339 = vunpack.c.l.b16 %v3105
      %v3340 = vunpack.c.l.b16 %v3106
      %v3341 = vunpack.c.l.b16 %v3107
      %v3342 = vunpack.c.l.b16 %v3108
      %v3343 = vunpack.c.l.b16 %v3109
      %v3344 = vunpack.c.l.b16 %v3110
      %v3345 = vunpack.c.l.b16 %v3111
      %v3346 = vunpack.c.l.b16 %v3112
      %v3347 = vunpack.c.l.b16 %v3113
      %v3348 = vunpack.c.l.b16 %v3114
      %v3349 = vpack.c.b16 %v3338, %v3337
      %v3350 = vpack.c.b16 %v3340, %v3339
      %v3351 = vpack.c.b16 %v3342, %v3341
      %v3352 = vpack.c.b16 %v3344, %v3343
      %v3353 = vpack.c.b16 %v3346, %v3345
      %v3354 = vpack.c.b16 %v3348, %v3347
      %v3362 = vsel %vm1939, %v3283, 0
      %v3365 = vsel %vm1939, %v3284, 0
      %v3368 = vsel %vm1939, %v3285, 0
      %v3371 = vsel %vm1939, %v3286, 0
      %v3374 = vsel %vm1939, %v3287, 0
      %v3377 = vsel %vm1939, %v3288, 0
      %v3380 = vsel %vm1939, %v3289, 0
      %v3383 = vsel %vm1939, %v3290, 0
      %v3386 = vsel %vm1939, %v3291, 0
      %v3389 = vsel %vm1939, %v3292, 0
      %v3392 = vsel %vm1939, %v3293, 0
      %v3395 = vsel %vm1939, %v3294, 0
      %v3398 = vsel %vm1939, %v3295, 0
      %v3401 = vsel %vm1939, %v3296, 0
      %v3404 = vsel %vm1939, %v3297, 0
      %v3407 = vsel %vm1939, %v3298, 0
      %v3410 = vsel %vm1939, %v3299, 0
      %v3413 = vsel %vm1939, %v3300, 0
      %v3416 = vsel %vm1939, %v3301, 0
      %v3419 = vsel %vm1939, %v3302, 0
      %v3422 = vsel %vm1939, %v3303, 0
      %v3425 = vsel %vm1939, %v3304, 0
      %v3428 = vsel %vm1939, %v3305, 0
      %v3431 = vsel %vm1939, %v3306, 0
      %v3434 = vsel %vm1939, %v3307, 0
      %v3437 = vsel %vm1939, %v3308, 0
      %v3440 = vsel %vm1939, %v3309, 0
      %v3443 = vsel %vm1939, %v3310, 0
      %v3446 = vsel %vm1939, %v3311, 0
      %v3449 = vsel %vm1939, %v3312, 0
      %v3452 = vsel %vm1939, %v3313, 0
      %v3455 = vsel %vm1939, %v3314, 0
      %v3458 = vsel %vm1939, %v3315, 0
      %v3461 = vsel %vm1939, %v3316, 0
      %v3464 = vsel %vm1939, %v3317, 0
      %v3467 = vsel %vm1939, %v3318, 0
      %v3470 = vsel %vm1939, %v3319, 0
      %v3473 = vsel %vm1939, %v3320, 0
      %v3476 = vsel %vm1939, %v3321, 0
      %v3479 = vsel %vm1939, %v3322, 0
      %v3482 = vsel %vm1939, %v3323, 0
      %v3485 = vsel %vm1939, %v3324, 0
      %3487 = vmatprep.subr.bf16.mxu0 0
      %3488 = vmatpush1.bf16.msra.mxu0 %v3349
      %3489 = vmatprep.subr.bf16.mxu0 0
      %3490 = vmatpush1.bf16.msra.mxu0 %v3350
      %3491 = vmatprep.subr.bf16.mxu0 0
      %3492 = vmatpush1.bf16.msra.mxu0 %v3351
      %3493 = vmatprep.subr.bf16.mxu0 0
      %3494 = vmatpush1.bf16.msra.mxu0 %v3352
      %3495 = vmatprep.subr.bf16.mxu0 0
      %3496 = vmatpush1.bf16.msra.mxu0 %v3353
      %3497 = vmatprep.subr.bf16.mxu0 0
      %3498 = vmatpush1.bf16.msra.mxu0 %v3354
      %3499 = vmatprep.subr.bf16.mxu0 0
      %3500 = vmatpush1.bf16.msra.mxu0 0
      %3501 = vmatprep.subr.bf16.mxu0 0
      %3502 = vmatpush1.bf16.msra.mxu0 0
      %3503 = vmatprep.subr.bf16.mxu0 0
      %3504 = vmatpush1.bf16.msra.mxu0 0
      %3505 = vmatprep.subr.bf16.mxu0 0
      %3506 = vmatpush1.bf16.msra.mxu0 0
      %3507 = vmatprep.subr.bf16.mxu0 0
      %3508 = vmatpush1.bf16.msra.mxu0 0
      %3509 = vmatprep.subr.bf16.mxu0 0
      %3510 = vmatpush1.bf16.msra.mxu0 0
      %3511 = vmatprep.subr.bf16.mxu0 0
      %3512 = vmatpush1.bf16.msra.mxu0 0
      %3513 = vmatprep.subr.bf16.mxu0 0
      %3514 = vmatpush1.bf16.msra.mxu0 0
      %3515 = vmatprep.subr.bf16.mxu0 0
      %3516 = vmatpush1.bf16.msra.mxu0 0
      %3517 = vmatprep.subr.bf16.mxu0 0
      %3518 = vmatpush1.bf16.msra.mxu0 0
      %3519 = vmatprep.mubr.bf16.mxu0 0
      %3520 = vmatmul.mubr.bf16.gmra.mrb[0].mxu0 %v3362
      %v3521 = vpop.f32.mrb[0].mxu0
      %v3522 = vadd.f32 0.0, %v3521
      %v3523 = vpop.f32.mrb[0].mxu0
      %v3524 = vpop.f32.mrb[0].mxu0
      %v3525 = vadd.f32 0.0, %v3524
      %v3526 = vpop.f32.mrb[0].mxu0
      %3527 = vmatprep.mubr.bf16.mxu0 0
      %3528 = vmatmul.mubr.bf16.gmra.mrb[0].mxu0 %v3365
      %v3529 = vpop.f32.mrb[0].mxu0
      %v3530 = vadd.f32 0.0, %v3529
      %v3531 = vpop.f32.mrb[0].mxu0
      %v3532 = vpop.f32.mrb[0].mxu0
      %v3533 = vadd.f32 0.0, %v3532
      %v3534 = vpop.f32.mrb[0].mxu0
      %3535 = vmatprep.mubr.bf16.mxu0 0
      %3536 = vmatmul.mubr.bf16.gmra.mrb[0].mxu0 %v3368
      %v3537 = vpop.f32.mrb[0].mxu0
      %v3538 = vadd.f32 0.0, %v3537
      %v3539 = vpop.f32.mrb[0].mxu0
      %v3540 = vpop.f32.mrb[0].mxu0
      %v3541 = vadd.f32 0.0, %v3540
      %v3542 = vpop.f32.mrb[0].mxu0
      %3543 = vmatprep.mubr.bf16.mxu0 0
      %3544 = vmatmul.mubr.bf16.gmra.mrb[0].mxu0 %v3371
      %v3545 = vpop.f32.mrb[0].mxu0
      %v3546 = vadd.f32 0.0, %v3545
      %v3547 = vpop.f32.mrb[0].mxu0
      %v3548 = vpop.f32.mrb[0].mxu0
      %v3549 = vadd.f32 0.0, %v3548
      %v3550 = vpop.f32.mrb[0].mxu0
      %3551 = vmatprep.mubr.bf16.mxu0 0
      %3552 = vmatmul.mubr.bf16.gmra.mrb[0].mxu0 %v3374
      %v3553 = vpop.f32.mrb[0].mxu0
      %v3554 = vadd.f32 0.0, %v3553
      %v3555 = vpop.f32.mrb[0].mxu0
      %v3556 = vpop.f32.mrb[0].mxu0
      %v3557 = vadd.f32 0.0, %v3556
      %v3558 = vpop.f32.mrb[0].mxu0
      %3559 = vmatprep.mubr.bf16.mxu0 0
      %3560 = vmatmul.mubr.bf16.gmra.mrb[0].mxu0 %v3377
      %v3561 = vpop.f32.mrb[0].mxu0
      %v3562 = vadd.f32 0.0, %v3561
      %v3563 = vpop.f32.mrb[0].mxu0
      %v3564 = vpop.f32.mrb[0].mxu0
      %v3565 = vadd.f32 0.0, %v3564
      %v3566 = vpop.f32.mrb[0].mxu0
      %3567 = vmatprep.mubr.bf16.mxu0 0
      %3568 = vmatmul.mubr.bf16.gmra.mrb[0].mxu0 %v3380
      %v3569 = vpop.f32.mrb[0].mxu0
      %v3570 = vadd.f32 0.0, %v3569
      %v3571 = vpop.f32.mrb[0].mxu0
      %v3572 = vpop.f32.mrb[0].mxu0
      %v3573 = vadd.f32 0.0, %v3572
      %v3574 = vpop.f32.mrb[0].mxu0
      %3575 = vmatprep.mubr.bf16.mxu0 0
      %3576 = vmatmul.mubr.bf16.gmra.mrb[0].mxu0 %v3383
      %v3577 = vpop.f32.mrb[0].mxu0
      %v3578 = vadd.f32 0.0, %v3577
      %v3579 = vpop.f32.mrb[0].mxu0
      %v3580 = vpop.f32.mrb[0].mxu0
      %v3581 = vadd.f32 0.0, %v3580
      %v3582 = vpop.f32.mrb[0].mxu0
      %3583 = vmatprep.mubr.bf16.mxu0 0
      %3584 = vmatmul.mubr.bf16.gmra.mrb[0].mxu0 %v3386
      %v3585 = vpop.f32.mrb[0].mxu0
      %v3586 = vadd.f32 0.0, %v3585
      %v3587 = vpop.f32.mrb[0].mxu0
      %v3588 = vpop.f32.mrb[0].mxu0
      %v3589 = vadd.f32 0.0, %v3588
      %v3590 = vpop.f32.mrb[0].mxu0
      %3591 = vmatprep.mubr.bf16.mxu0 0
      %3592 = vmatmul.mubr.bf16.gmra.mrb[0].mxu0 %v3389
      %v3593 = vpop.f32.mrb[0].mxu0
      %v3594 = vadd.f32 0.0, %v3593
      %v3595 = vpop.f32.mrb[0].mxu0
      %v3596 = vpop.f32.mrb[0].mxu0
      %v3597 = vadd.f32 0.0, %v3596
      %v3598 = vpop.f32.mrb[0].mxu0
      %3599 = vmatprep.mubr.bf16.mxu0 0
      %3600 = vmatmul.mubr.bf16.gmra.mrb[0].mxu0 %v3392
      %v3601 = vpop.f32.mrb[0].mxu0
      %v3602 = vadd.f32 0.0, %v3601
      %v3603 = vpop.f32.mrb[0].mxu0
      %v3604 = vpop.f32.mrb[0].mxu0
      %v3605 = vadd.f32 0.0, %v3604
      %v3606 = vpop.f32.mrb[0].mxu0
      %3607 = vmatprep.mubr.bf16.mxu0 0
      %3608 = vmatmul.mubr.bf16.gmra.mrb[0].mxu0 %v3395
      %v3609 = vpop.f32.mrb[0].mxu0
      %v3610 = vadd.f32 0.0, %v3609
      %v3611 = vpop.f32.mrb[0].mxu0
      %v3612 = vpop.f32.mrb[0].mxu0
      %v3613 = vadd.f32 0.0, %v3612
      %v3614 = vpop.f32.mrb[0].mxu0
      %3615 = vmatprep.mubr.bf16.mxu0 0
      %3616 = vmatmul.mubr.bf16.gmra.mrb[0].mxu0 %v3398
      %v3617 = vpop.f32.mrb[0].mxu0
      %v3618 = vadd.f32 0.0, %v3617
      %v3619 = vpop.f32.mrb[0].mxu0
      %v3620 = vpop.f32.mrb[0].mxu0
      %v3621 = vadd.f32 0.0, %v3620
      %v3622 = vpop.f32.mrb[0].mxu0
      %3623 = vmatprep.mubr.bf16.mxu0 0
      %3624 = vmatmul.mubr.bf16.gmra.mrb[0].mxu0 %v3401
      %v3625 = vpop.f32.mrb[0].mxu0
      %v3626 = vadd.f32 0.0, %v3625
      %v3627 = vpop.f32.mrb[0].mxu0
      %v3628 = vpop.f32.mrb[0].mxu0
      %v3629 = vadd.f32 0.0, %v3628
      %v3630 = vpop.f32.mrb[0].mxu0
      %3631 = vmatprep.mubr.bf16.mxu0 0
      %3632 = vmatmul.mubr.bf16.gmra.mrb[0].mxu0 %v3404
      %v3633 = vpop.f32.mrb[0].mxu0
      %v3634 = vadd.f32 0.0, %v3633
      %v3635 = vpop.f32.mrb[0].mxu0
      %v3636 = vpop.f32.mrb[0].mxu0
      %v3637 = vadd.f32 0.0, %v3636
      %v3638 = vpop.f32.mrb[0].mxu0
      %3639 = vmatprep.mubr.bf16.mxu0 0
      %3640 = vmatmul.mubr.bf16.gmra.mrb[0].mxu0 %v3407
      %v3641 = vpop.f32.mrb[0].mxu0
      %v3642 = vadd.f32 0.0, %v3641
      %v3643 = vpop.f32.mrb[0].mxu0
      %v3644 = vpop.f32.mrb[0].mxu0
      %v3645 = vadd.f32 0.0, %v3644
      %v3646 = vpop.f32.mrb[0].mxu0
      %3647 = vmatprep.mubr.bf16.mxu0 0
      %3648 = vmatmul.mubr.bf16.gmra.mrb[0].mxu0 %v3410
      %v3649 = vpop.f32.mrb[0].mxu0
      %v3650 = vadd.f32 0.0, %v3649
      %v3651 = vpop.f32.mrb[0].mxu0
      %v3652 = vpop.f32.mrb[0].mxu0
      %v3653 = vadd.f32 0.0, %v3652
      %v3654 = vpop.f32.mrb[0].mxu0
      %3655 = vmatprep.mubr.bf16.mxu0 0
      %3656 = vmatmul.mubr.bf16.gmra.mrb[0].mxu0 %v3413
      %v3657 = vpop.f32.mrb[0].mxu0
      %v3658 = vadd.f32 0.0, %v3657
      %v3659 = vpop.f32.mrb[0].mxu0
      %v3660 = vpop.f32.mrb[0].mxu0
      %v3661 = vadd.f32 0.0, %v3660
      %v3662 = vpop.f32.mrb[0].mxu0
      %3663 = vmatprep.mubr.bf16.mxu0 0
      %3664 = vmatmul.mubr.bf16.gmra.mrb[0].mxu0 %v3416
      %v3665 = vpop.f32.mrb[0].mxu0
      %v3666 = vadd.f32 0.0, %v3665
      %v3667 = vpop.f32.mrb[0].mxu0
      %v3668 = vpop.f32.mrb[0].mxu0
      %v3669 = vadd.f32 0.0, %v3668
      %v3670 = vpop.f32.mrb[0].mxu0
      %3671 = vmatprep.mubr.bf16.mxu0 0
      %3672 = vmatmul.mubr.bf16.gmra.mrb[0].mxu0 %v3419
      %v3673 = vpop.f32.mrb[0].mxu0
      %v3674 = vadd.f32 0.0, %v3673
      %v3675 = vpop.f32.mrb[0].mxu0
      %v3676 = vpop.f32.mrb[0].mxu0
      %v3677 = vadd.f32 0.0, %v3676
      %v3678 = vpop.f32.mrb[0].mxu0
      %3679 = vmatprep.mubr.bf16.mxu0 0
      %3680 = vmatmul.mubr.bf16.gmra.mrb[0].mxu0 %v3422
      %v3681 = vpop.f32.mrb[0].mxu0
      %v3682 = vadd.f32 0.0, %v3681
      %v3683 = vpop.f32.mrb[0].mxu0
      %v3684 = vpop.f32.mrb[0].mxu0
      %v3685 = vadd.f32 0.0, %v3684
      %v3686 = vpop.f32.mrb[0].mxu0
      %3687 = vmatprep.mubr.bf16.mxu0 0
      %3688 = vmatmul.mubr.bf16.gmra.mrb[0].mxu0 %v3425
      %v3689 = vpop.f32.mrb[0].mxu0
      %v3690 = vadd.f32 0.0, %v3689
      %v3691 = vpop.f32.mrb[0].mxu0
      %v3692 = vpop.f32.mrb[0].mxu0
      %v3693 = vadd.f32 0.0, %v3692
      %v3694 = vpop.f32.mrb[0].mxu0
      %3695 = vmatprep.mubr.bf16.mxu0 0
      %3696 = vmatmul.mubr.bf16.gmra.mrb[0].mxu0 %v3428
      %v3697 = vpop.f32.mrb[0].mxu0
      %v3698 = vadd.f32 0.0, %v3697
      %v3699 = vpop.f32.mrb[0].mxu0
      %v3700 = vpop.f32.mrb[0].mxu0
      %v3701 = vadd.f32 0.0, %v3700
      %v3702 = vpop.f32.mrb[0].mxu0
      %3703 = vmatprep.mubr.bf16.mxu0 0
      %3704 = vmatmul.mubr.bf16.gmra.mrb[0].mxu0 %v3431
      %v3705 = vpop.f32.mrb[0].mxu0
      %v3706 = vadd.f32 0.0, %v3705
      %v3707 = vpop.f32.mrb[0].mxu0
      %v3708 = vpop.f32.mrb[0].mxu0
      %v3709 = vadd.f32 0.0, %v3708
      %v3710 = vpop.f32.mrb[0].mxu0
      %3711 = vmatprep.mubr.bf16.mxu0 0
      %3712 = vmatmul.mubr.bf16.gmra.mrb[0].mxu0 %v3434
      %v3713 = vpop.f32.mrb[0].mxu0
      %v3714 = vadd.f32 0.0, %v3713
      %v3715 = vpop.f32.mrb[0].mxu0
      %v3716 = vpop.f32.mrb[0].mxu0
      %v3717 = vadd.f32 0.0, %v3716
      %v3718 = vpop.f32.mrb[0].mxu0
      %3719 = vmatprep.mubr.bf16.mxu0 0
      %3720 = vmatmul.mubr.bf16.gmra.mrb[0].mxu0 %v3437
      %v3721 = vpop.f32.mrb[0].mxu0
      %v3722 = vadd.f32 0.0, %v3721
      %v3723 = vpop.f32.mrb[0].mxu0
      %v3724 = vpop.f32.mrb[0].mxu0
      %v3725 = vadd.f32 0.0, %v3724
      %v3726 = vpop.f32.mrb[0].mxu0
      %3727 = vmatprep.mubr.bf16.mxu0 0
      %3728 = vmatmul.mubr.bf16.gmra.mrb[0].mxu0 %v3440
      %v3729 = vpop.f32.mrb[0].mxu0
      %v3730 = vadd.f32 0.0, %v3729
      %v3731 = vpop.f32.mrb[0].mxu0
      %v3732 = vpop.f32.mrb[0].mxu0
      %v3733 = vadd.f32 0.0, %v3732
      %v3734 = vpop.f32.mrb[0].mxu0
      %3735 = vmatprep.mubr.bf16.mxu0 0
      %3736 = vmatmul.mubr.bf16.gmra.mrb[0].mxu0 %v3443
      %v3737 = vpop.f32.mrb[0].mxu0
      %v3738 = vadd.f32 0.0, %v3737
      %v3739 = vpop.f32.mrb[0].mxu0
      %v3740 = vpop.f32.mrb[0].mxu0
      %v3741 = vadd.f32 0.0, %v3740
      %v3742 = vpop.f32.mrb[0].mxu0
      %3743 = vmatprep.mubr.bf16.mxu0 0
      %3744 = vmatmul.mubr.bf16.gmra.mrb[0].mxu0 %v3446
      %v3745 = vpop.f32.mrb[0].mxu0
      %v3746 = vadd.f32 0.0, %v3745
      %v3747 = vpop.f32.mrb[0].mxu0
      %v3748 = vpop.f32.mrb[0].mxu0
      %v3749 = vadd.f32 0.0, %v3748
      %v3750 = vpop.f32.mrb[0].mxu0
      %3751 = vmatprep.mubr.bf16.mxu0 0
      %3752 = vmatmul.mubr.bf16.gmra.mrb[0].mxu0 %v3449
      %v3753 = vpop.f32.mrb[0].mxu0
      %v3754 = vadd.f32 0.0, %v3753
      %v3755 = vpop.f32.mrb[0].mxu0
      %v3756 = vpop.f32.mrb[0].mxu0
      %v3757 = vadd.f32 0.0, %v3756
      %v3758 = vpop.f32.mrb[0].mxu0
      %3759 = vmatprep.mubr.bf16.mxu0 0
      %3760 = vmatmul.mubr.bf16.gmra.mrb[0].mxu0 %v3452
      %v3761 = vpop.f32.mrb[0].mxu0
      %v3762 = vadd.f32 0.0, %v3761
      %v3763 = vpop.f32.mrb[0].mxu0
      %v3764 = vpop.f32.mrb[0].mxu0
      %v3765 = vadd.f32 0.0, %v3764
      %v3766 = vpop.f32.mrb[0].mxu0
      %3767 = vmatprep.mubr.bf16.mxu0 0
      %3768 = vmatmul.mubr.bf16.gmra.mrb[0].mxu0 %v3455
      %v3769 = vpop.f32.mrb[0].mxu0
      %v3770 = vadd.f32 0.0, %v3769
      %v3771 = vpop.f32.mrb[0].mxu0
      %v3772 = vpop.f32.mrb[0].mxu0
      %v3773 = vadd.f32 0.0, %v3772
      %v3774 = vpop.f32.mrb[0].mxu0
      %3775 = vmatprep.mubr.bf16.mxu0 0
      %3776 = vmatmul.mubr.bf16.gmra.mrb[0].mxu0 %v3458
      %v3777 = vpop.f32.mrb[0].mxu0
      %v3778 = vadd.f32 0.0, %v3777
      %v3779 = vpop.f32.mrb[0].mxu0
      %v3780 = vpop.f32.mrb[0].mxu0
      %v3781 = vadd.f32 0.0, %v3780
      %v3782 = vpop.f32.mrb[0].mxu0
      %3783 = vmatprep.mubr.bf16.mxu0 0
      %3784 = vmatmul.mubr.bf16.gmra.mrb[0].mxu0 %v3461
      %v3785 = vpop.f32.mrb[0].mxu0
      %v3786 = vadd.f32 0.0, %v3785
      %v3787 = vpop.f32.mrb[0].mxu0
      %v3788 = vpop.f32.mrb[0].mxu0
      %v3789 = vadd.f32 0.0, %v3788
      %v3790 = vpop.f32.mrb[0].mxu0
      %3791 = vmatprep.mubr.bf16.mxu0 0
      %3792 = vmatmul.mubr.bf16.gmra.mrb[0].mxu0 %v3464
      %v3793 = vpop.f32.mrb[0].mxu0
      %v3794 = vadd.f32 0.0, %v3793
      %v3795 = vpop.f32.mrb[0].mxu0
      %v3796 = vpop.f32.mrb[0].mxu0
      %v3797 = vadd.f32 0.0, %v3796
      %v3798 = vpop.f32.mrb[0].mxu0
      %3799 = vmatprep.mubr.bf16.mxu0 0
      %3800 = vmatmul.mubr.bf16.gmra.mrb[0].mxu0 %v3467
      %v3801 = vpop.f32.mrb[0].mxu0
      %v3802 = vadd.f32 0.0, %v3801
      %v3803 = vpop.f32.mrb[0].mxu0
      %v3804 = vpop.f32.mrb[0].mxu0
      %v3805 = vadd.f32 0.0, %v3804
      %v3806 = vpop.f32.mrb[0].mxu0
      %3807 = vmatprep.mubr.bf16.mxu0 0
      %3808 = vmatmul.mubr.bf16.gmra.mrb[0].mxu0 %v3470
      %v3809 = vpop.f32.mrb[0].mxu0
      %v3810 = vadd.f32 0.0, %v3809
      %v3811 = vpop.f32.mrb[0].mxu0
      %v3812 = vpop.f32.mrb[0].mxu0
      %v3813 = vadd.f32 0.0, %v3812
      %v3814 = vpop.f32.mrb[0].mxu0
      %3815 = vmatprep.mubr.bf16.mxu0 0
      %3816 = vmatmul.mubr.bf16.gmra.mrb[0].mxu0 %v3473
      %v3817 = vpop.f32.mrb[0].mxu0
      %v3818 = vadd.f32 0.0, %v3817
      %v3819 = vpop.f32.mrb[0].mxu0
      %v3820 = vpop.f32.mrb[0].mxu0
      %v3821 = vadd.f32 0.0, %v3820
      %v3822 = vpop.f32.mrb[0].mxu0
      %3823 = vmatprep.mubr.bf16.mxu0 0
      %3824 = vmatmul.mubr.bf16.gmra.mrb[0].mxu0 %v3476
      %v3825 = vpop.f32.mrb[0].mxu0
      %v3826 = vadd.f32 0.0, %v3825
      %v3827 = vpop.f32.mrb[0].mxu0
      %v3828 = vpop.f32.mrb[0].mxu0
      %v3829 = vadd.f32 0.0, %v3828
      %v3830 = vpop.f32.mrb[0].mxu0
      %3831 = vmatprep.mubr.bf16.mxu0 0
      %3832 = vmatmul.mubr.bf16.gmra.mrb[0].mxu0 %v3479
      %v3833 = vpop.f32.mrb[0].mxu0
      %v3834 = vadd.f32 0.0, %v3833
      %v3835 = vpop.f32.mrb[0].mxu0
      %v3836 = vpop.f32.mrb[0].mxu0
      %v3837 = vadd.f32 0.0, %v3836
      %v3838 = vpop.f32.mrb[0].mxu0
      %3839 = vmatprep.mubr.bf16.mxu0 0
      %3840 = vmatmul.mubr.bf16.gmra.mrb[0].mxu0 %v3482
      %v3841 = vpop.f32.mrb[0].mxu0
      %v3842 = vadd.f32 0.0, %v3841
      %v3843 = vpop.f32.mrb[0].mxu0
      %v3844 = vpop.f32.mrb[0].mxu0
      %v3845 = vadd.f32 0.0, %v3844
      %v3846 = vpop.f32.mrb[0].mxu0
      %3847 = vmatprep.mubr.bf16.mxu0 0
      %3848 = vmatmul.mubr.bf16.gmra.mrb[0].mxu0 %v3485
      %v3849 = vpop.f32.mrb[0].mxu0
      %v3850 = vadd.f32 0.0, %v3849
      %v3851 = vpop.f32.mrb[0].mxu0
      %v3852 = vpop.f32.mrb[0].mxu0
      %v3853 = vadd.f32 0.0, %v3852
      %v3854 = vpop.f32.mrb[0].mxu0
      %3855 = vdwg.mxu0
      %v3856 = vadd.f32 %v2684, %v3522
      %v3857 = vadd.f32 %v2687, %v3525
      %v3858 = vadd.f32 %v2692, %v3530
      %v3859 = vadd.f32 %v2695, %v3533
      %v3860 = vadd.f32 %v2700, %v3538
      %v3861 = vadd.f32 %v2703, %v3541
      %v3862 = vadd.f32 %v2708, %v3546
      %v3863 = vadd.f32 %v2711, %v3549
      %v3864 = vadd.f32 %v2716, %v3554
      %v3865 = vadd.f32 %v2719, %v3557
      %v3866 = vadd.f32 %v2724, %v3562
      %v3867 = vadd.f32 %v2727, %v3565
      %v3868 = vadd.f32 %v2732, %v3570
      %v3869 = vadd.f32 %v2735, %v3573
      %v3870 = vadd.f32 %v2740, %v3578
      %v3871 = vadd.f32 %v2743, %v3581
      %v3872 = vadd.f32 %v2748, %v3586
      %v3873 = vadd.f32 %v2751, %v3589
      %v3874 = vadd.f32 %v2756, %v3594
      %v3875 = vadd.f32 %v2759, %v3597
      %v3876 = vadd.f32 %v2764, %v3602
      %v3877 = vadd.f32 %v2767, %v3605
      %v3878 = vadd.f32 %v2772, %v3610
      %v3879 = vadd.f32 %v2775, %v3613
      %v3880 = vadd.f32 %v2780, %v3618
      %v3881 = vadd.f32 %v2783, %v3621
      %v3882 = vadd.f32 %v2788, %v3626
      %v3883 = vadd.f32 %v2791, %v3629
      %v3884 = vadd.f32 %v2796, %v3634
      %v3885 = vadd.f32 %v2799, %v3637
      %v3886 = vadd.f32 %v2804, %v3642
      %v3887 = vadd.f32 %v2807, %v3645
      %v3888 = vadd.f32 %v2812, %v3650
      %v3889 = vadd.f32 %v2815, %v3653
      %v3890 = vadd.f32 %v2820, %v3658
      %v3891 = vadd.f32 %v2823, %v3661
      %v3892 = vadd.f32 %v2828, %v3666
      %v3893 = vadd.f32 %v2831, %v3669
      %v3894 = vadd.f32 %v2836, %v3674
      %v3895 = vadd.f32 %v2839, %v3677
      %v3896 = vadd.f32 %v2844, %v3682
      %v3897 = vadd.f32 %v2847, %v3685
      %v3898 = vadd.f32 %v2852, %v3690
      %v3899 = vadd.f32 %v2855, %v3693
      %v3900 = vadd.f32 %v2860, %v3698
      %v3901 = vadd.f32 %v2863, %v3701
      %v3902 = vadd.f32 %v2868, %v3706
      %v3903 = vadd.f32 %v2871, %v3709
      %v3904 = vadd.f32 %v2876, %v3714
      %v3905 = vadd.f32 %v2879, %v3717
      %v3906 = vadd.f32 %v2884, %v3722
      %v3907 = vadd.f32 %v2887, %v3725
      %v3908 = vadd.f32 %v2892, %v3730
      %v3909 = vadd.f32 %v2895, %v3733
      %v3910 = vadd.f32 %v2900, %v3738
      %v3911 = vadd.f32 %v2903, %v3741
      %v3912 = vadd.f32 %v2908, %v3746
      %v3913 = vadd.f32 %v2911, %v3749
      %v3914 = vadd.f32 %v2916, %v3754
      %v3915 = vadd.f32 %v2919, %v3757
      %v3916 = vadd.f32 %v2924, %v3762
      %v3917 = vadd.f32 %v2927, %v3765
      %v3918 = vadd.f32 %v2932, %v3770
      %v3919 = vadd.f32 %v2935, %v3773
      %v3920 = vadd.f32 %v2940, %v3778
      %v3921 = vadd.f32 %v2943, %v3781
      %v3922 = vadd.f32 %v2948, %v3786
      %v3923 = vadd.f32 %v2951, %v3789
      %v3924 = vadd.f32 %v2956, %v3794
      %v3925 = vadd.f32 %v2959, %v3797
      %v3926 = vadd.f32 %v2964, %v3802
      %v3927 = vadd.f32 %v2967, %v3805
      %v3928 = vadd.f32 %v2972, %v3810
      %v3929 = vadd.f32 %v2975, %v3813
      %v3930 = vadd.f32 %v2980, %v3818
      %v3931 = vadd.f32 %v2983, %v3821
      %v3932 = vadd.f32 %v2988, %v3826
      %v3933 = vadd.f32 %v2991, %v3829
      %v3934 = vadd.f32 %v2996, %v3834
      %v3935 = vadd.f32 %v2999, %v3837
      %v3936 = vadd.f32 %v3004, %v3842
      %v3937 = vadd.f32 %v3007, %v3845
      %v3938 = vadd.f32 %v3012, %v3850
      %v3939 = vadd.f32 %v3015, %v3853
      %vm3940 = vcmask 523264
      %3941 = vst.msk [vmem:[#allocation3] sm:$0xff] %vm3940, %v3856
      %3942 = vst.msk [vmem:[#allocation3 + $0x8] sm:$0xff] %vm3940, %v3857
      %3943 = vst.msk [vmem:[#allocation3 + $0x10] sm:$0xff] %vm3940, %v3858
      %3944 = vst.msk [vmem:[#allocation3 + $0x18] sm:$0xff] %vm3940, %v3859
      %3945 = vst.msk [vmem:[#allocation3 + $0x20] sm:$0xff] %vm3940, %v3860
      %3946 = vst.msk [vmem:[#allocation3 + $0x28] sm:$0xff] %vm3940, %v3861
      %3947 = vst.msk [vmem:[#allocation3 + $0x30] sm:$0xff] %vm3940, %v3862
      %3948 = vst.msk [vmem:[#allocation3 + $0x38] sm:$0xff] %vm3940, %v3863
      %3949 = vst.msk [vmem:[#allocation3 + $0x40] sm:$0xff] %vm3940, %v3864
      %3950 = vst.msk [vmem:[#allocation3 + $0x48] sm:$0xff] %vm3940, %v3865
      %3951 = vst.msk [vmem:[#allocation3 + $0x50] sm:$0xff] %vm3940, %v3866
      %3952 = vst.msk [vmem:[#allocation3 + $0x58] sm:$0xff] %vm3940, %v3867
      %3953 = vst.msk [vmem:[#allocation3 + $0x60] sm:$0xff] %vm3940, %v3868
      %3954 = vst.msk [vmem:[#allocation3 + $0x68] sm:$0xff] %vm3940, %v3869
      %3955 = vst.msk [vmem:[#allocation3 + $0x70] sm:$0xff] %vm3940, %v3870
      %3956 = vst.msk [vmem:[#allocation3 + $0x78] sm:$0xff] %vm3940, %v3871
      %3957 = vst.msk [vmem:[#allocation3 + $0x80] sm:$0xff] %vm3940, %v3872
      %3958 = vst.msk [vmem:[#allocation3 + $0x88] sm:$0xff] %vm3940, %v3873
      %3959 = vst.msk [vmem:[#allocation3 + $0x90] sm:$0xff] %vm3940, %v3874
      %3960 = vst.msk [vmem:[#allocation3 + $0x98] sm:$0xff] %vm3940, %v3875
      %3961 = vst.msk [vmem:[#allocation3 + $0xa0] sm:$0xff] %vm3940, %v3876
      %3962 = vst.msk [vmem:[#allocation3 + $0xa8] sm:$0xff] %vm3940, %v3877
      %3963 = vst.msk [vmem:[#allocation3 + $0xb0] sm:$0xff] %vm3940, %v3878
      %3964 = vst.msk [vmem:[#allocation3 + $0xb8] sm:$0xff] %vm3940, %v3879
      %3965 = vst.msk [vmem:[#allocation3 + $0xc0] sm:$0xff] %vm3940, %v3880
      %3966 = vst.msk [vmem:[#allocation3 + $0xc8] sm:$0xff] %vm3940, %v3881
      %3967 = vst.msk [vmem:[#allocation3 + $0xd0] sm:$0xff] %vm3940, %v3882
      %3968 = vst.msk [vmem:[#allocation3 + $0xd8] sm:$0xff] %vm3940, %v3883
      %3969 = vst.msk [vmem:[#allocation3 + $0xe0] sm:$0xff] %vm3940, %v3884
      %3970 = vst.msk [vmem:[#allocation3 + $0xe8] sm:$0xff] %vm3940, %v3885
      %3971 = vst.msk [vmem:[#allocation3 + $0xf0] sm:$0xff] %vm3940, %v3886
      %3972 = vst.msk [vmem:[#allocation3 + $0xf8] sm:$0xff] %vm3940, %v3887
      %3973 = vst.msk [vmem:[#allocation3 + $0x100] sm:$0xff] %vm3940, %v3888
      %3974 = vst.msk [vmem:[#allocation3 + $0x108] sm:$0xff] %vm3940, %v3889
      %3975 = vst.msk [vmem:[#allocation3 + $0x110] sm:$0xff] %vm3940, %v3890
      %3976 = vst.msk [vmem:[#allocation3 + $0x118] sm:$0xff] %vm3940, %v3891
      %3977 = vst.msk [vmem:[#allocation3 + $0x120] sm:$0xff] %vm3940, %v3892
      %3978 = vst.msk [vmem:[#allocation3 + $0x128] sm:$0xff] %vm3940, %v3893
      %3979 = vst.msk [vmem:[#allocation3 + $0x130] sm:$0xff] %vm3940, %v3894
      %3980 = vst.msk [vmem:[#allocation3 + $0x138] sm:$0xff] %vm3940, %v3895
      %3981 = vst.msk [vmem:[#allocation3 + $0x140] sm:$0xff] %vm3940, %v3896
      %3982 = vst.msk [vmem:[#allocation3 + $0x148] sm:$0xff] %vm3940, %v3897
      %3983 = vst.msk [vmem:[#allocation3 + $0x150] sm:$0xff] %vm3940, %v3898
      %3984 = vst.msk [vmem:[#allocation3 + $0x158] sm:$0xff] %vm3940, %v3899
      %3985 = vst.msk [vmem:[#allocation3 + $0x160] sm:$0xff] %vm3940, %v3900
      %3986 = vst.msk [vmem:[#allocation3 + $0x168] sm:$0xff] %vm3940, %v3901
      %3987 = vst.msk [vmem:[#allocation3 + $0x170] sm:$0xff] %vm3940, %v3902
      %3988 = vst.msk [vmem:[#allocation3 + $0x178] sm:$0xff] %vm3940, %v3903
      %3989 = vst.msk [vmem:[#allocation3 + $0x180] sm:$0xff] %vm3940, %v3904
      %3990 = vst.msk [vmem:[#allocation3 + $0x188] sm:$0xff] %vm3940, %v3905
      %3991 = vst.msk [vmem:[#allocation3 + $0x190] sm:$0xff] %vm3940, %v3906
      %3992 = vst.msk [vmem:[#allocation3 + $0x198] sm:$0xff] %vm3940, %v3907
      %3993 = vst.msk [vmem:[#allocation3 + $0x1a0] sm:$0xff] %vm3940, %v3908
      %3994 = vst.msk [vmem:[#allocation3 + $0x1a8] sm:$0xff] %vm3940, %v3909
      %3995 = vst.msk [vmem:[#allocation3 + $0x1b0] sm:$0xff] %vm3940, %v3910
      %3996 = vst.msk [vmem:[#allocation3 + $0x1b8] sm:$0xff] %vm3940, %v3911
      %3997 = vst.msk [vmem:[#allocation3 + $0x1c0] sm:$0xff] %vm3940, %v3912
      %3998 = vst.msk [vmem:[#allocation3 + $0x1c8] sm:$0xff] %vm3940, %v3913
      %3999 = vst.msk [vmem:[#allocation3 + $0x1d0] sm:$0xff] %vm3940, %v3914
      %4000 = vst.msk [vmem:[#allocation3 + $0x1d8] sm:$0xff] %vm3940, %v3915
      %4001 = vst.msk [vmem:[#allocation3 + $0x1e0] sm:$0xff] %vm3940, %v3916
      %4002 = vst.msk [vmem:[#allocation3 + $0x1e8] sm:$0xff] %vm3940, %v3917
      %4003 = vst.msk [vmem:[#allocation3 + $0x1f0] sm:$0xff] %vm3940, %v3918
      %4004 = vst.msk [vmem:[#allocation3 + $0x1f8] sm:$0xff] %vm3940, %v3919
      %4005 = vst.msk [vmem:[#allocation3 + $0x200] sm:$0xff] %vm3940, %v3920
      %4006 = vst.msk [vmem:[#allocation3 + $0x208] sm:$0xff] %vm3940, %v3921
      %4007 = vst.msk [vmem:[#allocation3 + $0x210] sm:$0xff] %vm3940, %v3922
      %4008 = vst.msk [vmem:[#allocation3 + $0x218] sm:$0xff] %vm3940, %v3923
      %4009 = vst.msk [vmem:[#allocation3 + $0x220] sm:$0xff] %vm3940, %v3924
      %4010 = vst.msk [vmem:[#allocation3 + $0x228] sm:$0xff] %vm3940, %v3925
      %4011 = vst.msk [vmem:[#allocation3 + $0x230] sm:$0xff] %vm3940, %v3926
      %4012 = vst.msk [vmem:[#allocation3 + $0x238] sm:$0xff] %vm3940, %v3927
      %4013 = vst.msk [vmem:[#allocation3 + $0x240] sm:$0xff] %vm3940, %v3928
      %4014 = vst.msk [vmem:[#allocation3 + $0x248] sm:$0xff] %vm3940, %v3929
      %4015 = vst.msk [vmem:[#allocation3 + $0x250] sm:$0xff] %vm3940, %v3930
      %4016 = vst.msk [vmem:[#allocation3 + $0x258] sm:$0xff] %vm3940, %v3931
      %4017 = vst.msk [vmem:[#allocation3 + $0x260] sm:$0xff] %vm3940, %v3932
      %4018 = vst.msk [vmem:[#allocation3 + $0x268] sm:$0xff] %vm3940, %v3933
      %4019 = vst.msk [vmem:[#allocation3 + $0x270] sm:$0xff] %vm3940, %v3934
      %4020 = vst.msk [vmem:[#allocation3 + $0x278] sm:$0xff] %vm3940, %v3935
      %4021 = vst.msk [vmem:[#allocation3 + $0x280] sm:$0xff] %vm3940, %v3936
      %4022 = vst.msk [vmem:[#allocation3 + $0x288] sm:$0xff] %vm3940, %v3937
      %4023 = vst.msk [vmem:[#allocation3 + $0x290] sm:$0xff] %vm3940, %v3938
      %vm4024 = vcmask 519168
      %4025 = vst.msk [vmem:[#allocation3 + $0x298] sm:$0xf] %vm4024, %v3939
      %v4026 = vld [vmem:[#allocation3] sm:$0xff]
      %v4027 = vld [vmem:[#allocation3 + $0x8] sm:$0xff]
      %v4028 = vld [vmem:[#allocation3 + $0x10] sm:$0xff]
      %v4029 = vld [vmem:[#allocation3 + $0x18] sm:$0xff]
      %v4030 = vld [vmem:[#allocation3 + $0x20] sm:$0xff]
      %v4031 = vld [vmem:[#allocation3 + $0x28] sm:$0xff]
      %v4032 = vld [vmem:[#allocation3 + $0x30] sm:$0xff]
      %v4033 = vld [vmem:[#allocation3 + $0x38] sm:$0xff]
      %v4034 = vld [vmem:[#allocation3 + $0x40] sm:$0xff]
      %v4035 = vld [vmem:[#allocation3 + $0x48] sm:$0xff]
      %v4036 = vld [vmem:[#allocation3 + $0x50] sm:$0xff]
      %v4037 = vld [vmem:[#allocation3 + $0x58] sm:$0xff]
      %v4038 = vld [vmem:[#allocation3 + $0x60] sm:$0xff]
      %v4039 = vld [vmem:[#allocation3 + $0x68] sm:$0xff]
      %v4040 = vld [vmem:[#allocation3 + $0x70] sm:$0xff]
      %v4041 = vld [vmem:[#allocation3 + $0x78] sm:$0xff]
      %v4042 = vld [vmem:[#allocation3 + $0x80] sm:$0xff]
      %v4043 = vld [vmem:[#allocation3 + $0x88] sm:$0xff]
      %v4044 = vld [vmem:[#allocation3 + $0x90] sm:$0xff]
      %v4045 = vld [vmem:[#allocation3 + $0x98] sm:$0xff]
      %v4046 = vld [vmem:[#allocation3 + $0xa0] sm:$0xff]
      %v4047 = vld [vmem:[#allocation3 + $0xa8] sm:$0xff]
      %v4048 = vld [vmem:[#allocation3 + $0xb0] sm:$0xff]
      %v4049 = vld [vmem:[#allocation3 + $0xb8] sm:$0xff]
      %v4050 = vld [vmem:[#allocation3 + $0xc0] sm:$0xff]
      %v4051 = vld [vmem:[#allocation3 + $0xc8] sm:$0xff]
      %v4052 = vld [vmem:[#allocation3 + $0xd0] sm:$0xff]
      %v4053 = vld [vmem:[#allocation3 + $0xd8] sm:$0xff]
      %v4054 = vld [vmem:[#allocation3 + $0xe0] sm:$0xff]
      %v4055 = vld [vmem:[#allocation3 + $0xe8] sm:$0xff]
      %v4056 = vld [vmem:[#allocation3 + $0xf0] sm:$0xff]
      %v4057 = vld [vmem:[#allocation3 + $0xf8] sm:$0xff]
      %v4058 = vld [vmem:[#allocation3 + $0x100] sm:$0xff]
      %v4059 = vld [vmem:[#allocation3 + $0x108] sm:$0xff]
      %v4060 = vld [vmem:[#allocation3 + $0x110] sm:$0xff]
      %v4061 = vld [vmem:[#allocation3 + $0x118] sm:$0xff]
      %v4062 = vld [vmem:[#allocation3 + $0x120] sm:$0xff]
      %v4063 = vld [vmem:[#allocation3 + $0x128] sm:$0xff]
      %v4064 = vld [vmem:[#allocation3 + $0x130] sm:$0xff]
      %v4065 = vld [vmem:[#allocation3 + $0x138] sm:$0xff]
      %v4066 = vld [vmem:[#allocation3 + $0x140] sm:$0xff]
      %v4067 = vld [vmem:[#allocation3 + $0x148] sm:$0xff]
      %v4068 = vld [vmem:[#allocation3 + $0x150] sm:$0xff]
      %v4069 = vld [vmem:[#allocation3 + $0x158] sm:$0xff]
      %v4070 = vld [vmem:[#allocation3 + $0x160] sm:$0xff]
      %v4071 = vld [vmem:[#allocation3 + $0x168] sm:$0xff]
      %v4072 = vld [vmem:[#allocation3 + $0x170] sm:$0xff]
      %v4073 = vld [vmem:[#allocation3 + $0x178] sm:$0xff]
      %v4074 = vld [vmem:[#allocation3 + $0x180] sm:$0xff]
      %v4075 = vld [vmem:[#allocation3 + $0x188] sm:$0xff]
      %v4076 = vld [vmem:[#allocation3 + $0x190] sm:$0xff]
      %v4077 = vld [vmem:[#allocation3 + $0x198] sm:$0xff]
      %v4078 = vld [vmem:[#allocation3 + $0x1a0] sm:$0xff]
      %v4079 = vld [vmem:[#allocation3 + $0x1a8] sm:$0xff]
      %v4080 = vld [vmem:[#allocation3 + $0x1b0] sm:$0xff]
      %v4081 = vld [vmem:[#allocation3 + $0x1b8] sm:$0xff]
      %v4082 = vld [vmem:[#allocation3 + $0x1c0] sm:$0xff]
      %v4083 = vld [vmem:[#allocation3 + $0x1c8] sm:$0xff]
      %v4084 = vld [vmem:[#allocation3 + $0x1d0] sm:$0xff]
      %v4085 = vld [vmem:[#allocation3 + $0x1d8] sm:$0xff]
      %v4086 = vld [vmem:[#allocation3 + $0x1e0] sm:$0xff]
      %v4087 = vld [vmem:[#allocation3 + $0x1e8] sm:$0xff]
      %v4088 = vld [vmem:[#allocation3 + $0x1f0] sm:$0xff]
      %v4089 = vld [vmem:[#allocation3 + $0x1f8] sm:$0xff]
      %v4090 = vld [vmem:[#allocation3 + $0x200] sm:$0xff]
      %v4091 = vld [vmem:[#allocation3 + $0x208] sm:$0xff]
      %v4092 = vld [vmem:[#allocation3 + $0x210] sm:$0xff]
      %v4093 = vld [vmem:[#allocation3 + $0x218] sm:$0xff]
      %v4094 = vld [vmem:[#allocation3 + $0x220] sm:$0xff]
      %v4095 = vld [vmem:[#allocation3 + $0x228] sm:$0xff]
      %v4096 = vld [vmem:[#allocation3 + $0x230] sm:$0xff]
      %v4097 = vld [vmem:[#allocation3 + $0x238] sm:$0xff]
      %v4098 = vld [vmem:[#allocation3 + $0x240] sm:$0xff]
      %v4099 = vld [vmem:[#allocation3 + $0x248] sm:$0xff]
      %v4100 = vld [vmem:[#allocation3 + $0x250] sm:$0xff]
      %v4101 = vld [vmem:[#allocation3 + $0x258] sm:$0xff]
      %v4102 = vld [vmem:[#allocation3 + $0x260] sm:$0xff]
      %v4103 = vld [vmem:[#allocation3 + $0x268] sm:$0xff]
      %v4104 = vld [vmem:[#allocation3 + $0x270] sm:$0xff]
      %v4105 = vld [vmem:[#allocation3 + $0x278] sm:$0x7f]
      %v4106 = vld [vmem:[#allocation3 + $0x1] sm:$0xff]
      %v4107 = vld [vmem:[#allocation3 + $0x9] sm:$0xff]
      %v4108 = vld [vmem:[#allocation3 + $0x11] sm:$0xff]
      %v4109 = vld [vmem:[#allocation3 + $0x19] sm:$0xff]
      %v4110 = vld [vmem:[#allocation3 + $0x21] sm:$0xff]
      %v4111 = vld [vmem:[#allocation3 + $0x29] sm:$0xff]
      %v4112 = vld [vmem:[#allocation3 + $0x31] sm:$0xff]
      %v4113 = vld [vmem:[#allocation3 + $0x39] sm:$0xff]
      %v4114 = vld [vmem:[#allocation3 + $0x41] sm:$0xff]
      %v4115 = vld [vmem:[#allocation3 + $0x49] sm:$0xff]
      %v4116 = vld [vmem:[#allocation3 + $0x51] sm:$0xff]
      %v4117 = vld [vmem:[#allocation3 + $0x59] sm:$0xff]
      %v4118 = vld [vmem:[#allocation3 + $0x61] sm:$0xff]
      %v4119 = vld [vmem:[#allocation3 + $0x69] sm:$0xff]
      %v4120 = vld [vmem:[#allocation3 + $0x71] sm:$0xff]
      %v4121 = vld [vmem:[#allocation3 + $0x79] sm:$0xff]
      %v4122 = vld [vmem:[#allocation3 + $0x81] sm:$0xff]
      %v4123 = vld [vmem:[#allocation3 + $0x89] sm:$0xff]
      %v4124 = vld [vmem:[#allocation3 + $0x91] sm:$0xff]
      %v4125 = vld [vmem:[#allocation3 + $0x99] sm:$0xff]
      %v4126 = vld [vmem:[#allocation3 + $0xa1] sm:$0xff]
      %v4127 = vld [vmem:[#allocation3 + $0xa9] sm:$0xff]
      %v4128 = vld [vmem:[#allocation3 + $0xb1] sm:$0xff]
      %v4129 = vld [vmem:[#allocation3 + $0xb9] sm:$0xff]
      %v4130 = vld [vmem:[#allocation3 + $0xc1] sm:$0xff]
      %v4131 = vld [vmem:[#allocation3 + $0xc9] sm:$0xff]
      %v4132 = vld [vmem:[#allocation3 + $0xd1] sm:$0xff]
      %v4133 = vld [vmem:[#allocation3 + $0xd9] sm:$0xff]
      %v4134 = vld [vmem:[#allocation3 + $0xe1] sm:$0xff]
      %v4135 = vld [vmem:[#allocation3 + $0xe9] sm:$0xff]
      %v4136 = vld [vmem:[#allocation3 + $0xf1] sm:$0xff]
      %v4137 = vld [vmem:[#allocation3 + $0xf9] sm:$0xff]
      %v4138 = vld [vmem:[#allocation3 + $0x101] sm:$0xff]
      %v4139 = vld [vmem:[#allocation3 + $0x109] sm:$0xff]
      %v4140 = vld [vmem:[#allocation3 + $0x111] sm:$0xff]
      %v4141 = vld [vmem:[#allocation3 + $0x119] sm:$0xff]
      %v4142 = vld [vmem:[#allocation3 + $0x121] sm:$0xff]
      %v4143 = vld [vmem:[#allocation3 + $0x129] sm:$0xff]
      %v4144 = vld [vmem:[#allocation3 + $0x131] sm:$0xff]
      %v4145 = vld [vmem:[#allocation3 + $0x139] sm:$0xff]
      %v4146 = vld [vmem:[#allocation3 + $0x141] sm:$0xff]
      %v4147 = vld [vmem:[#allocation3 + $0x149] sm:$0xff]
      %v4148 = vld [vmem:[#allocation3 + $0x151] sm:$0xff]
      %v4149 = vld [vmem:[#allocation3 + $0x159] sm:$0xff]
      %v4150 = vld [vmem:[#allocation3 + $0x161] sm:$0xff]
      %v4151 = vld [vmem:[#allocation3 + $0x169] sm:$0xff]
      %v4152 = vld [vmem:[#allocation3 + $0x171] sm:$0xff]
      %v4153 = vld [vmem:[#allocation3 + $0x179] sm:$0xff]
      %v4154 = vld [vmem:[#allocation3 + $0x181] sm:$0xff]
      %v4155 = vld [vmem:[#allocation3 + $0x189] sm:$0xff]
      %v4156 = vld [vmem:[#allocation3 + $0x191] sm:$0xff]
      %v4157 = vld [vmem:[#allocation3 + $0x199] sm:$0xff]
      %v4158 = vld [vmem:[#allocation3 + $0x1a1] sm:$0xff]
      %v4159 = vld [vmem:[#allocation3 + $0x1a9] sm:$0xff]
      %v4160 = vld [vmem:[#allocation3 + $0x1b1] sm:$0xff]
      %v4161 = vld [vmem:[#allocation3 + $0x1b9] sm:$0xff]
      %v4162 = vld [vmem:[#allocation3 + $0x1c1] sm:$0xff]
      %v4163 = vld [vmem:[#allocation3 + $0x1c9] sm:$0xff]
      %v4164 = vld [vmem:[#allocation3 + $0x1d1] sm:$0xff]
      %v4165 = vld [vmem:[#allocation3 + $0x1d9] sm:$0xff]
      %v4166 = vld [vmem:[#allocation3 + $0x1e1] sm:$0xff]
      %v4167 = vld [vmem:[#allocation3 + $0x1e9] sm:$0xff]
      %v4168 = vld [vmem:[#allocation3 + $0x1f1] sm:$0xff]
      %v4169 = vld [vmem:[#allocation3 + $0x1f9] sm:$0xff]
      %v4170 = vld [vmem:[#allocation3 + $0x201] sm:$0xff]
      %v4171 = vld [vmem:[#allocation3 + $0x209] sm:$0xff]
      %v4172 = vld [vmem:[#allocation3 + $0x211] sm:$0xff]
      %v4173 = vld [vmem:[#allocation3 + $0x219] sm:$0xff]
      %v4174 = vld [vmem:[#allocation3 + $0x221] sm:$0xff]
      %v4175 = vld [vmem:[#allocation3 + $0x229] sm:$0xff]
      %v4176 = vld [vmem:[#allocation3 + $0x231] sm:$0xff]
      %v4177 = vld [vmem:[#allocation3 + $0x239] sm:$0xff]
      %v4178 = vld [vmem:[#allocation3 + $0x241] sm:$0xff]
      %v4179 = vld [vmem:[#allocation3 + $0x249] sm:$0xff]
      %v4180 = vld [vmem:[#allocation3 + $0x251] sm:$0xff]
      %v4181 = vld [vmem:[#allocation3 + $0x259] sm:$0xff]
      %v4182 = vld [vmem:[#allocation3 + $0x261] sm:$0xff]
      %v4183 = vld [vmem:[#allocation3 + $0x269] sm:$0xff]
      %v4184 = vld [vmem:[#allocation3 + $0x271] sm:$0xff]
      %v4185 = vld [vmem:[#allocation3 + $0x279] sm:$0x7f]
      %v4186 = vmax.f32 %v4026, %v4106
      %v4187 = vmax.f32 %v4027, %v4107
      %v4188 = vmax.f32 %v4028, %v4108
      %v4189 = vmax.f32 %v4029, %v4109
      %v4190 = vmax.f32 %v4030, %v4110
      %v4191 = vmax.f32 %v4031, %v4111
      %v4192 = vmax.f32 %v4032, %v4112
      %v4193 = vmax.f32 %v4033, %v4113
      %v4194 = vmax.f32 %v4034, %v4114
      %v4195 = vmax.f32 %v4035, %v4115
      %v4196 = vmax.f32 %v4036, %v4116
      %v4197 = vmax.f32 %v4037, %v4117
      %v4198 = vmax.f32 %v4038, %v4118
      %v4199 = vmax.f32 %v4039, %v4119
      %v4200 = vmax.f32 %v4040, %v4120
      %v4201 = vmax.f32 %v4041, %v4121
      %v4202 = vmax.f32 %v4042, %v4122
      %v4203 = vmax.f32 %v4043, %v4123
      %v4204 = vmax.f32 %v4044, %v4124
      %v4205 = vmax.f32 %v4045, %v4125
      %v4206 = vmax.f32 %v4046, %v4126
      %v4207 = vmax.f32 %v4047, %v4127
      %v4208 = vmax.f32 %v4048, %v4128
      %v4209 = vmax.f32 %v4049, %v4129
      %v4210 = vmax.f32 %v4050, %v4130
      %v4211 = vmax.f32 %v4051, %v4131
      %v4212 = vmax.f32 %v4052, %v4132
      %v4213 = vmax.f32 %v4053, %v4133
      %v4214 = vmax.f32 %v4054, %v4134
      %v4215 = vmax.f32 %v4055, %v4135
      %v4216 = vmax.f32 %v4056, %v4136
      %v4217 = vmax.f32 %v4057, %v4137
      %v4218 = vmax.f32 %v4058, %v4138
      %v4219 = vmax.f32 %v4059, %v4139
      %v4220 = vmax.f32 %v4060, %v4140
      %v4221 = vmax.f32 %v4061, %v4141
      %v4222 = vmax.f32 %v4062, %v4142
      %v4223 = vmax.f32 %v4063, %v4143
      %v4224 = vmax.f32 %v4064, %v4144
      %v4225 = vmax.f32 %v4065, %v4145
      %v4226 = vmax.f32 %v4066, %v4146
      %v4227 = vmax.f32 %v4067, %v4147
      %v4228 = vmax.f32 %v4068, %v4148
      %v4229 = vmax.f32 %v4069, %v4149
      %v4230 = vmax.f32 %v4070, %v4150
      %v4231 = vmax.f32 %v4071, %v4151
      %v4232 = vmax.f32 %v4072, %v4152
      %v4233 = vmax.f32 %v4073, %v4153
      %v4234 = vmax.f32 %v4074, %v4154
      %v4235 = vmax.f32 %v4075, %v4155
      %v4236 = vmax.f32 %v4076, %v4156
      %v4237 = vmax.f32 %v4077, %v4157
      %v4238 = vmax.f32 %v4078, %v4158
      %v4239 = vmax.f32 %v4079, %v4159
      %v4240 = vmax.f32 %v4080, %v4160
      %v4241 = vmax.f32 %v4081, %v4161
      %v4242 = vmax.f32 %v4082, %v4162
      %v4243 = vmax.f32 %v4083, %v4163
      %v4244 = vmax.f32 %v4084, %v4164
      %v4245 = vmax.f32 %v4085, %v4165
      %v4246 = vmax.f32 %v4086, %v4166
      %v4247 = vmax.f32 %v4087, %v4167
      %v4248 = vmax.f32 %v4088, %v4168
      %v4249 = vmax.f32 %v4089, %v4169
      %v4250 = vmax.f32 %v4090, %v4170
      %v4251 = vmax.f32 %v4091, %v4171
      %v4252 = vmax.f32 %v4092, %v4172
      %v4253 = vmax.f32 %v4093, %v4173
      %v4254 = vmax.f32 %v4094, %v4174
      %v4255 = vmax.f32 %v4095, %v4175
      %v4256 = vmax.f32 %v4096, %v4176
      %v4257 = vmax.f32 %v4097, %v4177
      %v4258 = vmax.f32 %v4098, %v4178
      %v4259 = vmax.f32 %v4099, %v4179
      %v4260 = vmax.f32 %v4100, %v4180
      %v4261 = vmax.f32 %v4101, %v4181
      %v4262 = vmax.f32 %v4102, %v4182
      %v4263 = vmax.f32 %v4103, %v4183
      %v4264 = vmax.f32 %v4104, %v4184
      %v4265 = vmax.f32 %v4105, %v4185
      %v4266 = vld [vmem:[#allocation3 + $0x1c] sm:$0xff]
      %v4267 = vld [vmem:[#allocation3 + $0x24] sm:$0xff]
      %v4268 = vld [vmem:[#allocation3 + $0x2c] sm:$0xff]
      %v4269 = vld [vmem:[#allocation3 + $0x34] sm:$0xff]
      %v4270 = vld [vmem:[#allocation3 + $0x3c] sm:$0xff]
      %v4271 = vld [vmem:[#allocation3 + $0x44] sm:$0xff]
      %v4272 = vld [vmem:[#allocation3 + $0x4c] sm:$0xff]
      %v4273 = vld [vmem:[#allocation3 + $0x54] sm:$0xff]
      %v4274 = vld [vmem:[#allocation3 + $0x5c] sm:$0xff]
      %v4275 = vld [vmem:[#allocation3 + $0x64] sm:$0xff]
      %v4276 = vld [vmem:[#allocation3 + $0x6c] sm:$0xff]
      %v4277 = vld [vmem:[#allocation3 + $0x74] sm:$0xff]
      %v4278 = vld [vmem:[#allocation3 + $0x7c] sm:$0xff]
      %v4279 = vld [vmem:[#allocation3 + $0x84] sm:$0xff]
      %v4280 = vld [vmem:[#allocation3 + $0x8c] sm:$0xff]
      %v4281 = vld [vmem:[#allocation3 + $0x94] sm:$0xff]
      %v4282 = vld [vmem:[#allocation3 + $0x9c] sm:$0xff]
      %v4283 = vld [vmem:[#allocation3 + $0xa4] sm:$0xff]
      %v4284 = vld [vmem:[#allocation3 + $0xac] sm:$0xff]
      %v4285 = vld [vmem:[#allocation3 + $0xb4] sm:$0xff]
      %v4286 = vld [vmem:[#allocation3 + $0xbc] sm:$0xff]
      %v4287 = vld [vmem:[#allocation3 + $0xc4] sm:$0xff]
      %v4288 = vld [vmem:[#allocation3 + $0xcc] sm:$0xff]
      %v4289 = vld [vmem:[#allocation3 + $0xd4] sm:$0xff]
      %v4290 = vld [vmem:[#allocation3 + $0xdc] sm:$0xff]
      %v4291 = vld [vmem:[#allocation3 + $0xe4] sm:$0xff]
      %v4292 = vld [vmem:[#allocation3 + $0xec] sm:$0xff]
      %v4293 = vld [vmem:[#allocation3 + $0xf4] sm:$0xff]
      %v4294 = vld [vmem:[#allocation3 + $0xfc] sm:$0xff]
      %v4295 = vld [vmem:[#allocation3 + $0x104] sm:$0xff]
      %v4296 = vld [vmem:[#allocation3 + $0x10c] sm:$0xff]
      %v4297 = vld [vmem:[#allocation3 + $0x114] sm:$0xff]
      %v4298 = vld [vmem:[#allocation3 + $0x11c] sm:$0xff]
      %v4299 = vld [vmem:[#allocation3 + $0x124] sm:$0xff]
      %v4300 = vld [vmem:[#allocation3 + $0x12c] sm:$0xff]
      %v4301 = vld [vmem:[#allocation3 + $0x134] sm:$0xff]
      %v4302 = vld [vmem:[#allocation3 + $0x13c] sm:$0xff]
      %v4303 = vld [vmem:[#allocation3 + $0x144] sm:$0xff]
      %v4304 = vld [vmem:[#allocation3 + $0x14c] sm:$0xff]
      %v4305 = vld [vmem:[#allocation3 + $0x154] sm:$0xff]
      %v4306 = vld [vmem:[#allocation3 + $0x15c] sm:$0xff]
      %v4307 = vld [vmem:[#allocation3 + $0x164] sm:$0xff]
      %v4308 = vld [vmem:[#allocation3 + $0x16c] sm:$0xff]
      %v4309 = vld [vmem:[#allocation3 + $0x174] sm:$0xff]
      %v4310 = vld [vmem:[#allocation3 + $0x17c] sm:$0xff]
      %v4311 = vld [vmem:[#allocation3 + $0x184] sm:$0xff]
      %v4312 = vld [vmem:[#allocation3 + $0x18c] sm:$0xff]
      %v4313 = vld [vmem:[#allocation3 + $0x194] sm:$0xff]
      %v4314 = vld [vmem:[#allocation3 + $0x19c] sm:$0xff]
      %v4315 = vld [vmem:[#allocation3 + $0x1a4] sm:$0xff]
      %v4316 = vld [vmem:[#allocation3 + $0x1ac] sm:$0xff]
      %v4317 = vld [vmem:[#allocation3 + $0x1b4] sm:$0xff]
      %v4318 = vld [vmem:[#allocation3 + $0x1bc] sm:$0xff]
      %v4319 = vld [vmem:[#allocation3 + $0x1c4] sm:$0xff]
      %v4320 = vld [vmem:[#allocation3 + $0x1cc] sm:$0xff]
      %v4321 = vld [vmem:[#allocation3 + $0x1d4] sm:$0xff]
      %v4322 = vld [vmem:[#allocation3 + $0x1dc] sm:$0xff]
      %v4323 = vld [vmem:[#allocation3 + $0x1e4] sm:$0xff]
      %v4324 = vld [vmem:[#allocation3 + $0x1ec] sm:$0xff]
      %v4325 = vld [vmem:[#allocation3 + $0x1f4] sm:$0xff]
      %v4326 = vld [vmem:[#allocation3 + $0x1fc] sm:$0xff]
      %v4327 = vld [vmem:[#allocation3 + $0x204] sm:$0xff]
      %v4328 = vld [vmem:[#allocation3 + $0x20c] sm:$0xff]
      %v4329 = vld [vmem:[#allocation3 + $0x214] sm:$0xff]
      %v4330 = vld [vmem:[#allocation3 + $0x21c] sm:$0xff]
      %v4331 = vld [vmem:[#allocation3 + $0x224] sm:$0xff]
      %v4332 = vld [vmem:[#allocation3 + $0x22c] sm:$0xff]
      %v4333 = vld [vmem:[#allocation3 + $0x234] sm:$0xff]
      %v4334 = vld [vmem:[#allocation3 + $0x23c] sm:$0xff]
      %v4335 = vld [vmem:[#allocation3 + $0x244] sm:$0xff]
      %v4336 = vld [vmem:[#allocation3 + $0x24c] sm:$0xff]
      %v4337 = vld [vmem:[#allocation3 + $0x254] sm:$0xff]
      %v4338 = vld [vmem:[#allocation3 + $0x25c] sm:$0xff]
      %v4339 = vld [vmem:[#allocation3 + $0x264] sm:$0xff]
      %v4340 = vld [vmem:[#allocation3 + $0x26c] sm:$0xff]
      %v4341 = vld [vmem:[#allocation3 + $0x274] sm:$0xff]
      %v4342 = vld [vmem:[#allocation3 + $0x27c] sm:$0xff]
      %v4343 = vld [vmem:[#allocation3 + $0x284] sm:$0xff]
      %v4344 = vld [vmem:[#allocation3 + $0x28c] sm:$0xff]
      %v4345 = vld [vmem:[#allocation3 + $0x294] sm:$0x7f]
      %v4346 = vld [vmem:[#allocation3 + $0x1d] sm:$0xff]
      %v4347 = vld [vmem:[#allocation3 + $0x25] sm:$0xff]
      %v4348 = vld [vmem:[#allocation3 + $0x2d] sm:$0xff]
      %v4349 = vld [vmem:[#allocation3 + $0x35] sm:$0xff]
      %v4350 = vld [vmem:[#allocation3 + $0x3d] sm:$0xff]
      %v4351 = vld [vmem:[#allocation3 + $0x45] sm:$0xff]
      %v4352 = vld [vmem:[#allocation3 + $0x4d] sm:$0xff]
      %v4353 = vld [vmem:[#allocation3 + $0x55] sm:$0xff]
      %v4354 = vld [vmem:[#allocation3 + $0x5d] sm:$0xff]
      %v4355 = vld [vmem:[#allocation3 + $0x65] sm:$0xff]
      %v4356 = vld [vmem:[#allocation3 + $0x6d] sm:$0xff]
      %v4357 = vld [vmem:[#allocation3 + $0x75] sm:$0xff]
      %v4358 = vld [vmem:[#allocation3 + $0x7d] sm:$0xff]
      %v4359 = vld [vmem:[#allocation3 + $0x85] sm:$0xff]
      %v4360 = vld [vmem:[#allocation3 + $0x8d] sm:$0xff]
      %v4361 = vld [vmem:[#allocation3 + $0x95] sm:$0xff]
      %v4362 = vld [vmem:[#allocation3 + $0x9d] sm:$0xff]
      %v4363 = vld [vmem:[#allocation3 + $0xa5] sm:$0xff]
      %v4364 = vld [vmem:[#allocation3 + $0xad] sm:$0xff]
      %v4365 = vld [vmem:[#allocation3 + $0xb5] sm:$0xff]
      %v4366 = vld [vmem:[#allocation3 + $0xbd] sm:$0xff]
      %v4367 = vld [vmem:[#allocation3 + $0xc5] sm:$0xff]
      %v4368 = vld [vmem:[#allocation3 + $0xcd] sm:$0xff]
      %v4369 = vld [vmem:[#allocation3 + $0xd5] sm:$0xff]
      %v4370 = vld [vmem:[#allocation3 + $0xdd] sm:$0xff]
      %v4371 = vld [vmem:[#allocation3 + $0xe5] sm:$0xff]
      %v4372 = vld [vmem:[#allocation3 + $0xed] sm:$0xff]
      %v4373 = vld [vmem:[#allocation3 + $0xf5] sm:$0xff]
      %v4374 = vld [vmem:[#allocation3 + $0xfd] sm:$0xff]
      %v4375 = vld [vmem:[#allocation3 + $0x105] sm:$0xff]
      %v4376 = vld [vmem:[#allocation3 + $0x10d] sm:$0xff]
      %v4377 = vld [vmem:[#allocation3 + $0x115] sm:$0xff]
      %v4378 = vld [vmem:[#allocation3 + $0x11d] sm:$0xff]
      %v4379 = vld [vmem:[#allocation3 + $0x125] sm:$0xff]
      %v4380 = vld [vmem:[#allocation3 + $0x12d] sm:$0xff]
      %v4381 = vld [vmem:[#allocation3 + $0x135] sm:$0xff]
      %v4382 = vld [vmem:[#allocation3 + $0x13d] sm:$0xff]
      %v4383 = vld [vmem:[#allocation3 + $0x145] sm:$0xff]
      %v4384 = vld [vmem:[#allocation3 + $0x14d] sm:$0xff]
      %v4385 = vld [vmem:[#allocation3 + $0x155] sm:$0xff]
      %v4386 = vld [vmem:[#allocation3 + $0x15d] sm:$0xff]
      %v4387 = vld [vmem:[#allocation3 + $0x165] sm:$0xff]
      %v4388 = vld [vmem:[#allocation3 + $0x16d] sm:$0xff]
      %v4389 = vld [vmem:[#allocation3 + $0x175] sm:$0xff]
      %v4390 = vld [vmem:[#allocation3 + $0x17d] sm:$0xff]
      %v4391 = vld [vmem:[#allocation3 + $0x185] sm:$0xff]
      %v4392 = vld [vmem:[#allocation3 + $0x18d] sm:$0xff]
      %v4393 = vld [vmem:[#allocation3 + $0x195] sm:$0xff]
      %v4394 = vld [vmem:[#allocation3 + $0x19d] sm:$0xff]
      %v4395 = vld [vmem:[#allocation3 + $0x1a5] sm:$0xff]
      %v4396 = vld [vmem:[#allocation3 + $0x1ad] sm:$0xff]
      %v4397 = vld [vmem:[#allocation3 + $0x1b5] sm:$0xff]
      %v4398 = vld [vmem:[#allocation3 + $0x1bd] sm:$0xff]
      %v4399 = vld [vmem:[#allocation3 + $0x1c5] sm:$0xff]
      %v4400 = vld [vmem:[#allocation3 + $0x1cd] sm:$0xff]
      %v4401 = vld [vmem:[#allocation3 + $0x1d5] sm:$0xff]
      %v4402 = vld [vmem:[#allocation3 + $0x1dd] sm:$0xff]
      %v4403 = vld [vmem:[#allocation3 + $0x1e5] sm:$0xff]
      %v4404 = vld [vmem:[#allocation3 + $0x1ed] sm:$0xff]
      %v4405 = vld [vmem:[#allocation3 + $0x1f5] sm:$0xff]
      %v4406 = vld [vmem:[#allocation3 + $0x1fd] sm:$0xff]
      %v4407 = vld [vmem:[#allocation3 + $0x205] sm:$0xff]
      %v4408 = vld [vmem:[#allocation3 + $0x20d] sm:$0xff]
      %v4409 = vld [vmem:[#allocation3 + $0x215] sm:$0xff]
      %v4410 = vld [vmem:[#allocation3 + $0x21d] sm:$0xff]
      %v4411 = vld [vmem:[#allocation3 + $0x225] sm:$0xff]
      %v4412 = vld [vmem:[#allocation3 + $0x22d] sm:$0xff]
      %v4413 = vld [vmem:[#allocation3 + $0x235] sm:$0xff]
      %v4414 = vld [vmem:[#allocation3 + $0x23d] sm:$0xff]
      %v4415 = vld [vmem:[#allocation3 + $0x245] sm:$0xff]
      %v4416 = vld [vmem:[#allocation3 + $0x24d] sm:$0xff]
      %v4417 = vld [vmem:[#allocation3 + $0x255] sm:$0xff]
      %v4418 = vld [vmem:[#allocation3 + $0x25d] sm:$0xff]
      %v4419 = vld [vmem:[#allocation3 + $0x265] sm:$0xff]
      %v4420 = vld [vmem:[#allocation3 + $0x26d] sm:$0xff]
      %v4421 = vld [vmem:[#allocation3 + $0x275] sm:$0xff]
      %v4422 = vld [vmem:[#allocation3 + $0x27d] sm:$0xff]
      %v4423 = vld [vmem:[#allocation3 + $0x285] sm:$0xff]
      %v4424 = vld [vmem:[#allocation3 + $0x28d] sm:$0xff]
      %v4425 = vld [vmem:[#allocation3 + $0x295] sm:$0x7f]
      %v4426 = vmax.f32 %v4266, %v4346
      %v4427 = vmax.f32 %v4267, %v4347
      %v4428 = vmax.f32 %v4268, %v4348
      %v4429 = vmax.f32 %v4269, %v4349
      %v4430 = vmax.f32 %v4270, %v4350
      %v4431 = vmax.f32 %v4271, %v4351
      %v4432 = vmax.f32 %v4272, %v4352
      %v4433 = vmax.f32 %v4273, %v4353
      %v4434 = vmax.f32 %v4274, %v4354
      %v4435 = vmax.f32 %v4275, %v4355
      %v4436 = vmax.f32 %v4276, %v4356
      %v4437 = vmax.f32 %v4277, %v4357
      %v4438 = vmax.f32 %v4278, %v4358
      %v4439 = vmax.f32 %v4279, %v4359
      %v4440 = vmax.f32 %v4280, %v4360
      %v4441 = vmax.f32 %v4281, %v4361
      %v4442 = vmax.f32 %v4282, %v4362
      %v4443 = vmax.f32 %v4283, %v4363
      %v4444 = vmax.f32 %v4284, %v4364
      %v4445 = vmax.f32 %v4285, %v4365
      %v4446 = vmax.f32 %v4286, %v4366
      %v4447 = vmax.f32 %v4287, %v4367
      %v4448 = vmax.f32 %v4288, %v4368
      %v4449 = vmax.f32 %v4289, %v4369
      %v4450 = vmax.f32 %v4290, %v4370
      %v4451 = vmax.f32 %v4291, %v4371
      %v4452 = vmax.f32 %v4292, %v4372
      %v4453 = vmax.f32 %v4293, %v4373
      %v4454 = vmax.f32 %v4294, %v4374
      %v4455 = vmax.f32 %v4295, %v4375
      %v4456 = vmax.f32 %v4296, %v4376
      %v4457 = vmax.f32 %v4297, %v4377
      %v4458 = vmax.f32 %v4298, %v4378
      %v4459 = vmax.f32 %v4299, %v4379
      %v4460 = vmax.f32 %v4300, %v4380
      %v4461 = vmax.f32 %v4301, %v4381
      %v4462 = vmax.f32 %v4302, %v4382
      %v4463 = vmax.f32 %v4303, %v4383
      %v4464 = vmax.f32 %v4304, %v4384
      %v4465 = vmax.f32 %v4305, %v4385
      %v4466 = vmax.f32 %v4306, %v4386
      %v4467 = vmax.f32 %v4307, %v4387
      %v4468 = vmax.f32 %v4308, %v4388
      %v4469 = vmax.f32 %v4309, %v4389
      %v4470 = vmax.f32 %v4310, %v4390
      %v4471 = vmax.f32 %v4311, %v4391
      %v4472 = vmax.f32 %v4312, %v4392
      %v4473 = vmax.f32 %v4313, %v4393
      %v4474 = vmax.f32 %v4314, %v4394
      %v4475 = vmax.f32 %v4315, %v4395
      %v4476 = vmax.f32 %v4316, %v4396
      %v4477 = vmax.f32 %v4317, %v4397
      %v4478 = vmax.f32 %v4318, %v4398
      %v4479 = vmax.f32 %v4319, %v4399
      %v4480 = vmax.f32 %v4320, %v4400
      %v4481 = vmax.f32 %v4321, %v4401
      %v4482 = vmax.f32 %v4322, %v4402
      %v4483 = vmax.f32 %v4323, %v4403
      %v4484 = vmax.f32 %v4324, %v4404
      %v4485 = vmax.f32 %v4325, %v4405
      %v4486 = vmax.f32 %v4326, %v4406
      %v4487 = vmax.f32 %v4327, %v4407
      %v4488 = vmax.f32 %v4328, %v4408
      %v4489 = vmax.f32 %v4329, %v4409
      %v4490 = vmax.f32 %v4330, %v4410
      %v4491 = vmax.f32 %v4331, %v4411
      %v4492 = vmax.f32 %v4332, %v4412
      %v4493 = vmax.f32 %v4333, %v4413
      %v4494 = vmax.f32 %v4334, %v4414
      %v4495 = vmax.f32 %v4335, %v4415
      %v4496 = vmax.f32 %v4336, %v4416
      %v4497 = vmax.f32 %v4337, %v4417
      %v4498 = vmax.f32 %v4338, %v4418
      %v4499 = vmax.f32 %v4339, %v4419
      %v4500 = vmax.f32 %v4340, %v4420
      %v4501 = vmax.f32 %v4341, %v4421
      %v4502 = vmax.f32 %v4342, %v4422
      %v4503 = vmax.f32 %v4343, %v4423
      %v4504 = vmax.f32 %v4344, %v4424
      %v4505 = vmax.f32 %v4345, %v4425
      %v4506 = vmax.f32 %v4186, %v4426
      %v4507 = vmax.f32 %v4187, %v4427
      %v4508 = vmax.f32 %v4188, %v4428
      %v4509 = vmax.f32 %v4189, %v4429
      %v4510 = vmax.f32 %v4190, %v4430
      %v4511 = vmax.f32 %v4191, %v4431
      %v4512 = vmax.f32 %v4192, %v4432
      %v4513 = vmax.f32 %v4193, %v4433
      %v4514 = vmax.f32 %v4194, %v4434
      %v4515 = vmax.f32 %v4195, %v4435
      %v4516 = vmax.f32 %v4196, %v4436
      %v4517 = vmax.f32 %v4197, %v4437
      %v4518 = vmax.f32 %v4198, %v4438
      %v4519 = vmax.f32 %v4199, %v4439
      %v4520 = vmax.f32 %v4200, %v4440
      %v4521 = vmax.f32 %v4201, %v4441
      %v4522 = vmax.f32 %v4202, %v4442
      %v4523 = vmax.f32 %v4203, %v4443
      %v4524 = vmax.f32 %v4204, %v4444
      %v4525 = vmax.f32 %v4205, %v4445
      %v4526 = vmax.f32 %v4206, %v4446
      %v4527 = vmax.f32 %v4207, %v4447
      %v4528 = vmax.f32 %v4208, %v4448
      %v4529 = vmax.f32 %v4209, %v4449
      %v4530 = vmax.f32 %v4210, %v4450
      %v4531 = vmax.f32 %v4211, %v4451
      %v4532 = vmax.f32 %v4212, %v4452
      %v4533 = vmax.f32 %v4213, %v4453
      %v4534 = vmax.f32 %v4214, %v4454
      %v4535 = vmax.f32 %v4215, %v4455
      %v4536 = vmax.f32 %v4216, %v4456
      %v4537 = vmax.f32 %v4217, %v4457
      %v4538 = vmax.f32 %v4218, %v4458
      %v4539 = vmax.f32 %v4219, %v4459
      %v4540 = vmax.f32 %v4220, %v4460
      %v4541 = vmax.f32 %v4221, %v4461
      %v4542 = vmax.f32 %v4222, %v4462
      %v4543 = vmax.f32 %v4223, %v4463
      %v4544 = vmax.f32 %v4224, %v4464
      %v4545 = vmax.f32 %v4225, %v4465
      %v4546 = vmax.f32 %v4226, %v4466
      %v4547 = vmax.f32 %v4227, %v4467
      %v4548 = vmax.f32 %v4228, %v4468
      %v4549 = vmax.f32 %v4229, %v4469
      %v4550 = vmax.f32 %v4230, %v4470
      %v4551 = vmax.f32 %v4231, %v4471
      %v4552 = vmax.f32 %v4232, %v4472
      %v4553 = vmax.f32 %v4233, %v4473
      %v4554 = vmax.f32 %v4234, %v4474
      %v4555 = vmax.f32 %v4235, %v4475
      %v4556 = vmax.f32 %v4236, %v4476
      %v4557 = vmax.f32 %v4237, %v4477
      %v4558 = vmax.f32 %v4238, %v4478
      %v4559 = vmax.f32 %v4239, %v4479
      %v4560 = vmax.f32 %v4240, %v4480
      %v4561 = vmax.f32 %v4241, %v4481
      %v4562 = vmax.f32 %v4242, %v4482
      %v4563 = vmax.f32 %v4243, %v4483
      %v4564 = vmax.f32 %v4244, %v4484
      %v4565 = vmax.f32 %v4245, %v4485
      %v4566 = vmax.f32 %v4246, %v4486
      %v4567 = vmax.f32 %v4247, %v4487
      %v4568 = vmax.f32 %v4248, %v4488
      %v4569 = vmax.f32 %v4249, %v4489
      %v4570 = vmax.f32 %v4250, %v4490
      %v4571 = vmax.f32 %v4251, %v4491
      %v4572 = vmax.f32 %v4252, %v4492
      %v4573 = vmax.f32 %v4253, %v4493
      %v4574 = vmax.f32 %v4254, %v4494
      %v4575 = vmax.f32 %v4255, %v4495
      %v4576 = vmax.f32 %v4256, %v4496
      %v4577 = vmax.f32 %v4257, %v4497
      %v4578 = vmax.f32 %v4258, %v4498
      %v4579 = vmax.f32 %v4259, %v4499
      %v4580 = vmax.f32 %v4260, %v4500
      %v4581 = vmax.f32 %v4261, %v4501
      %v4582 = vmax.f32 %v4262, %v4502
      %v4583 = vmax.f32 %v4263, %v4503
      %v4584 = vmax.f32 %v4264, %v4504
      %v4585 = vmax.f32 %v4265, %v4505
      %4586 = vst.msk [vmem:[#allocation4] sm:$0xff] %vm3940, %v4506
      %4587 = vst.msk [vmem:[#allocation4 + $0x8] sm:$0xff] %vm3940, %v4507
      %4588 = vst.msk [vmem:[#allocation4 + $0x10] sm:$0xff] %vm3940, %v4508
      %4589 = vst.msk [vmem:[#allocation4 + $0x18] sm:$0xff] %vm3940, %v4509
      %4590 = vst.msk [vmem:[#allocation4 + $0x20] sm:$0xff] %vm3940, %v4510
      %4591 = vst.msk [vmem:[#allocation4 + $0x28] sm:$0xff] %vm3940, %v4511
      %4592 = vst.msk [vmem:[#allocation4 + $0x30] sm:$0xff] %vm3940, %v4512
      %4593 = vst.msk [vmem:[#allocation4 + $0x38] sm:$0xff] %vm3940, %v4513
      %4594 = vst.msk [vmem:[#allocation4 + $0x40] sm:$0xff] %vm3940, %v4514
      %4595 = vst.msk [vmem:[#allocation4 + $0x48] sm:$0xff] %vm3940, %v4515
      %4596 = vst.msk [vmem:[#allocation4 + $0x50] sm:$0xff] %vm3940, %v4516
      %4597 = vst.msk [vmem:[#allocation4 + $0x58] sm:$0xff] %vm3940, %v4517
      %4598 = vst.msk [vmem:[#allocation4 + $0x60] sm:$0xff] %vm3940, %v4518
      %4599 = vst.msk [vmem:[#allocation4 + $0x68] sm:$0xff] %vm3940, %v4519
      %4600 = vst.msk [vmem:[#allocation4 + $0x70] sm:$0xff] %vm3940, %v4520
      %4601 = vst.msk [vmem:[#allocation4 + $0x78] sm:$0xff] %vm3940, %v4521
      %4602 = vst.msk [vmem:[#allocation4 + $0x80] sm:$0xff] %vm3940, %v4522
      %4603 = vst.msk [vmem:[#allocation4 + $0x88] sm:$0xff] %vm3940, %v4523
      %4604 = vst.msk [vmem:[#allocation4 + $0x90] sm:$0xff] %vm3940, %v4524
      %4605 = vst.msk [vmem:[#allocation4 + $0x98] sm:$0xff] %vm3940, %v4525
      %4606 = vst.msk [vmem:[#allocation4 + $0xa0] sm:$0xff] %vm3940, %v4526
      %4607 = vst.msk [vmem:[#allocation4 + $0xa8] sm:$0xff] %vm3940, %v4527
      %4608 = vst.msk [vmem:[#allocation4 + $0xb0] sm:$0xff] %vm3940, %v4528
      %4609 = vst.msk [vmem:[#allocation4 + $0xb8] sm:$0xff] %vm3940, %v4529
      %4610 = vst.msk [vmem:[#allocation4 + $0xc0] sm:$0xff] %vm3940, %v4530
      %4611 = vst.msk [vmem:[#allocation4 + $0xc8] sm:$0xff] %vm3940, %v4531
      %4612 = vst.msk [vmem:[#allocation4 + $0xd0] sm:$0xff] %vm3940, %v4532
      %4613 = vst.msk [vmem:[#allocation4 + $0xd8] sm:$0xff] %vm3940, %v4533
      %4614 = vst.msk [vmem:[#allocation4 + $0xe0] sm:$0xff] %vm3940, %v4534
      %4615 = vst.msk [vmem:[#allocation4 + $0xe8] sm:$0xff] %vm3940, %v4535
      %4616 = vst.msk [vmem:[#allocation4 + $0xf0] sm:$0xff] %vm3940, %v4536
      %4617 = vst.msk [vmem:[#allocation4 + $0xf8] sm:$0xff] %vm3940, %v4537
      %4618 = vst.msk [vmem:[#allocation4 + $0x100] sm:$0xff] %vm3940, %v4538
      %4619 = vst.msk [vmem:[#allocation4 + $0x108] sm:$0xff] %vm3940, %v4539
      %4620 = vst.msk [vmem:[#allocation4 + $0x110] sm:$0xff] %vm3940, %v4540
      %4621 = vst.msk [vmem:[#allocation4 + $0x118] sm:$0xff] %vm3940, %v4541
      %4622 = vst.msk [vmem:[#allocation4 + $0x120] sm:$0xff] %vm3940, %v4542
      %4623 = vst.msk [vmem:[#allocation4 + $0x128] sm:$0xff] %vm3940, %v4543
      %4624 = vst.msk [vmem:[#allocation4 + $0x130] sm:$0xff] %vm3940, %v4544
      %4625 = vst.msk [vmem:[#allocation4 + $0x138] sm:$0xff] %vm3940, %v4545
      %4626 = vst.msk [vmem:[#allocation4 + $0x140] sm:$0xff] %vm3940, %v4546
      %4627 = vst.msk [vmem:[#allocation4 + $0x148] sm:$0xff] %vm3940, %v4547
      %4628 = vst.msk [vmem:[#allocation4 + $0x150] sm:$0xff] %vm3940, %v4548
      %4629 = vst.msk [vmem:[#allocation4 + $0x158] sm:$0xff] %vm3940, %v4549
      %4630 = vst.msk [vmem:[#allocation4 + $0x160] sm:$0xff] %vm3940, %v4550
      %4631 = vst.msk [vmem:[#allocation4 + $0x168] sm:$0xff] %vm3940, %v4551
      %4632 = vst.msk [vmem:[#allocation4 + $0x170] sm:$0xff] %vm3940, %v4552
      %4633 = vst.msk [vmem:[#allocation4 + $0x178] sm:$0xff] %vm3940, %v4553
      %4634 = vst.msk [vmem:[#allocation4 + $0x180] sm:$0xff] %vm3940, %v4554
      %4635 = vst.msk [vmem:[#allocation4 + $0x188] sm:$0xff] %vm3940, %v4555
      %4636 = vst.msk [vmem:[#allocation4 + $0x190] sm:$0xff] %vm3940, %v4556
      %4637 = vst.msk [vmem:[#allocation4 + $0x198] sm:$0xff] %vm3940, %v4557
      %4638 = vst.msk [vmem:[#allocation4 + $0x1a0] sm:$0xff] %vm3940, %v4558
      %4639 = vst.msk [vmem:[#allocation4 + $0x1a8] sm:$0xff] %vm3940, %v4559
      %4640 = vst.msk [vmem:[#allocation4 + $0x1b0] sm:$0xff] %vm3940, %v4560
      %4641 = vst.msk [vmem:[#allocation4 + $0x1b8] sm:$0xff] %vm3940, %v4561
      %4642 = vst.msk [vmem:[#allocation4 + $0x1c0] sm:$0xff] %vm3940, %v4562
      %4643 = vst.msk [vmem:[#allocation4 + $0x1c8] sm:$0xff] %vm3940, %v4563
      %4644 = vst.msk [vmem:[#allocation4 + $0x1d0] sm:$0xff] %vm3940, %v4564
      %4645 = vst.msk [vmem:[#allocation4 + $0x1d8] sm:$0xff] %vm3940, %v4565
      %4646 = vst.msk [vmem:[#allocation4 + $0x1e0] sm:$0xff] %vm3940, %v4566
      %4647 = vst.msk [vmem:[#allocation4 + $0x1e8] sm:$0xff] %vm3940, %v4567
      %4648 = vst.msk [vmem:[#allocation4 + $0x1f0] sm:$0xff] %vm3940, %v4568
      %4649 = vst.msk [vmem:[#allocation4 + $0x1f8] sm:$0xff] %vm3940, %v4569
      %4650 = vst.msk [vmem:[#allocation4 + $0x200] sm:$0xff] %vm3940, %v4570
      %4651 = vst.msk [vmem:[#allocation4 + $0x208] sm:$0xff] %vm3940, %v4571
      %4652 = vst.msk [vmem:[#allocation4 + $0x210] sm:$0xff] %vm3940, %v4572
      %4653 = vst.msk [vmem:[#allocation4 + $0x218] sm:$0xff] %vm3940, %v4573
      %4654 = vst.msk [vmem:[#allocation4 + $0x220] sm:$0xff] %vm3940, %v4574
      %4655 = vst.msk [vmem:[#allocation4 + $0x228] sm:$0xff] %vm3940, %v4575
      %4656 = vst.msk [vmem:[#allocation4 + $0x230] sm:$0xff] %vm3940, %v4576
      %4657 = vst.msk [vmem:[#allocation4 + $0x238] sm:$0xff] %vm3940, %v4577
      %4658 = vst.msk [vmem:[#allocation4 + $0x240] sm:$0xff] %vm3940, %v4578
      %4659 = vst.msk [vmem:[#allocation4 + $0x248] sm:$0xff] %vm3940, %v4579
      %4660 = vst.msk [vmem:[#allocation4 + $0x250] sm:$0xff] %vm3940, %v4580
      %4661 = vst.msk [vmem:[#allocation4 + $0x258] sm:$0xff] %vm3940, %v4581
      %4662 = vst.msk [vmem:[#allocation4 + $0x260] sm:$0xff] %vm3940, %v4582
      %4663 = vst.msk [vmem:[#allocation4 + $0x268] sm:$0xff] %vm3940, %v4583
      %4664 = vst.msk [vmem:[#allocation4 + $0x270] sm:$0xff] %vm3940, %v4584
      %vm4665 = vcmask 522240
      %4666 = vst.msk [vmem:[#allocation4 + $0x278] sm:$0x7f] %vm4665, %v4585
      %v4667 = vld [vmem:[#allocation4] ss:$4 sm:$0x3f]
      %s4668 = scalar_lea.vmem [#allocation4], 56
      %v4669 = vld [vmem:[%s4668] ss:$4 sm:$0x3f]
      %s4670 = scalar_lea.vmem [#allocation4], 112
      %v4671 = vld [vmem:[%s4670] ss:$4 sm:$0x3f]
      %s4672 = scalar_lea.vmem [#allocation4], 168
      %v4673 = vld [vmem:[%s4672] ss:$4 sm:$0x3f]
      %s4674 = scalar_lea.vmem [#allocation4], 224
      %v4675 = vld [vmem:[%s4674] ss:$4 sm:$0x3f]
      %s4676 = scalar_lea.vmem [#allocation4], 280
      %v4677 = vld [vmem:[%s4676] ss:$4 sm:$0x3f]
      %s4678 = scalar_lea.vmem [#allocation4], 336
      %v4679 = vld [vmem:[%s4678] ss:$4 sm:$0x3f]
      %s4680 = scalar_lea.vmem [#allocation4], 392
      %v4681 = vld [vmem:[%s4680] ss:$4 sm:$0x3f]
      %s4682 = scalar_lea.vmem [#allocation4], 448
      %v4683 = vld [vmem:[%s4682] ss:$4 sm:$0x3f]
      %s4684 = scalar_lea.vmem [#allocation4], 504
      %v4685 = vld [vmem:[%s4684] ss:$4 sm:$0x3f]
      %s4686 = scalar_lea.vmem [#allocation4], 560
      %v4687 = vld [vmem:[%s4686] ss:$4 sm:$0x3f]
      %s4688 = scalar_lea.vmem [#allocation4], 616
      %v4689 = vld [vmem:[%s4688] ss:$4 sm:$0x3f]
      %v4691 = vrot.slane %v4669, 2
      %v4694 = vrot.slane %v4671, 4
      %v4697 = vrot.slane %v4673, 6
      %v4700 = vrot.slane %v4677, 2
      %v4703 = vrot.slane %v4679, 4
      %v4706 = vrot.slane %v4681, 6
      %v4709 = vrot.slane %v4685, 2
      %v4712 = vrot.slane %v4687, 4
      %v4715 = vrot.slane %v4689, 6
      %vm4717 = vcmask 1045504
      %v4718 = vsel %vm4717, %v4667, %v4691
      %vm4719 = vcmask 1043456
      %v4720 = vsel %vm4719, %v4691, %v4694
      %vm4721 = vcmask 1041408
      %v4722 = vsel %vm4721, %v4694, %v4697
      %v4723 = vsel %vm4717, %v4675, %v4700
      %v4724 = vsel %vm4719, %v4700, %v4703
      %v4725 = vsel %vm4721, %v4703, %v4706
      %v4726 = vsel %vm4717, %v4683, %v4709
      %v4727 = vsel %vm4719, %v4709, %v4712
      %v4728 = vsel %vm4721, %v4712, %v4715
      %s4729 = scalar_lea.vmem [#allocation4], 2
      %v4730 = vld [vmem:[%s4729] ss:$4 sm:$0x3f]
      %s4731 = scalar_lea.vmem [#allocation4], 58
      %v4732 = vld [vmem:[%s4731] ss:$4 sm:$0x3f]
      %s4733 = scalar_lea.vmem [#allocation4], 114
      %v4734 = vld [vmem:[%s4733] ss:$4 sm:$0x3f]
      %s4735 = scalar_lea.vmem [#allocation4], 170
      %v4736 = vld [vmem:[%s4735] ss:$4 sm:$0x3f]
      %s4737 = scalar_lea.vmem [#allocation4], 226
      %v4738 = vld [vmem:[%s4737] ss:$4 sm:$0x3f]
      %s4739 = scalar_lea.vmem [#allocation4], 282
      %v4740 = vld [vmem:[%s4739] ss:$4 sm:$0x3f]
      %s4741 = scalar_lea.vmem [#allocation4], 338
      %v4742 = vld [vmem:[%s4741] ss:$4 sm:$0x3f]
      %s4743 = scalar_lea.vmem [#allocation4], 394
      %v4744 = vld [vmem:[%s4743] ss:$4 sm:$0x3f]
      %s4745 = scalar_lea.vmem [#allocation4], 450
      %v4746 = vld [vmem:[%s4745] ss:$4 sm:$0x3f]
      %s4747 = scalar_lea.vmem [#allocation4], 506
      %v4748 = vld [vmem:[%s4747] ss:$4 sm:$0x3f]
      %s4749 = scalar_lea.vmem [#allocation4], 562
      %v4750 = vld [vmem:[%s4749] ss:$4 sm:$0x3f]
      %s4751 = scalar_lea.vmem [#allocation4], 618
      %v4752 = vld [vmem:[%s4751] ss:$4 sm:$0x3f]
      %v4754 = vrot.slane %v4732, 2
      %v4757 = vrot.slane %v4734, 4
      %v4760 = vrot.slane %v4736, 6
      %v4763 = vrot.slane %v4740, 2
      %v4766 = vrot.slane %v4742, 4
      %v4769 = vrot.slane %v4744, 6
      %v4772 = vrot.slane %v4748, 2
      %v4775 = vrot.slane %v4750, 4
      %v4778 = vrot.slane %v4752, 6
      %v4780 = vsel %vm4717, %v4730, %v4754
      %v4781 = vsel %vm4719, %v4754, %v4757
      %v4782 = vsel %vm4721, %v4757, %v4760
      %v4783 = vsel %vm4717, %v4738, %v4763
      %v4784 = vsel %vm4719, %v4763, %v4766
      %v4785 = vsel %vm4721, %v4766, %v4769
      %v4786 = vsel %vm4717, %v4746, %v4772
      %v4787 = vsel %vm4719, %v4772, %v4775
      %v4788 = vsel %vm4721, %v4775, %v4778
      %4798 = vrot.lane.b32.xlu0 %v4780, 64
      %v4799 = vpop.permute.xlu0 %4798
      %4800 = vrot.lane.b32.xlu0 %v4781, 64
      %v4801 = vpop.permute.xlu0 %4800
      %4802 = vrot.lane.b32.xlu0 %v4782, 64
      %v4803 = vpop.permute.xlu0 %4802
      %4804 = vrot.lane.b32.xlu0 %v4783, 64
      %v4805 = vpop.permute.xlu0 %4804
      %4806 = vrot.lane.b32.xlu0 %v4784, 64
      %v4807 = vpop.permute.xlu0 %4806
      %4808 = vrot.lane.b32.xlu0 %v4785, 64
      %v4809 = vpop.permute.xlu0 %4808
      %4810 = vrot.lane.b32.xlu0 %v4786, 64
      %v4811 = vpop.permute.xlu0 %4810
      %4812 = vrot.lane.b32.xlu0 %v4787, 64
      %v4813 = vpop.permute.xlu0 %4812
      %4814 = vrot.lane.b32.xlu0 %v4788, 64
      %v4815 = vpop.permute.xlu0 %4814
      %v4825 = vsel %vm3940, %v4718, %v4799
      %v4826 = vsel %vm3940, %v4720, %v4801
      %v4827 = vsel %vm3940, %v4722, %v4803
      %v4828 = vsel %vm3940, %v4723, %v4805
      %v4829 = vsel %vm3940, %v4724, %v4807
      %v4830 = vsel %vm3940, %v4725, %v4809
      %v4831 = vsel %vm3940, %v4726, %v4811
      %v4832 = vsel %vm3940, %v4727, %v4813
      %v4833 = vsel %vm3940, %v4728, %v4815
      %v4834 = vld [vmem:[#allocation9] sm:$0x1]
      %v4836 = vlaneseq
      %v4837 = vshrl.u32 %v4836, 7
      %v4838 = vsub.s32 0, %v4837
      %v4839 = vrot.slane %v4834, %v4838
      %v4841 = vadd.f32 %v4825, %v4839
      %v4842 = vadd.f32 %v4826, %v4839
      %v4843 = vadd.f32 %v4827, %v4839
      %v4844 = vadd.f32 %v4828, %v4839
      %v4845 = vadd.f32 %v4829, %v4839
      %v4846 = vadd.f32 %v4830, %v4839
      %v4847 = vadd.f32 %v4831, %v4839
      %v4848 = vadd.f32 %v4832, %v4839
      %v4849 = vadd.f32 %v4833, %v4839
      %v4850 = vmax.f32 %v4841, 0.0
      %v4851 = vmax.f32 %v4842, 0.0
      %v4852 = vmax.f32 %v4843, 0.0
      %v4853 = vmax.f32 %v4844, 0.0
      %v4854 = vmax.f32 %v4845, 0.0
      %v4855 = vmax.f32 %v4846, 0.0
      %v4856 = vmax.f32 %v4847, 0.0
      %v4857 = vmax.f32 %v4848, 0.0
      %v4858 = vmax.f32 %v4849, 0.0
      %v4859 = vpack.c.bf16 %v4851, %v4850
      %v4860 = vpack.c.bf16 %v4853, %v4852
      %v4861 = vpack.c.bf16 %v4855, %v4854
      %v4862 = vpack.c.bf16 %v4857, %v4856
      %v4863 = vpack.c.bf16 %v4858, %v4858
      %v4869 = vunpack.c.l.b16 %v4859
      %v4870 = vunpack.c.h.b16 %v4859
      %v4871 = vunpack.c.l.b16 %v4860
      %v4872 = vunpack.c.h.b16 %v4860
      %v4873 = vunpack.c.l.b16 %v4861
      %v4874 = vunpack.c.h.b16 %v4861
      %v4875 = vunpack.c.l.b16 %v4862
      %v4876 = vunpack.c.h.b16 %v4862
      %v4877 = vunpack.c.l.b16 %v4863
      %v4878 = vpack.c.b16 %v4869, %v4869
      %v4879 = vpack.c.b16 %v4870, %v4870
      %v4880 = vpack.c.b16 %v4871, %v4871
      %v4881 = vpack.c.b16 %v4872, %v4872
      %v4882 = vpack.c.b16 %v4873, %v4873
      %v4883 = vpack.c.b16 %v4874, %v4874
      %v4884 = vpack.c.b16 %v4875, %v4875
      %v4885 = vpack.c.b16 %v4876, %v4876
      %v4886 = vpack.c.b16 %v4877, %v4877
      %s4896 = smul.u32 %s59, 9
      %s4897 = smul.addr %s4896, 4
      %s4898 = scalar_lea.vmem %s5, %s4897
      %4899 = vst [vmem:[%s4898] sm:$0xf] %v4878
      %4900 = vst [vmem:[%s4898 + $0x4] sm:$0xf] %v4879
      %4901 = vst [vmem:[%s4898 + $0x8] sm:$0xf] %v4880
      %4902 = vst [vmem:[%s4898 + $0xc] sm:$0xf] %v4881
      %4903 = vst [vmem:[%s4898 + $0x10] sm:$0xf] %v4882
      %4904 = vst [vmem:[%s4898 + $0x14] sm:$0xf] %v4883
      %4905 = vst [vmem:[%s4898 + $0x18] sm:$0xf] %v4884
      %4906 = vst [vmem:[%s4898 + $0x1c] sm:$0xf] %v4885
      %4907 = vst [vmem:[%s4898 + $0x20] sm:$0xf] %v4886
    $region38: #{net_forward.2} parent=1 // loop_footer
      %s63 = sadd.s32 1, %s59
    $region39: #{net_forward.2} parent=1 // loop_footer_branch
      %58 = sbr.rel target = $region35
    $region40: #{net_forward.2} parent=1 // loop_exit
      _
    // Predicated region
    $region41: #{net_forward.2} parent=1 // pred_check
      _
    $region42: #{net_forward.2} parent=1 // pred_check_branch
      %4909 = sbr.rel (0) target = $region44
    $region43: #{net_forward.2} parent=1 // pred_region
      _
    $region44: #{net_forward.2} parent=1 // pred_fallthru
      _
    // Predicated region
    $region45: #{net_forward.2} parent=1 // pred_check
      _
    $region46: #{net_forward.2} parent=1 // pred_check_branch
      %4911 = sbr.rel (0) target = $region48
    $region47: #{net_forward.2} parent=1 // pred_region
      _
    $region48: #{net_forward.2} parent=1 // pred_fallthru
      _
    %4912 = vsyncpa [#allocation6], 1
    %4913 = vsyncpa [#allocation8], 1

// kernel: net_forward.3
$region0: #{net_forward.3}
  #allocation0 [shape = 'u32[]', space=smem, size = 0x4, offset = 0x4, fixed_abs, tag = 'smem constant byte address 0x4 - core index']
  #allocation1 [shape = 'u32[144,128]{1,0:T(1,128)}', space=vmem, size = 0x12000, scoped, tag = 'internal scratch']
  %s0 = inlined_call_operand.vmem [shape: bf16[2,9216], index: 0, kind: input, shape index: {}]
  %s1 = inlined_call_operand.hbm [shape: bf16[9216,128], index: 1, kind: input, shape index: {}]
  %s2 = inlined_call_operand.hbm [shape: f32[1,128], index: 2, kind: input, shape index: {}]
  %s3 = inlined_call_operand.hbm [shape: bf16[128,128], index: 3, kind: input, shape index: {}]
  %s4 = inlined_call_operand.hbm [shape: f32[1,128], index: 4, kind: input, shape index: {}]
  %s5 = inlined_call_operand.hbm [shape: f32[2,128], index: 5, kind: output, shape index: {}]
  %s6 = sld [smem:[#allocation0]]
  $region46: #{net_forward.3} parent=0
    _
  %s8 = ssub.s32 1, %s6
  %s9 = scalar_select 0, %s8, %s6
  $region1: #{net_forward.3} parent=0
    #allocation2 [shape = 'u8[2359296]{0}', space=vmem, size = 0x240000, scoped, tag = 'input window, operand 1, single buffered']
    #allocation3 [shape = 's32[1]{0}', space=sflag, size = 0x4, scoped, tag = 'scoped memory for net_forward.3']
    #allocation4 [shape = 's32[1]{0}', space=sflag, size = 0x4, scoped, tag = 'scoped memory for net_forward.3']
    #allocation5 [shape = 'u8[512]{0}', space=vmem, size = 0x400, scoped, tag = 'input window, operand 2, single buffered']
    #allocation6 [shape = 's32[1]{0}', space=sflag, size = 0x4, scoped, tag = 'scoped memory for net_forward.3']
    #allocation7 [shape = 'u8[32768]{0}', space=vmem, size = 0x8000, scoped, tag = 'input window, operand 3, single buffered']
    #allocation8 [shape = 'u8[512]{0}', space=vmem, size = 0x400, scoped, tag = 'input window, operand 4, single buffered']
    #allocation9 [shape = 's32[1]{0}', space=sflag, size = 0x4, scoped, tag = 'scoped memory for net_forward.3']
    #allocation10 [shape = 'u8[1024]{0}', space=vmem, size = 0x400, scoped, tag = 'output window, operand 0, single buffered']
    %10 = vsyncpa [#allocation3], 0
    %11 = vsyncpa [#allocation6], 0
    %12 = vsyncpa [#allocation9], 0
    %13 = vsyncpa [#allocation4], 0
    // Predicated region
    $region2: #{net_forward.3} parent=1 // pred_check
      _
    $region3: #{net_forward.3} parent=1 // pred_check_branch
      %15 = sbr.rel (0) target = $region5
    $region4: #{net_forward.3} parent=1 // pred_region
      _
    $region5: #{net_forward.3} parent=1 // pred_fallthru
      _
    // Predicated region
    $region6: #{net_forward.3} parent=1 // pred_check
      _
    $region7: #{net_forward.3} parent=1 // pred_check_branch
      %17 = sbr.rel (0) target = $region9
    $region8: #{net_forward.3} parent=1 // pred_region
      %s19 = ssub.s32 73728, 73728
      %20 = vsyncadd [#allocation3], %s19
      %s21 = sshll.u32 [#allocation2], 4
      %s22 = int_to_ptr.vmem [resolvable:$true] %s21
      %27 = dma.hbm_to_vmem [thread:$0]  %s1, 73728, %s22, [#allocation3], 64, 64, 4
    $region9: #{net_forward.3} parent=1 // pred_fallthru
      _
    // Predicated region
    $region10: #{net_forward.3} parent=1 // pred_check
      _
    $region11: #{net_forward.3} parent=1 // pred_check_branch
      %29 = sbr.rel (0) target = $region13
    $region12: #{net_forward.3} parent=1 // pred_region
      %s31 = ssub.s32 16, 16
      %32 = vsyncadd [#allocation6], %s31
      %s34 = sshll.u32 [#allocation5], 4
      %s35 = int_to_ptr.vmem [resolvable:$true] %s34
      %37 = dma.hbm_to_vmem [thread:$0]  %s2, 16, %s35, [#allocation6]
    $region13: #{net_forward.3} parent=1 // pred_fallthru
      _
    // Predicated region
    $region14: #{net_forward.3} parent=1 // pred_check
      _
    $region15: #{net_forward.3} parent=1 // pred_check_branch
      %39 = sbr.rel (0) target = $region17
    $region16: #{net_forward.3} parent=1 // pred_region
      %s41 = ssub.s32 1024, 1024
      %42 = vsyncadd [#allocation6], %s41
      %s43 = sshll.u32 [#allocation7], 4
      %s44 = int_to_ptr.vmem [resolvable:$true] %s43
      %49 = dma.hbm_to_vmem [thread:$0]  %s3, 1024, %s44, [#allocation6], 64, 64, 4
    $region17: #{net_forward.3} parent=1 // pred_fallthru
      _
    // Predicated region
    $region18: #{net_forward.3} parent=1 // pred_check
      _
    $region19: #{net_forward.3} parent=1 // pred_check_branch
      %51 = sbr.rel (0) target = $region21
    $region20: #{net_forward.3} parent=1 // pred_region
      %s53 = ssub.s32 16, 16
      %54 = vsyncadd [#allocation9], %s53
      %s56 = sshll.u32 [#allocation8], 4
      %s57 = int_to_ptr.vmem [resolvable:$true] %s56
      %59 = dma.hbm_to_vmem [thread:$0]  %s4, 16, %s57, [#allocation9]
    $region21: #{net_forward.3} parent=1 // pred_fallthru
      _
    // Predicated region
    $region22: #{net_forward.3} parent=1 // pred_check
      _
    $region23: #{net_forward.3} parent=1 // pred_check_branch
      %61 = sbr.rel (0) target = $region25
    $region24: #{net_forward.3} parent=1 // pred_region
      %62 = dma.done [#allocation3], 73728
    $region25: #{net_forward.3} parent=1 // pred_fallthru
      _
    // Predicated region
    $region26: #{net_forward.3} parent=1 // pred_check
      _
    $region27: #{net_forward.3} parent=1 // pred_check_branch
      %64 = sbr.rel (0) target = $region29
    $region28: #{net_forward.3} parent=1 // pred_region
      %65 = dma.done [#allocation6], 16
    $region29: #{net_forward.3} parent=1 // pred_fallthru
      _
    // Predicated region
    $region30: #{net_forward.3} parent=1 // pred_check
      _
    $region31: #{net_forward.3} parent=1 // pred_check_branch
      %67 = sbr.rel (0) target = $region33
    $region32: #{net_forward.3} parent=1 // pred_region
      %68 = dma.done [#allocation6], 1024
    $region33: #{net_forward.3} parent=1 // pred_fallthru
      _
    // Predicated region
    $region34: #{net_forward.3} parent=1 // pred_check
      _
    $region35: #{net_forward.3} parent=1 // pred_check_branch
      %70 = sbr.rel (0) target = $region37
    $region36: #{net_forward.3} parent=1 // pred_region
      %71 = dma.done [#allocation9], 16
    $region37: #{net_forward.3} parent=1 // pred_fallthru
      _
    %v73 = vld [vmem:[%s0] sm:$0xff]
    %v74 = vld [vmem:[%s0 + $0x8] sm:$0xff]
    %v75 = vld [vmem:[%s0 + $0x10] sm:$0xff]
    %v76 = vld [vmem:[%s0 + $0x18] sm:$0xff]
    %v77 = vld [vmem:[%s0 + $0x20] sm:$0xff]
    %v78 = vld [vmem:[%s0 + $0x28] sm:$0xff]
    %v79 = vld [vmem:[%s0 + $0x30] sm:$0xff]
    %v80 = vld [vmem:[%s0 + $0x38] sm:$0xff]
    %v81 = vld [vmem:[%s0 + $0x40] sm:$0xff]
    %v82 = vld [vmem:[#allocation2] sm:$0xf]
    %v83 = vld [vmem:[#allocation2 + $0x4] sm:$0xf]
    %v84 = vld [vmem:[#allocation2 + $0x8] sm:$0xf]
    %v85 = vld [vmem:[#allocation2 + $0xc] sm:$0xf]
    %v86 = vld [vmem:[#allocation2 + $0x10] sm:$0xf]
    %v87 = vld [vmem:[#allocation2 + $0x14] sm:$0xf]
    %v88 = vld [vmem:[#allocation2 + $0x18] sm:$0xf]
    %v89 = vld [vmem:[#allocation2 + $0x1c] sm:$0xf]
    %v90 = vld [vmem:[#allocation2 + $0x20] sm:$0xf]
    %v91 = vld [vmem:[#allocation2 + $0x24] sm:$0xf]
    %v92 = vld [vmem:[#allocation2 + $0x28] sm:$0xf]
    %v93 = vld [vmem:[#allocation2 + $0x2c] sm:$0xf]
    %v94 = vld [vmem:[#allocation2 + $0x30] sm:$0xf]
    %v95 = vld [vmem:[#allocation2 + $0x34] sm:$0xf]
    %v96 = vld [vmem:[#allocation2 + $0x38] sm:$0xf]
    %v97 = vld [vmem:[#allocation2 + $0x3c] sm:$0xf]
    %v98 = vld [vmem:[#allocation2 + $0x40] sm:$0xf]
    %v99 = vld [vmem:[#allocation2 + $0x44] sm:$0xf]
    %v100 = vld [vmem:[#allocation2 + $0x48] sm:$0xf]
    %v101 = vld [vmem:[#allocation2 + $0x4c] sm:$0xf]
    %v102 = vld [vmem:[#allocation2 + $0x50] sm:$0xf]
    %v103 = vld [vmem:[#allocation2 + $0x54] sm:$0xf]
    %v104 = vld [vmem:[#allocation2 + $0x58] sm:$0xf]
    %v105 = vld [vmem:[#allocation2 + $0x5c] sm:$0xf]
    %v106 = vld [vmem:[#allocation2 + $0x60] sm:$0xf]
    %v107 = vld [vmem:[#allocation2 + $0x64] sm:$0xf]
    %v108 = vld [vmem:[#allocation2 + $0x68] sm:$0xf]
    %v109 = vld [vmem:[#allocation2 + $0x6c] sm:$0xf]
    %v110 = vld [vmem:[#allocation2 + $0x70] sm:$0xf]
    %v111 = vld [vmem:[#allocation2 + $0x74] sm:$0xf]
    %v112 = vld [vmem:[#allocation2 + $0x78] sm:$0xf]
    %v113 = vld [vmem:[#allocation2 + $0x7c] sm:$0xf]
    %v114 = vld [vmem:[#allocation2 + $0x80] sm:$0xf]
    %v115 = vld [vmem:[#allocation2 + $0x84] sm:$0xf]
    %v116 = vld [vmem:[#allocation2 + $0x88] sm:$0xf]
    %v117 = vld [vmem:[#allocation2 + $0x8c] sm:$0xf]
    %v118 = vld [vmem:[#allocation2 + $0x90] sm:$0xf]
    %v119 = vld [vmem:[#allocation2 + $0x94] sm:$0xf]
    %v120 = vld [vmem:[#allocation2 + $0x98] sm:$0xf]
    %v121 = vld [vmem:[#allocation2 + $0x9c] sm:$0xf]
    %v122 = vld [vmem:[#allocation2 + $0xa0] sm:$0xf]
    %v123 = vld [vmem:[#allocation2 + $0xa4] sm:$0xf]
    %v124 = vld [vmem:[#allocation2 + $0xa8] sm:$0xf]
    %v125 = vld [vmem:[#allocation2 + $0xac] sm:$0xf]
    %v126 = vld [vmem:[#allocation2 + $0xb0] sm:$0xf]
    %v127 = vld [vmem:[#allocation2 + $0xb4] sm:$0xf]
    %v128 = vld [vmem:[#allocation2 + $0xb8] sm:$0xf]
    %v129 = vld [vmem:[#allocation2 + $0xbc] sm:$0xf]
    %v130 = vld [vmem:[#allocation2 + $0xc0] sm:$0xf]
    %v131 = vld [vmem:[#allocation2 + $0xc4] sm:$0xf]
    %v132 = vld [vmem:[#allocation2 + $0xc8] sm:$0xf]
    %v133 = vld [vmem:[#allocation2 + $0xcc] sm:$0xf]
    %v134 = vld [vmem:[#allocation2 + $0xd0] sm:$0xf]
    %v135 = vld [vmem:[#allocation2 + $0xd4] sm:$0xf]
    %v136 = vld [vmem:[#allocation2 + $0xd8] sm:$0xf]
    %v137 = vld [vmem:[#allocation2 + $0xdc] sm:$0xf]
    %v138 = vld [vmem:[#allocation2 + $0xe0] sm:$0xf]
    %v139 = vld [vmem:[#allocation2 + $0xe4] sm:$0xf]
    %v140 = vld [vmem:[#allocation2 + $0xe8] sm:$0xf]
    %v141 = vld [vmem:[#allocation2 + $0xec] sm:$0xf]
    %v142 = vld [vmem:[#allocation2 + $0xf0] sm:$0xf]
    %v143 = vld [vmem:[#allocation2 + $0xf4] sm:$0xf]
    %v144 = vld [vmem:[#allocation2 + $0xf8] sm:$0xf]
    %v145 = vld [vmem:[#allocation2 + $0xfc] sm:$0xf]
    %v146 = vld [vmem:[#allocation2 + $0x100] sm:$0xf]
    %v147 = vld [vmem:[#allocation2 + $0x104] sm:$0xf]
    %v148 = vld [vmem:[#allocation2 + $0x108] sm:$0xf]
    %v149 = vld [vmem:[#allocation2 + $0x10c] sm:$0xf]
    %v150 = vld [vmem:[#allocation2 + $0x110] sm:$0xf]
    %v151 = vld [vmem:[#allocation2 + $0x114] sm:$0xf]
    %v152 = vld [vmem:[#allocation2 + $0x118] sm:$0xf]
    %v153 = vld [vmem:[#allocation2 + $0x11c] sm:$0xf]
    %v154 = vld [vmem:[#allocation2 + $0x120] sm:$0xf]
    %v155 = vld [vmem:[#allocation2 + $0x124] sm:$0xf]
    %v156 = vld [vmem:[#allocation2 + $0x128] sm:$0xf]
    %v157 = vld [vmem:[#allocation2 + $0x12c] sm:$0xf]
    %v158 = vld [vmem:[#allocation2 + $0x130] sm:$0xf]
    %v159 = vld [vmem:[#allocation2 + $0x134] sm:$0xf]
    %v160 = vld [vmem:[#allocation2 + $0x138] sm:$0xf]
    %v161 = vld [vmem:[#allocation2 + $0x13c] sm:$0xf]
    %v162 = vld [vmem:[#allocation2 + $0x140] sm:$0xf]
    %v163 = vld [vmem:[#allocation2 + $0x144] sm:$0xf]
    %v164 = vld [vmem:[#allocation2 + $0x148] sm:$0xf]
    %v165 = vld [vmem:[#allocation2 + $0x14c] sm:$0xf]
    %v166 = vld [vmem:[#allocation2 + $0x150] sm:$0xf]
    %v167 = vld [vmem:[#allocation2 + $0x154] sm:$0xf]
    %v168 = vld [vmem:[#allocation2 + $0x158] sm:$0xf]
    %v169 = vld [vmem:[#allocation2 + $0x15c] sm:$0xf]
    %v170 = vld [vmem:[#allocation2 + $0x160] sm:$0xf]
    %v171 = vld [vmem:[#allocation2 + $0x164] sm:$0xf]
    %v172 = vld [vmem:[#allocation2 + $0x168] sm:$0xf]
    %v173 = vld [vmem:[#allocation2 + $0x16c] sm:$0xf]
    %v174 = vld [vmem:[#allocation2 + $0x170] sm:$0xf]
    %v175 = vld [vmem:[#allocation2 + $0x174] sm:$0xf]
    %v176 = vld [vmem:[#allocation2 + $0x178] sm:$0xf]
    %v177 = vld [vmem:[#allocation2 + $0x17c] sm:$0xf]
    %v178 = vld [vmem:[#allocation2 + $0x180] sm:$0xf]
    %v179 = vld [vmem:[#allocation2 + $0x184] sm:$0xf]
    %v180 = vld [vmem:[#allocation2 + $0x188] sm:$0xf]
    %v181 = vld [vmem:[#allocation2 + $0x18c] sm:$0xf]
    %v182 = vld [vmem:[#allocation2 + $0x190] sm:$0xf]
    %v183 = vld [vmem:[#allocation2 + $0x194] sm:$0xf]
    %v184 = vld [vmem:[#allocation2 + $0x198] sm:$0xf]
    %v185 = vld [vmem:[#allocation2 + $0x19c] sm:$0xf]
    %v186 = vld [vmem:[#allocation2 + $0x1a0] sm:$0xf]
    %v187 = vld [vmem:[#allocation2 + $0x1a4] sm:$0xf]
    %v188 = vld [vmem:[#allocation2 + $0x1a8] sm:$0xf]
    %v189 = vld [vmem:[#allocation2 + $0x1ac] sm:$0xf]
    %v190 = vld [vmem:[#allocation2 + $0x1b0] sm:$0xf]
    %v191 = vld [vmem:[#allocation2 + $0x1b4] sm:$0xf]
    %v192 = vld [vmem:[#allocation2 + $0x1b8] sm:$0xf]
    %v193 = vld [vmem:[#allocation2 + $0x1bc] sm:$0xf]
    %v194 = vld [vmem:[#allocation2 + $0x1c0] sm:$0xf]
    %v195 = vld [vmem:[#allocation2 + $0x1c4] sm:$0xf]
    %v196 = vld [vmem:[#allocation2 + $0x1c8] sm:$0xf]
    %v197 = vld [vmem:[#allocation2 + $0x1cc] sm:$0xf]
    %v198 = vld [vmem:[#allocation2 + $0x1d0] sm:$0xf]
    %v199 = vld [vmem:[#allocation2 + $0x1d4] sm:$0xf]
    %v200 = vld [vmem:[#allocation2 + $0x1d8] sm:$0xf]
    %v201 = vld [vmem:[#allocation2 + $0x1dc] sm:$0xf]
    %v202 = vld [vmem:[#allocation2 + $0x1e0] sm:$0xf]
    %v203 = vld [vmem:[#allocation2 + $0x1e4] sm:$0xf]
    %v204 = vld [vmem:[#allocation2 + $0x1e8] sm:$0xf]
    %v205 = vld [vmem:[#allocation2 + $0x1ec] sm:$0xf]
    %v206 = vld [vmem:[#allocation2 + $0x1f0] sm:$0xf]
    %v207 = vld [vmem:[#allocation2 + $0x1f4] sm:$0xf]
    %v208 = vld [vmem:[#allocation2 + $0x1f8] sm:$0xf]
    %v209 = vld [vmem:[#allocation2 + $0x1fc] sm:$0xf]
    %v210 = vld [vmem:[#allocation2 + $0x200] sm:$0xf]
    %v211 = vld [vmem:[#allocation2 + $0x204] sm:$0xf]
    %v212 = vld [vmem:[#allocation2 + $0x208] sm:$0xf]
    %v213 = vld [vmem:[#allocation2 + $0x20c] sm:$0xf]
    %v214 = vld [vmem:[#allocation2 + $0x210] sm:$0xf]
    %v215 = vld [vmem:[#allocation2 + $0x214] sm:$0xf]
    %v216 = vld [vmem:[#allocation2 + $0x218] sm:$0xf]
    %v217 = vld [vmem:[#allocation2 + $0x21c] sm:$0xf]
    %v218 = vld [vmem:[#allocation2 + $0x220] sm:$0xf]
    %v219 = vld [vmem:[#allocation2 + $0x224] sm:$0xf]
    %v220 = vld [vmem:[#allocation2 + $0x228] sm:$0xf]
    %v221 = vld [vmem:[#allocation2 + $0x22c] sm:$0xf]
    %v222 = vld [vmem:[#allocation2 + $0x230] sm:$0xf]
    %v223 = vld [vmem:[#allocation2 + $0x234] sm:$0xf]
    %v224 = vld [vmem:[#allocation2 + $0x238] sm:$0xf]
    %v225 = vld [vmem:[#allocation2 + $0x23c] sm:$0xf]
    %v226 = vld [vmem:[#allocation2 + $0x240] sm:$0xf]
    %v227 = vld [vmem:[#allocation2 + $0x244] sm:$0xf]
    %v228 = vld [vmem:[#allocation2 + $0x248] sm:$0xf]
    %v229 = vld [vmem:[#allocation2 + $0x24c] sm:$0xf]
    %v230 = vld [vmem:[#allocation2 + $0x250] sm:$0xf]
    %v231 = vld [vmem:[#allocation2 + $0x254] sm:$0xf]
    %v232 = vld [vmem:[#allocation2 + $0x258] sm:$0xf]
    %v233 = vld [vmem:[#allocation2 + $0x25c] sm:$0xf]
    %v234 = vld [vmem:[#allocation2 + $0x260] sm:$0xf]
    %v235 = vld [vmem:[#allocation2 + $0x264] sm:$0xf]
    %v236 = vld [vmem:[#allocation2 + $0x268] sm:$0xf]
    %v237 = vld [vmem:[#allocation2 + $0x26c] sm:$0xf]
    %v238 = vld [vmem:[#allocation2 + $0x270] sm:$0xf]
    %v239 = vld [vmem:[#allocation2 + $0x274] sm:$0xf]
    %v240 = vld [vmem:[#allocation2 + $0x278] sm:$0xf]
    %v241 = vld [vmem:[#allocation2 + $0x27c] sm:$0xf]
    %v242 = vld [vmem:[#allocation2 + $0x280] sm:$0xf]
    %v243 = vld [vmem:[#allocation2 + $0x284] sm:$0xf]
    %v244 = vld [vmem:[#allocation2 + $0x288] sm:$0xf]
    %v245 = vld [vmem:[#allocation2 + $0x28c] sm:$0xf]
    %v246 = vld [vmem:[#allocation2 + $0x290] sm:$0xf]
    %v247 = vld [vmem:[#allocation2 + $0x294] sm:$0xf]
    %v248 = vld [vmem:[#allocation2 + $0x298] sm:$0xf]
    %v249 = vld [vmem:[#allocation2 + $0x29c] sm:$0xf]
    %v250 = vld [vmem:[#allocation2 + $0x2a0] sm:$0xf]
    %v251 = vld [vmem:[#allocation2 + $0x2a4] sm:$0xf]
    %v252 = vld [vmem:[#allocation2 + $0x2a8] sm:$0xf]
    %v253 = vld [vmem:[#allocation2 + $0x2ac] sm:$0xf]
    %v254 = vld [vmem:[#allocation2 + $0x2b0] sm:$0xf]
    %v255 = vld [vmem:[#allocation2 + $0x2b4] sm:$0xf]
    %v256 = vld [vmem:[#allocation2 + $0x2b8] sm:$0xf]
    %v257 = vld [vmem:[#allocation2 + $0x2bc] sm:$0xf]
    %v258 = vld [vmem:[#allocation2 + $0x2c0] sm:$0xf]
    %v259 = vld [vmem:[#allocation2 + $0x2c4] sm:$0xf]
    %v260 = vld [vmem:[#allocation2 + $0x2c8] sm:$0xf]
    %v261 = vld [vmem:[#allocation2 + $0x2cc] sm:$0xf]
    %v262 = vld [vmem:[#allocation2 + $0x2d0] sm:$0xf]
    %v263 = vld [vmem:[#allocation2 + $0x2d4] sm:$0xf]
    %v264 = vld [vmem:[#allocation2 + $0x2d8] sm:$0xf]
    %v265 = vld [vmem:[#allocation2 + $0x2dc] sm:$0xf]
    %v266 = vld [vmem:[#allocation2 + $0x2e0] sm:$0xf]
    %v267 = vld [vmem:[#allocation2 + $0x2e4] sm:$0xf]
    %v268 = vld [vmem:[#allocation2 + $0x2e8] sm:$0xf]
    %v269 = vld [vmem:[#allocation2 + $0x2ec] sm:$0xf]
    %v270 = vld [vmem:[#allocation2 + $0x2f0] sm:$0xf]
    %v271 = vld [vmem:[#allocation2 + $0x2f4] sm:$0xf]
    %v272 = vld [vmem:[#allocation2 + $0x2f8] sm:$0xf]
    %v273 = vld [vmem:[#allocation2 + $0x2fc] sm:$0xf]
    %v274 = vld [vmem:[#allocation2 + $0x300] sm:$0xf]
    %v275 = vld [vmem:[#allocation2 + $0x304] sm:$0xf]
    %v276 = vld [vmem:[#allocation2 + $0x308] sm:$0xf]
    %v277 = vld [vmem:[#allocation2 + $0x30c] sm:$0xf]
    %v278 = vld [vmem:[#allocation2 + $0x310] sm:$0xf]
    %v279 = vld [vmem:[#allocation2 + $0x314] sm:$0xf]
    %v280 = vld [vmem:[#allocation2 + $0x318] sm:$0xf]
    %v281 = vld [vmem:[#allocation2 + $0x31c] sm:$0xf]
    %v282 = vld [vmem:[#allocation2 + $0x320] sm:$0xf]
    %v283 = vld [vmem:[#allocation2 + $0x324] sm:$0xf]
    %v284 = vld [vmem:[#allocation2 + $0x328] sm:$0xf]
    %v285 = vld [vmem:[#allocation2 + $0x32c] sm:$0xf]
    %v286 = vld [vmem:[#allocation2 + $0x330] sm:$0xf]
    %v287 = vld [vmem:[#allocation2 + $0x334] sm:$0xf]
    %v288 = vld [vmem:[#allocation2 + $0x338] sm:$0xf]
    %v289 = vld [vmem:[#allocation2 + $0x33c] sm:$0xf]
    %v290 = vld [vmem:[#allocation2 + $0x340] sm:$0xf]
    %v291 = vld [vmem:[#allocation2 + $0x344] sm:$0xf]
    %v292 = vld [vmem:[#allocation2 + $0x348] sm:$0xf]
    %v293 = vld [vmem:[#allocation2 + $0x34c] sm:$0xf]
    %v294 = vld [vmem:[#allocation2 + $0x350] sm:$0xf]
    %v295 = vld [vmem:[#allocation2 + $0x354] sm:$0xf]
    %v296 = vld [vmem:[#allocation2 + $0x358] sm:$0xf]
    %v297 = vld [vmem:[#allocation2 + $0x35c] sm:$0xf]
    %v298 = vld [vmem:[#allocation2 + $0x360] sm:$0xf]
    %v299 = vld [vmem:[#allocation2 + $0x364] sm:$0xf]
    %v300 = vld [vmem:[#allocation2 + $0x368] sm:$0xf]
    %v301 = vld [vmem:[#allocation2 + $0x36c] sm:$0xf]
    %v302 = vld [vmem:[#allocation2 + $0x370] sm:$0xf]
    %v303 = vld [vmem:[#allocation2 + $0x374] sm:$0xf]
    %v304 = vld [vmem:[#allocation2 + $0x378] sm:$0xf]
    %v305 = vld [vmem:[#allocation2 + $0x37c] sm:$0xf]
    %v306 = vld [vmem:[#allocation2 + $0x380] sm:$0xf]
    %v307 = vld [vmem:[#allocation2 + $0x384] sm:$0xf]
    %v308 = vld [vmem:[#allocation2 + $0x388] sm:$0xf]
    %v309 = vld [vmem:[#allocation2 + $0x38c] sm:$0xf]
    %v310 = vld [vmem:[#allocation2 + $0x390] sm:$0xf]
    %v311 = vld [vmem:[#allocation2 + $0x394] sm:$0xf]
    %v312 = vld [vmem:[#allocation2 + $0x398] sm:$0xf]
    %v313 = vld [vmem:[#allocation2 + $0x39c] sm:$0xf]
    %v314 = vld [vmem:[#allocation2 + $0x3a0] sm:$0xf]
    %v315 = vld [vmem:[#allocation2 + $0x3a4] sm:$0xf]
    %v316 = vld [vmem:[#allocation2 + $0x3a8] sm:$0xf]
    %v317 = vld [vmem:[#allocation2 + $0x3ac] sm:$0xf]
    %v318 = vld [vmem:[#allocation2 + $0x3b0] sm:$0xf]
    %v319 = vld [vmem:[#allocation2 + $0x3b4] sm:$0xf]
    %v320 = vld [vmem:[#allocation2 + $0x3b8] sm:$0xf]
    %v321 = vld [vmem:[#allocation2 + $0x3bc] sm:$0xf]
    %v322 = vld [vmem:[#allocation2 + $0x3c0] sm:$0xf]
    %v323 = vld [vmem:[#allocation2 + $0x3c4] sm:$0xf]
    %v324 = vld [vmem:[#allocation2 + $0x3c8] sm:$0xf]
    %v325 = vld [vmem:[#allocation2 + $0x3cc] sm:$0xf]
    %v326 = vld [vmem:[#allocation2 + $0x3d0] sm:$0xf]
    %v327 = vld [vmem:[#allocation2 + $0x3d4] sm:$0xf]
    %v328 = vld [vmem:[#allocation2 + $0x3d8] sm:$0xf]
    %v329 = vld [vmem:[#allocation2 + $0x3dc] sm:$0xf]
    %v330 = vld [vmem:[#allocation2 + $0x3e0] sm:$0xf]
    %v331 = vld [vmem:[#allocation2 + $0x3e4] sm:$0xf]
    %v332 = vld [vmem:[#allocation2 + $0x3e8] sm:$0xf]
    %v333 = vld [vmem:[#allocation2 + $0x3ec] sm:$0xf]
    %v334 = vld [vmem:[#allocation2 + $0x3f0] sm:$0xf]
    %v335 = vld [vmem:[#allocation2 + $0x3f4] sm:$0xf]
    %v336 = vld [vmem:[#allocation2 + $0x3f8] sm:$0xf]
    %v337 = vld [vmem:[#allocation2 + $0x3fc] sm:$0xf]
    %v338 = vld [vmem:[#allocation2 + $0x400] sm:$0xf]
    %v339 = vld [vmem:[#allocation2 + $0x404] sm:$0xf]
    %v340 = vld [vmem:[#allocation2 + $0x408] sm:$0xf]
    %v341 = vld [vmem:[#allocation2 + $0x40c] sm:$0xf]
    %v342 = vld [vmem:[#allocation2 + $0x410] sm:$0xf]
    %v343 = vld [vmem:[#allocation2 + $0x414] sm:$0xf]
    %v344 = vld [vmem:[#allocation2 + $0x418] sm:$0xf]
    %v345 = vld [vmem:[#allocation2 + $0x41c] sm:$0xf]
    %v346 = vld [vmem:[#allocation2 + $0x420] sm:$0xf]
    %v347 = vld [vmem:[#allocation2 + $0x424] sm:$0xf]
    %v348 = vld [vmem:[#allocation2 + $0x428] sm:$0xf]
    %v349 = vld [vmem:[#allocation2 + $0x42c] sm:$0xf]
    %v350 = vld [vmem:[#allocation2 + $0x430] sm:$0xf]
    %v351 = vld [vmem:[#allocation2 + $0x434] sm:$0xf]
    %v352 = vld [vmem:[#allocation2 + $0x438] sm:$0xf]
    %v353 = vld [vmem:[#allocation2 + $0x43c] sm:$0xf]
    %v354 = vld [vmem:[#allocation2 + $0x440] sm:$0xf]
    %v355 = vld [vmem:[#allocation2 + $0x444] sm:$0xf]
    %v356 = vld [vmem:[#allocation2 + $0x448] sm:$0xf]
    %v357 = vld [vmem:[#allocation2 + $0x44c] sm:$0xf]
    %v358 = vld [vmem:[#allocation2 + $0x450] sm:$0xf]
    %v359 = vld [vmem:[#allocation2 + $0x454] sm:$0xf]
    %v360 = vld [vmem:[#allocation2 + $0x458] sm:$0xf]
    %v361 = vld [vmem:[#allocation2 + $0x45c] sm:$0xf]
    %v362 = vld [vmem:[#allocation2 + $0x460] sm:$0xf]
    %v363 = vld [vmem:[#allocation2 + $0x464] sm:$0xf]
    %v364 = vld [vmem:[#allocation2 + $0x468] sm:$0xf]
    %v365 = vld [vmem:[#allocation2 + $0x46c] sm:$0xf]
    %v366 = vld [vmem:[#allocation2 + $0x470] sm:$0xf]
    %v367 = vld [vmem:[#allocation2 + $0x474] sm:$0xf]
    %v368 = vld [vmem:[#allocation2 + $0x478] sm:$0xf]
    %v369 = vld [vmem:[#allocation2 + $0x47c] sm:$0xf]
    %v370 = vld [vmem:[#allocation2 + $0x480] sm:$0xf]
    %v371 = vld [vmem:[#allocation2 + $0x484] sm:$0xf]
    %v372 = vld [vmem:[#allocation2 + $0x488] sm:$0xf]
    %v373 = vld [vmem:[#allocation2 + $0x48c] sm:$0xf]
    %v374 = vld [vmem:[#allocation2 + $0x490] sm:$0xf]
    %v375 = vld [vmem:[#allocation2 + $0x494] sm:$0xf]
    %v376 = vld [vmem:[#allocation2 + $0x498] sm:$0xf]
    %v377 = vld [vmem:[#allocation2 + $0x49c] sm:$0xf]
    %v378 = vld [vmem:[#allocation2 + $0x4a0] sm:$0xf]
    %v379 = vld [vmem:[#allocation2 + $0x4a4] sm:$0xf]
    %v380 = vld [vmem:[#allocation2 + $0x4a8] sm:$0xf]
    %v381 = vld [vmem:[#allocation2 + $0x4ac] sm:$0xf]
    %v382 = vld [vmem:[#allocation2 + $0x4b0] sm:$0xf]
    %v383 = vld [vmem:[#allocation2 + $0x4b4] sm:$0xf]
    %v384 = vld [vmem:[#allocation2 + $0x4b8] sm:$0xf]
    %v385 = vld [vmem:[#allocation2 + $0x4bc] sm:$0xf]
    %v386 = vld [vmem:[#allocation2 + $0x4c0] sm:$0xf]
    %v387 = vld [vmem:[#allocation2 + $0x4c4] sm:$0xf]
    %v388 = vld [vmem:[#allocation2 + $0x4c8] sm:$0xf]
    %v389 = vld [vmem:[#allocation2 + $0x4cc] sm:$0xf]
    %v390 = vld [vmem:[#allocation2 + $0x4d0] sm:$0xf]
    %v391 = vld [vmem:[#allocation2 + $0x4d4] sm:$0xf]
    %v392 = vld [vmem:[#allocation2 + $0x4d8] sm:$0xf]
    %v393 = vld [vmem:[#allocation2 + $0x4dc] sm:$0xf]
    %v394 = vld [vmem:[#allocation2 + $0x4e0] sm:$0xf]
    %v395 = vld [vmem:[#allocation2 + $0x4e4] sm:$0xf]
    %v396 = vld [vmem:[#allocation2 + $0x4e8] sm:$0xf]
    %v397 = vld [vmem:[#allocation2 + $0x4ec] sm:$0xf]
    %v398 = vld [vmem:[#allocation2 + $0x4f0] sm:$0xf]
    %v399 = vld [vmem:[#allocation2 + $0x4f4] sm:$0xf]
    %v400 = vld [vmem:[#allocation2 + $0x4f8] sm:$0xf]
    %v401 = vld [vmem:[#allocation2 + $0x4fc] sm:$0xf]
    %v402 = vld [vmem:[#allocation2 + $0x500] sm:$0xf]
    %v403 = vld [vmem:[#allocation2 + $0x504] sm:$0xf]
    %v404 = vld [vmem:[#allocation2 + $0x508] sm:$0xf]
    %v405 = vld [vmem:[#allocation2 + $0x50c] sm:$0xf]
    %v406 = vld [vmem:[#allocation2 + $0x510] sm:$0xf]
    %v407 = vld [vmem:[#allocation2 + $0x514] sm:$0xf]
    %v408 = vld [vmem:[#allocation2 + $0x518] sm:$0xf]
    %v409 = vld [vmem:[#allocation2 + $0x51c] sm:$0xf]
    %v410 = vld [vmem:[#allocation2 + $0x520] sm:$0xf]
    %v411 = vld [vmem:[#allocation2 + $0x524] sm:$0xf]
    %v412 = vld [vmem:[#allocation2 + $0x528] sm:$0xf]
    %v413 = vld [vmem:[#allocation2 + $0x52c] sm:$0xf]
    %v414 = vld [vmem:[#allocation2 + $0x530] sm:$0xf]
    %v415 = vld [vmem:[#allocation2 + $0x534] sm:$0xf]
    %v416 = vld [vmem:[#allocation2 + $0x538] sm:$0xf]
    %v417 = vld [vmem:[#allocation2 + $0x53c] sm:$0xf]
    %v418 = vld [vmem:[#allocation2 + $0x540] sm:$0xf]
    %v419 = vld [vmem:[#allocation2 + $0x544] sm:$0xf]
    %v420 = vld [vmem:[#allocation2 + $0x548] sm:$0xf]
    %v421 = vld [vmem:[#allocation2 + $0x54c] sm:$0xf]
    %v422 = vld [vmem:[#allocation2 + $0x550] sm:$0xf]
    %v423 = vld [vmem:[#allocation2 + $0x554] sm:$0xf]
    %v424 = vld [vmem:[#allocation2 + $0x558] sm:$0xf]
    %v425 = vld [vmem:[#allocation2 + $0x55c] sm:$0xf]
    %v426 = vld [vmem:[#allocation2 + $0x560] sm:$0xf]
    %v427 = vld [vmem:[#allocation2 + $0x564] sm:$0xf]
    %v428 = vld [vmem:[#allocation2 + $0x568] sm:$0xf]
    %v429 = vld [vmem:[#allocation2 + $0x56c] sm:$0xf]
    %v430 = vld [vmem:[#allocation2 + $0x570] sm:$0xf]
    %v431 = vld [vmem:[#allocation2 + $0x574] sm:$0xf]
    %v432 = vld [vmem:[#allocation2 + $0x578] sm:$0xf]
    %v433 = vld [vmem:[#allocation2 + $0x57c] sm:$0xf]
    %v434 = vld [vmem:[#allocation2 + $0x580] sm:$0xf]
    %v435 = vld [vmem:[#allocation2 + $0x584] sm:$0xf]
    %v436 = vld [vmem:[#allocation2 + $0x588] sm:$0xf]
    %v437 = vld [vmem:[#allocation2 + $0x58c] sm:$0xf]
    %v438 = vld [vmem:[#allocation2 + $0x590] sm:$0xf]
    %v439 = vld [vmem:[#allocation2 + $0x594] sm:$0xf]
    %v440 = vld [vmem:[#allocation2 + $0x598] sm:$0xf]
    %v441 = vld [vmem:[#allocation2 + $0x59c] sm:$0xf]
    %v442 = vld [vmem:[#allocation2 + $0x5a0] sm:$0xf]
    %v443 = vld [vmem:[#allocation2 + $0x5a4] sm:$0xf]
    %v444 = vld [vmem:[#allocation2 + $0x5a8] sm:$0xf]
    %v445 = vld [vmem:[#allocation2 + $0x5ac] sm:$0xf]
    %v446 = vld [vmem:[#allocation2 + $0x5b0] sm:$0xf]
    %v447 = vld [vmem:[#allocation2 + $0x5b4] sm:$0xf]
    %v448 = vld [vmem:[#allocation2 + $0x5b8] sm:$0xf]
    %v449 = vld [vmem:[#allocation2 + $0x5bc] sm:$0xf]
    %v450 = vld [vmem:[#allocation2 + $0x5c0] sm:$0xf]
    %v451 = vld [vmem:[#allocation2 + $0x5c4] sm:$0xf]
    %v452 = vld [vmem:[#allocation2 + $0x5c8] sm:$0xf]
    %v453 = vld [vmem:[#allocation2 + $0x5cc] sm:$0xf]
    %v454 = vld [vmem:[#allocation2 + $0x5d0] sm:$0xf]
    %v455 = vld [vmem:[#allocation2 + $0x5d4] sm:$0xf]
    %v456 = vld [vmem:[#allocation2 + $0x5d8] sm:$0xf]
    %v457 = vld [vmem:[#allocation2 + $0x5dc] sm:$0xf]
    %v458 = vld [vmem:[#allocation2 + $0x5e0] sm:$0xf]
    %v459 = vld [vmem:[#allocation2 + $0x5e4] sm:$0xf]
    %v460 = vld [vmem:[#allocation2 + $0x5e8] sm:$0xf]
    %v461 = vld [vmem:[#allocation2 + $0x5ec] sm:$0xf]
    %v462 = vld [vmem:[#allocation2 + $0x5f0] sm:$0xf]
    %v463 = vld [vmem:[#allocation2 + $0x5f4] sm:$0xf]
    %v464 = vld [vmem:[#allocation2 + $0x5f8] sm:$0xf]
    %v465 = vld [vmem:[#allocation2 + $0x5fc] sm:$0xf]
    %v466 = vld [vmem:[#allocation2 + $0x600] sm:$0xf]
    %v467 = vld [vmem:[#allocation2 + $0x604] sm:$0xf]
    %v468 = vld [vmem:[#allocation2 + $0x608] sm:$0xf]
    %v469 = vld [vmem:[#allocation2 + $0x60c] sm:$0xf]
    %v470 = vld [vmem:[#allocation2 + $0x610] sm:$0xf]
    %v471 = vld [vmem:[#allocation2 + $0x614] sm:$0xf]
    %v472 = vld [vmem:[#allocation2 + $0x618] sm:$0xf]
    %v473 = vld [vmem:[#allocation2 + $0x61c] sm:$0xf]
    %v474 = vld [vmem:[#allocation2 + $0x620] sm:$0xf]
    %v475 = vld [vmem:[#allocation2 + $0x624] sm:$0xf]
    %v476 = vld [vmem:[#allocation2 + $0x628] sm:$0xf]
    %v477 = vld [vmem:[#allocation2 + $0x62c] sm:$0xf]
    %v478 = vld [vmem:[#allocation2 + $0x630] sm:$0xf]
    %v479 = vld [vmem:[#allocation2 + $0x634] sm:$0xf]
    %v480 = vld [vmem:[#allocation2 + $0x638] sm:$0xf]
    %v481 = vld [vmem:[#allocation2 + $0x63c] sm:$0xf]
    %v482 = vld [vmem:[#allocation2 + $0x640] sm:$0xf]
    %v483 = vld [vmem:[#allocation2 + $0x644] sm:$0xf]
    %v484 = vld [vmem:[#allocation2 + $0x648] sm:$0xf]
    %v485 = vld [vmem:[#allocation2 + $0x64c] sm:$0xf]
    %v486 = vld [vmem:[#allocation2 + $0x650] sm:$0xf]
    %v487 = vld [vmem:[#allocation2 + $0x654] sm:$0xf]
    %v488 = vld [vmem:[#allocation2 + $0x658] sm:$0xf]
    %v489 = vld [vmem:[#allocation2 + $0x65c] sm:$0xf]
    %v490 = vld [vmem:[#allocation2 + $0x660] sm:$0xf]
    %v491 = vld [vmem:[#allocation2 + $0x664] sm:$0xf]
    %v492 = vld [vmem:[#allocation2 + $0x668] sm:$0xf]
    %v493 = vld [vmem:[#allocation2 + $0x66c] sm:$0xf]
    %v494 = vld [vmem:[#allocation2 + $0x670] sm:$0xf]
    %v495 = vld [vmem:[#allocation2 + $0x674] sm:$0xf]
    %v496 = vld [vmem:[#allocation2 + $0x678] sm:$0xf]
    %v497 = vld [vmem:[#allocation2 + $0x67c] sm:$0xf]
    %v498 = vld [vmem:[#allocation2 + $0x680] sm:$0xf]
    %v499 = vld [vmem:[#allocation2 + $0x684] sm:$0xf]
    %v500 = vld [vmem:[#allocation2 + $0x688] sm:$0xf]
    %v501 = vld [vmem:[#allocation2 + $0x68c] sm:$0xf]
    %v502 = vld [vmem:[#allocation2 + $0x690] sm:$0xf]
    %v503 = vld [vmem:[#allocation2 + $0x694] sm:$0xf]
    %v504 = vld [vmem:[#allocation2 + $0x698] sm:$0xf]
    %v505 = vld [vmem:[#allocation2 + $0x69c] sm:$0xf]
    %v506 = vld [vmem:[#allocation2 + $0x6a0] sm:$0xf]
    %v507 = vld [vmem:[#allocation2 + $0x6a4] sm:$0xf]
    %v508 = vld [vmem:[#allocation2 + $0x6a8] sm:$0xf]
    %v509 = vld [vmem:[#allocation2 + $0x6ac] sm:$0xf]
    %v510 = vld [vmem:[#allocation2 + $0x6b0] sm:$0xf]
    %v511 = vld [vmem:[#allocation2 + $0x6b4] sm:$0xf]
    %v512 = vld [vmem:[#allocation2 + $0x6b8] sm:$0xf]
    %v513 = vld [vmem:[#allocation2 + $0x6bc] sm:$0xf]
    %v514 = vld [vmem:[#allocation2 + $0x6c0] sm:$0xf]
    %v515 = vld [vmem:[#allocation2 + $0x6c4] sm:$0xf]
    %v516 = vld [vmem:[#allocation2 + $0x6c8] sm:$0xf]
    %v517 = vld [vmem:[#allocation2 + $0x6cc] sm:$0xf]
    %v518 = vld [vmem:[#allocation2 + $0x6d0] sm:$0xf]
    %v519 = vld [vmem:[#allocation2 + $0x6d4] sm:$0xf]
    %v520 = vld [vmem:[#allocation2 + $0x6d8] sm:$0xf]
    %v521 = vld [vmem:[#allocation2 + $0x6dc] sm:$0xf]
    %v522 = vld [vmem:[#allocation2 + $0x6e0] sm:$0xf]
    %v523 = vld [vmem:[#allocation2 + $0x6e4] sm:$0xf]
    %v524 = vld [vmem:[#allocation2 + $0x6e8] sm:$0xf]
    %v525 = vld [vmem:[#allocation2 + $0x6ec] sm:$0xf]
    %v526 = vld [vmem:[#allocation2 + $0x6f0] sm:$0xf]
    %v527 = vld [vmem:[#allocation2 + $0x6f4] sm:$0xf]
    %v528 = vld [vmem:[#allocation2 + $0x6f8] sm:$0xf]
    %v529 = vld [vmem:[#allocation2 + $0x6fc] sm:$0xf]
    %v530 = vld [vmem:[#allocation2 + $0x700] sm:$0xf]
    %v531 = vld [vmem:[#allocation2 + $0x704] sm:$0xf]
    %v532 = vld [vmem:[#allocation2 + $0x708] sm:$0xf]
    %v533 = vld [vmem:[#allocation2 + $0x70c] sm:$0xf]
    %v534 = vld [vmem:[#allocation2 + $0x710] sm:$0xf]
    %v535 = vld [vmem:[#allocation2 + $0x714] sm:$0xf]
    %v536 = vld [vmem:[#allocation2 + $0x718] sm:$0xf]
    %v537 = vld [vmem:[#allocation2 + $0x71c] sm:$0xf]
    %v538 = vld [vmem:[#allocation2 + $0x720] sm:$0xf]
    %v539 = vld [vmem:[#allocation2 + $0x724] sm:$0xf]
    %v540 = vld [vmem:[#allocation2 + $0x728] sm:$0xf]
    %v541 = vld [vmem:[#allocation2 + $0x72c] sm:$0xf]
    %v542 = vld [vmem:[#allocation2 + $0x730] sm:$0xf]
    %v543 = vld [vmem:[#allocation2 + $0x734] sm:$0xf]
    %v544 = vld [vmem:[#allocation2 + $0x738] sm:$0xf]
    %v545 = vld [vmem:[#allocation2 + $0x73c] sm:$0xf]
    %v546 = vld [vmem:[#allocation2 + $0x740] sm:$0xf]
    %v547 = vld [vmem:[#allocation2 + $0x744] sm:$0xf]
    %v548 = vld [vmem:[#allocation2 + $0x748] sm:$0xf]
    %v549 = vld [vmem:[#allocation2 + $0x74c] sm:$0xf]
    %v550 = vld [vmem:[#allocation2 + $0x750] sm:$0xf]
    %v551 = vld [vmem:[#allocation2 + $0x754] sm:$0xf]
    %v552 = vld [vmem:[#allocation2 + $0x758] sm:$0xf]
    %v553 = vld [vmem:[#allocation2 + $0x75c] sm:$0xf]
    %v554 = vld [vmem:[#allocation2 + $0x760] sm:$0xf]
    %v555 = vld [vmem:[#allocation2 + $0x764] sm:$0xf]
    %v556 = vld [vmem:[#allocation2 + $0x768] sm:$0xf]
    %v557 = vld [vmem:[#allocation2 + $0x76c] sm:$0xf]
    %v558 = vld [vmem:[#allocation2 + $0x770] sm:$0xf]
    %v559 = vld [vmem:[#allocation2 + $0x774] sm:$0xf]
    %v560 = vld [vmem:[#allocation2 + $0x778] sm:$0xf]
    %v561 = vld [vmem:[#allocation2 + $0x77c] sm:$0xf]
    %v562 = vld [vmem:[#allocation2 + $0x780] sm:$0xf]
    %v563 = vld [vmem:[#allocation2 + $0x784] sm:$0xf]
    %v564 = vld [vmem:[#allocation2 + $0x788] sm:$0xf]
    %v565 = vld [vmem:[#allocation2 + $0x78c] sm:$0xf]
    %v566 = vld [vmem:[#allocation2 + $0x790] sm:$0xf]
    %v567 = vld [vmem:[#allocation2 + $0x794] sm:$0xf]
    %v568 = vld [vmem:[#allocation2 + $0x798] sm:$0xf]
    %v569 = vld [vmem:[#allocation2 + $0x79c] sm:$0xf]
    %v570 = vld [vmem:[#allocation2 + $0x7a0] sm:$0xf]
    %v571 = vld [vmem:[#allocation2 + $0x7a4] sm:$0xf]
    %v572 = vld [vmem:[#allocation2 + $0x7a8] sm:$0xf]
    %v573 = vld [vmem:[#allocation2 + $0x7ac] sm:$0xf]
    %v574 = vld [vmem:[#allocation2 + $0x7b0] sm:$0xf]
    %v575 = vld [vmem:[#allocation2 + $0x7b4] sm:$0xf]
    %v576 = vld [vmem:[#allocation2 + $0x7b8] sm:$0xf]
    %v577 = vld [vmem:[#allocation2 + $0x7bc] sm:$0xf]
    %v578 = vld [vmem:[#allocation2 + $0x7c0] sm:$0xf]
    %v579 = vld [vmem:[#allocation2 + $0x7c4] sm:$0xf]
    %v580 = vld [vmem:[#allocation2 + $0x7c8] sm:$0xf]
    %v581 = vld [vmem:[#allocation2 + $0x7cc] sm:$0xf]
    %v582 = vld [vmem:[#allocation2 + $0x7d0] sm:$0xf]
    %v583 = vld [vmem:[#allocation2 + $0x7d4] sm:$0xf]
    %v584 = vld [vmem:[#allocation2 + $0x7d8] sm:$0xf]
    %v585 = vld [vmem:[#allocation2 + $0x7dc] sm:$0xf]
    %v586 = vld [vmem:[#allocation2 + $0x7e0] sm:$0xf]
    %v587 = vld [vmem:[#allocation2 + $0x7e4] sm:$0xf]
    %v588 = vld [vmem:[#allocation2 + $0x7e8] sm:$0xf]
    %v589 = vld [vmem:[#allocation2 + $0x7ec] sm:$0xf]
    %v590 = vld [vmem:[#allocation2 + $0x7f0] sm:$0xf]
    %v591 = vld [vmem:[#allocation2 + $0x7f4] sm:$0xf]
    %v592 = vld [vmem:[#allocation2 + $0x7f8] sm:$0xf]
    %v593 = vld [vmem:[#allocation2 + $0x7fc] sm:$0xf]
    %v594 = vld [vmem:[#allocation2 + $0x800] sm:$0xf]
    %v595 = vld [vmem:[#allocation2 + $0x804] sm:$0xf]
    %v596 = vld [vmem:[#allocation2 + $0x808] sm:$0xf]
    %v597 = vld [vmem:[#allocation2 + $0x80c] sm:$0xf]
    %v598 = vld [vmem:[#allocation2 + $0x810] sm:$0xf]
    %v599 = vld [vmem:[#allocation2 + $0x814] sm:$0xf]
    %v600 = vld [vmem:[#allocation2 + $0x818] sm:$0xf]
    %v601 = vld [vmem:[#allocation2 + $0x81c] sm:$0xf]
    %v602 = vld [vmem:[#allocation2 + $0x820] sm:$0xf]
    %v603 = vld [vmem:[#allocation2 + $0x824] sm:$0xf]
    %v604 = vld [vmem:[#allocation2 + $0x828] sm:$0xf]
    %v605 = vld [vmem:[#allocation2 + $0x82c] sm:$0xf]
    %v606 = vld [vmem:[#allocation2 + $0x830] sm:$0xf]
    %v607 = vld [vmem:[#allocation2 + $0x834] sm:$0xf]
    %v608 = vld [vmem:[#allocation2 + $0x838] sm:$0xf]
    %v609 = vld [vmem:[#allocation2 + $0x83c] sm:$0xf]
    %v610 = vld [vmem:[#allocation2 + $0x840] sm:$0xf]
    %v611 = vld [vmem:[#allocation2 + $0x844] sm:$0xf]
    %v612 = vld [vmem:[#allocation2 + $0x848] sm:$0xf]
    %v613 = vld [vmem:[#allocation2 + $0x84c] sm:$0xf]
    %v614 = vld [vmem:[#allocation2 + $0x850] sm:$0xf]
    %v615 = vld [vmem:[#allocation2 + $0x854] sm:$0xf]
    %v616 = vld [vmem:[#allocation2 + $0x858] sm:$0xf]
    %v617 = vld [vmem:[#allocation2 + $0x85c] sm:$0xf]
    %v618 = vld [vmem:[#allocation2 + $0x860] sm:$0xf]
    %v619 = vld [vmem:[#allocation2 + $0x864] sm:$0xf]
    %v620 = vld [vmem:[#allocation2 + $0x868] sm:$0xf]
    %v621 = vld [vmem:[#allocation2 + $0x86c] sm:$0xf]
    %v622 = vld [vmem:[#allocation2 + $0x870] sm:$0xf]
    %v623 = vld [vmem:[#allocation2 + $0x874] sm:$0xf]
    %v624 = vld [vmem:[#allocation2 + $0x878] sm:$0xf]
    %v625 = vld [vmem:[#allocation2 + $0x87c] sm:$0xf]
    %v626 = vld [vmem:[#allocation2 + $0x880] sm:$0xf]
    %v627 = vld [vmem:[#allocation2 + $0x884] sm:$0xf]
    %v628 = vld [vmem:[#allocation2 + $0x888] sm:$0xf]
    %v629 = vld [vmem:[#allocation2 + $0x88c] sm:$0xf]
    %v630 = vld [vmem:[#allocation2 + $0x890] sm:$0xf]
    %v631 = vld [vmem:[#allocation2 + $0x894] sm:$0xf]
    %v632 = vld [vmem:[#allocation2 + $0x898] sm:$0xf]
    %v633 = vld [vmem:[#allocation2 + $0x89c] sm:$0xf]
    %v634 = vld [vmem:[#allocation2 + $0x8a0] sm:$0xf]
    %v635 = vld [vmem:[#allocation2 + $0x8a4] sm:$0xf]
    %v636 = vld [vmem:[#allocation2 + $0x8a8] sm:$0xf]
    %v637 = vld [vmem:[#allocation2 + $0x8ac] sm:$0xf]
    %v638 = vld [vmem:[#allocation2 + $0x8b0] sm:$0xf]
    %v639 = vld [vmem:[#allocation2 + $0x8b4] sm:$0xf]
    %v640 = vld [vmem:[#allocation2 + $0x8b8] sm:$0xf]
    %v641 = vld [vmem:[#allocation2 + $0x8bc] sm:$0xf]
    %v642 = vld [vmem:[#allocation2 + $0x8c0] sm:$0xf]
    %v643 = vld [vmem:[#allocation2 + $0x8c4] sm:$0xf]
    %v644 = vld [vmem:[#allocation2 + $0x8c8] sm:$0xf]
    %v645 = vld [vmem:[#allocation2 + $0x8cc] sm:$0xf]
    %v646 = vld [vmem:[#allocation2 + $0x8d0] sm:$0xf]
    %v647 = vld [vmem:[#allocation2 + $0x8d4] sm:$0xf]
    %v648 = vld [vmem:[#allocation2 + $0x8d8] sm:$0xf]
    %v649 = vld [vmem:[#allocation2 + $0x8dc] sm:$0xf]
    %v650 = vld [vmem:[#allocation2 + $0x8e0] sm:$0xf]
    %v651 = vld [vmem:[#allocation2 + $0x8e4] sm:$0xf]
    %v652 = vld [vmem:[#allocation2 + $0x8e8] sm:$0xf]
    %v653 = vld [vmem:[#allocation2 + $0x8ec] sm:$0xf]
    %v654 = vld [vmem:[#allocation2 + $0x8f0] sm:$0xf]
    %v655 = vld [vmem:[#allocation2 + $0x8f4] sm:$0xf]
    %v656 = vld [vmem:[#allocation2 + $0x8f8] sm:$0xf]
    %v657 = vld [vmem:[#allocation2 + $0x8fc] sm:$0xf]
    %v658 = vld [vmem:[#allocation2 + $0x900] sm:$0xf]
    %v659 = vld [vmem:[#allocation2 + $0x904] sm:$0xf]
    %v660 = vld [vmem:[#allocation2 + $0x908] sm:$0xf]
    %v661 = vld [vmem:[#allocation2 + $0x90c] sm:$0xf]
    %v662 = vld [vmem:[#allocation2 + $0x910] sm:$0xf]
    %v663 = vld [vmem:[#allocation2 + $0x914] sm:$0xf]
    %v664 = vld [vmem:[#allocation2 + $0x918] sm:$0xf]
    %v665 = vld [vmem:[#allocation2 + $0x91c] sm:$0xf]
    %v666 = vld [vmem:[#allocation2 + $0x920] sm:$0xf]
    %v667 = vld [vmem:[#allocation2 + $0x924] sm:$0xf]
    %v668 = vld [vmem:[#allocation2 + $0x928] sm:$0xf]
    %v669 = vld [vmem:[#allocation2 + $0x92c] sm:$0xf]
    %v670 = vld [vmem:[#allocation2 + $0x930] sm:$0xf]
    %v671 = vld [vmem:[#allocation2 + $0x934] sm:$0xf]
    %v672 = vld [vmem:[#allocation2 + $0x938] sm:$0xf]
    %v673 = vld [vmem:[#allocation2 + $0x93c] sm:$0xf]
    %v674 = vld [vmem:[#allocation2 + $0x940] sm:$0xf]
    %v675 = vld [vmem:[#allocation2 + $0x944] sm:$0xf]
    %v676 = vld [vmem:[#allocation2 + $0x948] sm:$0xf]
    %v677 = vld [vmem:[#allocation2 + $0x94c] sm:$0xf]
    %v678 = vld [vmem:[#allocation2 + $0x950] sm:$0xf]
    %v679 = vld [vmem:[#allocation2 + $0x954] sm:$0xf]
    %v680 = vld [vmem:[#allocation2 + $0x958] sm:$0xf]
    %v681 = vld [vmem:[#allocation2 + $0x95c] sm:$0xf]
    %v682 = vld [vmem:[#allocation2 + $0x960] sm:$0xf]
    %v683 = vld [vmem:[#allocation2 + $0x964] sm:$0xf]
    %v684 = vld [vmem:[#allocation2 + $0x968] sm:$0xf]
    %v685 = vld [vmem:[#allocation2 + $0x96c] sm:$0xf]
    %v686 = vld [vmem:[#allocation2 + $0x970] sm:$0xf]
    %v687 = vld [vmem:[#allocation2 + $0x974] sm:$0xf]
    %v688 = vld [vmem:[#allocation2 + $0x978] sm:$0xf]
    %v689 = vld [vmem:[#allocation2 + $0x97c] sm:$0xf]
    %v690 = vld [vmem:[#allocation2 + $0x980] sm:$0xf]
    %v691 = vld [vmem:[#allocation2 + $0x984] sm:$0xf]
    %v692 = vld [vmem:[#allocation2 + $0x988] sm:$0xf]
    %v693 = vld [vmem:[#allocation2 + $0x98c] sm:$0xf]
    %v694 = vld [vmem:[#allocation2 + $0x990] sm:$0xf]
    %v695 = vld [vmem:[#allocation2 + $0x994] sm:$0xf]
    %v696 = vld [vmem:[#allocation2 + $0x998] sm:$0xf]
    %v697 = vld [vmem:[#allocation2 + $0x99c] sm:$0xf]
    %v698 = vld [vmem:[#allocation2 + $0x9a0] sm:$0xf]
    %v699 = vld [vmem:[#allocation2 + $0x9a4] sm:$0xf]
    %v700 = vld [vmem:[#allocation2 + $0x9a8] sm:$0xf]
    %v701 = vld [vmem:[#allocation2 + $0x9ac] sm:$0xf]
    %v702 = vld [vmem:[#allocation2 + $0x9b0] sm:$0xf]
    %v703 = vld [vmem:[#allocation2 + $0x9b4] sm:$0xf]
    %v704 = vld [vmem:[#allocation2 + $0x9b8] sm:$0xf]
    %v705 = vld [vmem:[#allocation2 + $0x9bc] sm:$0xf]
    %v706 = vld [vmem:[#allocation2 + $0x9c0] sm:$0xf]
    %v707 = vld [vmem:[#allocation2 + $0x9c4] sm:$0xf]
    %v708 = vld [vmem:[#allocation2 + $0x9c8] sm:$0xf]
    %v709 = vld [vmem:[#allocation2 + $0x9cc] sm:$0xf]
    %v710 = vld [vmem:[#allocation2 + $0x9d0] sm:$0xf]
    %v711 = vld [vmem:[#allocation2 + $0x9d4] sm:$0xf]
    %v712 = vld [vmem:[#allocation2 + $0x9d8] sm:$0xf]
    %v713 = vld [vmem:[#allocation2 + $0x9dc] sm:$0xf]
    %v714 = vld [vmem:[#allocation2 + $0x9e0] sm:$0xf]
    %v715 = vld [vmem:[#allocation2 + $0x9e4] sm:$0xf]
    %v716 = vld [vmem:[#allocation2 + $0x9e8] sm:$0xf]
    %v717 = vld [vmem:[#allocation2 + $0x9ec] sm:$0xf]
    %v718 = vld [vmem:[#allocation2 + $0x9f0] sm:$0xf]
    %v719 = vld [vmem:[#allocation2 + $0x9f4] sm:$0xf]
    %v720 = vld [vmem:[#allocation2 + $0x9f8] sm:$0xf]
    %v721 = vld [vmem:[#allocation2 + $0x9fc] sm:$0xf]
    %v722 = vld [vmem:[#allocation2 + $0xa00] sm:$0xf]
    %v723 = vld [vmem:[#allocation2 + $0xa04] sm:$0xf]
    %v724 = vld [vmem:[#allocation2 + $0xa08] sm:$0xf]
    %v725 = vld [vmem:[#allocation2 + $0xa0c] sm:$0xf]
    %v726 = vld [vmem:[#allocation2 + $0xa10] sm:$0xf]
    %v727 = vld [vmem:[#allocation2 + $0xa14] sm:$0xf]
    %v728 = vld [vmem:[#allocation2 + $0xa18] sm:$0xf]
    %v729 = vld [vmem:[#allocation2 + $0xa1c] sm:$0xf]
    %v730 = vld [vmem:[#allocation2 + $0xa20] sm:$0xf]
    %v731 = vld [vmem:[#allocation2 + $0xa24] sm:$0xf]
    %v732 = vld [vmem:[#allocation2 + $0xa28] sm:$0xf]
    %v733 = vld [vmem:[#allocation2 + $0xa2c] sm:$0xf]
    %v734 = vld [vmem:[#allocation2 + $0xa30] sm:$0xf]
    %v735 = vld [vmem:[#allocation2 + $0xa34] sm:$0xf]
    %v736 = vld [vmem:[#allocation2 + $0xa38] sm:$0xf]
    %v737 = vld [vmem:[#allocation2 + $0xa3c] sm:$0xf]
    %v738 = vld [vmem:[#allocation2 + $0xa40] sm:$0xf]
    %v739 = vld [vmem:[#allocation2 + $0xa44] sm:$0xf]
    %v740 = vld [vmem:[#allocation2 + $0xa48] sm:$0xf]
    %v741 = vld [vmem:[#allocation2 + $0xa4c] sm:$0xf]
    %v742 = vld [vmem:[#allocation2 + $0xa50] sm:$0xf]
    %v743 = vld [vmem:[#allocation2 + $0xa54] sm:$0xf]
    %v744 = vld [vmem:[#allocation2 + $0xa58] sm:$0xf]
    %v745 = vld [vmem:[#allocation2 + $0xa5c] sm:$0xf]
    %v746 = vld [vmem:[#allocation2 + $0xa60] sm:$0xf]
    %v747 = vld [vmem:[#allocation2 + $0xa64] sm:$0xf]
    %v748 = vld [vmem:[#allocation2 + $0xa68] sm:$0xf]
    %v749 = vld [vmem:[#allocation2 + $0xa6c] sm:$0xf]
    %v750 = vld [vmem:[#allocation2 + $0xa70] sm:$0xf]
    %v751 = vld [vmem:[#allocation2 + $0xa74] sm:$0xf]
    %v752 = vld [vmem:[#allocation2 + $0xa78] sm:$0xf]
    %v753 = vld [vmem:[#allocation2 + $0xa7c] sm:$0xf]
    %v754 = vld [vmem:[#allocation2 + $0xa80] sm:$0xf]
    %v755 = vld [vmem:[#allocation2 + $0xa84] sm:$0xf]
    %v756 = vld [vmem:[#allocation2 + $0xa88] sm:$0xf]
    %v757 = vld [vmem:[#allocation2 + $0xa8c] sm:$0xf]
    %v758 = vld [vmem:[#allocation2 + $0xa90] sm:$0xf]
    %v759 = vld [vmem:[#allocation2 + $0xa94] sm:$0xf]
    %v760 = vld [vmem:[#allocation2 + $0xa98] sm:$0xf]
    %v761 = vld [vmem:[#allocation2 + $0xa9c] sm:$0xf]
    %v762 = vld [vmem:[#allocation2 + $0xaa0] sm:$0xf]
    %v763 = vld [vmem:[#allocation2 + $0xaa4] sm:$0xf]
    %v764 = vld [vmem:[#allocation2 + $0xaa8] sm:$0xf]
    %v765 = vld [vmem:[#allocation2 + $0xaac] sm:$0xf]
    %v766 = vld [vmem:[#allocation2 + $0xab0] sm:$0xf]
    %v767 = vld [vmem:[#allocation2 + $0xab4] sm:$0xf]
    %v768 = vld [vmem:[#allocation2 + $0xab8] sm:$0xf]
    %v769 = vld [vmem:[#allocation2 + $0xabc] sm:$0xf]
    %v770 = vld [vmem:[#allocation2 + $0xac0] sm:$0xf]
    %v771 = vld [vmem:[#allocation2 + $0xac4] sm:$0xf]
    %v772 = vld [vmem:[#allocation2 + $0xac8] sm:$0xf]
    %v773 = vld [vmem:[#allocation2 + $0xacc] sm:$0xf]
    %v774 = vld [vmem:[#allocation2 + $0xad0] sm:$0xf]
    %v775 = vld [vmem:[#allocation2 + $0xad4] sm:$0xf]
    %v776 = vld [vmem:[#allocation2 + $0xad8] sm:$0xf]
    %v777 = vld [vmem:[#allocation2 + $0xadc] sm:$0xf]
    %v778 = vld [vmem:[#allocation2 + $0xae0] sm:$0xf]
    %v779 = vld [vmem:[#allocation2 + $0xae4] sm:$0xf]
    %v780 = vld [vmem:[#allocation2 + $0xae8] sm:$0xf]
    %v781 = vld [vmem:[#allocation2 + $0xaec] sm:$0xf]
    %v782 = vld [vmem:[#allocation2 + $0xaf0] sm:$0xf]
    %v783 = vld [vmem:[#allocation2 + $0xaf4] sm:$0xf]
    %v784 = vld [vmem:[#allocation2 + $0xaf8] sm:$0xf]
    %v785 = vld [vmem:[#allocation2 + $0xafc] sm:$0xf]
    %v786 = vld [vmem:[#allocation2 + $0xb00] sm:$0xf]
    %v787 = vld [vmem:[#allocation2 + $0xb04] sm:$0xf]
    %v788 = vld [vmem:[#allocation2 + $0xb08] sm:$0xf]
    %v789 = vld [vmem:[#allocation2 + $0xb0c] sm:$0xf]
    %v790 = vld [vmem:[#allocation2 + $0xb10] sm:$0xf]
    %v791 = vld [vmem:[#allocation2 + $0xb14] sm:$0xf]
    %v792 = vld [vmem:[#allocation2 + $0xb18] sm:$0xf]
    %v793 = vld [vmem:[#allocation2 + $0xb1c] sm:$0xf]
    %v794 = vld [vmem:[#allocation2 + $0xb20] sm:$0xf]
    %v795 = vld [vmem:[#allocation2 + $0xb24] sm:$0xf]
    %v796 = vld [vmem:[#allocation2 + $0xb28] sm:$0xf]
    %v797 = vld [vmem:[#allocation2 + $0xb2c] sm:$0xf]
    %v798 = vld [vmem:[#allocation2 + $0xb30] sm:$0xf]
    %v799 = vld [vmem:[#allocation2 + $0xb34] sm:$0xf]
    %v800 = vld [vmem:[#allocation2 + $0xb38] sm:$0xf]
    %v801 = vld [vmem:[#allocation2 + $0xb3c] sm:$0xf]
    %v802 = vld [vmem:[#allocation2 + $0xb40] sm:$0xf]
    %v803 = vld [vmem:[#allocation2 + $0xb44] sm:$0xf]
    %v804 = vld [vmem:[#allocation2 + $0xb48] sm:$0xf]
    %v805 = vld [vmem:[#allocation2 + $0xb4c] sm:$0xf]
    %v806 = vld [vmem:[#allocation2 + $0xb50] sm:$0xf]
    %v807 = vld [vmem:[#allocation2 + $0xb54] sm:$0xf]
    %v808 = vld [vmem:[#allocation2 + $0xb58] sm:$0xf]
    %v809 = vld [vmem:[#allocation2 + $0xb5c] sm:$0xf]
    %v810 = vld [vmem:[#allocation2 + $0xb60] sm:$0xf]
    %v811 = vld [vmem:[#allocation2 + $0xb64] sm:$0xf]
    %v812 = vld [vmem:[#allocation2 + $0xb68] sm:$0xf]
    %v813 = vld [vmem:[#allocation2 + $0xb6c] sm:$0xf]
    %v814 = vld [vmem:[#allocation2 + $0xb70] sm:$0xf]
    %v815 = vld [vmem:[#allocation2 + $0xb74] sm:$0xf]
    %v816 = vld [vmem:[#allocation2 + $0xb78] sm:$0xf]
    %v817 = vld [vmem:[#allocation2 + $0xb7c] sm:$0xf]
    %v818 = vld [vmem:[#allocation2 + $0xb80] sm:$0xf]
    %v819 = vld [vmem:[#allocation2 + $0xb84] sm:$0xf]
    %v820 = vld [vmem:[#allocation2 + $0xb88] sm:$0xf]
    %v821 = vld [vmem:[#allocation2 + $0xb8c] sm:$0xf]
    %v822 = vld [vmem:[#allocation2 + $0xb90] sm:$0xf]
    %v823 = vld [vmem:[#allocation2 + $0xb94] sm:$0xf]
    %v824 = vld [vmem:[#allocation2 + $0xb98] sm:$0xf]
    %v825 = vld [vmem:[#allocation2 + $0xb9c] sm:$0xf]
    %v826 = vld [vmem:[#allocation2 + $0xba0] sm:$0xf]
    %v827 = vld [vmem:[#allocation2 + $0xba4] sm:$0xf]
    %v828 = vld [vmem:[#allocation2 + $0xba8] sm:$0xf]
    %v829 = vld [vmem:[#allocation2 + $0xbac] sm:$0xf]
    %v830 = vld [vmem:[#allocation2 + $0xbb0] sm:$0xf]
    %v831 = vld [vmem:[#allocation2 + $0xbb4] sm:$0xf]
    %v832 = vld [vmem:[#allocation2 + $0xbb8] sm:$0xf]
    %v833 = vld [vmem:[#allocation2 + $0xbbc] sm:$0xf]
    %v834 = vld [vmem:[#allocation2 + $0xbc0] sm:$0xf]
    %v835 = vld [vmem:[#allocation2 + $0xbc4] sm:$0xf]
    %v836 = vld [vmem:[#allocation2 + $0xbc8] sm:$0xf]
    %v837 = vld [vmem:[#allocation2 + $0xbcc] sm:$0xf]
    %v838 = vld [vmem:[#allocation2 + $0xbd0] sm:$0xf]
    %v839 = vld [vmem:[#allocation2 + $0xbd4] sm:$0xf]
    %v840 = vld [vmem:[#allocation2 + $0xbd8] sm:$0xf]
    %v841 = vld [vmem:[#allocation2 + $0xbdc] sm:$0xf]
    %v842 = vld [vmem:[#allocation2 + $0xbe0] sm:$0xf]
    %v843 = vld [vmem:[#allocation2 + $0xbe4] sm:$0xf]
    %v844 = vld [vmem:[#allocation2 + $0xbe8] sm:$0xf]
    %v845 = vld [vmem:[#allocation2 + $0xbec] sm:$0xf]
    %v846 = vld [vmem:[#allocation2 + $0xbf0] sm:$0xf]
    %v847 = vld [vmem:[#allocation2 + $0xbf4] sm:$0xf]
    %v848 = vld [vmem:[#allocation2 + $0xbf8] sm:$0xf]
    %v849 = vld [vmem:[#allocation2 + $0xbfc] sm:$0xf]
    %v850 = vld [vmem:[#allocation2 + $0xc00] sm:$0xf]
    %v851 = vld [vmem:[#allocation2 + $0xc04] sm:$0xf]
    %v852 = vld [vmem:[#allocation2 + $0xc08] sm:$0xf]
    %v853 = vld [vmem:[#allocation2 + $0xc0c] sm:$0xf]
    %v854 = vld [vmem:[#allocation2 + $0xc10] sm:$0xf]
    %v855 = vld [vmem:[#allocation2 + $0xc14] sm:$0xf]
    %v856 = vld [vmem:[#allocation2 + $0xc18] sm:$0xf]
    %v857 = vld [vmem:[#allocation2 + $0xc1c] sm:$0xf]
    %v858 = vld [vmem:[#allocation2 + $0xc20] sm:$0xf]
    %v859 = vld [vmem:[#allocation2 + $0xc24] sm:$0xf]
    %v860 = vld [vmem:[#allocation2 + $0xc28] sm:$0xf]
    %v861 = vld [vmem:[#allocation2 + $0xc2c] sm:$0xf]
    %v862 = vld [vmem:[#allocation2 + $0xc30] sm:$0xf]
    %v863 = vld [vmem:[#allocation2 + $0xc34] sm:$0xf]
    %v864 = vld [vmem:[#allocation2 + $0xc38] sm:$0xf]
    %v865 = vld [vmem:[#allocation2 + $0xc3c] sm:$0xf]
    %v866 = vld [vmem:[#allocation2 + $0xc40] sm:$0xf]
    %v867 = vld [vmem:[#allocation2 + $0xc44] sm:$0xf]
    %v868 = vld [vmem:[#allocation2 + $0xc48] sm:$0xf]
    %v869 = vld [vmem:[#allocation2 + $0xc4c] sm:$0xf]
    %v870 = vld [vmem:[#allocation2 + $0xc50] sm:$0xf]
    %v871 = vld [vmem:[#allocation2 + $0xc54] sm:$0xf]
    %v872 = vld [vmem:[#allocation2 + $0xc58] sm:$0xf]
    %v873 = vld [vmem:[#allocation2 + $0xc5c] sm:$0xf]
    %v874 = vld [vmem:[#allocation2 + $0xc60] sm:$0xf]
    %v875 = vld [vmem:[#allocation2 + $0xc64] sm:$0xf]
    %v876 = vld [vmem:[#allocation2 + $0xc68] sm:$0xf]
    %v877 = vld [vmem:[#allocation2 + $0xc6c] sm:$0xf]
    %v878 = vld [vmem:[#allocation2 + $0xc70] sm:$0xf]
    %v879 = vld [vmem:[#allocation2 + $0xc74] sm:$0xf]
    %v880 = vld [vmem:[#allocation2 + $0xc78] sm:$0xf]
    %v881 = vld [vmem:[#allocation2 + $0xc7c] sm:$0xf]
    %v882 = vld [vmem:[#allocation2 + $0xc80] sm:$0xf]
    %v883 = vld [vmem:[#allocation2 + $0xc84] sm:$0xf]
    %v884 = vld [vmem:[#allocation2 + $0xc88] sm:$0xf]
    %v885 = vld [vmem:[#allocation2 + $0xc8c] sm:$0xf]
    %v886 = vld [vmem:[#allocation2 + $0xc90] sm:$0xf]
    %v887 = vld [vmem:[#allocation2 + $0xc94] sm:$0xf]
    %v888 = vld [vmem:[#allocation2 + $0xc98] sm:$0xf]
    %v889 = vld [vmem:[#allocation2 + $0xc9c] sm:$0xf]
    %v890 = vld [vmem:[#allocation2 + $0xca0] sm:$0xf]
    %v891 = vld [vmem:[#allocation2 + $0xca4] sm:$0xf]
    %v892 = vld [vmem:[#allocation2 + $0xca8] sm:$0xf]
    %v893 = vld [vmem:[#allocation2 + $0xcac] sm:$0xf]
    %v894 = vld [vmem:[#allocation2 + $0xcb0] sm:$0xf]
    %v895 = vld [vmem:[#allocation2 + $0xcb4] sm:$0xf]
    %v896 = vld [vmem:[#allocation2 + $0xcb8] sm:$0xf]
    %v897 = vld [vmem:[#allocation2 + $0xcbc] sm:$0xf]
    %v898 = vld [vmem:[#allocation2 + $0xcc0] sm:$0xf]
    %v899 = vld [vmem:[#allocation2 + $0xcc4] sm:$0xf]
    %v900 = vld [vmem:[#allocation2 + $0xcc8] sm:$0xf]
    %v901 = vld [vmem:[#allocation2 + $0xccc] sm:$0xf]
    %v902 = vld [vmem:[#allocation2 + $0xcd0] sm:$0xf]
    %v903 = vld [vmem:[#allocation2 + $0xcd4] sm:$0xf]
    %v904 = vld [vmem:[#allocation2 + $0xcd8] sm:$0xf]
    %v905 = vld [vmem:[#allocation2 + $0xcdc] sm:$0xf]
    %v906 = vld [vmem:[#allocation2 + $0xce0] sm:$0xf]
    %v907 = vld [vmem:[#allocation2 + $0xce4] sm:$0xf]
    %v908 = vld [vmem:[#allocation2 + $0xce8] sm:$0xf]
    %v909 = vld [vmem:[#allocation2 + $0xcec] sm:$0xf]
    %v910 = vld [vmem:[#allocation2 + $0xcf0] sm:$0xf]
    %v911 = vld [vmem:[#allocation2 + $0xcf4] sm:$0xf]
    %v912 = vld [vmem:[#allocation2 + $0xcf8] sm:$0xf]
    %v913 = vld [vmem:[#allocation2 + $0xcfc] sm:$0xf]
    %v914 = vld [vmem:[#allocation2 + $0xd00] sm:$0xf]
    %v915 = vld [vmem:[#allocation2 + $0xd04] sm:$0xf]
    %v916 = vld [vmem:[#allocation2 + $0xd08] sm:$0xf]
    %v917 = vld [vmem:[#allocation2 + $0xd0c] sm:$0xf]
    %v918 = vld [vmem:[#allocation2 + $0xd10] sm:$0xf]
    %v919 = vld [vmem:[#allocation2 + $0xd14] sm:$0xf]
    %v920 = vld [vmem:[#allocation2 + $0xd18] sm:$0xf]
    %v921 = vld [vmem:[#allocation2 + $0xd1c] sm:$0xf]
    %v922 = vld [vmem:[#allocation2 + $0xd20] sm:$0xf]
    %v923 = vld [vmem:[#allocation2 + $0xd24] sm:$0xf]
    %v924 = vld [vmem:[#allocation2 + $0xd28] sm:$0xf]
    %v925 = vld [vmem:[#allocation2 + $0xd2c] sm:$0xf]
    %v926 = vld [vmem:[#allocation2 + $0xd30] sm:$0xf]
    %v927 = vld [vmem:[#allocation2 + $0xd34] sm:$0xf]
    %v928 = vld [vmem:[#allocation2 + $0xd38] sm:$0xf]
    %v929 = vld [vmem:[#allocation2 + $0xd3c] sm:$0xf]
    %v930 = vld [vmem:[#allocation2 + $0xd40] sm:$0xf]
    %v931 = vld [vmem:[#allocation2 + $0xd44] sm:$0xf]
    %v932 = vld [vmem:[#allocation2 + $0xd48] sm:$0xf]
    %v933 = vld [vmem:[#allocation2 + $0xd4c] sm:$0xf]
    %v934 = vld [vmem:[#allocation2 + $0xd50] sm:$0xf]
    %v935 = vld [vmem:[#allocation2 + $0xd54] sm:$0xf]
    %v936 = vld [vmem:[#allocation2 + $0xd58] sm:$0xf]
    %v937 = vld [vmem:[#allocation2 + $0xd5c] sm:$0xf]
    %v938 = vld [vmem:[#allocation2 + $0xd60] sm:$0xf]
    %v939 = vld [vmem:[#allocation2 + $0xd64] sm:$0xf]
    %v940 = vld [vmem:[#allocation2 + $0xd68] sm:$0xf]
    %v941 = vld [vmem:[#allocation2 + $0xd6c] sm:$0xf]
    %v942 = vld [vmem:[#allocation2 + $0xd70] sm:$0xf]
    %v943 = vld [vmem:[#allocation2 + $0xd74] sm:$0xf]
    %v944 = vld [vmem:[#allocation2 + $0xd78] sm:$0xf]
    %v945 = vld [vmem:[#allocation2 + $0xd7c] sm:$0xf]
    %v946 = vld [vmem:[#allocation2 + $0xd80] sm:$0xf]
    %v947 = vld [vmem:[#allocation2 + $0xd84] sm:$0xf]
    %v948 = vld [vmem:[#allocation2 + $0xd88] sm:$0xf]
    %v949 = vld [vmem:[#allocation2 + $0xd8c] sm:$0xf]
    %v950 = vld [vmem:[#allocation2 + $0xd90] sm:$0xf]
    %v951 = vld [vmem:[#allocation2 + $0xd94] sm:$0xf]
    %v952 = vld [vmem:[#allocation2 + $0xd98] sm:$0xf]
    %v953 = vld [vmem:[#allocation2 + $0xd9c] sm:$0xf]
    %v954 = vld [vmem:[#allocation2 + $0xda0] sm:$0xf]
    %v955 = vld [vmem:[#allocation2 + $0xda4] sm:$0xf]
    %v956 = vld [vmem:[#allocation2 + $0xda8] sm:$0xf]
    %v957 = vld [vmem:[#allocation2 + $0xdac] sm:$0xf]
    %v958 = vld [vmem:[#allocation2 + $0xdb0] sm:$0xf]
    %v959 = vld [vmem:[#allocation2 + $0xdb4] sm:$0xf]
    %v960 = vld [vmem:[#allocation2 + $0xdb8] sm:$0xf]
    %v961 = vld [vmem:[#allocation2 + $0xdbc] sm:$0xf]
    %v962 = vld [vmem:[#allocation2 + $0xdc0] sm:$0xf]
    %v963 = vld [vmem:[#allocation2 + $0xdc4] sm:$0xf]
    %v964 = vld [vmem:[#allocation2 + $0xdc8] sm:$0xf]
    %v965 = vld [vmem:[#allocation2 + $0xdcc] sm:$0xf]
    %v966 = vld [vmem:[#allocation2 + $0xdd0] sm:$0xf]
    %v967 = vld [vmem:[#allocation2 + $0xdd4] sm:$0xf]
    %v968 = vld [vmem:[#allocation2 + $0xdd8] sm:$0xf]
    %v969 = vld [vmem:[#allocation2 + $0xddc] sm:$0xf]
    %v970 = vld [vmem:[#allocation2 + $0xde0] sm:$0xf]
    %v971 = vld [vmem:[#allocation2 + $0xde4] sm:$0xf]
    %v972 = vld [vmem:[#allocation2 + $0xde8] sm:$0xf]
    %v973 = vld [vmem:[#allocation2 + $0xdec] sm:$0xf]
    %v974 = vld [vmem:[#allocation2 + $0xdf0] sm:$0xf]
    %v975 = vld [vmem:[#allocation2 + $0xdf4] sm:$0xf]
    %v976 = vld [vmem:[#allocation2 + $0xdf8] sm:$0xf]
    %v977 = vld [vmem:[#allocation2 + $0xdfc] sm:$0xf]
    %v978 = vld [vmem:[#allocation2 + $0xe00] sm:$0xf]
    %v979 = vld [vmem:[#allocation2 + $0xe04] sm:$0xf]
    %v980 = vld [vmem:[#allocation2 + $0xe08] sm:$0xf]
    %v981 = vld [vmem:[#allocation2 + $0xe0c] sm:$0xf]
    %v982 = vld [vmem:[#allocation2 + $0xe10] sm:$0xf]
    %v983 = vld [vmem:[#allocation2 + $0xe14] sm:$0xf]
    %v984 = vld [vmem:[#allocation2 + $0xe18] sm:$0xf]
    %v985 = vld [vmem:[#allocation2 + $0xe1c] sm:$0xf]
    %v986 = vld [vmem:[#allocation2 + $0xe20] sm:$0xf]
    %v987 = vld [vmem:[#allocation2 + $0xe24] sm:$0xf]
    %v988 = vld [vmem:[#allocation2 + $0xe28] sm:$0xf]
    %v989 = vld [vmem:[#allocation2 + $0xe2c] sm:$0xf]
    %v990 = vld [vmem:[#allocation2 + $0xe30] sm:$0xf]
    %v991 = vld [vmem:[#allocation2 + $0xe34] sm:$0xf]
    %v992 = vld [vmem:[#allocation2 + $0xe38] sm:$0xf]
    %v993 = vld [vmem:[#allocation2 + $0xe3c] sm:$0xf]
    %v994 = vld [vmem:[#allocation2 + $0xe40] sm:$0xf]
    %v995 = vld [vmem:[#allocation2 + $0xe44] sm:$0xf]
    %v996 = vld [vmem:[#allocation2 + $0xe48] sm:$0xf]
    %v997 = vld [vmem:[#allocation2 + $0xe4c] sm:$0xf]
    %v998 = vld [vmem:[#allocation2 + $0xe50] sm:$0xf]
    %v999 = vld [vmem:[#allocation2 + $0xe54] sm:$0xf]
    %v1000 = vld [vmem:[#allocation2 + $0xe58] sm:$0xf]
    %v1001 = vld [vmem:[#allocation2 + $0xe5c] sm:$0xf]
    %v1002 = vld [vmem:[#allocation2 + $0xe60] sm:$0xf]
    %v1003 = vld [vmem:[#allocation2 + $0xe64] sm:$0xf]
    %v1004 = vld [vmem:[#allocation2 + $0xe68] sm:$0xf]
    %v1005 = vld [vmem:[#allocation2 + $0xe6c] sm:$0xf]
    %v1006 = vld [vmem:[#allocation2 + $0xe70] sm:$0xf]
    %v1007 = vld [vmem:[#allocation2 + $0xe74] sm:$0xf]
    %v1008 = vld [vmem:[#allocation2 + $0xe78] sm:$0xf]
    %v1009 = vld [vmem:[#allocation2 + $0xe7c] sm:$0xf]
    %v1010 = vld [vmem:[#allocation2 + $0xe80] sm:$0xf]
    %v1011 = vld [vmem:[#allocation2 + $0xe84] sm:$0xf]
    %v1012 = vld [vmem:[#allocation2 + $0xe88] sm:$0xf]
    %v1013 = vld [vmem:[#allocation2 + $0xe8c] sm:$0xf]
    %v1014 = vld [vmem:[#allocation2 + $0xe90] sm:$0xf]
    %v1015 = vld [vmem:[#allocation2 + $0xe94] sm:$0xf]
    %v1016 = vld [vmem:[#allocation2 + $0xe98] sm:$0xf]
    %v1017 = vld [vmem:[#allocation2 + $0xe9c] sm:$0xf]
    %v1018 = vld [vmem:[#allocation2 + $0xea0] sm:$0xf]
    %v1019 = vld [vmem:[#allocation2 + $0xea4] sm:$0xf]
    %v1020 = vld [vmem:[#allocation2 + $0xea8] sm:$0xf]
    %v1021 = vld [vmem:[#allocation2 + $0xeac] sm:$0xf]
    %v1022 = vld [vmem:[#allocation2 + $0xeb0] sm:$0xf]
    %v1023 = vld [vmem:[#allocation2 + $0xeb4] sm:$0xf]
    %v1024 = vld [vmem:[#allocation2 + $0xeb8] sm:$0xf]
    %v1025 = vld [vmem:[#allocation2 + $0xebc] sm:$0xf]
    %v1026 = vld [vmem:[#allocation2 + $0xec0] sm:$0xf]
    %v1027 = vld [vmem:[#allocation2 + $0xec4] sm:$0xf]
    %v1028 = vld [vmem:[#allocation2 + $0xec8] sm:$0xf]
    %v1029 = vld [vmem:[#allocation2 + $0xecc] sm:$0xf]
    %v1030 = vld [vmem:[#allocation2 + $0xed0] sm:$0xf]
    %v1031 = vld [vmem:[#allocation2 + $0xed4] sm:$0xf]
    %v1032 = vld [vmem:[#allocation2 + $0xed8] sm:$0xf]
    %v1033 = vld [vmem:[#allocation2 + $0xedc] sm:$0xf]
    %v1034 = vld [vmem:[#allocation2 + $0xee0] sm:$0xf]
    %v1035 = vld [vmem:[#allocation2 + $0xee4] sm:$0xf]
    %v1036 = vld [vmem:[#allocation2 + $0xee8] sm:$0xf]
    %v1037 = vld [vmem:[#allocation2 + $0xeec] sm:$0xf]
    %v1038 = vld [vmem:[#allocation2 + $0xef0] sm:$0xf]
    %v1039 = vld [vmem:[#allocation2 + $0xef4] sm:$0xf]
    %v1040 = vld [vmem:[#allocation2 + $0xef8] sm:$0xf]
    %v1041 = vld [vmem:[#allocation2 + $0xefc] sm:$0xf]
    %v1042 = vld [vmem:[#allocation2 + $0xf00] sm:$0xf]
    %v1043 = vld [vmem:[#allocation2 + $0xf04] sm:$0xf]
    %v1044 = vld [vmem:[#allocation2 + $0xf08] sm:$0xf]
    %v1045 = vld [vmem:[#allocation2 + $0xf0c] sm:$0xf]
    %v1046 = vld [vmem:[#allocation2 + $0xf10] sm:$0xf]
    %v1047 = vld [vmem:[#allocation2 + $0xf14] sm:$0xf]
    %v1048 = vld [vmem:[#allocation2 + $0xf18] sm:$0xf]
    %v1049 = vld [vmem:[#allocation2 + $0xf1c] sm:$0xf]
    %v1050 = vld [vmem:[#allocation2 + $0xf20] sm:$0xf]
    %v1051 = vld [vmem:[#allocation2 + $0xf24] sm:$0xf]
    %v1052 = vld [vmem:[#allocation2 + $0xf28] sm:$0xf]
    %v1053 = vld [vmem:[#allocation2 + $0xf2c] sm:$0xf]
    %v1054 = vld [vmem:[#allocation2 + $0xf30] sm:$0xf]
    %v1055 = vld [vmem:[#allocation2 + $0xf34] sm:$0xf]
    %v1056 = vld [vmem:[#allocation2 + $0xf38] sm:$0xf]
    %v1057 = vld [vmem:[#allocation2 + $0xf3c] sm:$0xf]
    %v1058 = vld [vmem:[#allocation2 + $0xf40] sm:$0xf]
    %v1059 = vld [vmem:[#allocation2 + $0xf44] sm:$0xf]
    %v1060 = vld [vmem:[#allocation2 + $0xf48] sm:$0xf]
    %v1061 = vld [vmem:[#allocation2 + $0xf4c] sm:$0xf]
    %v1062 = vld [vmem:[#allocation2 + $0xf50] sm:$0xf]
    %v1063 = vld [vmem:[#allocation2 + $0xf54] sm:$0xf]
    %v1064 = vld [vmem:[#allocation2 + $0xf58] sm:$0xf]
    %v1065 = vld [vmem:[#allocation2 + $0xf5c] sm:$0xf]
    %v1066 = vld [vmem:[#allocation2 + $0xf60] sm:$0xf]
    %v1067 = vld [vmem:[#allocation2 + $0xf64] sm:$0xf]
    %v1068 = vld [vmem:[#allocation2 + $0xf68] sm:$0xf]
    %v1069 = vld [vmem:[#allocation2 + $0xf6c] sm:$0xf]
    %v1070 = vld [vmem:[#allocation2 + $0xf70] sm:$0xf]
    %v1071 = vld [vmem:[#allocation2 + $0xf74] sm:$0xf]
    %v1072 = vld [vmem:[#allocation2 + $0xf78] sm:$0xf]
    %v1073 = vld [vmem:[#allocation2 + $0xf7c] sm:$0xf]
    %v1074 = vld [vmem:[#allocation2 + $0xf80] sm:$0xf]
    %v1075 = vld [vmem:[#allocation2 + $0xf84] sm:$0xf]
    %v1076 = vld [vmem:[#allocation2 + $0xf88] sm:$0xf]
    %v1077 = vld [vmem:[#allocation2 + $0xf8c] sm:$0xf]
    %v1078 = vld [vmem:[#allocation2 + $0xf90] sm:$0xf]
    %v1079 = vld [vmem:[#allocation2 + $0xf94] sm:$0xf]
    %v1080 = vld [vmem:[#allocation2 + $0xf98] sm:$0xf]
    %v1081 = vld [vmem:[#allocation2 + $0xf9c] sm:$0xf]
    %v1082 = vld [vmem:[#allocation2 + $0xfa0] sm:$0xf]
    %v1083 = vld [vmem:[#allocation2 + $0xfa4] sm:$0xf]
    %v1084 = vld [vmem:[#allocation2 + $0xfa8] sm:$0xf]
    %v1085 = vld [vmem:[#allocation2 + $0xfac] sm:$0xf]
    %v1086 = vld [vmem:[#allocation2 + $0xfb0] sm:$0xf]
    %v1087 = vld [vmem:[#allocation2 + $0xfb4] sm:$0xf]
    %v1088 = vld [vmem:[#allocation2 + $0xfb8] sm:$0xf]
    %v1089 = vld [vmem:[#allocation2 + $0xfbc] sm:$0xf]
    %v1090 = vld [vmem:[#allocation2 + $0xfc0] sm:$0xf]
    %v1091 = vld [vmem:[#allocation2 + $0xfc4] sm:$0xf]
    %v1092 = vld [vmem:[#allocation2 + $0xfc8] sm:$0xf]
    %v1093 = vld [vmem:[#allocation2 + $0xfcc] sm:$0xf]
    %v1094 = vld [vmem:[#allocation2 + $0xfd0] sm:$0xf]
    %v1095 = vld [vmem:[#allocation2 + $0xfd4] sm:$0xf]
    %v1096 = vld [vmem:[#allocation2 + $0xfd8] sm:$0xf]
    %v1097 = vld [vmem:[#allocation2 + $0xfdc] sm:$0xf]
    %v1098 = vld [vmem:[#allocation2 + $0xfe0] sm:$0xf]
    %v1099 = vld [vmem:[#allocation2 + $0xfe4] sm:$0xf]
    %v1100 = vld [vmem:[#allocation2 + $0xfe8] sm:$0xf]
    %v1101 = vld [vmem:[#allocation2 + $0xfec] sm:$0xf]
    %v1102 = vld [vmem:[#allocation2 + $0xff0] sm:$0xf]
    %v1103 = vld [vmem:[#allocation2 + $0xff4] sm:$0xf]
    %v1104 = vld [vmem:[#allocation2 + $0xff8] sm:$0xf]
    %v1105 = vld [vmem:[#allocation2 + $0xffc] sm:$0xf]
    %v1106 = vld [vmem:[#allocation2 + $0x1000] sm:$0xf]
    %v1107 = vld [vmem:[#allocation2 + $0x1004] sm:$0xf]
    %v1108 = vld [vmem:[#allocation2 + $0x1008] sm:$0xf]
    %v1109 = vld [vmem:[#allocation2 + $0x100c] sm:$0xf]
    %v1110 = vld [vmem:[#allocation2 + $0x1010] sm:$0xf]
    %v1111 = vld [vmem:[#allocation2 + $0x1014] sm:$0xf]
    %v1112 = vld [vmem:[#allocation2 + $0x1018] sm:$0xf]
    %v1113 = vld [vmem:[#allocation2 + $0x101c] sm:$0xf]
    %v1114 = vld [vmem:[#allocation2 + $0x1020] sm:$0xf]
    %v1115 = vld [vmem:[#allocation2 + $0x1024] sm:$0xf]
    %v1116 = vld [vmem:[#allocation2 + $0x1028] sm:$0xf]
    %v1117 = vld [vmem:[#allocation2 + $0x102c] sm:$0xf]
    %v1118 = vld [vmem:[#allocation2 + $0x1030] sm:$0xf]
    %v1119 = vld [vmem:[#allocation2 + $0x1034] sm:$0xf]
    %v1120 = vld [vmem:[#allocation2 + $0x1038] sm:$0xf]
    %v1121 = vld [vmem:[#allocation2 + $0x103c] sm:$0xf]
    %v1122 = vld [vmem:[#allocation2 + $0x1040] sm:$0xf]
    %v1123 = vld [vmem:[#allocation2 + $0x1044] sm:$0xf]
    %v1124 = vld [vmem:[#allocation2 + $0x1048] sm:$0xf]
    %v1125 = vld [vmem:[#allocation2 + $0x104c] sm:$0xf]
    %v1126 = vld [vmem:[#allocation2 + $0x1050] sm:$0xf]
    %v1127 = vld [vmem:[#allocation2 + $0x1054] sm:$0xf]
    %v1128 = vld [vmem:[#allocation2 + $0x1058] sm:$0xf]
    %v1129 = vld [vmem:[#allocation2 + $0x105c] sm:$0xf]
    %v1130 = vld [vmem:[#allocation2 + $0x1060] sm:$0xf]
    %v1131 = vld [vmem:[#allocation2 + $0x1064] sm:$0xf]
    %v1132 = vld [vmem:[#allocation2 + $0x1068] sm:$0xf]
    %v1133 = vld [vmem:[#allocation2 + $0x106c] sm:$0xf]
    %v1134 = vld [vmem:[#allocation2 + $0x1070] sm:$0xf]
    %v1135 = vld [vmem:[#allocation2 + $0x1074] sm:$0xf]
    %v1136 = vld [vmem:[#allocation2 + $0x1078] sm:$0xf]
    %v1137 = vld [vmem:[#allocation2 + $0x107c] sm:$0xf]
    %v1138 = vld [vmem:[#allocation2 + $0x1080] sm:$0xf]
    %v1139 = vld [vmem:[#allocation2 + $0x1084] sm:$0xf]
    %v1140 = vld [vmem:[#allocation2 + $0x1088] sm:$0xf]
    %v1141 = vld [vmem:[#allocation2 + $0x108c] sm:$0xf]
    %v1142 = vld [vmem:[#allocation2 + $0x1090] sm:$0xf]
    %v1143 = vld [vmem:[#allocation2 + $0x1094] sm:$0xf]
    %v1144 = vld [vmem:[#allocation2 + $0x1098] sm:$0xf]
    %v1145 = vld [vmem:[#allocation2 + $0x109c] sm:$0xf]
    %v1146 = vld [vmem:[#allocation2 + $0x10a0] sm:$0xf]
    %v1147 = vld [vmem:[#allocation2 + $0x10a4] sm:$0xf]
    %v1148 = vld [vmem:[#allocation2 + $0x10a8] sm:$0xf]
    %v1149 = vld [vmem:[#allocation2 + $0x10ac] sm:$0xf]
    %v1150 = vld [vmem:[#allocation2 + $0x10b0] sm:$0xf]
    %v1151 = vld [vmem:[#allocation2 + $0x10b4] sm:$0xf]
    %v1152 = vld [vmem:[#allocation2 + $0x10b8] sm:$0xf]
    %v1153 = vld [vmem:[#allocation2 + $0x10bc] sm:$0xf]
    %v1154 = vld [vmem:[#allocation2 + $0x10c0] sm:$0xf]
    %v1155 = vld [vmem:[#allocation2 + $0x10c4] sm:$0xf]
    %v1156 = vld [vmem:[#allocation2 + $0x10c8] sm:$0xf]
    %v1157 = vld [vmem:[#allocation2 + $0x10cc] sm:$0xf]
    %v1158 = vld [vmem:[#allocation2 + $0x10d0] sm:$0xf]
    %v1159 = vld [vmem:[#allocation2 + $0x10d4] sm:$0xf]
    %v1160 = vld [vmem:[#allocation2 + $0x10d8] sm:$0xf]
    %v1161 = vld [vmem:[#allocation2 + $0x10dc] sm:$0xf]
    %v1162 = vld [vmem:[#allocation2 + $0x10e0] sm:$0xf]
    %v1163 = vld [vmem:[#allocation2 + $0x10e4] sm:$0xf]
    %v1164 = vld [vmem:[#allocation2 + $0x10e8] sm:$0xf]
    %v1165 = vld [vmem:[#allocation2 + $0x10ec] sm:$0xf]
    %v1166 = vld [vmem:[#allocation2 + $0x10f0] sm:$0xf]
    %v1167 = vld [vmem:[#allocation2 + $0x10f4] sm:$0xf]
    %v1168 = vld [vmem:[#allocation2 + $0x10f8] sm:$0xf]
    %v1169 = vld [vmem:[#allocation2 + $0x10fc] sm:$0xf]
    %v1170 = vld [vmem:[#allocation2 + $0x1100] sm:$0xf]
    %v1171 = vld [vmem:[#allocation2 + $0x1104] sm:$0xf]
    %v1172 = vld [vmem:[#allocation2 + $0x1108] sm:$0xf]
    %v1173 = vld [vmem:[#allocation2 + $0x110c] sm:$0xf]
    %v1174 = vld [vmem:[#allocation2 + $0x1110] sm:$0xf]
    %v1175 = vld [vmem:[#allocation2 + $0x1114] sm:$0xf]
    %v1176 = vld [vmem:[#allocation2 + $0x1118] sm:$0xf]
    %v1177 = vld [vmem:[#allocation2 + $0x111c] sm:$0xf]
    %v1178 = vld [vmem:[#allocation2 + $0x1120] sm:$0xf]
    %v1179 = vld [vmem:[#allocation2 + $0x1124] sm:$0xf]
    %v1180 = vld [vmem:[#allocation2 + $0x1128] sm:$0xf]
    %v1181 = vld [vmem:[#allocation2 + $0x112c] sm:$0xf]
    %v1182 = vld [vmem:[#allocation2 + $0x1130] sm:$0xf]
    %v1183 = vld [vmem:[#allocation2 + $0x1134] sm:$0xf]
    %v1184 = vld [vmem:[#allocation2 + $0x1138] sm:$0xf]
    %v1185 = vld [vmem:[#allocation2 + $0x113c] sm:$0xf]
    %v1186 = vld [vmem:[#allocation2 + $0x1140] sm:$0xf]
    %v1187 = vld [vmem:[#allocation2 + $0x1144] sm:$0xf]
    %v1188 = vld [vmem:[#allocation2 + $0x1148] sm:$0xf]
    %v1189 = vld [vmem:[#allocation2 + $0x114c] sm:$0xf]
    %v1190 = vld [vmem:[#allocation2 + $0x1150] sm:$0xf]
    %v1191 = vld [vmem:[#allocation2 + $0x1154] sm:$0xf]
    %v1192 = vld [vmem:[#allocation2 + $0x1158] sm:$0xf]
    %v1193 = vld [vmem:[#allocation2 + $0x115c] sm:$0xf]
    %v1194 = vld [vmem:[#allocation2 + $0x1160] sm:$0xf]
    %v1195 = vld [vmem:[#allocation2 + $0x1164] sm:$0xf]
    %v1196 = vld [vmem:[#allocation2 + $0x1168] sm:$0xf]
    %v1197 = vld [vmem:[#allocation2 + $0x116c] sm:$0xf]
    %v1198 = vld [vmem:[#allocation2 + $0x1170] sm:$0xf]
    %v1199 = vld [vmem:[#allocation2 + $0x1174] sm:$0xf]
    %v1200 = vld [vmem:[#allocation2 + $0x1178] sm:$0xf]
    %v1201 = vld [vmem:[#allocation2 + $0x117c] sm:$0xf]
    %v1202 = vld [vmem:[#allocation2 + $0x1180] sm:$0xf]
    %v1203 = vld [vmem:[#allocation2 + $0x1184] sm:$0xf]
    %v1204 = vld [vmem:[#allocation2 + $0x1188] sm:$0xf]
    %v1205 = vld [vmem:[#allocation2 + $0x118c] sm:$0xf]
    %v1206 = vld [vmem:[#allocation2 + $0x1190] sm:$0xf]
    %v1207 = vld [vmem:[#allocation2 + $0x1194] sm:$0xf]
    %v1208 = vld [vmem:[#allocation2 + $0x1198] sm:$0xf]
    %v1209 = vld [vmem:[#allocation2 + $0x119c] sm:$0xf]
    %v1210 = vld [vmem:[#allocation2 + $0x11a0] sm:$0xf]
    %v1211 = vld [vmem:[#allocation2 + $0x11a4] sm:$0xf]
    %v1212 = vld [vmem:[#allocation2 + $0x11a8] sm:$0xf]
    %v1213 = vld [vmem:[#allocation2 + $0x11ac] sm:$0xf]
    %v1214 = vld [vmem:[#allocation2 + $0x11b0] sm:$0xf]
    %v1215 = vld [vmem:[#allocation2 + $0x11b4] sm:$0xf]
    %v1216 = vld [vmem:[#allocation2 + $0x11b8] sm:$0xf]
    %v1217 = vld [vmem:[#allocation2 + $0x11bc] sm:$0xf]
    %v1218 = vld [vmem:[#allocation2 + $0x11c0] sm:$0xf]
    %v1219 = vld [vmem:[#allocation2 + $0x11c4] sm:$0xf]
    %v1220 = vld [vmem:[#allocation2 + $0x11c8] sm:$0xf]
    %v1221 = vld [vmem:[#allocation2 + $0x11cc] sm:$0xf]
    %v1222 = vld [vmem:[#allocation2 + $0x11d0] sm:$0xf]
    %v1223 = vld [vmem:[#allocation2 + $0x11d4] sm:$0xf]
    %v1224 = vld [vmem:[#allocation2 + $0x11d8] sm:$0xf]
    %v1225 = vld [vmem:[#allocation2 + $0x11dc] sm:$0xf]
    %v1226 = vld [vmem:[#allocation2 + $0x11e0] sm:$0xf]
    %v1227 = vld [vmem:[#allocation2 + $0x11e4] sm:$0xf]
    %v1228 = vld [vmem:[#allocation2 + $0x11e8] sm:$0xf]
    %v1229 = vld [vmem:[#allocation2 + $0x11ec] sm:$0xf]
    %v1230 = vld [vmem:[#allocation2 + $0x11f0] sm:$0xf]
    %v1231 = vld [vmem:[#allocation2 + $0x11f4] sm:$0xf]
    %v1232 = vld [vmem:[#allocation2 + $0x11f8] sm:$0xf]
    %v1233 = vld [vmem:[#allocation2 + $0x11fc] sm:$0xf]
    %v1234 = vld [vmem:[#allocation5] sm:$0x1]
    %v1236 = vlaneseq
    %v1237 = vshrl.u32 %v1236, 7
    %v1238 = vsub.s32 0, %v1237
    %v1239 = vrot.slane %v1234, %v1238
    %v1250 = vcombine.high %v73, %v73
    %v1252 = vunpack.c.l.s4 1966171168
    %v1253 = vunpack.c.0.s8 %v1252
    %v1254 = vlaneseq
    %v1255 = vshrl.u32 %v1254, 7
    %v1256 = vsub.s32 %v1253, %v1255
    %v1257 = vrot.slane %v73, %v1256
    %v1259 = vunpack.c.l.s4 1966171168
    %v1260 = vunpack.c.0.s8 %v1259
    %v1261 = vlaneseq
    %v1262 = vshrl.u32 %v1261, 7
    %v1263 = vsub.s32 %v1260, %v1262
    %v1264 = vrot.slane %v1250, %v1263
    %v1265 = vcombine.high %v1257, %v1257
    %v1266 = vcombine.high %v1264, %v1264
    %v1268 = vunpack.c.l.s4 1966171168
    %v1269 = vunpack.c.0.s8 %v1268
    %v1270 = vlaneseq
    %v1271 = vshrl.u32 %v1270, 7
    %v1272 = vsub.s32 %v1269, %v1271
    %v1273 = vrot.slane %v1257, %v1272
    %v1275 = vunpack.c.l.s4 1966171168
    %v1276 = vunpack.c.0.s8 %v1275
    %v1277 = vlaneseq
    %v1278 = vshrl.u32 %v1277, 7
    %v1279 = vsub.s32 %v1276, %v1278
    %v1280 = vrot.slane %v1264, %v1279
    %v1282 = vunpack.c.l.s4 1966171168
    %v1283 = vunpack.c.0.s8 %v1282
    %v1284 = vlaneseq
    %v1285 = vshrl.u32 %v1284, 7
    %v1286 = vsub.s32 %v1283, %v1285
    %v1287 = vrot.slane %v1265, %v1286
    %v1289 = vunpack.c.l.s4 1966171168
    %v1290 = vunpack.c.0.s8 %v1289
    %v1291 = vlaneseq
    %v1292 = vshrl.u32 %v1291, 7
    %v1293 = vsub.s32 %v1290, %v1292
    %v1294 = vrot.slane %v1266, %v1293
    %v1295 = vcombine.high %v1273, %v1273
    %v1296 = vcombine.high %v1280, %v1280
    %v1297 = vcombine.high %v1287, %v1287
    %v1298 = vcombine.high %v1294, %v1294
    %v1299 = vcombine.high %v74, %v74
    %v1301 = vunpack.c.l.s4 1966171168
    %v1302 = vunpack.c.0.s8 %v1301
    %v1303 = vlaneseq
    %v1304 = vshrl.u32 %v1303, 7
    %v1305 = vsub.s32 %v1302, %v1304
    %v1306 = vrot.slane %v74, %v1305
    %v1308 = vunpack.c.l.s4 1966171168
    %v1309 = vunpack.c.0.s8 %v1308
    %v1310 = vlaneseq
    %v1311 = vshrl.u32 %v1310, 7
    %v1312 = vsub.s32 %v1309, %v1311
    %v1313 = vrot.slane %v1299, %v1312
    %v1314 = vcombine.high %v1306, %v1306
    %v1315 = vcombine.high %v1313, %v1313
    %v1317 = vunpack.c.l.s4 1966171168
    %v1318 = vunpack.c.0.s8 %v1317
    %v1319 = vlaneseq
    %v1320 = vshrl.u32 %v1319, 7
    %v1321 = vsub.s32 %v1318, %v1320
    %v1322 = vrot.slane %v1306, %v1321
    %v1324 = vunpack.c.l.s4 1966171168
    %v1325 = vunpack.c.0.s8 %v1324
    %v1326 = vlaneseq
    %v1327 = vshrl.u32 %v1326, 7
    %v1328 = vsub.s32 %v1325, %v1327
    %v1329 = vrot.slane %v1313, %v1328
    %v1331 = vunpack.c.l.s4 1966171168
    %v1332 = vunpack.c.0.s8 %v1331
    %v1333 = vlaneseq
    %v1334 = vshrl.u32 %v1333, 7
    %v1335 = vsub.s32 %v1332, %v1334
    %v1336 = vrot.slane %v1314, %v1335
    %v1338 = vunpack.c.l.s4 1966171168
    %v1339 = vunpack.c.0.s8 %v1338
    %v1340 = vlaneseq
    %v1341 = vshrl.u32 %v1340, 7
    %v1342 = vsub.s32 %v1339, %v1341
    %v1343 = vrot.slane %v1315, %v1342
    %v1344 = vcombine.high %v1322, %v1322
    %v1345 = vcombine.high %v1329, %v1329
    %v1346 = vcombine.high %v1336, %v1336
    %v1347 = vcombine.high %v1343, %v1343
    %v1348 = vcombine.high %v75, %v75
    %v1350 = vunpack.c.l.s4 1966171168
    %v1351 = vunpack.c.0.s8 %v1350
    %v1352 = vlaneseq
    %v1353 = vshrl.u32 %v1352, 7
    %v1354 = vsub.s32 %v1351, %v1353
    %v1355 = vrot.slane %v75, %v1354
    %v1357 = vunpack.c.l.s4 1966171168
    %v1358 = vunpack.c.0.s8 %v1357
    %v1359 = vlaneseq
    %v1360 = vshrl.u32 %v1359, 7
    %v1361 = vsub.s32 %v1358, %v1360
    %v1362 = vrot.slane %v1348, %v1361
    %v1363 = vcombine.high %v1355, %v1355
    %v1364 = vcombine.high %v1362, %v1362
    %v1366 = vunpack.c.l.s4 1966171168
    %v1367 = vunpack.c.0.s8 %v1366
    %v1368 = vlaneseq
    %v1369 = vshrl.u32 %v1368, 7
    %v1370 = vsub.s32 %v1367, %v1369
    %v1371 = vrot.slane %v1355, %v1370
    %v1373 = vunpack.c.l.s4 1966171168
    %v1374 = vunpack.c.0.s8 %v1373
    %v1375 = vlaneseq
    %v1376 = vshrl.u32 %v1375, 7
    %v1377 = vsub.s32 %v1374, %v1376
    %v1378 = vrot.slane %v1362, %v1377
    %v1380 = vunpack.c.l.s4 1966171168
    %v1381 = vunpack.c.0.s8 %v1380
    %v1382 = vlaneseq
    %v1383 = vshrl.u32 %v1382, 7
    %v1384 = vsub.s32 %v1381, %v1383
    %v1385 = vrot.slane %v1363, %v1384
    %v1387 = vunpack.c.l.s4 1966171168
    %v1388 = vunpack.c.0.s8 %v1387
    %v1389 = vlaneseq
    %v1390 = vshrl.u32 %v1389, 7
    %v1391 = vsub.s32 %v1388, %v1390
    %v1392 = vrot.slane %v1364, %v1391
    %v1393 = vcombine.high %v1371, %v1371
    %v1394 = vcombine.high %v1378, %v1378
    %v1395 = vcombine.high %v1385, %v1385
    %v1396 = vcombine.high %v1392, %v1392
    %v1397 = vcombine.high %v76, %v76
    %v1399 = vunpack.c.l.s4 1966171168
    %v1400 = vunpack.c.0.s8 %v1399
    %v1401 = vlaneseq
    %v1402 = vshrl.u32 %v1401, 7
    %v1403 = vsub.s32 %v1400, %v1402
    %v1404 = vrot.slane %v76, %v1403
    %v1406 = vunpack.c.l.s4 1966171168
    %v1407 = vunpack.c.0.s8 %v1406
    %v1408 = vlaneseq
    %v1409 = vshrl.u32 %v1408, 7
    %v1410 = vsub.s32 %v1407, %v1409
    %v1411 = vrot.slane %v1397, %v1410
    %v1412 = vcombine.high %v1404, %v1404
    %v1413 = vcombine.high %v1411, %v1411
    %v1415 = vunpack.c.l.s4 1966171168
    %v1416 = vunpack.c.0.s8 %v1415
    %v1417 = vlaneseq
    %v1418 = vshrl.u32 %v1417, 7
    %v1419 = vsub.s32 %v1416, %v1418
    %v1420 = vrot.slane %v1404, %v1419
    %v1422 = vunpack.c.l.s4 1966171168
    %v1423 = vunpack.c.0.s8 %v1422
    %v1424 = vlaneseq
    %v1425 = vshrl.u32 %v1424, 7
    %v1426 = vsub.s32 %v1423, %v1425
    %v1427 = vrot.slane %v1411, %v1426
    %v1429 = vunpack.c.l.s4 1966171168
    %v1430 = vunpack.c.0.s8 %v1429
    %v1431 = vlaneseq
    %v1432 = vshrl.u32 %v1431, 7
    %v1433 = vsub.s32 %v1430, %v1432
    %v1434 = vrot.slane %v1412, %v1433
    %v1436 = vunpack.c.l.s4 1966171168
    %v1437 = vunpack.c.0.s8 %v1436
    %v1438 = vlaneseq
    %v1439 = vshrl.u32 %v1438, 7
    %v1440 = vsub.s32 %v1437, %v1439
    %v1441 = vrot.slane %v1413, %v1440
    %v1442 = vcombine.high %v1420, %v1420
    %v1443 = vcombine.high %v1427, %v1427
    %v1444 = vcombine.high %v1434, %v1434
    %v1445 = vcombine.high %v1441, %v1441
    %v1446 = vcombine.high %v77, %v77
    %v1448 = vunpack.c.l.s4 1966171168
    %v1449 = vunpack.c.0.s8 %v1448
    %v1450 = vlaneseq
    %v1451 = vshrl.u32 %v1450, 7
    %v1452 = vsub.s32 %v1449, %v1451
    %v1453 = vrot.slane %v77, %v1452
    %v1455 = vunpack.c.l.s4 1966171168
    %v1456 = vunpack.c.0.s8 %v1455
    %v1457 = vlaneseq
    %v1458 = vshrl.u32 %v1457, 7
    %v1459 = vsub.s32 %v1456, %v1458
    %v1460 = vrot.slane %v1446, %v1459
    %v1461 = vcombine.high %v1453, %v1453
    %v1462 = vcombine.high %v1460, %v1460
    %v1464 = vunpack.c.l.s4 1966171168
    %v1465 = vunpack.c.0.s8 %v1464
    %v1466 = vlaneseq
    %v1467 = vshrl.u32 %v1466, 7
    %v1468 = vsub.s32 %v1465, %v1467
    %v1469 = vrot.slane %v1453, %v1468
    %v1471 = vunpack.c.l.s4 1966171168
    %v1472 = vunpack.c.0.s8 %v1471
    %v1473 = vlaneseq
    %v1474 = vshrl.u32 %v1473, 7
    %v1475 = vsub.s32 %v1472, %v1474
    %v1476 = vrot.slane %v1460, %v1475
    %v1478 = vunpack.c.l.s4 1966171168
    %v1479 = vunpack.c.0.s8 %v1478
    %v1480 = vlaneseq
    %v1481 = vshrl.u32 %v1480, 7
    %v1482 = vsub.s32 %v1479, %v1481
    %v1483 = vrot.slane %v1461, %v1482
    %v1485 = vunpack.c.l.s4 1966171168
    %v1486 = vunpack.c.0.s8 %v1485
    %v1487 = vlaneseq
    %v1488 = vshrl.u32 %v1487, 7
    %v1489 = vsub.s32 %v1486, %v1488
    %v1490 = vrot.slane %v1462, %v1489
    %v1491 = vcombine.high %v1469, %v1469
    %v1492 = vcombine.high %v1476, %v1476
    %v1493 = vcombine.high %v1483, %v1483
    %v1494 = vcombine.high %v1490, %v1490
    %v1495 = vcombine.high %v78, %v78
    %v1497 = vunpack.c.l.s4 1966171168
    %v1498 = vunpack.c.0.s8 %v1497
    %v1499 = vlaneseq
    %v1500 = vshrl.u32 %v1499, 7
    %v1501 = vsub.s32 %v1498, %v1500
    %v1502 = vrot.slane %v78, %v1501
    %v1504 = vunpack.c.l.s4 1966171168
    %v1505 = vunpack.c.0.s8 %v1504
    %v1506 = vlaneseq
    %v1507 = vshrl.u32 %v1506, 7
    %v1508 = vsub.s32 %v1505, %v1507
    %v1509 = vrot.slane %v1495, %v1508
    %v1510 = vcombine.high %v1502, %v1502
    %v1511 = vcombine.high %v1509, %v1509
    %v1513 = vunpack.c.l.s4 1966171168
    %v1514 = vunpack.c.0.s8 %v1513
    %v1515 = vlaneseq
    %v1516 = vshrl.u32 %v1515, 7
    %v1517 = vsub.s32 %v1514, %v1516
    %v1518 = vrot.slane %v1502, %v1517
    %v1520 = vunpack.c.l.s4 1966171168
    %v1521 = vunpack.c.0.s8 %v1520
    %v1522 = vlaneseq
    %v1523 = vshrl.u32 %v1522, 7
    %v1524 = vsub.s32 %v1521, %v1523
    %v1525 = vrot.slane %v1509, %v1524
    %v1527 = vunpack.c.l.s4 1966171168
    %v1528 = vunpack.c.0.s8 %v1527
    %v1529 = vlaneseq
    %v1530 = vshrl.u32 %v1529, 7
    %v1531 = vsub.s32 %v1528, %v1530
    %v1532 = vrot.slane %v1510, %v1531
    %v1534 = vunpack.c.l.s4 1966171168
    %v1535 = vunpack.c.0.s8 %v1534
    %v1536 = vlaneseq
    %v1537 = vshrl.u32 %v1536, 7
    %v1538 = vsub.s32 %v1535, %v1537
    %v1539 = vrot.slane %v1511, %v1538
    %v1540 = vcombine.high %v1518, %v1518
    %v1541 = vcombine.high %v1525, %v1525
    %v1542 = vcombine.high %v1532, %v1532
    %v1543 = vcombine.high %v1539, %v1539
    %v1544 = vcombine.high %v79, %v79
    %v1546 = vunpack.c.l.s4 1966171168
    %v1547 = vunpack.c.0.s8 %v1546
    %v1548 = vlaneseq
    %v1549 = vshrl.u32 %v1548, 7
    %v1550 = vsub.s32 %v1547, %v1549
    %v1551 = vrot.slane %v79, %v1550
    %v1553 = vunpack.c.l.s4 1966171168
    %v1554 = vunpack.c.0.s8 %v1553
    %v1555 = vlaneseq
    %v1556 = vshrl.u32 %v1555, 7
    %v1557 = vsub.s32 %v1554, %v1556
    %v1558 = vrot.slane %v1544, %v1557
    %v1559 = vcombine.high %v1551, %v1551
    %v1560 = vcombine.high %v1558, %v1558
    %v1562 = vunpack.c.l.s4 1966171168
    %v1563 = vunpack.c.0.s8 %v1562
    %v1564 = vlaneseq
    %v1565 = vshrl.u32 %v1564, 7
    %v1566 = vsub.s32 %v1563, %v1565
    %v1567 = vrot.slane %v1551, %v1566
    %v1569 = vunpack.c.l.s4 1966171168
    %v1570 = vunpack.c.0.s8 %v1569
    %v1571 = vlaneseq
    %v1572 = vshrl.u32 %v1571, 7
    %v1573 = vsub.s32 %v1570, %v1572
    %v1574 = vrot.slane %v1558, %v1573
    %v1576 = vunpack.c.l.s4 1966171168
    %v1577 = vunpack.c.0.s8 %v1576
    %v1578 = vlaneseq
    %v1579 = vshrl.u32 %v1578, 7
    %v1580 = vsub.s32 %v1577, %v1579
    %v1581 = vrot.slane %v1559, %v1580
    %v1583 = vunpack.c.l.s4 1966171168
    %v1584 = vunpack.c.0.s8 %v1583
    %v1585 = vlaneseq
    %v1586 = vshrl.u32 %v1585, 7
    %v1587 = vsub.s32 %v1584, %v1586
    %v1588 = vrot.slane %v1560, %v1587
    %v1589 = vcombine.high %v1567, %v1567
    %v1590 = vcombine.high %v1574, %v1574
    %v1591 = vcombine.high %v1581, %v1581
    %v1592 = vcombine.high %v1588, %v1588
    %v1593 = vcombine.high %v80, %v80
    %v1595 = vunpack.c.l.s4 1966171168
    %v1596 = vunpack.c.0.s8 %v1595
    %v1597 = vlaneseq
    %v1598 = vshrl.u32 %v1597, 7
    %v1599 = vsub.s32 %v1596, %v1598
    %v1600 = vrot.slane %v80, %v1599
    %v1602 = vunpack.c.l.s4 1966171168
    %v1603 = vunpack.c.0.s8 %v1602
    %v1604 = vlaneseq
    %v1605 = vshrl.u32 %v1604, 7
    %v1606 = vsub.s32 %v1603, %v1605
    %v1607 = vrot.slane %v1593, %v1606
    %v1608 = vcombine.high %v1600, %v1600
    %v1609 = vcombine.high %v1607, %v1607
    %v1611 = vunpack.c.l.s4 1966171168
    %v1612 = vunpack.c.0.s8 %v1611
    %v1613 = vlaneseq
    %v1614 = vshrl.u32 %v1613, 7
    %v1615 = vsub.s32 %v1612, %v1614
    %v1616 = vrot.slane %v1600, %v1615
    %v1618 = vunpack.c.l.s4 1966171168
    %v1619 = vunpack.c.0.s8 %v1618
    %v1620 = vlaneseq
    %v1621 = vshrl.u32 %v1620, 7
    %v1622 = vsub.s32 %v1619, %v1621
    %v1623 = vrot.slane %v1607, %v1622
    %v1625 = vunpack.c.l.s4 1966171168
    %v1626 = vunpack.c.0.s8 %v1625
    %v1627 = vlaneseq
    %v1628 = vshrl.u32 %v1627, 7
    %v1629 = vsub.s32 %v1626, %v1628
    %v1630 = vrot.slane %v1608, %v1629
    %v1632 = vunpack.c.l.s4 1966171168
    %v1633 = vunpack.c.0.s8 %v1632
    %v1634 = vlaneseq
    %v1635 = vshrl.u32 %v1634, 7
    %v1636 = vsub.s32 %v1633, %v1635
    %v1637 = vrot.slane %v1609, %v1636
    %v1638 = vcombine.high %v1616, %v1616
    %v1639 = vcombine.high %v1623, %v1623
    %v1640 = vcombine.high %v1630, %v1630
    %v1641 = vcombine.high %v1637, %v1637
    %v1642 = vcombine.high %v81, %v81
    %v1644 = vunpack.c.l.s4 1966171168
    %v1645 = vunpack.c.0.s8 %v1644
    %v1646 = vlaneseq
    %v1647 = vshrl.u32 %v1646, 7
    %v1648 = vsub.s32 %v1645, %v1647
    %v1649 = vrot.slane %v81, %v1648
    %v1651 = vunpack.c.l.s4 1966171168
    %v1652 = vunpack.c.0.s8 %v1651
    %v1653 = vlaneseq
    %v1654 = vshrl.u32 %v1653, 7
    %v1655 = vsub.s32 %v1652, %v1654
    %v1656 = vrot.slane %v1642, %v1655
    %v1657 = vcombine.high %v1649, %v1649
    %v1658 = vcombine.high %v1656, %v1656
    %v1660 = vunpack.c.l.s4 1966171168
    %v1661 = vunpack.c.0.s8 %v1660
    %v1662 = vlaneseq
    %v1663 = vshrl.u32 %v1662, 7
    %v1664 = vsub.s32 %v1661, %v1663
    %v1665 = vrot.slane %v1649, %v1664
    %v1667 = vunpack.c.l.s4 1966171168
    %v1668 = vunpack.c.0.s8 %v1667
    %v1669 = vlaneseq
    %v1670 = vshrl.u32 %v1669, 7
    %v1671 = vsub.s32 %v1668, %v1670
    %v1672 = vrot.slane %v1656, %v1671
    %v1674 = vunpack.c.l.s4 1966171168
    %v1675 = vunpack.c.0.s8 %v1674
    %v1676 = vlaneseq
    %v1677 = vshrl.u32 %v1676, 7
    %v1678 = vsub.s32 %v1675, %v1677
    %v1679 = vrot.slane %v1657, %v1678
    %v1681 = vunpack.c.l.s4 1966171168
    %v1682 = vunpack.c.0.s8 %v1681
    %v1683 = vlaneseq
    %v1684 = vshrl.u32 %v1683, 7
    %v1685 = vsub.s32 %v1682, %v1684
    %v1686 = vrot.slane %v1658, %v1685
    %v1687 = vcombine.high %v1665, %v1665
    %v1688 = vcombine.high %v1672, %v1672
    %v1689 = vcombine.high %v1679, %v1679
    %v1690 = vcombine.high %v1686, %v1686
    %v2915 = vunpack.c.l.b16 %v82
    %v2916 = vunpack.c.l.b16 %v83
    %v2917 = vunpack.c.l.b16 %v84
    %v2918 = vunpack.c.l.b16 %v85
    %v2919 = vunpack.c.l.b16 %v86
    %v2920 = vunpack.c.l.b16 %v87
    %v2921 = vunpack.c.l.b16 %v88
    %v2922 = vunpack.c.l.b16 %v89
    %v2923 = vunpack.c.l.b16 %v90
    %v2924 = vunpack.c.l.b16 %v91
    %v2925 = vunpack.c.l.b16 %v92
    %v2926 = vunpack.c.l.b16 %v93
    %v2927 = vunpack.c.l.b16 %v94
    %v2928 = vunpack.c.l.b16 %v95
    %v2929 = vunpack.c.l.b16 %v96
    %v2930 = vunpack.c.l.b16 %v97
    %v2931 = vunpack.c.l.b16 %v98
    %v2932 = vunpack.c.l.b16 %v99
    %v2933 = vunpack.c.l.b16 %v100
    %v2934 = vunpack.c.l.b16 %v101
    %v2935 = vunpack.c.l.b16 %v102
    %v2936 = vunpack.c.l.b16 %v103
    %v2937 = vunpack.c.l.b16 %v104
    %v2938 = vunpack.c.l.b16 %v105
    %v2939 = vunpack.c.l.b16 %v106
    %v2940 = vunpack.c.l.b16 %v107
    %v2941 = vunpack.c.l.b16 %v108
    %v2942 = vunpack.c.l.b16 %v109
    %v2943 = vunpack.c.l.b16 %v110
    %v2944 = vunpack.c.l.b16 %v111
    %v2945 = vunpack.c.l.b16 %v112
    %v2946 = vunpack.c.l.b16 %v113
    %v2947 = vunpack.c.l.b16 %v114
    %v2948 = vunpack.c.l.b16 %v115
    %v2949 = vunpack.c.l.b16 %v116
    %v2950 = vunpack.c.l.b16 %v117
    %v2951 = vunpack.c.l.b16 %v118
    %v2952 = vunpack.c.l.b16 %v119
    %v2953 = vunpack.c.l.b16 %v120
    %v2954 = vunpack.c.l.b16 %v121
    %v2955 = vunpack.c.l.b16 %v122
    %v2956 = vunpack.c.l.b16 %v123
    %v2957 = vunpack.c.l.b16 %v124
    %v2958 = vunpack.c.l.b16 %v125
    %v2959 = vunpack.c.l.b16 %v126
    %v2960 = vunpack.c.l.b16 %v127
    %v2961 = vunpack.c.l.b16 %v128
    %v2962 = vunpack.c.l.b16 %v129
    %v2963 = vunpack.c.l.b16 %v130
    %v2964 = vunpack.c.l.b16 %v131
    %v2965 = vunpack.c.l.b16 %v132
    %v2966 = vunpack.c.l.b16 %v133
    %v2967 = vunpack.c.l.b16 %v134
    %v2968 = vunpack.c.l.b16 %v135
    %v2969 = vunpack.c.l.b16 %v136
    %v2970 = vunpack.c.l.b16 %v137
    %v2971 = vunpack.c.l.b16 %v138
    %v2972 = vunpack.c.l.b16 %v139
    %v2973 = vunpack.c.l.b16 %v140
    %v2974 = vunpack.c.l.b16 %v141
    %v2975 = vunpack.c.l.b16 %v142
    %v2976 = vunpack.c.l.b16 %v143
    %v2977 = vunpack.c.l.b16 %v144
    %v2978 = vunpack.c.l.b16 %v145
    %v2979 = vunpack.c.l.b16 %v146
    %v2980 = vunpack.c.l.b16 %v147
    %v2981 = vunpack.c.l.b16 %v148
    %v2982 = vunpack.c.l.b16 %v149
    %v2983 = vunpack.c.l.b16 %v150
    %v2984 = vunpack.c.l.b16 %v151
    %v2985 = vunpack.c.l.b16 %v152
    %v2986 = vunpack.c.l.b16 %v153
    %v2987 = vunpack.c.l.b16 %v154
    %v2988 = vunpack.c.l.b16 %v155
    %v2989 = vunpack.c.l.b16 %v156
    %v2990 = vunpack.c.l.b16 %v157
    %v2991 = vunpack.c.l.b16 %v158
    %v2992 = vunpack.c.l.b16 %v159
    %v2993 = vunpack.c.l.b16 %v160
    %v2994 = vunpack.c.l.b16 %v161
    %v2995 = vunpack.c.l.b16 %v162
    %v2996 = vunpack.c.l.b16 %v163
    %v2997 = vunpack.c.l.b16 %v164
    %v2998 = vunpack.c.l.b16 %v165
    %v2999 = vunpack.c.l.b16 %v166
    %v3000 = vunpack.c.l.b16 %v167
    %v3001 = vunpack.c.l.b16 %v168
    %v3002 = vunpack.c.l.b16 %v169
    %v3003 = vunpack.c.l.b16 %v170
    %v3004 = vunpack.c.l.b16 %v171
    %v3005 = vunpack.c.l.b16 %v172
    %v3006 = vunpack.c.l.b16 %v173
    %v3007 = vunpack.c.l.b16 %v174
    %v3008 = vunpack.c.l.b16 %v175
    %v3009 = vunpack.c.l.b16 %v176
    %v3010 = vunpack.c.l.b16 %v177
    %v3011 = vunpack.c.l.b16 %v178
    %v3012 = vunpack.c.l.b16 %v179
    %v3013 = vunpack.c.l.b16 %v180
    %v3014 = vunpack.c.l.b16 %v181
    %v3015 = vunpack.c.l.b16 %v182
    %v3016 = vunpack.c.l.b16 %v183
    %v3017 = vunpack.c.l.b16 %v184
    %v3018 = vunpack.c.l.b16 %v185
    %v3019 = vunpack.c.l.b16 %v186
    %v3020 = vunpack.c.l.b16 %v187
    %v3021 = vunpack.c.l.b16 %v188
    %v3022 = vunpack.c.l.b16 %v189
    %v3023 = vunpack.c.l.b16 %v190
    %v3024 = vunpack.c.l.b16 %v191
    %v3025 = vunpack.c.l.b16 %v192
    %v3026 = vunpack.c.l.b16 %v193
    %v3027 = vunpack.c.l.b16 %v194
    %v3028 = vunpack.c.l.b16 %v195
    %v3029 = vunpack.c.l.b16 %v196
    %v3030 = vunpack.c.l.b16 %v197
    %v3031 = vunpack.c.l.b16 %v198
    %v3032 = vunpack.c.l.b16 %v199
    %v3033 = vunpack.c.l.b16 %v200
    %v3034 = vunpack.c.l.b16 %v201
    %v3035 = vunpack.c.l.b16 %v202
    %v3036 = vunpack.c.l.b16 %v203
    %v3037 = vunpack.c.l.b16 %v204
    %v3038 = vunpack.c.l.b16 %v205
    %v3039 = vunpack.c.l.b16 %v206
    %v3040 = vunpack.c.l.b16 %v207
    %v3041 = vunpack.c.l.b16 %v208
    %v3042 = vunpack.c.l.b16 %v209
    %v3043 = vunpack.c.l.b16 %v210
    %v3044 = vunpack.c.l.b16 %v211
    %v3045 = vunpack.c.l.b16 %v212
    %v3046 = vunpack.c.l.b16 %v213
    %v3047 = vunpack.c.l.b16 %v214
    %v3048 = vunpack.c.l.b16 %v215
    %v3049 = vunpack.c.l.b16 %v216
    %v3050 = vunpack.c.l.b16 %v217
    %v3051 = vunpack.c.l.b16 %v218
    %v3052 = vunpack.c.l.b16 %v219
    %v3053 = vunpack.c.l.b16 %v220
    %v3054 = vunpack.c.l.b16 %v221
    %v3055 = vunpack.c.l.b16 %v222
    %v3056 = vunpack.c.l.b16 %v223
    %v3057 = vunpack.c.l.b16 %v224
    %v3058 = vunpack.c.l.b16 %v225
    %v3059 = vunpack.c.l.b16 %v226
    %v3060 = vunpack.c.l.b16 %v227
    %v3061 = vunpack.c.l.b16 %v228
    %v3062 = vunpack.c.l.b16 %v229
    %v3063 = vunpack.c.l.b16 %v230
    %v3064 = vunpack.c.l.b16 %v231
    %v3065 = vunpack.c.l.b16 %v232
    %v3066 = vunpack.c.l.b16 %v233
    %v3067 = vunpack.c.l.b16 %v234
    %v3068 = vunpack.c.l.b16 %v235
    %v3069 = vunpack.c.l.b16 %v236
    %v3070 = vunpack.c.l.b16 %v237
    %v3071 = vunpack.c.l.b16 %v238
    %v3072 = vunpack.c.l.b16 %v239
    %v3073 = vunpack.c.l.b16 %v240
    %v3074 = vunpack.c.l.b16 %v241
    %v3075 = vunpack.c.l.b16 %v242
    %v3076 = vunpack.c.l.b16 %v243
    %v3077 = vunpack.c.l.b16 %v244
    %v3078 = vunpack.c.l.b16 %v245
    %v3079 = vunpack.c.l.b16 %v246
    %v3080 = vunpack.c.l.b16 %v247
    %v3081 = vunpack.c.l.b16 %v248
    %v3082 = vunpack.c.l.b16 %v249
    %v3083 = vunpack.c.l.b16 %v250
    %v3084 = vunpack.c.l.b16 %v251
    %v3085 = vunpack.c.l.b16 %v252
    %v3086 = vunpack.c.l.b16 %v253
    %v3087 = vunpack.c.l.b16 %v254
    %v3088 = vunpack.c.l.b16 %v255
    %v3089 = vunpack.c.l.b16 %v256
    %v3090 = vunpack.c.l.b16 %v257
    %v3091 = vunpack.c.l.b16 %v258
    %v3092 = vunpack.c.l.b16 %v259
    %v3093 = vunpack.c.l.b16 %v260
    %v3094 = vunpack.c.l.b16 %v261
    %v3095 = vunpack.c.l.b16 %v262
    %v3096 = vunpack.c.l.b16 %v263
    %v3097 = vunpack.c.l.b16 %v264
    %v3098 = vunpack.c.l.b16 %v265
    %v3099 = vunpack.c.l.b16 %v266
    %v3100 = vunpack.c.l.b16 %v267
    %v3101 = vunpack.c.l.b16 %v268
    %v3102 = vunpack.c.l.b16 %v269
    %v3103 = vunpack.c.l.b16 %v270
    %v3104 = vunpack.c.l.b16 %v271
    %v3105 = vunpack.c.l.b16 %v272
    %v3106 = vunpack.c.l.b16 %v273
    %v3107 = vunpack.c.l.b16 %v274
    %v3108 = vunpack.c.l.b16 %v275
    %v3109 = vunpack.c.l.b16 %v276
    %v3110 = vunpack.c.l.b16 %v277
    %v3111 = vunpack.c.l.b16 %v278
    %v3112 = vunpack.c.l.b16 %v279
    %v3113 = vunpack.c.l.b16 %v280
    %v3114 = vunpack.c.l.b16 %v281
    %v3115 = vunpack.c.l.b16 %v282
    %v3116 = vunpack.c.l.b16 %v283
    %v3117 = vunpack.c.l.b16 %v284
    %v3118 = vunpack.c.l.b16 %v285
    %v3119 = vunpack.c.l.b16 %v286
    %v3120 = vunpack.c.l.b16 %v287
    %v3121 = vunpack.c.l.b16 %v288
    %v3122 = vunpack.c.l.b16 %v289
    %v3123 = vunpack.c.l.b16 %v290
    %v3124 = vunpack.c.l.b16 %v291
    %v3125 = vunpack.c.l.b16 %v292
    %v3126 = vunpack.c.l.b16 %v293
    %v3127 = vunpack.c.l.b16 %v294
    %v3128 = vunpack.c.l.b16 %v295
    %v3129 = vunpack.c.l.b16 %v296
    %v3130 = vunpack.c.l.b16 %v297
    %v3131 = vunpack.c.l.b16 %v298
    %v3132 = vunpack.c.l.b16 %v299
    %v3133 = vunpack.c.l.b16 %v300
    %v3134 = vunpack.c.l.b16 %v301
    %v3135 = vunpack.c.l.b16 %v302
    %v3136 = vunpack.c.l.b16 %v303
    %v3137 = vunpack.c.l.b16 %v304
    %v3138 = vunpack.c.l.b16 %v305
    %v3139 = vunpack.c.l.b16 %v306
    %v3140 = vunpack.c.l.b16 %v307
    %v3141 = vunpack.c.l.b16 %v308
    %v3142 = vunpack.c.l.b16 %v309
    %v3143 = vunpack.c.l.b16 %v310
    %v3144 = vunpack.c.l.b16 %v311
    %v3145 = vunpack.c.l.b16 %v312
    %v3146 = vunpack.c.l.b16 %v313
    %v3147 = vunpack.c.l.b16 %v314
    %v3148 = vunpack.c.l.b16 %v315
    %v3149 = vunpack.c.l.b16 %v316
    %v3150 = vunpack.c.l.b16 %v317
    %v3151 = vunpack.c.l.b16 %v318
    %v3152 = vunpack.c.l.b16 %v319
    %v3153 = vunpack.c.l.b16 %v320
    %v3154 = vunpack.c.l.b16 %v321
    %v3155 = vunpack.c.l.b16 %v322
    %v3156 = vunpack.c.l.b16 %v323
    %v3157 = vunpack.c.l.b16 %v324
    %v3158 = vunpack.c.l.b16 %v325
    %v3159 = vunpack.c.l.b16 %v326
    %v3160 = vunpack.c.l.b16 %v327
    %v3161 = vunpack.c.l.b16 %v328
    %v3162 = vunpack.c.l.b16 %v329
    %v3163 = vunpack.c.l.b16 %v330
    %v3164 = vunpack.c.l.b16 %v331
    %v3165 = vunpack.c.l.b16 %v332
    %v3166 = vunpack.c.l.b16 %v333
    %v3167 = vunpack.c.l.b16 %v334
    %v3168 = vunpack.c.l.b16 %v335
    %v3169 = vunpack.c.l.b16 %v336
    %v3170 = vunpack.c.l.b16 %v337
    %v3171 = vunpack.c.l.b16 %v338
    %v3172 = vunpack.c.l.b16 %v339
    %v3173 = vunpack.c.l.b16 %v340
    %v3174 = vunpack.c.l.b16 %v341
    %v3175 = vunpack.c.l.b16 %v342
    %v3176 = vunpack.c.l.b16 %v343
    %v3177 = vunpack.c.l.b16 %v344
    %v3178 = vunpack.c.l.b16 %v345
    %v3179 = vunpack.c.l.b16 %v346
    %v3180 = vunpack.c.l.b16 %v347
    %v3181 = vunpack.c.l.b16 %v348
    %v3182 = vunpack.c.l.b16 %v349
    %v3183 = vunpack.c.l.b16 %v350
    %v3184 = vunpack.c.l.b16 %v351
    %v3185 = vunpack.c.l.b16 %v352
    %v3186 = vunpack.c.l.b16 %v353
    %v3187 = vunpack.c.l.b16 %v354
    %v3188 = vunpack.c.l.b16 %v355
    %v3189 = vunpack.c.l.b16 %v356
    %v3190 = vunpack.c.l.b16 %v357
    %v3191 = vunpack.c.l.b16 %v358
    %v3192 = vunpack.c.l.b16 %v359
    %v3193 = vunpack.c.l.b16 %v360
    %v3194 = vunpack.c.l.b16 %v361
    %v3195 = vunpack.c.l.b16 %v362
    %v3196 = vunpack.c.l.b16 %v363
    %v3197 = vunpack.c.l.b16 %v364
    %v3198 = vunpack.c.l.b16 %v365
    %v3199 = vunpack.c.l.b16 %v366
    %v3200 = vunpack.c.l.b16 %v367
    %v3201 = vunpack.c.l.b16 %v368
    %v3202 = vunpack.c.l.b16 %v369
    %v3203 = vunpack.c.l.b16 %v370
    %v3204 = vunpack.c.l.b16 %v371
    %v3205 = vunpack.c.l.b16 %v372
    %v3206 = vunpack.c.l.b16 %v373
    %v3207 = vunpack.c.l.b16 %v374
    %v3208 = vunpack.c.l.b16 %v375
    %v3209 = vunpack.c.l.b16 %v376
    %v3210 = vunpack.c.l.b16 %v377
    %v3211 = vunpack.c.l.b16 %v378
    %v3212 = vunpack.c.l.b16 %v379
    %v3213 = vunpack.c.l.b16 %v380
    %v3214 = vunpack.c.l.b16 %v381
    %v3215 = vunpack.c.l.b16 %v382
    %v3216 = vunpack.c.l.b16 %v383
    %v3217 = vunpack.c.l.b16 %v384
    %v3218 = vunpack.c.l.b16 %v385
    %v3219 = vunpack.c.l.b16 %v386
    %v3220 = vunpack.c.l.b16 %v387
    %v3221 = vunpack.c.l.b16 %v388
    %v3222 = vunpack.c.l.b16 %v389
    %v3223 = vunpack.c.l.b16 %v390
    %v3224 = vunpack.c.l.b16 %v391
    %v3225 = vunpack.c.l.b16 %v392
    %v3226 = vunpack.c.l.b16 %v393
    %v3227 = vunpack.c.l.b16 %v394
    %v3228 = vunpack.c.l.b16 %v395
    %v3229 = vunpack.c.l.b16 %v396
    %v3230 = vunpack.c.l.b16 %v397
    %v3231 = vunpack.c.l.b16 %v398
    %v3232 = vunpack.c.l.b16 %v399
    %v3233 = vunpack.c.l.b16 %v400
    %v3234 = vunpack.c.l.b16 %v401
    %v3235 = vunpack.c.l.b16 %v402
    %v3236 = vunpack.c.l.b16 %v403
    %v3237 = vunpack.c.l.b16 %v404
    %v3238 = vunpack.c.l.b16 %v405
    %v3239 = vunpack.c.l.b16 %v406
    %v3240 = vunpack.c.l.b16 %v407
    %v3241 = vunpack.c.l.b16 %v408
    %v3242 = vunpack.c.l.b16 %v409
    %v3243 = vunpack.c.l.b16 %v410
    %v3244 = vunpack.c.l.b16 %v411
    %v3245 = vunpack.c.l.b16 %v412
    %v3246 = vunpack.c.l.b16 %v413
    %v3247 = vunpack.c.l.b16 %v414
    %v3248 = vunpack.c.l.b16 %v415
    %v3249 = vunpack.c.l.b16 %v416
    %v3250 = vunpack.c.l.b16 %v417
    %v3251 = vunpack.c.l.b16 %v418
    %v3252 = vunpack.c.l.b16 %v419
    %v3253 = vunpack.c.l.b16 %v420
    %v3254 = vunpack.c.l.b16 %v421
    %v3255 = vunpack.c.l.b16 %v422
    %v3256 = vunpack.c.l.b16 %v423
    %v3257 = vunpack.c.l.b16 %v424
    %v3258 = vunpack.c.l.b16 %v425
    %v3259 = vunpack.c.l.b16 %v426
    %v3260 = vunpack.c.l.b16 %v427
    %v3261 = vunpack.c.l.b16 %v428
    %v3262 = vunpack.c.l.b16 %v429
    %v3263 = vunpack.c.l.b16 %v430
    %v3264 = vunpack.c.l.b16 %v431
    %v3265 = vunpack.c.l.b16 %v432
    %v3266 = vunpack.c.l.b16 %v433
    %v3267 = vunpack.c.l.b16 %v434
    %v3268 = vunpack.c.l.b16 %v435
    %v3269 = vunpack.c.l.b16 %v436
    %v3270 = vunpack.c.l.b16 %v437
    %v3271 = vunpack.c.l.b16 %v438
    %v3272 = vunpack.c.l.b16 %v439
    %v3273 = vunpack.c.l.b16 %v440
    %v3274 = vunpack.c.l.b16 %v441
    %v3275 = vunpack.c.l.b16 %v442
    %v3276 = vunpack.c.l.b16 %v443
    %v3277 = vunpack.c.l.b16 %v444
    %v3278 = vunpack.c.l.b16 %v445
    %v3279 = vunpack.c.l.b16 %v446
    %v3280 = vunpack.c.l.b16 %v447
    %v3281 = vunpack.c.l.b16 %v448
    %v3282 = vunpack.c.l.b16 %v449
    %v3283 = vunpack.c.l.b16 %v450
    %v3284 = vunpack.c.l.b16 %v451
    %v3285 = vunpack.c.l.b16 %v452
    %v3286 = vunpack.c.l.b16 %v453
    %v3287 = vunpack.c.l.b16 %v454
    %v3288 = vunpack.c.l.b16 %v455
    %v3289 = vunpack.c.l.b16 %v456
    %v3290 = vunpack.c.l.b16 %v457
    %v3291 = vunpack.c.l.b16 %v458
    %v3292 = vunpack.c.l.b16 %v459
    %v3293 = vunpack.c.l.b16 %v460
    %v3294 = vunpack.c.l.b16 %v461
    %v3295 = vunpack.c.l.b16 %v462
    %v3296 = vunpack.c.l.b16 %v463
    %v3297 = vunpack.c.l.b16 %v464
    %v3298 = vunpack.c.l.b16 %v465
    %v3299 = vunpack.c.l.b16 %v466
    %v3300 = vunpack.c.l.b16 %v467
    %v3301 = vunpack.c.l.b16 %v468
    %v3302 = vunpack.c.l.b16 %v469
    %v3303 = vunpack.c.l.b16 %v470
    %v3304 = vunpack.c.l.b16 %v471
    %v3305 = vunpack.c.l.b16 %v472
    %v3306 = vunpack.c.l.b16 %v473
    %v3307 = vunpack.c.l.b16 %v474
    %v3308 = vunpack.c.l.b16 %v475
    %v3309 = vunpack.c.l.b16 %v476
    %v3310 = vunpack.c.l.b16 %v477
    %v3311 = vunpack.c.l.b16 %v478
    %v3312 = vunpack.c.l.b16 %v479
    %v3313 = vunpack.c.l.b16 %v480
    %v3314 = vunpack.c.l.b16 %v481
    %v3315 = vunpack.c.l.b16 %v482
    %v3316 = vunpack.c.l.b16 %v483
    %v3317 = vunpack.c.l.b16 %v484
    %v3318 = vunpack.c.l.b16 %v485
    %v3319 = vunpack.c.l.b16 %v486
    %v3320 = vunpack.c.l.b16 %v487
    %v3321 = vunpack.c.l.b16 %v488
    %v3322 = vunpack.c.l.b16 %v489
    %v3323 = vunpack.c.l.b16 %v490
    %v3324 = vunpack.c.l.b16 %v491
    %v3325 = vunpack.c.l.b16 %v492
    %v3326 = vunpack.c.l.b16 %v493
    %v3327 = vunpack.c.l.b16 %v494
    %v3328 = vunpack.c.l.b16 %v495
    %v3329 = vunpack.c.l.b16 %v496
    %v3330 = vunpack.c.l.b16 %v497
    %v3331 = vunpack.c.l.b16 %v498
    %v3332 = vunpack.c.l.b16 %v499
    %v3333 = vunpack.c.l.b16 %v500
    %v3334 = vunpack.c.l.b16 %v501
    %v3335 = vunpack.c.l.b16 %v502
    %v3336 = vunpack.c.l.b16 %v503
    %v3337 = vunpack.c.l.b16 %v504
    %v3338 = vunpack.c.l.b16 %v505
    %v3339 = vunpack.c.l.b16 %v506
    %v3340 = vunpack.c.l.b16 %v507
    %v3341 = vunpack.c.l.b16 %v508
    %v3342 = vunpack.c.l.b16 %v509
    %v3343 = vunpack.c.l.b16 %v510
    %v3344 = vunpack.c.l.b16 %v511
    %v3345 = vunpack.c.l.b16 %v512
    %v3346 = vunpack.c.l.b16 %v513
    %v3347 = vunpack.c.l.b16 %v514
    %v3348 = vunpack.c.l.b16 %v515
    %v3349 = vunpack.c.l.b16 %v516
    %v3350 = vunpack.c.l.b16 %v517
    %v3351 = vunpack.c.l.b16 %v518
    %v3352 = vunpack.c.l.b16 %v519
    %v3353 = vunpack.c.l.b16 %v520
    %v3354 = vunpack.c.l.b16 %v521
    %v3355 = vunpack.c.l.b16 %v522
    %v3356 = vunpack.c.l.b16 %v523
    %v3357 = vunpack.c.l.b16 %v524
    %v3358 = vunpack.c.l.b16 %v525
    %v3359 = vunpack.c.l.b16 %v526
    %v3360 = vunpack.c.l.b16 %v527
    %v3361 = vunpack.c.l.b16 %v528
    %v3362 = vunpack.c.l.b16 %v529
    %v3363 = vunpack.c.l.b16 %v530
    %v3364 = vunpack.c.l.b16 %v531
    %v3365 = vunpack.c.l.b16 %v532
    %v3366 = vunpack.c.l.b16 %v533
    %v3367 = vunpack.c.l.b16 %v534
    %v3368 = vunpack.c.l.b16 %v535
    %v3369 = vunpack.c.l.b16 %v536
    %v3370 = vunpack.c.l.b16 %v537
    %v3371 = vunpack.c.l.b16 %v538
    %v3372 = vunpack.c.l.b16 %v539
    %v3373 = vunpack.c.l.b16 %v540
    %v3374 = vunpack.c.l.b16 %v541
    %v3375 = vunpack.c.l.b16 %v542
    %v3376 = vunpack.c.l.b16 %v543
    %v3377 = vunpack.c.l.b16 %v544
    %v3378 = vunpack.c.l.b16 %v545
    %v3379 = vunpack.c.l.b16 %v546
    %v3380 = vunpack.c.l.b16 %v547
    %v3381 = vunpack.c.l.b16 %v548
    %v3382 = vunpack.c.l.b16 %v549
    %v3383 = vunpack.c.l.b16 %v550
    %v3384 = vunpack.c.l.b16 %v551
    %v3385 = vunpack.c.l.b16 %v552
    %v3386 = vunpack.c.l.b16 %v553
    %v3387 = vunpack.c.l.b16 %v554
    %v3388 = vunpack.c.l.b16 %v555
    %v3389 = vunpack.c.l.b16 %v556
    %v3390 = vunpack.c.l.b16 %v557
    %v3391 = vunpack.c.l.b16 %v558
    %v3392 = vunpack.c.l.b16 %v559
    %v3393 = vunpack.c.l.b16 %v560
    %v3394 = vunpack.c.l.b16 %v561
    %v3395 = vunpack.c.l.b16 %v562
    %v3396 = vunpack.c.l.b16 %v563
    %v3397 = vunpack.c.l.b16 %v564
    %v3398 = vunpack.c.l.b16 %v565
    %v3399 = vunpack.c.l.b16 %v566
    %v3400 = vunpack.c.l.b16 %v567
    %v3401 = vunpack.c.l.b16 %v568
    %v3402 = vunpack.c.l.b16 %v569
    %v3403 = vunpack.c.l.b16 %v570
    %v3404 = vunpack.c.l.b16 %v571
    %v3405 = vunpack.c.l.b16 %v572
    %v3406 = vunpack.c.l.b16 %v573
    %v3407 = vunpack.c.l.b16 %v574
    %v3408 = vunpack.c.l.b16 %v575
    %v3409 = vunpack.c.l.b16 %v576
    %v3410 = vunpack.c.l.b16 %v577
    %v3411 = vunpack.c.l.b16 %v578
    %v3412 = vunpack.c.l.b16 %v579
    %v3413 = vunpack.c.l.b16 %v580
    %v3414 = vunpack.c.l.b16 %v581
    %v3415 = vunpack.c.l.b16 %v582
    %v3416 = vunpack.c.l.b16 %v583
    %v3417 = vunpack.c.l.b16 %v584
    %v3418 = vunpack.c.l.b16 %v585
    %v3419 = vunpack.c.l.b16 %v586
    %v3420 = vunpack.c.l.b16 %v587
    %v3421 = vunpack.c.l.b16 %v588
    %v3422 = vunpack.c.l.b16 %v589
    %v3423 = vunpack.c.l.b16 %v590
    %v3424 = vunpack.c.l.b16 %v591
    %v3425 = vunpack.c.l.b16 %v592
    %v3426 = vunpack.c.l.b16 %v593
    %v3427 = vunpack.c.l.b16 %v594
    %v3428 = vunpack.c.l.b16 %v595
    %v3429 = vunpack.c.l.b16 %v596
    %v3430 = vunpack.c.l.b16 %v597
    %v3431 = vunpack.c.l.b16 %v598
    %v3432 = vunpack.c.l.b16 %v599
    %v3433 = vunpack.c.l.b16 %v600
    %v3434 = vunpack.c.l.b16 %v601
    %v3435 = vunpack.c.l.b16 %v602
    %v3436 = vunpack.c.l.b16 %v603
    %v3437 = vunpack.c.l.b16 %v604
    %v3438 = vunpack.c.l.b16 %v605
    %v3439 = vunpack.c.l.b16 %v606
    %v3440 = vunpack.c.l.b16 %v607
    %v3441 = vunpack.c.l.b16 %v608
    %v3442 = vunpack.c.l.b16 %v609
    %v3443 = vunpack.c.l.b16 %v610
    %v3444 = vunpack.c.l.b16 %v611
    %v3445 = vunpack.c.l.b16 %v612
    %v3446 = vunpack.c.l.b16 %v613
    %v3447 = vunpack.c.l.b16 %v614
    %v3448 = vunpack.c.l.b16 %v615
    %v3449 = vunpack.c.l.b16 %v616
    %v3450 = vunpack.c.l.b16 %v617
    %v3451 = vunpack.c.l.b16 %v618
    %v3452 = vunpack.c.l.b16 %v619
    %v3453 = vunpack.c.l.b16 %v620
    %v3454 = vunpack.c.l.b16 %v621
    %v3455 = vunpack.c.l.b16 %v622
    %v3456 = vunpack.c.l.b16 %v623
    %v3457 = vunpack.c.l.b16 %v624
    %v3458 = vunpack.c.l.b16 %v625
    %v3459 = vunpack.c.l.b16 %v626
    %v3460 = vunpack.c.l.b16 %v627
    %v3461 = vunpack.c.l.b16 %v628
    %v3462 = vunpack.c.l.b16 %v629
    %v3463 = vunpack.c.l.b16 %v630
    %v3464 = vunpack.c.l.b16 %v631
    %v3465 = vunpack.c.l.b16 %v632
    %v3466 = vunpack.c.l.b16 %v633
    %v3467 = vunpack.c.l.b16 %v634
    %v3468 = vunpack.c.l.b16 %v635
    %v3469 = vunpack.c.l.b16 %v636
    %v3470 = vunpack.c.l.b16 %v637
    %v3471 = vunpack.c.l.b16 %v638
    %v3472 = vunpack.c.l.b16 %v639
    %v3473 = vunpack.c.l.b16 %v640
    %v3474 = vunpack.c.l.b16 %v641
    %v3475 = vunpack.c.l.b16 %v642
    %v3476 = vunpack.c.l.b16 %v643
    %v3477 = vunpack.c.l.b16 %v644
    %v3478 = vunpack.c.l.b16 %v645
    %v3479 = vunpack.c.l.b16 %v646
    %v3480 = vunpack.c.l.b16 %v647
    %v3481 = vunpack.c.l.b16 %v648
    %v3482 = vunpack.c.l.b16 %v649
    %v3483 = vunpack.c.l.b16 %v650
    %v3484 = vunpack.c.l.b16 %v651
    %v3485 = vunpack.c.l.b16 %v652
    %v3486 = vunpack.c.l.b16 %v653
    %v3487 = vunpack.c.l.b16 %v654
    %v3488 = vunpack.c.l.b16 %v655
    %v3489 = vunpack.c.l.b16 %v656
    %v3490 = vunpack.c.l.b16 %v657
    %v3491 = vunpack.c.l.b16 %v658
    %v3492 = vunpack.c.l.b16 %v659
    %v3493 = vunpack.c.l.b16 %v660
    %v3494 = vunpack.c.l.b16 %v661
    %v3495 = vunpack.c.l.b16 %v662
    %v3496 = vunpack.c.l.b16 %v663
    %v3497 = vunpack.c.l.b16 %v664
    %v3498 = vunpack.c.l.b16 %v665
    %v3499 = vunpack.c.l.b16 %v666
    %v3500 = vunpack.c.l.b16 %v667
    %v3501 = vunpack.c.l.b16 %v668
    %v3502 = vunpack.c.l.b16 %v669
    %v3503 = vunpack.c.l.b16 %v670
    %v3504 = vunpack.c.l.b16 %v671
    %v3505 = vunpack.c.l.b16 %v672
    %v3506 = vunpack.c.l.b16 %v673
    %v3507 = vunpack.c.l.b16 %v674
    %v3508 = vunpack.c.l.b16 %v675
    %v3509 = vunpack.c.l.b16 %v676
    %v3510 = vunpack.c.l.b16 %v677
    %v3511 = vunpack.c.l.b16 %v678
    %v3512 = vunpack.c.l.b16 %v679
    %v3513 = vunpack.c.l.b16 %v680
    %v3514 = vunpack.c.l.b16 %v681
    %v3515 = vunpack.c.l.b16 %v682
    %v3516 = vunpack.c.l.b16 %v683
    %v3517 = vunpack.c.l.b16 %v684
    %v3518 = vunpack.c.l.b16 %v685
    %v3519 = vunpack.c.l.b16 %v686
    %v3520 = vunpack.c.l.b16 %v687
    %v3521 = vunpack.c.l.b16 %v688
    %v3522 = vunpack.c.l.b16 %v689
    %v3523 = vunpack.c.l.b16 %v690
    %v3524 = vunpack.c.l.b16 %v691
    %v3525 = vunpack.c.l.b16 %v692
    %v3526 = vunpack.c.l.b16 %v693
    %v3527 = vunpack.c.l.b16 %v694
    %v3528 = vunpack.c.l.b16 %v695
    %v3529 = vunpack.c.l.b16 %v696
    %v3530 = vunpack.c.l.b16 %v697
    %v3531 = vunpack.c.l.b16 %v698
    %v3532 = vunpack.c.l.b16 %v699
    %v3533 = vunpack.c.l.b16 %v700
    %v3534 = vunpack.c.l.b16 %v701
    %v3535 = vunpack.c.l.b16 %v702
    %v3536 = vunpack.c.l.b16 %v703
    %v3537 = vunpack.c.l.b16 %v704
    %v3538 = vunpack.c.l.b16 %v705
    %v3539 = vunpack.c.l.b16 %v706
    %v3540 = vunpack.c.l.b16 %v707
    %v3541 = vunpack.c.l.b16 %v708
    %v3542 = vunpack.c.l.b16 %v709
    %v3543 = vunpack.c.l.b16 %v710
    %v3544 = vunpack.c.l.b16 %v711
    %v3545 = vunpack.c.l.b16 %v712
    %v3546 = vunpack.c.l.b16 %v713
    %v3547 = vunpack.c.l.b16 %v714
    %v3548 = vunpack.c.l.b16 %v715
    %v3549 = vunpack.c.l.b16 %v716
    %v3550 = vunpack.c.l.b16 %v717
    %v3551 = vunpack.c.l.b16 %v718
    %v3552 = vunpack.c.l.b16 %v719
    %v3553 = vunpack.c.l.b16 %v720
    %v3554 = vunpack.c.l.b16 %v721
    %v3555 = vunpack.c.l.b16 %v722
    %v3556 = vunpack.c.l.b16 %v723
    %v3557 = vunpack.c.l.b16 %v724
    %v3558 = vunpack.c.l.b16 %v725
    %v3559 = vunpack.c.l.b16 %v726
    %v3560 = vunpack.c.l.b16 %v727
    %v3561 = vunpack.c.l.b16 %v728
    %v3562 = vunpack.c.l.b16 %v729
    %v3563 = vunpack.c.l.b16 %v730
    %v3564 = vunpack.c.l.b16 %v731
    %v3565 = vunpack.c.l.b16 %v732
    %v3566 = vunpack.c.l.b16 %v733
    %v3567 = vunpack.c.l.b16 %v734
    %v3568 = vunpack.c.l.b16 %v735
    %v3569 = vunpack.c.l.b16 %v736
    %v3570 = vunpack.c.l.b16 %v737
    %v3571 = vunpack.c.l.b16 %v738
    %v3572 = vunpack.c.l.b16 %v739
    %v3573 = vunpack.c.l.b16 %v740
    %v3574 = vunpack.c.l.b16 %v741
    %v3575 = vunpack.c.l.b16 %v742
    %v3576 = vunpack.c.l.b16 %v743
    %v3577 = vunpack.c.l.b16 %v744
    %v3578 = vunpack.c.l.b16 %v745
    %v3579 = vunpack.c.l.b16 %v746
    %v3580 = vunpack.c.l.b16 %v747
    %v3581 = vunpack.c.l.b16 %v748
    %v3582 = vunpack.c.l.b16 %v749
    %v3583 = vunpack.c.l.b16 %v750
    %v3584 = vunpack.c.l.b16 %v751
    %v3585 = vunpack.c.l.b16 %v752
    %v3586 = vunpack.c.l.b16 %v753
    %v3587 = vunpack.c.l.b16 %v754
    %v3588 = vunpack.c.l.b16 %v755
    %v3589 = vunpack.c.l.b16 %v756
    %v3590 = vunpack.c.l.b16 %v757
    %v3591 = vunpack.c.l.b16 %v758
    %v3592 = vunpack.c.l.b16 %v759
    %v3593 = vunpack.c.l.b16 %v760
    %v3594 = vunpack.c.l.b16 %v761
    %v3595 = vunpack.c.l.b16 %v762
    %v3596 = vunpack.c.l.b16 %v763
    %v3597 = vunpack.c.l.b16 %v764
    %v3598 = vunpack.c.l.b16 %v765
    %v3599 = vunpack.c.l.b16 %v766
    %v3600 = vunpack.c.l.b16 %v767
    %v3601 = vunpack.c.l.b16 %v768
    %v3602 = vunpack.c.l.b16 %v769
    %v3603 = vunpack.c.l.b16 %v770
    %v3604 = vunpack.c.l.b16 %v771
    %v3605 = vunpack.c.l.b16 %v772
    %v3606 = vunpack.c.l.b16 %v773
    %v3607 = vunpack.c.l.b16 %v774
    %v3608 = vunpack.c.l.b16 %v775
    %v3609 = vunpack.c.l.b16 %v776
    %v3610 = vunpack.c.l.b16 %v777
    %v3611 = vunpack.c.l.b16 %v778
    %v3612 = vunpack.c.l.b16 %v779
    %v3613 = vunpack.c.l.b16 %v780
    %v3614 = vunpack.c.l.b16 %v781
    %v3615 = vunpack.c.l.b16 %v782
    %v3616 = vunpack.c.l.b16 %v783
    %v3617 = vunpack.c.l.b16 %v784
    %v3618 = vunpack.c.l.b16 %v785
    %v3619 = vunpack.c.l.b16 %v786
    %v3620 = vunpack.c.l.b16 %v787
    %v3621 = vunpack.c.l.b16 %v788
    %v3622 = vunpack.c.l.b16 %v789
    %v3623 = vunpack.c.l.b16 %v790
    %v3624 = vunpack.c.l.b16 %v791
    %v3625 = vunpack.c.l.b16 %v792
    %v3626 = vunpack.c.l.b16 %v793
    %v3627 = vunpack.c.l.b16 %v794
    %v3628 = vunpack.c.l.b16 %v795
    %v3629 = vunpack.c.l.b16 %v796
    %v3630 = vunpack.c.l.b16 %v797
    %v3631 = vunpack.c.l.b16 %v798
    %v3632 = vunpack.c.l.b16 %v799
    %v3633 = vunpack.c.l.b16 %v800
    %v3634 = vunpack.c.l.b16 %v801
    %v3635 = vunpack.c.l.b16 %v802
    %v3636 = vunpack.c.l.b16 %v803
    %v3637 = vunpack.c.l.b16 %v804
    %v3638 = vunpack.c.l.b16 %v805
    %v3639 = vunpack.c.l.b16 %v806
    %v3640 = vunpack.c.l.b16 %v807
    %v3641 = vunpack.c.l.b16 %v808
    %v3642 = vunpack.c.l.b16 %v809
    %v3643 = vunpack.c.l.b16 %v810
    %v3644 = vunpack.c.l.b16 %v811
    %v3645 = vunpack.c.l.b16 %v812
    %v3646 = vunpack.c.l.b16 %v813
    %v3647 = vunpack.c.l.b16 %v814
    %v3648 = vunpack.c.l.b16 %v815
    %v3649 = vunpack.c.l.b16 %v816
    %v3650 = vunpack.c.l.b16 %v817
    %v3651 = vunpack.c.l.b16 %v818
    %v3652 = vunpack.c.l.b16 %v819
    %v3653 = vunpack.c.l.b16 %v820
    %v3654 = vunpack.c.l.b16 %v821
    %v3655 = vunpack.c.l.b16 %v822
    %v3656 = vunpack.c.l.b16 %v823
    %v3657 = vunpack.c.l.b16 %v824
    %v3658 = vunpack.c.l.b16 %v825
    %v3659 = vunpack.c.l.b16 %v826
    %v3660 = vunpack.c.l.b16 %v827
    %v3661 = vunpack.c.l.b16 %v828
    %v3662 = vunpack.c.l.b16 %v829
    %v3663 = vunpack.c.l.b16 %v830
    %v3664 = vunpack.c.l.b16 %v831
    %v3665 = vunpack.c.l.b16 %v832
    %v3666 = vunpack.c.l.b16 %v833
    %v3667 = vunpack.c.l.b16 %v834
    %v3668 = vunpack.c.l.b16 %v835
    %v3669 = vunpack.c.l.b16 %v836
    %v3670 = vunpack.c.l.b16 %v837
    %v3671 = vunpack.c.l.b16 %v838
    %v3672 = vunpack.c.l.b16 %v839
    %v3673 = vunpack.c.l.b16 %v840
    %v3674 = vunpack.c.l.b16 %v841
    %v3675 = vunpack.c.l.b16 %v842
    %v3676 = vunpack.c.l.b16 %v843
    %v3677 = vunpack.c.l.b16 %v844
    %v3678 = vunpack.c.l.b16 %v845
    %v3679 = vunpack.c.l.b16 %v846
    %v3680 = vunpack.c.l.b16 %v847
    %v3681 = vunpack.c.l.b16 %v848
    %v3682 = vunpack.c.l.b16 %v849
    %v3683 = vunpack.c.l.b16 %v850
    %v3684 = vunpack.c.l.b16 %v851
    %v3685 = vunpack.c.l.b16 %v852
    %v3686 = vunpack.c.l.b16 %v853
    %v3687 = vunpack.c.l.b16 %v854
    %v3688 = vunpack.c.l.b16 %v855
    %v3689 = vunpack.c.l.b16 %v856
    %v3690 = vunpack.c.l.b16 %v857
    %v3691 = vunpack.c.l.b16 %v858
    %v3692 = vunpack.c.l.b16 %v859
    %v3693 = vunpack.c.l.b16 %v860
    %v3694 = vunpack.c.l.b16 %v861
    %v3695 = vunpack.c.l.b16 %v862
    %v3696 = vunpack.c.l.b16 %v863
    %v3697 = vunpack.c.l.b16 %v864
    %v3698 = vunpack.c.l.b16 %v865
    %v3699 = vunpack.c.l.b16 %v866
    %v3700 = vunpack.c.l.b16 %v867
    %v3701 = vunpack.c.l.b16 %v868
    %v3702 = vunpack.c.l.b16 %v869
    %v3703 = vunpack.c.l.b16 %v870
    %v3704 = vunpack.c.l.b16 %v871
    %v3705 = vunpack.c.l.b16 %v872
    %v3706 = vunpack.c.l.b16 %v873
    %v3707 = vunpack.c.l.b16 %v874
    %v3708 = vunpack.c.l.b16 %v875
    %v3709 = vunpack.c.l.b16 %v876
    %v3710 = vunpack.c.l.b16 %v877
    %v3711 = vunpack.c.l.b16 %v878
    %v3712 = vunpack.c.l.b16 %v879
    %v3713 = vunpack.c.l.b16 %v880
    %v3714 = vunpack.c.l.b16 %v881
    %v3715 = vunpack.c.l.b16 %v882
    %v3716 = vunpack.c.l.b16 %v883
    %v3717 = vunpack.c.l.b16 %v884
    %v3718 = vunpack.c.l.b16 %v885
    %v3719 = vunpack.c.l.b16 %v886
    %v3720 = vunpack.c.l.b16 %v887
    %v3721 = vunpack.c.l.b16 %v888
    %v3722 = vunpack.c.l.b16 %v889
    %v3723 = vunpack.c.l.b16 %v890
    %v3724 = vunpack.c.l.b16 %v891
    %v3725 = vunpack.c.l.b16 %v892
    %v3726 = vunpack.c.l.b16 %v893
    %v3727 = vunpack.c.l.b16 %v894
    %v3728 = vunpack.c.l.b16 %v895
    %v3729 = vunpack.c.l.b16 %v896
    %v3730 = vunpack.c.l.b16 %v897
    %v3731 = vunpack.c.l.b16 %v898
    %v3732 = vunpack.c.l.b16 %v899
    %v3733 = vunpack.c.l.b16 %v900
    %v3734 = vunpack.c.l.b16 %v901
    %v3735 = vunpack.c.l.b16 %v902
    %v3736 = vunpack.c.l.b16 %v903
    %v3737 = vunpack.c.l.b16 %v904
    %v3738 = vunpack.c.l.b16 %v905
    %v3739 = vunpack.c.l.b16 %v906
    %v3740 = vunpack.c.l.b16 %v907
    %v3741 = vunpack.c.l.b16 %v908
    %v3742 = vunpack.c.l.b16 %v909
    %v3743 = vunpack.c.l.b16 %v910
    %v3744 = vunpack.c.l.b16 %v911
    %v3745 = vunpack.c.l.b16 %v912
    %v3746 = vunpack.c.l.b16 %v913
    %v3747 = vunpack.c.l.b16 %v914
    %v3748 = vunpack.c.l.b16 %v915
    %v3749 = vunpack.c.l.b16 %v916
    %v3750 = vunpack.c.l.b16 %v917
    %v3751 = vunpack.c.l.b16 %v918
    %v3752 = vunpack.c.l.b16 %v919
    %v3753 = vunpack.c.l.b16 %v920
    %v3754 = vunpack.c.l.b16 %v921
    %v3755 = vunpack.c.l.b16 %v922
    %v3756 = vunpack.c.l.b16 %v923
    %v3757 = vunpack.c.l.b16 %v924
    %v3758 = vunpack.c.l.b16 %v925
    %v3759 = vunpack.c.l.b16 %v926
    %v3760 = vunpack.c.l.b16 %v927
    %v3761 = vunpack.c.l.b16 %v928
    %v3762 = vunpack.c.l.b16 %v929
    %v3763 = vunpack.c.l.b16 %v930
    %v3764 = vunpack.c.l.b16 %v931
    %v3765 = vunpack.c.l.b16 %v932
    %v3766 = vunpack.c.l.b16 %v933
    %v3767 = vunpack.c.l.b16 %v934
    %v3768 = vunpack.c.l.b16 %v935
    %v3769 = vunpack.c.l.b16 %v936
    %v3770 = vunpack.c.l.b16 %v937
    %v3771 = vunpack.c.l.b16 %v938
    %v3772 = vunpack.c.l.b16 %v939
    %v3773 = vunpack.c.l.b16 %v940
    %v3774 = vunpack.c.l.b16 %v941
    %v3775 = vunpack.c.l.b16 %v942
    %v3776 = vunpack.c.l.b16 %v943
    %v3777 = vunpack.c.l.b16 %v944
    %v3778 = vunpack.c.l.b16 %v945
    %v3779 = vunpack.c.l.b16 %v946
    %v3780 = vunpack.c.l.b16 %v947
    %v3781 = vunpack.c.l.b16 %v948
    %v3782 = vunpack.c.l.b16 %v949
    %v3783 = vunpack.c.l.b16 %v950
    %v3784 = vunpack.c.l.b16 %v951
    %v3785 = vunpack.c.l.b16 %v952
    %v3786 = vunpack.c.l.b16 %v953
    %v3787 = vunpack.c.l.b16 %v954
    %v3788 = vunpack.c.l.b16 %v955
    %v3789 = vunpack.c.l.b16 %v956
    %v3790 = vunpack.c.l.b16 %v957
    %v3791 = vunpack.c.l.b16 %v958
    %v3792 = vunpack.c.l.b16 %v959
    %v3793 = vunpack.c.l.b16 %v960
    %v3794 = vunpack.c.l.b16 %v961
    %v3795 = vunpack.c.l.b16 %v962
    %v3796 = vunpack.c.l.b16 %v963
    %v3797 = vunpack.c.l.b16 %v964
    %v3798 = vunpack.c.l.b16 %v965
    %v3799 = vunpack.c.l.b16 %v966
    %v3800 = vunpack.c.l.b16 %v967
    %v3801 = vunpack.c.l.b16 %v968
    %v3802 = vunpack.c.l.b16 %v969
    %v3803 = vunpack.c.l.b16 %v970
    %v3804 = vunpack.c.l.b16 %v971
    %v3805 = vunpack.c.l.b16 %v972
    %v3806 = vunpack.c.l.b16 %v973
    %v3807 = vunpack.c.l.b16 %v974
    %v3808 = vunpack.c.l.b16 %v975
    %v3809 = vunpack.c.l.b16 %v976
    %v3810 = vunpack.c.l.b16 %v977
    %v3811 = vunpack.c.l.b16 %v978
    %v3812 = vunpack.c.l.b16 %v979
    %v3813 = vunpack.c.l.b16 %v980
    %v3814 = vunpack.c.l.b16 %v981
    %v3815 = vunpack.c.l.b16 %v982
    %v3816 = vunpack.c.l.b16 %v983
    %v3817 = vunpack.c.l.b16 %v984
    %v3818 = vunpack.c.l.b16 %v985
    %v3819 = vunpack.c.l.b16 %v986
    %v3820 = vunpack.c.l.b16 %v987
    %v3821 = vunpack.c.l.b16 %v988
    %v3822 = vunpack.c.l.b16 %v989
    %v3823 = vunpack.c.l.b16 %v990
    %v3824 = vunpack.c.l.b16 %v991
    %v3825 = vunpack.c.l.b16 %v992
    %v3826 = vunpack.c.l.b16 %v993
    %v3827 = vunpack.c.l.b16 %v994
    %v3828 = vunpack.c.l.b16 %v995
    %v3829 = vunpack.c.l.b16 %v996
    %v3830 = vunpack.c.l.b16 %v997
    %v3831 = vunpack.c.l.b16 %v998
    %v3832 = vunpack.c.l.b16 %v999
    %v3833 = vunpack.c.l.b16 %v1000
    %v3834 = vunpack.c.l.b16 %v1001
    %v3835 = vunpack.c.l.b16 %v1002
    %v3836 = vunpack.c.l.b16 %v1003
    %v3837 = vunpack.c.l.b16 %v1004
    %v3838 = vunpack.c.l.b16 %v1005
    %v3839 = vunpack.c.l.b16 %v1006
    %v3840 = vunpack.c.l.b16 %v1007
    %v3841 = vunpack.c.l.b16 %v1008
    %v3842 = vunpack.c.l.b16 %v1009
    %v3843 = vunpack.c.l.b16 %v1010
    %v3844 = vunpack.c.l.b16 %v1011
    %v3845 = vunpack.c.l.b16 %v1012
    %v3846 = vunpack.c.l.b16 %v1013
    %v3847 = vunpack.c.l.b16 %v1014
    %v3848 = vunpack.c.l.b16 %v1015
    %v3849 = vunpack.c.l.b16 %v1016
    %v3850 = vunpack.c.l.b16 %v1017
    %v3851 = vunpack.c.l.b16 %v1018
    %v3852 = vunpack.c.l.b16 %v1019
    %v3853 = vunpack.c.l.b16 %v1020
    %v3854 = vunpack.c.l.b16 %v1021
    %v3855 = vunpack.c.l.b16 %v1022
    %v3856 = vunpack.c.l.b16 %v1023
    %v3857 = vunpack.c.l.b16 %v1024
    %v3858 = vunpack.c.l.b16 %v1025
    %v3859 = vunpack.c.l.b16 %v1026
    %v3860 = vunpack.c.l.b16 %v1027
    %v3861 = vunpack.c.l.b16 %v1028
    %v3862 = vunpack.c.l.b16 %v1029
    %v3863 = vunpack.c.l.b16 %v1030
    %v3864 = vunpack.c.l.b16 %v1031
    %v3865 = vunpack.c.l.b16 %v1032
    %v3866 = vunpack.c.l.b16 %v1033
    %v3867 = vunpack.c.l.b16 %v1034
    %v3868 = vunpack.c.l.b16 %v1035
    %v3869 = vunpack.c.l.b16 %v1036
    %v3870 = vunpack.c.l.b16 %v1037
    %v3871 = vunpack.c.l.b16 %v1038
    %v3872 = vunpack.c.l.b16 %v1039
    %v3873 = vunpack.c.l.b16 %v1040
    %v3874 = vunpack.c.l.b16 %v1041
    %v3875 = vunpack.c.l.b16 %v1042
    %v3876 = vunpack.c.l.b16 %v1043
    %v3877 = vunpack.c.l.b16 %v1044
    %v3878 = vunpack.c.l.b16 %v1045
    %v3879 = vunpack.c.l.b16 %v1046
    %v3880 = vunpack.c.l.b16 %v1047
    %v3881 = vunpack.c.l.b16 %v1048
    %v3882 = vunpack.c.l.b16 %v1049
    %v3883 = vunpack.c.l.b16 %v1050
    %v3884 = vunpack.c.l.b16 %v1051
    %v3885 = vunpack.c.l.b16 %v1052
    %v3886 = vunpack.c.l.b16 %v1053
    %v3887 = vunpack.c.l.b16 %v1054
    %v3888 = vunpack.c.l.b16 %v1055
    %v3889 = vunpack.c.l.b16 %v1056
    %v3890 = vunpack.c.l.b16 %v1057
    %v3891 = vunpack.c.l.b16 %v1058
    %v3892 = vunpack.c.l.b16 %v1059
    %v3893 = vunpack.c.l.b16 %v1060
    %v3894 = vunpack.c.l.b16 %v1061
    %v3895 = vunpack.c.l.b16 %v1062
    %v3896 = vunpack.c.l.b16 %v1063
    %v3897 = vunpack.c.l.b16 %v1064
    %v3898 = vunpack.c.l.b16 %v1065
    %v3899 = vunpack.c.l.b16 %v1066
    %v3900 = vunpack.c.l.b16 %v1067
    %v3901 = vunpack.c.l.b16 %v1068
    %v3902 = vunpack.c.l.b16 %v1069
    %v3903 = vunpack.c.l.b16 %v1070
    %v3904 = vunpack.c.l.b16 %v1071
    %v3905 = vunpack.c.l.b16 %v1072
    %v3906 = vunpack.c.l.b16 %v1073
    %v3907 = vunpack.c.l.b16 %v1074
    %v3908 = vunpack.c.l.b16 %v1075
    %v3909 = vunpack.c.l.b16 %v1076
    %v3910 = vunpack.c.l.b16 %v1077
    %v3911 = vunpack.c.l.b16 %v1078
    %v3912 = vunpack.c.l.b16 %v1079
    %v3913 = vunpack.c.l.b16 %v1080
    %v3914 = vunpack.c.l.b16 %v1081
    %v3915 = vunpack.c.l.b16 %v1082
    %v3916 = vunpack.c.l.b16 %v1083
    %v3917 = vunpack.c.l.b16 %v1084
    %v3918 = vunpack.c.l.b16 %v1085
    %v3919 = vunpack.c.l.b16 %v1086
    %v3920 = vunpack.c.l.b16 %v1087
    %v3921 = vunpack.c.l.b16 %v1088
    %v3922 = vunpack.c.l.b16 %v1089
    %v3923 = vunpack.c.l.b16 %v1090
    %v3924 = vunpack.c.l.b16 %v1091
    %v3925 = vunpack.c.l.b16 %v1092
    %v3926 = vunpack.c.l.b16 %v1093
    %v3927 = vunpack.c.l.b16 %v1094
    %v3928 = vunpack.c.l.b16 %v1095
    %v3929 = vunpack.c.l.b16 %v1096
    %v3930 = vunpack.c.l.b16 %v1097
    %v3931 = vunpack.c.l.b16 %v1098
    %v3932 = vunpack.c.l.b16 %v1099
    %v3933 = vunpack.c.l.b16 %v1100
    %v3934 = vunpack.c.l.b16 %v1101
    %v3935 = vunpack.c.l.b16 %v1102
    %v3936 = vunpack.c.l.b16 %v1103
    %v3937 = vunpack.c.l.b16 %v1104
    %v3938 = vunpack.c.l.b16 %v1105
    %v3939 = vunpack.c.l.b16 %v1106
    %v3940 = vunpack.c.l.b16 %v1107
    %v3941 = vunpack.c.l.b16 %v1108
    %v3942 = vunpack.c.l.b16 %v1109
    %v3943 = vunpack.c.l.b16 %v1110
    %v3944 = vunpack.c.l.b16 %v1111
    %v3945 = vunpack.c.l.b16 %v1112
    %v3946 = vunpack.c.l.b16 %v1113
    %v3947 = vunpack.c.l.b16 %v1114
    %v3948 = vunpack.c.l.b16 %v1115
    %v3949 = vunpack.c.l.b16 %v1116
    %v3950 = vunpack.c.l.b16 %v1117
    %v3951 = vunpack.c.l.b16 %v1118
    %v3952 = vunpack.c.l.b16 %v1119
    %v3953 = vunpack.c.l.b16 %v1120
    %v3954 = vunpack.c.l.b16 %v1121
    %v3955 = vunpack.c.l.b16 %v1122
    %v3956 = vunpack.c.l.b16 %v1123
    %v3957 = vunpack.c.l.b16 %v1124
    %v3958 = vunpack.c.l.b16 %v1125
    %v3959 = vunpack.c.l.b16 %v1126
    %v3960 = vunpack.c.l.b16 %v1127
    %v3961 = vunpack.c.l.b16 %v1128
    %v3962 = vunpack.c.l.b16 %v1129
    %v3963 = vunpack.c.l.b16 %v1130
    %v3964 = vunpack.c.l.b16 %v1131
    %v3965 = vunpack.c.l.b16 %v1132
    %v3966 = vunpack.c.l.b16 %v1133
    %v3967 = vunpack.c.l.b16 %v1134
    %v3968 = vunpack.c.l.b16 %v1135
    %v3969 = vunpack.c.l.b16 %v1136
    %v3970 = vunpack.c.l.b16 %v1137
    %v3971 = vunpack.c.l.b16 %v1138
    %v3972 = vunpack.c.l.b16 %v1139
    %v3973 = vunpack.c.l.b16 %v1140
    %v3974 = vunpack.c.l.b16 %v1141
    %v3975 = vunpack.c.l.b16 %v1142
    %v3976 = vunpack.c.l.b16 %v1143
    %v3977 = vunpack.c.l.b16 %v1144
    %v3978 = vunpack.c.l.b16 %v1145
    %v3979 = vunpack.c.l.b16 %v1146
    %v3980 = vunpack.c.l.b16 %v1147
    %v3981 = vunpack.c.l.b16 %v1148
    %v3982 = vunpack.c.l.b16 %v1149
    %v3983 = vunpack.c.l.b16 %v1150
    %v3984 = vunpack.c.l.b16 %v1151
    %v3985 = vunpack.c.l.b16 %v1152
    %v3986 = vunpack.c.l.b16 %v1153
    %v3987 = vunpack.c.l.b16 %v1154
    %v3988 = vunpack.c.l.b16 %v1155
    %v3989 = vunpack.c.l.b16 %v1156
    %v3990 = vunpack.c.l.b16 %v1157
    %v3991 = vunpack.c.l.b16 %v1158
    %v3992 = vunpack.c.l.b16 %v1159
    %v3993 = vunpack.c.l.b16 %v1160
    %v3994 = vunpack.c.l.b16 %v1161
    %v3995 = vunpack.c.l.b16 %v1162
    %v3996 = vunpack.c.l.b16 %v1163
    %v3997 = vunpack.c.l.b16 %v1164
    %v3998 = vunpack.c.l.b16 %v1165
    %v3999 = vunpack.c.l.b16 %v1166
    %v4000 = vunpack.c.l.b16 %v1167
    %v4001 = vunpack.c.l.b16 %v1168
    %v4002 = vunpack.c.l.b16 %v1169
    %v4003 = vunpack.c.l.b16 %v1170
    %v4004 = vunpack.c.l.b16 %v1171
    %v4005 = vunpack.c.l.b16 %v1172
    %v4006 = vunpack.c.l.b16 %v1173
    %v4007 = vunpack.c.l.b16 %v1174
    %v4008 = vunpack.c.l.b16 %v1175
    %v4009 = vunpack.c.l.b16 %v1176
    %v4010 = vunpack.c.l.b16 %v1177
    %v4011 = vunpack.c.l.b16 %v1178
    %v4012 = vunpack.c.l.b16 %v1179
    %v4013 = vunpack.c.l.b16 %v1180
    %v4014 = vunpack.c.l.b16 %v1181
    %v4015 = vunpack.c.l.b16 %v1182
    %v4016 = vunpack.c.l.b16 %v1183
    %v4017 = vunpack.c.l.b16 %v1184
    %v4018 = vunpack.c.l.b16 %v1185
    %v4019 = vunpack.c.l.b16 %v1186
    %v4020 = vunpack.c.l.b16 %v1187
    %v4021 = vunpack.c.l.b16 %v1188
    %v4022 = vunpack.c.l.b16 %v1189
    %v4023 = vunpack.c.l.b16 %v1190
    %v4024 = vunpack.c.l.b16 %v1191
    %v4025 = vunpack.c.l.b16 %v1192
    %v4026 = vunpack.c.l.b16 %v1193
    %v4027 = vunpack.c.l.b16 %v1194
    %v4028 = vunpack.c.l.b16 %v1195
    %v4029 = vunpack.c.l.b16 %v1196
    %v4030 = vunpack.c.l.b16 %v1197
    %v4031 = vunpack.c.l.b16 %v1198
    %v4032 = vunpack.c.l.b16 %v1199
    %v4033 = vunpack.c.l.b16 %v1200
    %v4034 = vunpack.c.l.b16 %v1201
    %v4035 = vunpack.c.l.b16 %v1202
    %v4036 = vunpack.c.l.b16 %v1203
    %v4037 = vunpack.c.l.b16 %v1204
    %v4038 = vunpack.c.l.b16 %v1205
    %v4039 = vunpack.c.l.b16 %v1206
    %v4040 = vunpack.c.l.b16 %v1207
    %v4041 = vunpack.c.l.b16 %v1208
    %v4042 = vunpack.c.l.b16 %v1209
    %v4043 = vunpack.c.l.b16 %v1210
    %v4044 = vunpack.c.l.b16 %v1211
    %v4045 = vunpack.c.l.b16 %v1212
    %v4046 = vunpack.c.l.b16 %v1213
    %v4047 = vunpack.c.l.b16 %v1214
    %v4048 = vunpack.c.l.b16 %v1215
    %v4049 = vunpack.c.l.b16 %v1216
    %v4050 = vunpack.c.l.b16 %v1217
    %v4051 = vunpack.c.l.b16 %v1218
    %v4052 = vunpack.c.l.b16 %v1219
    %v4053 = vunpack.c.l.b16 %v1220
    %v4054 = vunpack.c.l.b16 %v1221
    %v4055 = vunpack.c.l.b16 %v1222
    %v4056 = vunpack.c.l.b16 %v1223
    %v4057 = vunpack.c.l.b16 %v1224
    %v4058 = vunpack.c.l.b16 %v1225
    %v4059 = vunpack.c.l.b16 %v1226
    %v4060 = vunpack.c.l.b16 %v1227
    %v4061 = vunpack.c.l.b16 %v1228
    %v4062 = vunpack.c.l.b16 %v1229
    %v4063 = vunpack.c.l.b16 %v1230
    %v4064 = vunpack.c.l.b16 %v1231
    %v4065 = vunpack.c.l.b16 %v1232
    %v4066 = vunpack.c.l.b16 %v1233
    %v4067 = vpack.c.b16 %v2916, %v2915
    %v4068 = vpack.c.b16 %v2918, %v2917
    %v4069 = vpack.c.b16 %v2920, %v2919
    %v4070 = vpack.c.b16 %v2922, %v2921
    %v4071 = vpack.c.b16 %v2924, %v2923
    %v4072 = vpack.c.b16 %v2926, %v2925
    %v4073 = vpack.c.b16 %v2928, %v2927
    %v4074 = vpack.c.b16 %v2930, %v2929
    %v4075 = vpack.c.b16 %v2932, %v2931
    %v4076 = vpack.c.b16 %v2934, %v2933
    %v4077 = vpack.c.b16 %v2936, %v2935
    %v4078 = vpack.c.b16 %v2938, %v2937
    %v4079 = vpack.c.b16 %v2940, %v2939
    %v4080 = vpack.c.b16 %v2942, %v2941
    %v4081 = vpack.c.b16 %v2944, %v2943
    %v4082 = vpack.c.b16 %v2946, %v2945
    %v4083 = vpack.c.b16 %v2948, %v2947
    %v4084 = vpack.c.b16 %v2950, %v2949
    %v4085 = vpack.c.b16 %v2952, %v2951
    %v4086 = vpack.c.b16 %v2954, %v2953
    %v4087 = vpack.c.b16 %v2956, %v2955
    %v4088 = vpack.c.b16 %v2958, %v2957
    %v4089 = vpack.c.b16 %v2960, %v2959
    %v4090 = vpack.c.b16 %v2962, %v2961
    %v4091 = vpack.c.b16 %v2964, %v2963
    %v4092 = vpack.c.b16 %v2966, %v2965
    %v4093 = vpack.c.b16 %v2968, %v2967
    %v4094 = vpack.c.b16 %v2970, %v2969
    %v4095 = vpack.c.b16 %v2972, %v2971
    %v4096 = vpack.c.b16 %v2974, %v2973
    %v4097 = vpack.c.b16 %v2976, %v2975
    %v4098 = vpack.c.b16 %v2978, %v2977
    %v4099 = vpack.c.b16 %v2980, %v2979
    %v4100 = vpack.c.b16 %v2982, %v2981
    %v4101 = vpack.c.b16 %v2984, %v2983
    %v4102 = vpack.c.b16 %v2986, %v2985
    %v4103 = vpack.c.b16 %v2988, %v2987
    %v4104 = vpack.c.b16 %v2990, %v2989
    %v4105 = vpack.c.b16 %v2992, %v2991
    %v4106 = vpack.c.b16 %v2994, %v2993
    %v4107 = vpack.c.b16 %v2996, %v2995
    %v4108 = vpack.c.b16 %v2998, %v2997
    %v4109 = vpack.c.b16 %v3000, %v2999
    %v4110 = vpack.c.b16 %v3002, %v3001
    %v4111 = vpack.c.b16 %v3004, %v3003
    %v4112 = vpack.c.b16 %v3006, %v3005
    %v4113 = vpack.c.b16 %v3008, %v3007
    %v4114 = vpack.c.b16 %v3010, %v3009
    %v4115 = vpack.c.b16 %v3012, %v3011
    %v4116 = vpack.c.b16 %v3014, %v3013
    %v4117 = vpack.c.b16 %v3016, %v3015
    %v4118 = vpack.c.b16 %v3018, %v3017
    %v4119 = vpack.c.b16 %v3020, %v3019
    %v4120 = vpack.c.b16 %v3022, %v3021
    %v4121 = vpack.c.b16 %v3024, %v3023
    %v4122 = vpack.c.b16 %v3026, %v3025
    %v4123 = vpack.c.b16 %v3028, %v3027
    %v4124 = vpack.c.b16 %v3030, %v3029
    %v4125 = vpack.c.b16 %v3032, %v3031
    %v4126 = vpack.c.b16 %v3034, %v3033
    %v4127 = vpack.c.b16 %v3036, %v3035
    %v4128 = vpack.c.b16 %v3038, %v3037
    %v4129 = vpack.c.b16 %v3040, %v3039
    %v4130 = vpack.c.b16 %v3042, %v3041
    %v4131 = vpack.c.b16 %v3044, %v3043
    %v4132 = vpack.c.b16 %v3046, %v3045
    %v4133 = vpack.c.b16 %v3048, %v3047
    %v4134 = vpack.c.b16 %v3050, %v3049
    %v4135 = vpack.c.b16 %v3052, %v3051
    %v4136 = vpack.c.b16 %v3054, %v3053
    %v4137 = vpack.c.b16 %v3056, %v3055
    %v4138 = vpack.c.b16 %v3058, %v3057
    %v4139 = vpack.c.b16 %v3060, %v3059
    %v4140 = vpack.c.b16 %v3062, %v3061
    %v4141 = vpack.c.b16 %v3064, %v3063
    %v4142 = vpack.c.b16 %v3066, %v3065
    %v4143 = vpack.c.b16 %v3068, %v3067
    %v4144 = vpack.c.b16 %v3070, %v3069
    %v4145 = vpack.c.b16 %v3072, %v3071
    %v4146 = vpack.c.b16 %v3074, %v3073
    %v4147 = vpack.c.b16 %v3076, %v3075
    %v4148 = vpack.c.b16 %v3078, %v3077
    %v4149 = vpack.c.b16 %v3080, %v3079
    %v4150 = vpack.c.b16 %v3082, %v3081
    %v4151 = vpack.c.b16 %v3084, %v3083
    %v4152 = vpack.c.b16 %v3086, %v3085
    %v4153 = vpack.c.b16 %v3088, %v3087
    %v4154 = vpack.c.b16 %v3090, %v3089
    %v4155 = vpack.c.b16 %v3092, %v3091
    %v4156 = vpack.c.b16 %v3094, %v3093
    %v4157 = vpack.c.b16 %v3096, %v3095
    %v4158 = vpack.c.b16 %v3098, %v3097
    %v4159 = vpack.c.b16 %v3100, %v3099
    %v4160 = vpack.c.b16 %v3102, %v3101
    %v4161 = vpack.c.b16 %v3104, %v3103
    %v4162 = vpack.c.b16 %v3106, %v3105
    %v4163 = vpack.c.b16 %v3108, %v3107
    %v4164 = vpack.c.b16 %v3110, %v3109
    %v4165 = vpack.c.b16 %v3112, %v3111
    %v4166 = vpack.c.b16 %v3114, %v3113
    %v4167 = vpack.c.b16 %v3116, %v3115
    %v4168 = vpack.c.b16 %v3118, %v3117
    %v4169 = vpack.c.b16 %v3120, %v3119
    %v4170 = vpack.c.b16 %v3122, %v3121
    %v4171 = vpack.c.b16 %v3124, %v3123
    %v4172 = vpack.c.b16 %v3126, %v3125
    %v4173 = vpack.c.b16 %v3128, %v3127
    %v4174 = vpack.c.b16 %v3130, %v3129
    %v4175 = vpack.c.b16 %v3132, %v3131
    %v4176 = vpack.c.b16 %v3134, %v3133
    %v4177 = vpack.c.b16 %v3136, %v3135
    %v4178 = vpack.c.b16 %v3138, %v3137
    %v4179 = vpack.c.b16 %v3140, %v3139
    %v4180 = vpack.c.b16 %v3142, %v3141
    %v4181 = vpack.c.b16 %v3144, %v3143
    %v4182 = vpack.c.b16 %v3146, %v3145
    %v4183 = vpack.c.b16 %v3148, %v3147
    %v4184 = vpack.c.b16 %v3150, %v3149
    %v4185 = vpack.c.b16 %v3152, %v3151
    %v4186 = vpack.c.b16 %v3154, %v3153
    %v4187 = vpack.c.b16 %v3156, %v3155
    %v4188 = vpack.c.b16 %v3158, %v3157
    %v4189 = vpack.c.b16 %v3160, %v3159
    %v4190 = vpack.c.b16 %v3162, %v3161
    %v4191 = vpack.c.b16 %v3164, %v3163
    %v4192 = vpack.c.b16 %v3166, %v3165
    %v4193 = vpack.c.b16 %v3168, %v3167
    %v4194 = vpack.c.b16 %v3170, %v3169
    %v4195 = vpack.c.b16 %v3172, %v3171
    %v4196 = vpack.c.b16 %v3174, %v3173
    %v4197 = vpack.c.b16 %v3176, %v3175
    %v4198 = vpack.c.b16 %v3178, %v3177
    %v4199 = vpack.c.b16 %v3180, %v3179
    %v4200 = vpack.c.b16 %v3182, %v3181
    %v4201 = vpack.c.b16 %v3184, %v3183
    %v4202 = vpack.c.b16 %v3186, %v3185
    %v4203 = vpack.c.b16 %v3188, %v3187
    %v4204 = vpack.c.b16 %v3190, %v3189
    %v4205 = vpack.c.b16 %v3192, %v3191
    %v4206 = vpack.c.b16 %v3194, %v3193
    %v4207 = vpack.c.b16 %v3196, %v3195
    %v4208 = vpack.c.b16 %v3198, %v3197
    %v4209 = vpack.c.b16 %v3200, %v3199
    %v4210 = vpack.c.b16 %v3202, %v3201
    %v4211 = vpack.c.b16 %v3204, %v3203
    %v4212 = vpack.c.b16 %v3206, %v3205
    %v4213 = vpack.c.b16 %v3208, %v3207
    %v4214 = vpack.c.b16 %v3210, %v3209
    %v4215 = vpack.c.b16 %v3212, %v3211
    %v4216 = vpack.c.b16 %v3214, %v3213
    %v4217 = vpack.c.b16 %v3216, %v3215
    %v4218 = vpack.c.b16 %v3218, %v3217
    %v4219 = vpack.c.b16 %v3220, %v3219
    %v4220 = vpack.c.b16 %v3222, %v3221
    %v4221 = vpack.c.b16 %v3224, %v3223
    %v4222 = vpack.c.b16 %v3226, %v3225
    %v4223 = vpack.c.b16 %v3228, %v3227
    %v4224 = vpack.c.b16 %v3230, %v3229
    %v4225 = vpack.c.b16 %v3232, %v3231
    %v4226 = vpack.c.b16 %v3234, %v3233
    %v4227 = vpack.c.b16 %v3236, %v3235
    %v4228 = vpack.c.b16 %v3238, %v3237
    %v4229 = vpack.c.b16 %v3240, %v3239
    %v4230 = vpack.c.b16 %v3242, %v3241
    %v4231 = vpack.c.b16 %v3244, %v3243
    %v4232 = vpack.c.b16 %v3246, %v3245
    %v4233 = vpack.c.b16 %v3248, %v3247
    %v4234 = vpack.c.b16 %v3250, %v3249
    %v4235 = vpack.c.b16 %v3252, %v3251
    %v4236 = vpack.c.b16 %v3254, %v3253
    %v4237 = vpack.c.b16 %v3256, %v3255
    %v4238 = vpack.c.b16 %v3258, %v3257
    %v4239 = vpack.c.b16 %v3260, %v3259
    %v4240 = vpack.c.b16 %v3262, %v3261
    %v4241 = vpack.c.b16 %v3264, %v3263
    %v4242 = vpack.c.b16 %v3266, %v3265
    %v4243 = vpack.c.b16 %v3268, %v3267
    %v4244 = vpack.c.b16 %v3270, %v3269
    %v4245 = vpack.c.b16 %v3272, %v3271
    %v4246 = vpack.c.b16 %v3274, %v3273
    %v4247 = vpack.c.b16 %v3276, %v3275
    %v4248 = vpack.c.b16 %v3278, %v3277
    %v4249 = vpack.c.b16 %v3280, %v3279
    %v4250 = vpack.c.b16 %v3282, %v3281
    %v4251 = vpack.c.b16 %v3284, %v3283
    %v4252 = vpack.c.b16 %v3286, %v3285
    %v4253 = vpack.c.b16 %v3288, %v3287
    %v4254 = vpack.c.b16 %v3290, %v3289
    %v4255 = vpack.c.b16 %v3292, %v3291
    %v4256 = vpack.c.b16 %v3294, %v3293
    %v4257 = vpack.c.b16 %v3296, %v3295
    %v4258 = vpack.c.b16 %v3298, %v3297
    %v4259 = vpack.c.b16 %v3300, %v3299
    %v4260 = vpack.c.b16 %v3302, %v3301
    %v4261 = vpack.c.b16 %v3304, %v3303
    %v4262 = vpack.c.b16 %v3306, %v3305
    %v4263 = vpack.c.b16 %v3308, %v3307
    %v4264 = vpack.c.b16 %v3310, %v3309
    %v4265 = vpack.c.b16 %v3312, %v3311
    %v4266 = vpack.c.b16 %v3314, %v3313
    %v4267 = vpack.c.b16 %v3316, %v3315
    %v4268 = vpack.c.b16 %v3318, %v3317
    %v4269 = vpack.c.b16 %v3320, %v3319
    %v4270 = vpack.c.b16 %v3322, %v3321
    %v4271 = vpack.c.b16 %v3324, %v3323
    %v4272 = vpack.c.b16 %v3326, %v3325
    %v4273 = vpack.c.b16 %v3328, %v3327
    %v4274 = vpack.c.b16 %v3330, %v3329
    %v4275 = vpack.c.b16 %v3332, %v3331
    %v4276 = vpack.c.b16 %v3334, %v3333
    %v4277 = vpack.c.b16 %v3336, %v3335
    %v4278 = vpack.c.b16 %v3338, %v3337
    %v4279 = vpack.c.b16 %v3340, %v3339
    %v4280 = vpack.c.b16 %v3342, %v3341
    %v4281 = vpack.c.b16 %v3344, %v3343
    %v4282 = vpack.c.b16 %v3346, %v3345
    %v4283 = vpack.c.b16 %v3348, %v3347
    %v4284 = vpack.c.b16 %v3350, %v3349
    %v4285 = vpack.c.b16 %v3352, %v3351
    %v4286 = vpack.c.b16 %v3354, %v3353
    %v4287 = vpack.c.b16 %v3356, %v3355
    %v4288 = vpack.c.b16 %v3358, %v3357
    %v4289 = vpack.c.b16 %v3360, %v3359
    %v4290 = vpack.c.b16 %v3362, %v3361
    %v4291 = vpack.c.b16 %v3364, %v3363
    %v4292 = vpack.c.b16 %v3366, %v3365
    %v4293 = vpack.c.b16 %v3368, %v3367
    %v4294 = vpack.c.b16 %v3370, %v3369
    %v4295 = vpack.c.b16 %v3372, %v3371
    %v4296 = vpack.c.b16 %v3374, %v3373
    %v4297 = vpack.c.b16 %v3376, %v3375
    %v4298 = vpack.c.b16 %v3378, %v3377
    %v4299 = vpack.c.b16 %v3380, %v3379
    %v4300 = vpack.c.b16 %v3382, %v3381
    %v4301 = vpack.c.b16 %v3384, %v3383
    %v4302 = vpack.c.b16 %v3386, %v3385
    %v4303 = vpack.c.b16 %v3388, %v3387
    %v4304 = vpack.c.b16 %v3390, %v3389
    %v4305 = vpack.c.b16 %v3392, %v3391
    %v4306 = vpack.c.b16 %v3394, %v3393
    %v4307 = vpack.c.b16 %v3396, %v3395
    %v4308 = vpack.c.b16 %v3398, %v3397
    %v4309 = vpack.c.b16 %v3400, %v3399
    %v4310 = vpack.c.b16 %v3402, %v3401
    %v4311 = vpack.c.b16 %v3404, %v3403
    %v4312 = vpack.c.b16 %v3406, %v3405
    %v4313 = vpack.c.b16 %v3408, %v3407
    %v4314 = vpack.c.b16 %v3410, %v3409
    %v4315 = vpack.c.b16 %v3412, %v3411
    %v4316 = vpack.c.b16 %v3414, %v3413
    %v4317 = vpack.c.b16 %v3416, %v3415
    %v4318 = vpack.c.b16 %v3418, %v3417
    %v4319 = vpack.c.b16 %v3420, %v3419
    %v4320 = vpack.c.b16 %v3422, %v3421
    %v4321 = vpack.c.b16 %v3424, %v3423
    %v4322 = vpack.c.b16 %v3426, %v3425
    %v4323 = vpack.c.b16 %v3428, %v3427
    %v4324 = vpack.c.b16 %v3430, %v3429
    %v4325 = vpack.c.b16 %v3432, %v3431
    %v4326 = vpack.c.b16 %v3434, %v3433
    %v4327 = vpack.c.b16 %v3436, %v3435
    %v4328 = vpack.c.b16 %v3438, %v3437
    %v4329 = vpack.c.b16 %v3440, %v3439
    %v4330 = vpack.c.b16 %v3442, %v3441
    %v4331 = vpack.c.b16 %v3444, %v3443
    %v4332 = vpack.c.b16 %v3446, %v3445
    %v4333 = vpack.c.b16 %v3448, %v3447
    %v4334 = vpack.c.b16 %v3450, %v3449
    %v4335 = vpack.c.b16 %v3452, %v3451
    %v4336 = vpack.c.b16 %v3454, %v3453
    %v4337 = vpack.c.b16 %v3456, %v3455
    %v4338 = vpack.c.b16 %v3458, %v3457
    %v4339 = vpack.c.b16 %v3460, %v3459
    %v4340 = vpack.c.b16 %v3462, %v3461
    %v4341 = vpack.c.b16 %v3464, %v3463
    %v4342 = vpack.c.b16 %v3466, %v3465
    %v4343 = vpack.c.b16 %v3468, %v3467
    %v4344 = vpack.c.b16 %v3470, %v3469
    %v4345 = vpack.c.b16 %v3472, %v3471
    %v4346 = vpack.c.b16 %v3474, %v3473
    %v4347 = vpack.c.b16 %v3476, %v3475
    %v4348 = vpack.c.b16 %v3478, %v3477
    %v4349 = vpack.c.b16 %v3480, %v3479
    %v4350 = vpack.c.b16 %v3482, %v3481
    %v4351 = vpack.c.b16 %v3484, %v3483
    %v4352 = vpack.c.b16 %v3486, %v3485
    %v4353 = vpack.c.b16 %v3488, %v3487
    %v4354 = vpack.c.b16 %v3490, %v3489
    %v4355 = vpack.c.b16 %v3492, %v3491
    %v4356 = vpack.c.b16 %v3494, %v3493
    %v4357 = vpack.c.b16 %v3496, %v3495
    %v4358 = vpack.c.b16 %v3498, %v3497
    %v4359 = vpack.c.b16 %v3500, %v3499
    %v4360 = vpack.c.b16 %v3502, %v3501
    %v4361 = vpack.c.b16 %v3504, %v3503
    %v4362 = vpack.c.b16 %v3506, %v3505
    %v4363 = vpack.c.b16 %v3508, %v3507
    %v4364 = vpack.c.b16 %v3510, %v3509
    %v4365 = vpack.c.b16 %v3512, %v3511
    %v4366 = vpack.c.b16 %v3514, %v3513
    %v4367 = vpack.c.b16 %v3516, %v3515
    %v4368 = vpack.c.b16 %v3518, %v3517
    %v4369 = vpack.c.b16 %v3520, %v3519
    %v4370 = vpack.c.b16 %v3522, %v3521
    %v4371 = vpack.c.b16 %v3524, %v3523
    %v4372 = vpack.c.b16 %v3526, %v3525
    %v4373 = vpack.c.b16 %v3528, %v3527
    %v4374 = vpack.c.b16 %v3530, %v3529
    %v4375 = vpack.c.b16 %v3532, %v3531
    %v4376 = vpack.c.b16 %v3534, %v3533
    %v4377 = vpack.c.b16 %v3536, %v3535
    %v4378 = vpack.c.b16 %v3538, %v3537
    %v4379 = vpack.c.b16 %v3540, %v3539
    %v4380 = vpack.c.b16 %v3542, %v3541
    %v4381 = vpack.c.b16 %v3544, %v3543
    %v4382 = vpack.c.b16 %v3546, %v3545
    %v4383 = vpack.c.b16 %v3548, %v3547
    %v4384 = vpack.c.b16 %v3550, %v3549
    %v4385 = vpack.c.b16 %v3552, %v3551
    %v4386 = vpack.c.b16 %v3554, %v3553
    %v4387 = vpack.c.b16 %v3556, %v3555
    %v4388 = vpack.c.b16 %v3558, %v3557
    %v4389 = vpack.c.b16 %v3560, %v3559
    %v4390 = vpack.c.b16 %v3562, %v3561
    %v4391 = vpack.c.b16 %v3564, %v3563
    %v4392 = vpack.c.b16 %v3566, %v3565
    %v4393 = vpack.c.b16 %v3568, %v3567
    %v4394 = vpack.c.b16 %v3570, %v3569
    %v4395 = vpack.c.b16 %v3572, %v3571
    %v4396 = vpack.c.b16 %v3574, %v3573
    %v4397 = vpack.c.b16 %v3576, %v3575
    %v4398 = vpack.c.b16 %v3578, %v3577
    %v4399 = vpack.c.b16 %v3580, %v3579
    %v4400 = vpack.c.b16 %v3582, %v3581
    %v4401 = vpack.c.b16 %v3584, %v3583
    %v4402 = vpack.c.b16 %v3586, %v3585
    %v4403 = vpack.c.b16 %v3588, %v3587
    %v4404 = vpack.c.b16 %v3590, %v3589
    %v4405 = vpack.c.b16 %v3592, %v3591
    %v4406 = vpack.c.b16 %v3594, %v3593
    %v4407 = vpack.c.b16 %v3596, %v3595
    %v4408 = vpack.c.b16 %v3598, %v3597
    %v4409 = vpack.c.b16 %v3600, %v3599
    %v4410 = vpack.c.b16 %v3602, %v3601
    %v4411 = vpack.c.b16 %v3604, %v3603
    %v4412 = vpack.c.b16 %v3606, %v3605
    %v4413 = vpack.c.b16 %v3608, %v3607
    %v4414 = vpack.c.b16 %v3610, %v3609
    %v4415 = vpack.c.b16 %v3612, %v3611
    %v4416 = vpack.c.b16 %v3614, %v3613
    %v4417 = vpack.c.b16 %v3616, %v3615
    %v4418 = vpack.c.b16 %v3618, %v3617
    %v4419 = vpack.c.b16 %v3620, %v3619
    %v4420 = vpack.c.b16 %v3622, %v3621
    %v4421 = vpack.c.b16 %v3624, %v3623
    %v4422 = vpack.c.b16 %v3626, %v3625
    %v4423 = vpack.c.b16 %v3628, %v3627
    %v4424 = vpack.c.b16 %v3630, %v3629
    %v4425 = vpack.c.b16 %v3632, %v3631
    %v4426 = vpack.c.b16 %v3634, %v3633
    %v4427 = vpack.c.b16 %v3636, %v3635
    %v4428 = vpack.c.b16 %v3638, %v3637
    %v4429 = vpack.c.b16 %v3640, %v3639
    %v4430 = vpack.c.b16 %v3642, %v3641
    %v4431 = vpack.c.b16 %v3644, %v3643
    %v4432 = vpack.c.b16 %v3646, %v3645
    %v4433 = vpack.c.b16 %v3648, %v3647
    %v4434 = vpack.c.b16 %v3650, %v3649
    %v4435 = vpack.c.b16 %v3652, %v3651
    %v4436 = vpack.c.b16 %v3654, %v3653
    %v4437 = vpack.c.b16 %v3656, %v3655
    %v4438 = vpack.c.b16 %v3658, %v3657
    %v4439 = vpack.c.b16 %v3660, %v3659
    %v4440 = vpack.c.b16 %v3662, %v3661
    %v4441 = vpack.c.b16 %v3664, %v3663
    %v4442 = vpack.c.b16 %v3666, %v3665
    %v4443 = vpack.c.b16 %v3668, %v3667
    %v4444 = vpack.c.b16 %v3670, %v3669
    %v4445 = vpack.c.b16 %v3672, %v3671
    %v4446 = vpack.c.b16 %v3674, %v3673
    %v4447 = vpack.c.b16 %v3676, %v3675
    %v4448 = vpack.c.b16 %v3678, %v3677
    %v4449 = vpack.c.b16 %v3680, %v3679
    %v4450 = vpack.c.b16 %v3682, %v3681
    %v4451 = vpack.c.b16 %v3684, %v3683
    %v4452 = vpack.c.b16 %v3686, %v3685
    %v4453 = vpack.c.b16 %v3688, %v3687
    %v4454 = vpack.c.b16 %v3690, %v3689
    %v4455 = vpack.c.b16 %v3692, %v3691
    %v4456 = vpack.c.b16 %v3694, %v3693
    %v4457 = vpack.c.b16 %v3696, %v3695
    %v4458 = vpack.c.b16 %v3698, %v3697
    %v4459 = vpack.c.b16 %v3700, %v3699
    %v4460 = vpack.c.b16 %v3702, %v3701
    %v4461 = vpack.c.b16 %v3704, %v3703
    %v4462 = vpack.c.b16 %v3706, %v3705
    %v4463 = vpack.c.b16 %v3708, %v3707
    %v4464 = vpack.c.b16 %v3710, %v3709
    %v4465 = vpack.c.b16 %v3712, %v3711
    %v4466 = vpack.c.b16 %v3714, %v3713
    %v4467 = vpack.c.b16 %v3716, %v3715
    %v4468 = vpack.c.b16 %v3718, %v3717
    %v4469 = vpack.c.b16 %v3720, %v3719
    %v4470 = vpack.c.b16 %v3722, %v3721
    %v4471 = vpack.c.b16 %v3724, %v3723
    %v4472 = vpack.c.b16 %v3726, %v3725
    %v4473 = vpack.c.b16 %v3728, %v3727
    %v4474 = vpack.c.b16 %v3730, %v3729
    %v4475 = vpack.c.b16 %v3732, %v3731
    %v4476 = vpack.c.b16 %v3734, %v3733
    %v4477 = vpack.c.b16 %v3736, %v3735
    %v4478 = vpack.c.b16 %v3738, %v3737
    %v4479 = vpack.c.b16 %v3740, %v3739
    %v4480 = vpack.c.b16 %v3742, %v3741
    %v4481 = vpack.c.b16 %v3744, %v3743
    %v4482 = vpack.c.b16 %v3746, %v3745
    %v4483 = vpack.c.b16 %v3748, %v3747
    %v4484 = vpack.c.b16 %v3750, %v3749
    %v4485 = vpack.c.b16 %v3752, %v3751
    %v4486 = vpack.c.b16 %v3754, %v3753
    %v4487 = vpack.c.b16 %v3756, %v3755
    %v4488 = vpack.c.b16 %v3758, %v3757
    %v4489 = vpack.c.b16 %v3760, %v3759
    %v4490 = vpack.c.b16 %v3762, %v3761
    %v4491 = vpack.c.b16 %v3764, %v3763
    %v4492 = vpack.c.b16 %v3766, %v3765
    %v4493 = vpack.c.b16 %v3768, %v3767
    %v4494 = vpack.c.b16 %v3770, %v3769
    %v4495 = vpack.c.b16 %v3772, %v3771
    %v4496 = vpack.c.b16 %v3774, %v3773
    %v4497 = vpack.c.b16 %v3776, %v3775
    %v4498 = vpack.c.b16 %v3778, %v3777
    %v4499 = vpack.c.b16 %v3780, %v3779
    %v4500 = vpack.c.b16 %v3782, %v3781
    %v4501 = vpack.c.b16 %v3784, %v3783
    %v4502 = vpack.c.b16 %v3786, %v3785
    %v4503 = vpack.c.b16 %v3788, %v3787
    %v4504 = vpack.c.b16 %v3790, %v3789
    %v4505 = vpack.c.b16 %v3792, %v3791
    %v4506 = vpack.c.b16 %v3794, %v3793
    %v4507 = vpack.c.b16 %v3796, %v3795
    %v4508 = vpack.c.b16 %v3798, %v3797
    %v4509 = vpack.c.b16 %v3800, %v3799
    %v4510 = vpack.c.b16 %v3802, %v3801
    %v4511 = vpack.c.b16 %v3804, %v3803
    %v4512 = vpack.c.b16 %v3806, %v3805
    %v4513 = vpack.c.b16 %v3808, %v3807
    %v4514 = vpack.c.b16 %v3810, %v3809
    %v4515 = vpack.c.b16 %v3812, %v3811
    %v4516 = vpack.c.b16 %v3814, %v3813
    %v4517 = vpack.c.b16 %v3816, %v3815
    %v4518 = vpack.c.b16 %v3818, %v3817
    %v4519 = vpack.c.b16 %v3820, %v3819
    %v4520 = vpack.c.b16 %v3822, %v3821
    %v4521 = vpack.c.b16 %v3824, %v3823
    %v4522 = vpack.c.b16 %v3826, %v3825
    %v4523 = vpack.c.b16 %v3828, %v3827
    %v4524 = vpack.c.b16 %v3830, %v3829
    %v4525 = vpack.c.b16 %v3832, %v3831
    %v4526 = vpack.c.b16 %v3834, %v3833
    %v4527 = vpack.c.b16 %v3836, %v3835
    %v4528 = vpack.c.b16 %v3838, %v3837
    %v4529 = vpack.c.b16 %v3840, %v3839
    %v4530 = vpack.c.b16 %v3842, %v3841
    %v4531 = vpack.c.b16 %v3844, %v3843
    %v4532 = vpack.c.b16 %v3846, %v3845
    %v4533 = vpack.c.b16 %v3848, %v3847
    %v4534 = vpack.c.b16 %v3850, %v3849
    %v4535 = vpack.c.b16 %v3852, %v3851
    %v4536 = vpack.c.b16 %v3854, %v3853
    %v4537 = vpack.c.b16 %v3856, %v3855
    %v4538 = vpack.c.b16 %v3858, %v3857
    %v4539 = vpack.c.b16 %v3860, %v3859
    %v4540 = vpack.c.b16 %v3862, %v3861
    %v4541 = vpack.c.b16 %v3864, %v3863
    %v4542 = vpack.c.b16 %v3866, %v3865
    %v4543 = vpack.c.b16 %v3868, %v3867
    %v4544 = vpack.c.b16 %v3870, %v3869
    %v4545 = vpack.c.b16 %v3872, %v3871
    %v4546 = vpack.c.b16 %v3874, %v3873
    %v4547 = vpack.c.b16 %v3876, %v3875
    %v4548 = vpack.c.b16 %v3878, %v3877
    %v4549 = vpack.c.b16 %v3880, %v3879
    %v4550 = vpack.c.b16 %v3882, %v3881
    %v4551 = vpack.c.b16 %v3884, %v3883
    %v4552 = vpack.c.b16 %v3886, %v3885
    %v4553 = vpack.c.b16 %v3888, %v3887
    %v4554 = vpack.c.b16 %v3890, %v3889
    %v4555 = vpack.c.b16 %v3892, %v3891
    %v4556 = vpack.c.b16 %v3894, %v3893
    %v4557 = vpack.c.b16 %v3896, %v3895
    %v4558 = vpack.c.b16 %v3898, %v3897
    %v4559 = vpack.c.b16 %v3900, %v3899
    %v4560 = vpack.c.b16 %v3902, %v3901
    %v4561 = vpack.c.b16 %v3904, %v3903
    %v4562 = vpack.c.b16 %v3906, %v3905
    %v4563 = vpack.c.b16 %v3908, %v3907
    %v4564 = vpack.c.b16 %v3910, %v3909
    %v4565 = vpack.c.b16 %v3912, %v3911
    %v4566 = vpack.c.b16 %v3914, %v3913
    %v4567 = vpack.c.b16 %v3916, %v3915
    %v4568 = vpack.c.b16 %v3918, %v3917
    %v4569 = vpack.c.b16 %v3920, %v3919
    %v4570 = vpack.c.b16 %v3922, %v3921
    %v4571 = vpack.c.b16 %v3924, %v3923
    %v4572 = vpack.c.b16 %v3926, %v3925
    %v4573 = vpack.c.b16 %v3928, %v3927
    %v4574 = vpack.c.b16 %v3930, %v3929
    %v4575 = vpack.c.b16 %v3932, %v3931
    %v4576 = vpack.c.b16 %v3934, %v3933
    %v4577 = vpack.c.b16 %v3936, %v3935
    %v4578 = vpack.c.b16 %v3938, %v3937
    %v4579 = vpack.c.b16 %v3940, %v3939
    %v4580 = vpack.c.b16 %v3942, %v3941
    %v4581 = vpack.c.b16 %v3944, %v3943
    %v4582 = vpack.c.b16 %v3946, %v3945
    %v4583 = vpack.c.b16 %v3948, %v3947
    %v4584 = vpack.c.b16 %v3950, %v3949
    %v4585 = vpack.c.b16 %v3952, %v3951
    %v4586 = vpack.c.b16 %v3954, %v3953
    %v4587 = vpack.c.b16 %v3956, %v3955
    %v4588 = vpack.c.b16 %v3958, %v3957
    %v4589 = vpack.c.b16 %v3960, %v3959
    %v4590 = vpack.c.b16 %v3962, %v3961
    %v4591 = vpack.c.b16 %v3964, %v3963
    %v4592 = vpack.c.b16 %v3966, %v3965
    %v4593 = vpack.c.b16 %v3968, %v3967
    %v4594 = vpack.c.b16 %v3970, %v3969
    %v4595 = vpack.c.b16 %v3972, %v3971
    %v4596 = vpack.c.b16 %v3974, %v3973
    %v4597 = vpack.c.b16 %v3976, %v3975
    %v4598 = vpack.c.b16 %v3978, %v3977
    %v4599 = vpack.c.b16 %v3980, %v3979
    %v4600 = vpack.c.b16 %v3982, %v3981
    %v4601 = vpack.c.b16 %v3984, %v3983
    %v4602 = vpack.c.b16 %v3986, %v3985
    %v4603 = vpack.c.b16 %v3988, %v3987
    %v4604 = vpack.c.b16 %v3990, %v3989
    %v4605 = vpack.c.b16 %v3992, %v3991
    %v4606 = vpack.c.b16 %v3994, %v3993
    %v4607 = vpack.c.b16 %v3996, %v3995
    %v4608 = vpack.c.b16 %v3998, %v3997
    %v4609 = vpack.c.b16 %v4000, %v3999
    %v4610 = vpack.c.b16 %v4002, %v4001
    %v4611 = vpack.c.b16 %v4004, %v4003
    %v4612 = vpack.c.b16 %v4006, %v4005
    %v4613 = vpack.c.b16 %v4008, %v4007
    %v4614 = vpack.c.b16 %v4010, %v4009
    %v4615 = vpack.c.b16 %v4012, %v4011
    %v4616 = vpack.c.b16 %v4014, %v4013
    %v4617 = vpack.c.b16 %v4016, %v4015
    %v4618 = vpack.c.b16 %v4018, %v4017
    %v4619 = vpack.c.b16 %v4020, %v4019
    %v4620 = vpack.c.b16 %v4022, %v4021
    %v4621 = vpack.c.b16 %v4024, %v4023
    %v4622 = vpack.c.b16 %v4026, %v4025
    %v4623 = vpack.c.b16 %v4028, %v4027
    %v4624 = vpack.c.b16 %v4030, %v4029
    %v4625 = vpack.c.b16 %v4032, %v4031
    %v4626 = vpack.c.b16 %v4034, %v4033
    %v4627 = vpack.c.b16 %v4036, %v4035
    %v4628 = vpack.c.b16 %v4038, %v4037
    %v4629 = vpack.c.b16 %v4040, %v4039
    %v4630 = vpack.c.b16 %v4042, %v4041
    %v4631 = vpack.c.b16 %v4044, %v4043
    %v4632 = vpack.c.b16 %v4046, %v4045
    %v4633 = vpack.c.b16 %v4048, %v4047
    %v4634 = vpack.c.b16 %v4050, %v4049
    %v4635 = vpack.c.b16 %v4052, %v4051
    %v4636 = vpack.c.b16 %v4054, %v4053
    %v4637 = vpack.c.b16 %v4056, %v4055
    %v4638 = vpack.c.b16 %v4058, %v4057
    %v4639 = vpack.c.b16 %v4060, %v4059
    %v4640 = vpack.c.b16 %v4062, %v4061
    %v4641 = vpack.c.b16 %v4064, %v4063
    %v4642 = vpack.c.b16 %v4066, %v4065
    %5219 = vmatprep.subr.bf16.mxu0 0
    %5220 = vmatpush1.bf16.msra.mxu0 %v4067
    %5221 = vmatprep.subr.bf16.mxu0 0
    %5222 = vmatpush1.bf16.msra.mxu0 %v4068
    %5223 = vmatprep.subr.bf16.mxu0 0
    %5224 = vmatpush1.bf16.msra.mxu0 %v4069
    %5225 = vmatprep.subr.bf16.mxu0 0
    %5226 = vmatpush1.bf16.msra.mxu0 %v4070
    %5227 = vmatprep.subr.bf16.mxu0 0
    %5228 = vmatpush1.bf16.msra.mxu0 %v4071
    %5229 = vmatprep.subr.bf16.mxu0 0
    %5230 = vmatpush1.bf16.msra.mxu0 %v4072
    %5231 = vmatprep.subr.bf16.mxu0 0
    %5232 = vmatpush1.bf16.msra.mxu0 %v4073
    %5233 = vmatprep.subr.bf16.mxu0 0
    %5234 = vmatpush1.bf16.msra.mxu0 %v4074
    %5235 = vmatprep.subr.bf16.mxu0 0
    %5236 = vmatpush1.bf16.msra.mxu0 %v4075
    %5237 = vmatprep.subr.bf16.mxu0 0
    %5238 = vmatpush1.bf16.msra.mxu0 %v4076
    %5239 = vmatprep.subr.bf16.mxu0 0
    %5240 = vmatpush1.bf16.msra.mxu0 %v4077
    %5241 = vmatprep.subr.bf16.mxu0 0
    %5242 = vmatpush1.bf16.msra.mxu0 %v4078
    %5243 = vmatprep.subr.bf16.mxu0 0
    %5244 = vmatpush1.bf16.msra.mxu0 %v4079
    %5245 = vmatprep.subr.bf16.mxu0 0
    %5246 = vmatpush1.bf16.msra.mxu0 %v4080
    %5247 = vmatprep.subr.bf16.mxu0 0
    %5248 = vmatpush1.bf16.msra.mxu0 %v4081
    %5249 = vmatprep.subr.bf16.mxu0 0
    %5250 = vmatpush1.bf16.msra.mxu0 %v4082
    %5251 = vmatprep.mubr.bf16.mxu0 %v1287
    %5252 = vmatmul.mubr.bf16.gmra.mrb[0].mxu0 %v1273
    %v5253 = vpop.f32.mrb[0].mxu0
    %v5254 = vadd.f32 %v1239, %v5253
    %v5255 = vpop.f32.mrb[0].mxu0
    %v5256 = vpop.f32.mrb[0].mxu0
    %v5257 = vpop.f32.mrb[0].mxu0
    %5258 = vdwg.mxu0
    %5259 = vmatprep.subr.bf16.mxu0 0
    %5260 = vmatpush1.bf16.msra.mxu0 %v4083
    %5261 = vmatprep.subr.bf16.mxu0 0
    %5262 = vmatpush1.bf16.msra.mxu0 %v4084
    %5263 = vmatprep.subr.bf16.mxu0 0
    %5264 = vmatpush1.bf16.msra.mxu0 %v4085
    %5265 = vmatprep.subr.bf16.mxu0 0
    %5266 = vmatpush1.bf16.msra.mxu0 %v4086
    %5267 = vmatprep.subr.bf16.mxu0 0
    %5268 = vmatpush1.bf16.msra.mxu0 %v4087
    %5269 = vmatprep.subr.bf16.mxu0 0
    %5270 = vmatpush1.bf16.msra.mxu0 %v4088
    %5271 = vmatprep.subr.bf16.mxu0 0
    %5272 = vmatpush1.bf16.msra.mxu0 %v4089
    %5273 = vmatprep.subr.bf16.mxu0 0
    %5274 = vmatpush1.bf16.msra.mxu0 %v4090
    %5275 = vmatprep.subr.bf16.mxu0 0
    %5276 = vmatpush1.bf16.msra.mxu0 %v4091
    %5277 = vmatprep.subr.bf16.mxu0 0
    %5278 = vmatpush1.bf16.msra.mxu0 %v4092
    %5279 = vmatprep.subr.bf16.mxu0 0
    %5280 = vmatpush1.bf16.msra.mxu0 %v4093
    %5281 = vmatprep.subr.bf16.mxu0 0
    %5282 = vmatpush1.bf16.msra.mxu0 %v4094
    %5283 = vmatprep.subr.bf16.mxu0 0
    %5284 = vmatpush1.bf16.msra.mxu0 %v4095
    %5285 = vmatprep.subr.bf16.mxu0 0
    %5286 = vmatpush1.bf16.msra.mxu0 %v4096
    %5287 = vmatprep.subr.bf16.mxu0 0
    %5288 = vmatpush1.bf16.msra.mxu0 %v4097
    %5289 = vmatprep.subr.bf16.mxu0 0
    %5290 = vmatpush1.bf16.msra.mxu0 %v4098
    %5291 = vmatprep.mubr.bf16.mxu0 %v1297
    %5292 = vmatmul.mubr.bf16.gmra.mrb[0].mxu0 %v1295
    %v5293 = vpop.f32.mrb[0].mxu0
    %v5294 = vadd.f32 %v5254, %v5293
    %v5295 = vpop.f32.mrb[0].mxu0
    %v5296 = vpop.f32.mrb[0].mxu0
    %v5297 = vpop.f32.mrb[0].mxu0
    %5298 = vdwg.mxu0
    %5299 = vmatprep.subr.bf16.mxu0 0
    %5300 = vmatpush1.bf16.msra.mxu0 %v4099
    %5301 = vmatprep.subr.bf16.mxu0 0
    %5302 = vmatpush1.bf16.msra.mxu0 %v4100
    %5303 = vmatprep.subr.bf16.mxu0 0
    %5304 = vmatpush1.bf16.msra.mxu0 %v4101
    %5305 = vmatprep.subr.bf16.mxu0 0
    %5306 = vmatpush1.bf16.msra.mxu0 %v4102
    %5307 = vmatprep.subr.bf16.mxu0 0
    %5308 = vmatpush1.bf16.msra.mxu0 %v4103
    %5309 = vmatprep.subr.bf16.mxu0 0
    %5310 = vmatpush1.bf16.msra.mxu0 %v4104
    %5311 = vmatprep.subr.bf16.mxu0 0
    %5312 = vmatpush1.bf16.msra.mxu0 %v4105
    %5313 = vmatprep.subr.bf16.mxu0 0
    %5314 = vmatpush1.bf16.msra.mxu0 %v4106
    %5315 = vmatprep.subr.bf16.mxu0 0
    %5316 = vmatpush1.bf16.msra.mxu0 %v4107
    %5317 = vmatprep.subr.bf16.mxu0 0
    %5318 = vmatpush1.bf16.msra.mxu0 %v4108
    %5319 = vmatprep.subr.bf16.mxu0 0
    %5320 = vmatpush1.bf16.msra.mxu0 %v4109
    %5321 = vmatprep.subr.bf16.mxu0 0
    %5322 = vmatpush1.bf16.msra.mxu0 %v4110
    %5323 = vmatprep.subr.bf16.mxu0 0
    %5324 = vmatpush1.bf16.msra.mxu0 %v4111
    %5325 = vmatprep.subr.bf16.mxu0 0
    %5326 = vmatpush1.bf16.msra.mxu0 %v4112
    %5327 = vmatprep.subr.bf16.mxu0 0
    %5328 = vmatpush1.bf16.msra.mxu0 %v4113
    %5329 = vmatprep.subr.bf16.mxu0 0
    %5330 = vmatpush1.bf16.msra.mxu0 %v4114
    %5331 = vmatprep.mubr.bf16.mxu0 %v1294
    %5332 = vmatmul.mubr.bf16.gmra.mrb[0].mxu0 %v1280
    %v5333 = vpop.f32.mrb[0].mxu0
    %v5334 = vadd.f32 %v5294, %v5333
    %v5335 = vpop.f32.mrb[0].mxu0
    %v5336 = vpop.f32.mrb[0].mxu0
    %v5337 = vpop.f32.mrb[0].mxu0
    %5338 = vdwg.mxu0
    %5339 = vmatprep.subr.bf16.mxu0 0
    %5340 = vmatpush1.bf16.msra.mxu0 %v4115
    %5341 = vmatprep.subr.bf16.mxu0 0
    %5342 = vmatpush1.bf16.msra.mxu0 %v4116
    %5343 = vmatprep.subr.bf16.mxu0 0
    %5344 = vmatpush1.bf16.msra.mxu0 %v4117
    %5345 = vmatprep.subr.bf16.mxu0 0
    %5346 = vmatpush1.bf16.msra.mxu0 %v4118
    %5347 = vmatprep.subr.bf16.mxu0 0
    %5348 = vmatpush1.bf16.msra.mxu0 %v4119
    %5349 = vmatprep.subr.bf16.mxu0 0
    %5350 = vmatpush1.bf16.msra.mxu0 %v4120
    %5351 = vmatprep.subr.bf16.mxu0 0
    %5352 = vmatpush1.bf16.msra.mxu0 %v4121
    %5353 = vmatprep.subr.bf16.mxu0 0
    %5354 = vmatpush1.bf16.msra.mxu0 %v4122
    %5355 = vmatprep.subr.bf16.mxu0 0
    %5356 = vmatpush1.bf16.msra.mxu0 %v4123
    %5357 = vmatprep.subr.bf16.mxu0 0
    %5358 = vmatpush1.bf16.msra.mxu0 %v4124
    %5359 = vmatprep.subr.bf16.mxu0 0
    %5360 = vmatpush1.bf16.msra.mxu0 %v4125
    %5361 = vmatprep.subr.bf16.mxu0 0
    %5362 = vmatpush1.bf16.msra.mxu0 %v4126
    %5363 = vmatprep.subr.bf16.mxu0 0
    %5364 = vmatpush1.bf16.msra.mxu0 %v4127
    %5365 = vmatprep.subr.bf16.mxu0 0
    %5366 = vmatpush1.bf16.msra.mxu0 %v4128
    %5367 = vmatprep.subr.bf16.mxu0 0
    %5368 = vmatpush1.bf16.msra.mxu0 %v4129
    %5369 = vmatprep.subr.bf16.mxu0 0
    %5370 = vmatpush1.bf16.msra.mxu0 %v4130
    %5371 = vmatprep.mubr.bf16.mxu0 %v1298
    %5372 = vmatmul.mubr.bf16.gmra.mrb[0].mxu0 %v1296
    %v5373 = vpop.f32.mrb[0].mxu0
    %v5374 = vadd.f32 %v5334, %v5373
    %v5375 = vpop.f32.mrb[0].mxu0
    %v5376 = vpop.f32.mrb[0].mxu0
    %v5377 = vpop.f32.mrb[0].mxu0
    %5378 = vdwg.mxu0
    %5379 = vmatprep.subr.bf16.mxu0 0
    %5380 = vmatpush1.bf16.msra.mxu0 %v4131
    %5381 = vmatprep.subr.bf16.mxu0 0
    %5382 = vmatpush1.bf16.msra.mxu0 %v4132
    %5383 = vmatprep.subr.bf16.mxu0 0
    %5384 = vmatpush1.bf16.msra.mxu0 %v4133
    %5385 = vmatprep.subr.bf16.mxu0 0
    %5386 = vmatpush1.bf16.msra.mxu0 %v4134
    %5387 = vmatprep.subr.bf16.mxu0 0
    %5388 = vmatpush1.bf16.msra.mxu0 %v4135
    %5389 = vmatprep.subr.bf16.mxu0 0
    %5390 = vmatpush1.bf16.msra.mxu0 %v4136
    %5391 = vmatprep.subr.bf16.mxu0 0
    %5392 = vmatpush1.bf16.msra.mxu0 %v4137
    %5393 = vmatprep.subr.bf16.mxu0 0
    %5394 = vmatpush1.bf16.msra.mxu0 %v4138
    %5395 = vmatprep.subr.bf16.mxu0 0
    %5396 = vmatpush1.bf16.msra.mxu0 %v4139
    %5397 = vmatprep.subr.bf16.mxu0 0
    %5398 = vmatpush1.bf16.msra.mxu0 %v4140
    %5399 = vmatprep.subr.bf16.mxu0 0
    %5400 = vmatpush1.bf16.msra.mxu0 %v4141
    %5401 = vmatprep.subr.bf16.mxu0 0
    %5402 = vmatpush1.bf16.msra.mxu0 %v4142
    %5403 = vmatprep.subr.bf16.mxu0 0
    %5404 = vmatpush1.bf16.msra.mxu0 %v4143
    %5405 = vmatprep.subr.bf16.mxu0 0
    %5406 = vmatpush1.bf16.msra.mxu0 %v4144
    %5407 = vmatprep.subr.bf16.mxu0 0
    %5408 = vmatpush1.bf16.msra.mxu0 %v4145
    %5409 = vmatprep.subr.bf16.mxu0 0
    %5410 = vmatpush1.bf16.msra.mxu0 %v4146
    %5411 = vmatprep.mubr.bf16.mxu0 %v1336
    %5412 = vmatmul.mubr.bf16.gmra.mrb[0].mxu0 %v1322
    %v5413 = vpop.f32.mrb[0].mxu0
    %v5414 = vadd.f32 %v5374, %v5413
    %v5415 = vpop.f32.mrb[0].mxu0
    %v5416 = vpop.f32.mrb[0].mxu0
    %v5417 = vpop.f32.mrb[0].mxu0
    %5418 = vdwg.mxu0
    %5419 = vmatprep.subr.bf16.mxu0 0
    %5420 = vmatpush1.bf16.msra.mxu0 %v4147
    %5421 = vmatprep.subr.bf16.mxu0 0
    %5422 = vmatpush1.bf16.msra.mxu0 %v4148
    %5423 = vmatprep.subr.bf16.mxu0 0
    %5424 = vmatpush1.bf16.msra.mxu0 %v4149
    %5425 = vmatprep.subr.bf16.mxu0 0
    %5426 = vmatpush1.bf16.msra.mxu0 %v4150
    %5427 = vmatprep.subr.bf16.mxu0 0
    %5428 = vmatpush1.bf16.msra.mxu0 %v4151
    %5429 = vmatprep.subr.bf16.mxu0 0
    %5430 = vmatpush1.bf16.msra.mxu0 %v4152
    %5431 = vmatprep.subr.bf16.mxu0 0
    %5432 = vmatpush1.bf16.msra.mxu0 %v4153
    %5433 = vmatprep.subr.bf16.mxu0 0
    %5434 = vmatpush1.bf16.msra.mxu0 %v4154
    %5435 = vmatprep.subr.bf16.mxu0 0
    %5436 = vmatpush1.bf16.msra.mxu0 %v4155
    %5437 = vmatprep.subr.bf16.mxu0 0
    %5438 = vmatpush1.bf16.msra.mxu0 %v4156
    %5439 = vmatprep.subr.bf16.mxu0 0
    %5440 = vmatpush1.bf16.msra.mxu0 %v4157
    %5441 = vmatprep.subr.bf16.mxu0 0
    %5442 = vmatpush1.bf16.msra.mxu0 %v4158
    %5443 = vmatprep.subr.bf16.mxu0 0
    %5444 = vmatpush1.bf16.msra.mxu0 %v4159
    %5445 = vmatprep.subr.bf16.mxu0 0
    %5446 = vmatpush1.bf16.msra.mxu0 %v4160
    %5447 = vmatprep.subr.bf16.mxu0 0
    %5448 = vmatpush1.bf16.msra.mxu0 %v4161
    %5449 = vmatprep.subr.bf16.mxu0 0
    %5450 = vmatpush1.bf16.msra.mxu0 %v4162
    %5451 = vmatprep.mubr.bf16.mxu0 %v1346
    %5452 = vmatmul.mubr.bf16.gmra.mrb[0].mxu0 %v1344
    %v5453 = vpop.f32.mrb[0].mxu0
    %v5454 = vadd.f32 %v5414, %v5453
    %v5455 = vpop.f32.mrb[0].mxu0
    %v5456 = vpop.f32.mrb[0].mxu0
    %v5457 = vpop.f32.mrb[0].mxu0
    %5458 = vdwg.mxu0
    %5459 = vmatprep.subr.bf16.mxu0 0
    %5460 = vmatpush1.bf16.msra.mxu0 %v4163
    %5461 = vmatprep.subr.bf16.mxu0 0
    %5462 = vmatpush1.bf16.msra.mxu0 %v4164
    %5463 = vmatprep.subr.bf16.mxu0 0
    %5464 = vmatpush1.bf16.msra.mxu0 %v4165
    %5465 = vmatprep.subr.bf16.mxu0 0
    %5466 = vmatpush1.bf16.msra.mxu0 %v4166
    %5467 = vmatprep.subr.bf16.mxu0 0
    %5468 = vmatpush1.bf16.msra.mxu0 %v4167
    %5469 = vmatprep.subr.bf16.mxu0 0
    %5470 = vmatpush1.bf16.msra.mxu0 %v4168
    %5471 = vmatprep.subr.bf16.mxu0 0
    %5472 = vmatpush1.bf16.msra.mxu0 %v4169
    %5473 = vmatprep.subr.bf16.mxu0 0
    %5474 = vmatpush1.bf16.msra.mxu0 %v4170
    %5475 = vmatprep.subr.bf16.mxu0 0
    %5476 = vmatpush1.bf16.msra.mxu0 %v4171
    %5477 = vmatprep.subr.bf16.mxu0 0
    %5478 = vmatpush1.bf16.msra.mxu0 %v4172
    %5479 = vmatprep.subr.bf16.mxu0 0
    %5480 = vmatpush1.bf16.msra.mxu0 %v4173
    %5481 = vmatprep.subr.bf16.mxu0 0
    %5482 = vmatpush1.bf16.msra.mxu0 %v4174
    %5483 = vmatprep.subr.bf16.mxu0 0
    %5484 = vmatpush1.bf16.msra.mxu0 %v4175
    %5485 = vmatprep.subr.bf16.mxu0 0
    %5486 = vmatpush1.bf16.msra.mxu0 %v4176
    %5487 = vmatprep.subr.bf16.mxu0 0
    %5488 = vmatpush1.bf16.msra.mxu0 %v4177
    %5489 = vmatprep.subr.bf16.mxu0 0
    %5490 = vmatpush1.bf16.msra.mxu0 %v4178
    %5491 = vmatprep.mubr.bf16.mxu0 %v1343
    %5492 = vmatmul.mubr.bf16.gmra.mrb[0].mxu0 %v1329
    %v5493 = vpop.f32.mrb[0].mxu0
    %v5494 = vadd.f32 %v5454, %v5493
    %v5495 = vpop.f32.mrb[0].mxu0
    %v5496 = vpop.f32.mrb[0].mxu0
    %v5497 = vpop.f32.mrb[0].mxu0
    %5498 = vdwg.mxu0
    %5499 = vmatprep.subr.bf16.mxu0 0
    %5500 = vmatpush1.bf16.msra.mxu0 %v4179
    %5501 = vmatprep.subr.bf16.mxu0 0
    %5502 = vmatpush1.bf16.msra.mxu0 %v4180
    %5503 = vmatprep.subr.bf16.mxu0 0
    %5504 = vmatpush1.bf16.msra.mxu0 %v4181
    %5505 = vmatprep.subr.bf16.mxu0 0
    %5506 = vmatpush1.bf16.msra.mxu0 %v4182
    %5507 = vmatprep.subr.bf16.mxu0 0
    %5508 = vmatpush1.bf16.msra.mxu0 %v4183
    %5509 = vmatprep.subr.bf16.mxu0 0
    %5510 = vmatpush1.bf16.msra.mxu0 %v4184
    %5511 = vmatprep.subr.bf16.mxu0 0
    %5512 = vmatpush1.bf16.msra.mxu0 %v4185
    %5513 = vmatprep.subr.bf16.mxu0 0
    %5514 = vmatpush1.bf16.msra.mxu0 %v4186
    %5515 = vmatprep.subr.bf16.mxu0 0
    %5516 = vmatpush1.bf16.msra.mxu0 %v4187
    %5517 = vmatprep.subr.bf16.mxu0 0
    %5518 = vmatpush1.bf16.msra.mxu0 %v4188
    %5519 = vmatprep.subr.bf16.mxu0 0
    %5520 = vmatpush1.bf16.msra.mxu0 %v4189
    %5521 = vmatprep.subr.bf16.mxu0 0
    %5522 = vmatpush1.bf16.msra.mxu0 %v4190
    %5523 = vmatprep.subr.bf16.mxu0 0
    %5524 = vmatpush1.bf16.msra.mxu0 %v4191
    %5525 = vmatprep.subr.bf16.mxu0 0
    %5526 = vmatpush1.bf16.msra.mxu0 %v4192
    %5527 = vmatprep.subr.bf16.mxu0 0
    %5528 = vmatpush1.bf16.msra.mxu0 %v4193
    %5529 = vmatprep.subr.bf16.mxu0 0
    %5530 = vmatpush1.bf16.msra.mxu0 %v4194
    %5531 = vmatprep.mubr.bf16.mxu0 %v1347
    %5532 = vmatmul.mubr.bf16.gmra.mrb[0].mxu0 %v1345
    %v5533 = vpop.f32.mrb[0].mxu0
    %v5534 = vadd.f32 %v5494, %v5533
    %v5535 = vpop.f32.mrb[0].mxu0
    %v5536 = vpop.f32.mrb[0].mxu0
    %v5537 = vpop.f32.mrb[0].mxu0
    %5538 = vdwg.mxu0
    %5539 = vmatprep.subr.bf16.mxu0 0
    %5540 = vmatpush1.bf16.msra.mxu0 %v4195
    %5541 = vmatprep.subr.bf16.mxu0 0
    %5542 = vmatpush1.bf16.msra.mxu0 %v4196
    %5543 = vmatprep.subr.bf16.mxu0 0
    %5544 = vmatpush1.bf16.msra.mxu0 %v4197
    %5545 = vmatprep.subr.bf16.mxu0 0
    %5546 = vmatpush1.bf16.msra.mxu0 %v4198
    %5547 = vmatprep.subr.bf16.mxu0 0
    %5548 = vmatpush1.bf16.msra.mxu0 %v4199
    %5549 = vmatprep.subr.bf16.mxu0 0
    %5550 = vmatpush1.bf16.msra.mxu0 %v4200
    %5551 = vmatprep.subr.bf16.mxu0 0
    %5552 = vmatpush1.bf16.msra.mxu0 %v4201
    %5553 = vmatprep.subr.bf16.mxu0 0
    %5554 = vmatpush1.bf16.msra.mxu0 %v4202
    %5555 = vmatprep.subr.bf16.mxu0 0
    %5556 = vmatpush1.bf16.msra.mxu0 %v4203
    %5557 = vmatprep.subr.bf16.mxu0 0
    %5558 = vmatpush1.bf16.msra.mxu0 %v4204
    %5559 = vmatprep.subr.bf16.mxu0 0
    %5560 = vmatpush1.bf16.msra.mxu0 %v4205
    %5561 = vmatprep.subr.bf16.mxu0 0
    %5562 = vmatpush1.bf16.msra.mxu0 %v4206
    %5563 = vmatprep.subr.bf16.mxu0 0
    %5564 = vmatpush1.bf16.msra.mxu0 %v4207
    %5565 = vmatprep.subr.bf16.mxu0 0
    %5566 = vmatpush1.bf16.msra.mxu0 %v4208
    %5567 = vmatprep.subr.bf16.mxu0 0
    %5568 = vmatpush1.bf16.msra.mxu0 %v4209
    %5569 = vmatprep.subr.bf16.mxu0 0
    %5570 = vmatpush1.bf16.msra.mxu0 %v4210
    %5571 = vmatprep.mubr.bf16.mxu0 %v1385
    %5572 = vmatmul.mubr.bf16.gmra.mrb[0].mxu0 %v1371
    %v5573 = vpop.f32.mrb[0].mxu0
    %v5574 = vadd.f32 %v5534, %v5573
    %v5575 = vpop.f32.mrb[0].mxu0
    %v5576 = vpop.f32.mrb[0].mxu0
    %v5577 = vpop.f32.mrb[0].mxu0
    %5578 = vdwg.mxu0
    %5579 = vmatprep.subr.bf16.mxu0 0
    %5580 = vmatpush1.bf16.msra.mxu0 %v4211
    %5581 = vmatprep.subr.bf16.mxu0 0
    %5582 = vmatpush1.bf16.msra.mxu0 %v4212
    %5583 = vmatprep.subr.bf16.mxu0 0
    %5584 = vmatpush1.bf16.msra.mxu0 %v4213
    %5585 = vmatprep.subr.bf16.mxu0 0
    %5586 = vmatpush1.bf16.msra.mxu0 %v4214
    %5587 = vmatprep.subr.bf16.mxu0 0
    %5588 = vmatpush1.bf16.msra.mxu0 %v4215
    %5589 = vmatprep.subr.bf16.mxu0 0
    %5590 = vmatpush1.bf16.msra.mxu0 %v4216
    %5591 = vmatprep.subr.bf16.mxu0 0
    %5592 = vmatpush1.bf16.msra.mxu0 %v4217
    %5593 = vmatprep.subr.bf16.mxu0 0
    %5594 = vmatpush1.bf16.msra.mxu0 %v4218
    %5595 = vmatprep.subr.bf16.mxu0 0
    %5596 = vmatpush1.bf16.msra.mxu0 %v4219
    %5597 = vmatprep.subr.bf16.mxu0 0
    %5598 = vmatpush1.bf16.msra.mxu0 %v4220
    %5599 = vmatprep.subr.bf16.mxu0 0
    %5600 = vmatpush1.bf16.msra.mxu0 %v4221
    %5601 = vmatprep.subr.bf16.mxu0 0
    %5602 = vmatpush1.bf16.msra.mxu0 %v4222
    %5603 = vmatprep.subr.bf16.mxu0 0
    %5604 = vmatpush1.bf16.msra.mxu0 %v4223
    %5605 = vmatprep.subr.bf16.mxu0 0
    %5606 = vmatpush1.bf16.msra.mxu0 %v4224
    %5607 = vmatprep.subr.bf16.mxu0 0
    %5608 = vmatpush1.bf16.msra.mxu0 %v4225
    %5609 = vmatprep.subr.bf16.mxu0 0
    %5610 = vmatpush1.bf16.msra.mxu0 %v4226
    %5611 = vmatprep.mubr.bf16.mxu0 %v1395
    %5612 = vmatmul.mubr.bf16.gmra.mrb[0].mxu0 %v1393
    %v5613 = vpop.f32.mrb[0].mxu0
    %v5614 = vadd.f32 %v5574, %v5613
    %v5615 = vpop.f32.mrb[0].mxu0
    %v5616 = vpop.f32.mrb[0].mxu0
    %v5617 = vpop.f32.mrb[0].mxu0
    %5618 = vdwg.mxu0
    %5619 = vmatprep.subr.bf16.mxu0 0
    %5620 = vmatpush1.bf16.msra.mxu0 %v4227
    %5621 = vmatprep.subr.bf16.mxu0 0
    %5622 = vmatpush1.bf16.msra.mxu0 %v4228
    %5623 = vmatprep.subr.bf16.mxu0 0
    %5624 = vmatpush1.bf16.msra.mxu0 %v4229
    %5625 = vmatprep.subr.bf16.mxu0 0
    %5626 = vmatpush1.bf16.msra.mxu0 %v4230
    %5627 = vmatprep.subr.bf16.mxu0 0
    %5628 = vmatpush1.bf16.msra.mxu0 %v4231
    %5629 = vmatprep.subr.bf16.mxu0 0
    %5630 = vmatpush1.bf16.msra.mxu0 %v4232
    %5631 = vmatprep.subr.bf16.mxu0 0
    %5632 = vmatpush1.bf16.msra.mxu0 %v4233
    %5633 = vmatprep.subr.bf16.mxu0 0
    %5634 = vmatpush1.bf16.msra.mxu0 %v4234
    %5635 = vmatprep.subr.bf16.mxu0 0
    %5636 = vmatpush1.bf16.msra.mxu0 %v4235
    %5637 = vmatprep.subr.bf16.mxu0 0
    %5638 = vmatpush1.bf16.msra.mxu0 %v4236
    %5639 = vmatprep.subr.bf16.mxu0 0
    %5640 = vmatpush1.bf16.msra.mxu0 %v4237
    %5641 = vmatprep.subr.bf16.mxu0 0
    %5642 = vmatpush1.bf16.msra.mxu0 %v4238
    %5643 = vmatprep.subr.bf16.mxu0 0
    %5644 = vmatpush1.bf16.msra.mxu0 %v4239
    %5645 = vmatprep.subr.bf16.mxu0 0
    %5646 = vmatpush1.bf16.msra.mxu0 %v4240
    %5647 = vmatprep.subr.bf16.mxu0 0
    %5648 = vmatpush1.bf16.msra.mxu0 %v4241
    %5649 = vmatprep.subr.bf16.mxu0 0
    %5650 = vmatpush1.bf16.msra.mxu0 %v4242
    %5651 = vmatprep.mubr.bf16.mxu0 %v1392
    %5652 = vmatmul.mubr.bf16.gmra.mrb[0].mxu0 %v1378
    %v5653 = vpop.f32.mrb[0].mxu0
    %v5654 = vadd.f32 %v5614, %v5653
    %v5655 = vpop.f32.mrb[0].mxu0
    %v5656 = vpop.f32.mrb[0].mxu0
    %v5657 = vpop.f32.mrb[0].mxu0
    %5658 = vdwg.mxu0
    %5659 = vmatprep.subr.bf16.mxu0 0
    %5660 = vmatpush1.bf16.msra.mxu0 %v4243
    %5661 = vmatprep.subr.bf16.mxu0 0
    %5662 = vmatpush1.bf16.msra.mxu0 %v4244
    %5663 = vmatprep.subr.bf16.mxu0 0
    %5664 = vmatpush1.bf16.msra.mxu0 %v4245
    %5665 = vmatprep.subr.bf16.mxu0 0
    %5666 = vmatpush1.bf16.msra.mxu0 %v4246
    %5667 = vmatprep.subr.bf16.mxu0 0
    %5668 = vmatpush1.bf16.msra.mxu0 %v4247
    %5669 = vmatprep.subr.bf16.mxu0 0
    %5670 = vmatpush1.bf16.msra.mxu0 %v4248
    %5671 = vmatprep.subr.bf16.mxu0 0
    %5672 = vmatpush1.bf16.msra.mxu0 %v4249
    %5673 = vmatprep.subr.bf16.mxu0 0
    %5674 = vmatpush1.bf16.msra.mxu0 %v4250
    %5675 = vmatprep.subr.bf16.mxu0 0
    %5676 = vmatpush1.bf16.msra.mxu0 %v4251
    %5677 = vmatprep.subr.bf16.mxu0 0
    %5678 = vmatpush1.bf16.msra.mxu0 %v4252
    %5679 = vmatprep.subr.bf16.mxu0 0
    %5680 = vmatpush1.bf16.msra.mxu0 %v4253
    %5681 = vmatprep.subr.bf16.mxu0 0
    %5682 = vmatpush1.bf16.msra.mxu0 %v4254
    %5683 = vmatprep.subr.bf16.mxu0 0
    %5684 = vmatpush1.bf16.msra.mxu0 %v4255
    %5685 = vmatprep.subr.bf16.mxu0 0
    %5686 = vmatpush1.bf16.msra.mxu0 %v4256
    %5687 = vmatprep.subr.bf16.mxu0 0
    %5688 = vmatpush1.bf16.msra.mxu0 %v4257
    %5689 = vmatprep.subr.bf16.mxu0 0
    %5690 = vmatpush1.bf16.msra.mxu0 %v4258
    %5691 = vmatprep.mubr.bf16.mxu0 %v1396
    %5692 = vmatmul.mubr.bf16.gmra.mrb[0].mxu0 %v1394
    %v5693 = vpop.f32.mrb[0].mxu0
    %v5694 = vadd.f32 %v5654, %v5693
    %v5695 = vpop.f32.mrb[0].mxu0
    %v5696 = vpop.f32.mrb[0].mxu0
    %v5697 = vpop.f32.mrb[0].mxu0
    %5698 = vdwg.mxu0
    %5699 = vmatprep.subr.bf16.mxu0 0
    %5700 = vmatpush1.bf16.msra.mxu0 %v4259
    %5701 = vmatprep.subr.bf16.mxu0 0
    %5702 = vmatpush1.bf16.msra.mxu0 %v4260
    %5703 = vmatprep.subr.bf16.mxu0 0
    %5704 = vmatpush1.bf16.msra.mxu0 %v4261
    %5705 = vmatprep.subr.bf16.mxu0 0
    %5706 = vmatpush1.bf16.msra.mxu0 %v4262
    %5707 = vmatprep.subr.bf16.mxu0 0
    %5708 = vmatpush1.bf16.msra.mxu0 %v4263
    %5709 = vmatprep.subr.bf16.mxu0 0
    %5710 = vmatpush1.bf16.msra.mxu0 %v4264
    %5711 = vmatprep.subr.bf16.mxu0 0
    %5712 = vmatpush1.bf16.msra.mxu0 %v4265
    %5713 = vmatprep.subr.bf16.mxu0 0
    %5714 = vmatpush1.bf16.msra.mxu0 %v4266
    %5715 = vmatprep.subr.bf16.mxu0 0
    %5716 = vmatpush1.bf16.msra.mxu0 %v4267
    %5717 = vmatprep.subr.bf16.mxu0 0
    %5718 = vmatpush1.bf16.msra.mxu0 %v4268
    %5719 = vmatprep.subr.bf16.mxu0 0
    %5720 = vmatpush1.bf16.msra.mxu0 %v4269
    %5721 = vmatprep.subr.bf16.mxu0 0
    %5722 = vmatpush1.bf16.msra.mxu0 %v4270
    %5723 = vmatprep.subr.bf16.mxu0 0
    %5724 = vmatpush1.bf16.msra.mxu0 %v4271
    %5725 = vmatprep.subr.bf16.mxu0 0
    %5726 = vmatpush1.bf16.msra.mxu0 %v4272
    %5727 = vmatprep.subr.bf16.mxu0 0
    %5728 = vmatpush1.bf16.msra.mxu0 %v4273
    %5729 = vmatprep.subr.bf16.mxu0 0
    %5730 = vmatpush1.bf16.msra.mxu0 %v4274
    %5731 = vmatprep.mubr.bf16.mxu0 %v1434
    %5732 = vmatmul.mubr.bf16.gmra.mrb[0].mxu0 %v1420
    %v5733 = vpop.f32.mrb[0].mxu0
    %v5734 = vadd.f32 %v5694, %v5733
    %v5735 = vpop.f32.mrb[0].mxu0
    %v5736 = vpop.f32.mrb[0].mxu0
    %v5737 = vpop.f32.mrb[0].mxu0
    %5738 = vdwg.mxu0
    %5739 = vmatprep.subr.bf16.mxu0 0
    %5740 = vmatpush1.bf16.msra.mxu0 %v4275
    %5741 = vmatprep.subr.bf16.mxu0 0
    %5742 = vmatpush1.bf16.msra.mxu0 %v4276
    %5743 = vmatprep.subr.bf16.mxu0 0
    %5744 = vmatpush1.bf16.msra.mxu0 %v4277
    %5745 = vmatprep.subr.bf16.mxu0 0
    %5746 = vmatpush1.bf16.msra.mxu0 %v4278
    %5747 = vmatprep.subr.bf16.mxu0 0
    %5748 = vmatpush1.bf16.msra.mxu0 %v4279
    %5749 = vmatprep.subr.bf16.mxu0 0
    %5750 = vmatpush1.bf16.msra.mxu0 %v4280
    %5751 = vmatprep.subr.bf16.mxu0 0
    %5752 = vmatpush1.bf16.msra.mxu0 %v4281
    %5753 = vmatprep.subr.bf16.mxu0 0
    %5754 = vmatpush1.bf16.msra.mxu0 %v4282
    %5755 = vmatprep.subr.bf16.mxu0 0
    %5756 = vmatpush1.bf16.msra.mxu0 %v4283
    %5757 = vmatprep.subr.bf16.mxu0 0
    %5758 = vmatpush1.bf16.msra.mxu0 %v4284
    %5759 = vmatprep.subr.bf16.mxu0 0
    %5760 = vmatpush1.bf16.msra.mxu0 %v4285
    %5761 = vmatprep.subr.bf16.mxu0 0
    %5762 = vmatpush1.bf16.msra.mxu0 %v4286
    %5763 = vmatprep.subr.bf16.mxu0 0
    %5764 = vmatpush1.bf16.msra.mxu0 %v4287
    %5765 = vmatprep.subr.bf16.mxu0 0
    %5766 = vmatpush1.bf16.msra.mxu0 %v4288
    %5767 = vmatprep.subr.bf16.mxu0 0
    %5768 = vmatpush1.bf16.msra.mxu0 %v4289
    %5769 = vmatprep.subr.bf16.mxu0 0
    %5770 = vmatpush1.bf16.msra.mxu0 %v4290
    %5771 = vmatprep.mubr.bf16.mxu0 %v1444
    %5772 = vmatmul.mubr.bf16.gmra.mrb[0].mxu0 %v1442
    %v5773 = vpop.f32.mrb[0].mxu0
    %v5774 = vadd.f32 %v5734, %v5773
    %v5775 = vpop.f32.mrb[0].mxu0
    %v5776 = vpop.f32.mrb[0].mxu0
    %v5777 = vpop.f32.mrb[0].mxu0
    %5778 = vdwg.mxu0
    %5779 = vmatprep.subr.bf16.mxu0 0
    %5780 = vmatpush1.bf16.msra.mxu0 %v4291
    %5781 = vmatprep.subr.bf16.mxu0 0
    %5782 = vmatpush1.bf16.msra.mxu0 %v4292
    %5783 = vmatprep.subr.bf16.mxu0 0
    %5784 = vmatpush1.bf16.msra.mxu0 %v4293
    %5785 = vmatprep.subr.bf16.mxu0 0
    %5786 = vmatpush1.bf16.msra.mxu0 %v4294
    %5787 = vmatprep.subr.bf16.mxu0 0
    %5788 = vmatpush1.bf16.msra.mxu0 %v4295
    %5789 = vmatprep.subr.bf16.mxu0 0
    %5790 = vmatpush1.bf16.msra.mxu0 %v4296
    %5791 = vmatprep.subr.bf16.mxu0 0
    %5792 = vmatpush1.bf16.msra.mxu0 %v4297
    %5793 = vmatprep.subr.bf16.mxu0 0
    %5794 = vmatpush1.bf16.msra.mxu0 %v4298
    %5795 = vmatprep.subr.bf16.mxu0 0
    %5796 = vmatpush1.bf16.msra.mxu0 %v4299
    %5797 = vmatprep.subr.bf16.mxu0 0
    %5798 = vmatpush1.bf16.msra.mxu0 %v4300
    %5799 = vmatprep.subr.bf16.mxu0 0
    %5800 = vmatpush1.bf16.msra.mxu0 %v4301
    %5801 = vmatprep.subr.bf16.mxu0 0
    %5802 = vmatpush1.bf16.msra.mxu0 %v4302
    %5803 = vmatprep.subr.bf16.mxu0 0
    %5804 = vmatpush1.bf16.msra.mxu0 %v4303
    %5805 = vmatprep.subr.bf16.mxu0 0
    %5806 = vmatpush1.bf16.msra.mxu0 %v4304
    %5807 = vmatprep.subr.bf16.mxu0 0
    %5808 = vmatpush1.bf16.msra.mxu0 %v4305
    %5809 = vmatprep.subr.bf16.mxu0 0
    %5810 = vmatpush1.bf16.msra.mxu0 %v4306
    %5811 = vmatprep.mubr.bf16.mxu0 %v1441
    %5812 = vmatmul.mubr.bf16.gmra.mrb[0].mxu0 %v1427
    %v5813 = vpop.f32.mrb[0].mxu0
    %v5814 = vadd.f32 %v5774, %v5813
    %v5815 = vpop.f32.mrb[0].mxu0
    %v5816 = vpop.f32.mrb[0].mxu0
    %v5817 = vpop.f32.mrb[0].mxu0
    %5818 = vdwg.mxu0
    %5819 = vmatprep.subr.bf16.mxu0 0
    %5820 = vmatpush1.bf16.msra.mxu0 %v4307
    %5821 = vmatprep.subr.bf16.mxu0 0
    %5822 = vmatpush1.bf16.msra.mxu0 %v4308
    %5823 = vmatprep.subr.bf16.mxu0 0
    %5824 = vmatpush1.bf16.msra.mxu0 %v4309
    %5825 = vmatprep.subr.bf16.mxu0 0
    %5826 = vmatpush1.bf16.msra.mxu0 %v4310
    %5827 = vmatprep.subr.bf16.mxu0 0
    %5828 = vmatpush1.bf16.msra.mxu0 %v4311
    %5829 = vmatprep.subr.bf16.mxu0 0
    %5830 = vmatpush1.bf16.msra.mxu0 %v4312
    %5831 = vmatprep.subr.bf16.mxu0 0
    %5832 = vmatpush1.bf16.msra.mxu0 %v4313
    %5833 = vmatprep.subr.bf16.mxu0 0
    %5834 = vmatpush1.bf16.msra.mxu0 %v4314
    %5835 = vmatprep.subr.bf16.mxu0 0
    %5836 = vmatpush1.bf16.msra.mxu0 %v4315
    %5837 = vmatprep.subr.bf16.mxu0 0
    %5838 = vmatpush1.bf16.msra.mxu0 %v4316
    %5839 = vmatprep.subr.bf16.mxu0 0
    %5840 = vmatpush1.bf16.msra.mxu0 %v4317
    %5841 = vmatprep.subr.bf16.mxu0 0
    %5842 = vmatpush1.bf16.msra.mxu0 %v4318
    %5843 = vmatprep.subr.bf16.mxu0 0
    %5844 = vmatpush1.bf16.msra.mxu0 %v4319
    %5845 = vmatprep.subr.bf16.mxu0 0
    %5846 = vmatpush1.bf16.msra.mxu0 %v4320
    %5847 = vmatprep.subr.bf16.mxu0 0
    %5848 = vmatpush1.bf16.msra.mxu0 %v4321
    %5849 = vmatprep.subr.bf16.mxu0 0
    %5850 = vmatpush1.bf16.msra.mxu0 %v4322
    %5851 = vmatprep.mubr.bf16.mxu0 %v1445
    %5852 = vmatmul.mubr.bf16.gmra.mrb[0].mxu0 %v1443
    %v5853 = vpop.f32.mrb[0].mxu0
    %v5854 = vadd.f32 %v5814, %v5853
    %v5855 = vpop.f32.mrb[0].mxu0
    %v5856 = vpop.f32.mrb[0].mxu0
    %v5857 = vpop.f32.mrb[0].mxu0
    %5858 = vdwg.mxu0
    %5859 = vmatprep.subr.bf16.mxu0 0
    %5860 = vmatpush1.bf16.msra.mxu0 %v4323
    %5861 = vmatprep.subr.bf16.mxu0 0
    %5862 = vmatpush1.bf16.msra.mxu0 %v4324
    %5863 = vmatprep.subr.bf16.mxu0 0
    %5864 = vmatpush1.bf16.msra.mxu0 %v4325
    %5865 = vmatprep.subr.bf16.mxu0 0
    %5866 = vmatpush1.bf16.msra.mxu0 %v4326
    %5867 = vmatprep.subr.bf16.mxu0 0
    %5868 = vmatpush1.bf16.msra.mxu0 %v4327
    %5869 = vmatprep.subr.bf16.mxu0 0
    %5870 = vmatpush1.bf16.msra.mxu0 %v4328
    %5871 = vmatprep.subr.bf16.mxu0 0
    %5872 = vmatpush1.bf16.msra.mxu0 %v4329
    %5873 = vmatprep.subr.bf16.mxu0 0
    %5874 = vmatpush1.bf16.msra.mxu0 %v4330
    %5875 = vmatprep.subr.bf16.mxu0 0
    %5876 = vmatpush1.bf16.msra.mxu0 %v4331
    %5877 = vmatprep.subr.bf16.mxu0 0
    %5878 = vmatpush1.bf16.msra.mxu0 %v4332
    %5879 = vmatprep.subr.bf16.mxu0 0
    %5880 = vmatpush1.bf16.msra.mxu0 %v4333
    %5881 = vmatprep.subr.bf16.mxu0 0
    %5882 = vmatpush1.bf16.msra.mxu0 %v4334
    %5883 = vmatprep.subr.bf16.mxu0 0
    %5884 = vmatpush1.bf16.msra.mxu0 %v4335
    %5885 = vmatprep.subr.bf16.mxu0 0
    %5886 = vmatpush1.bf16.msra.mxu0 %v4336
    %5887 = vmatprep.subr.bf16.mxu0 0
    %5888 = vmatpush1.bf16.msra.mxu0 %v4337
    %5889 = vmatprep.subr.bf16.mxu0 0
    %5890 = vmatpush1.bf16.msra.mxu0 %v4338
    %5891 = vmatprep.mubr.bf16.mxu0 %v1483
    %5892 = vmatmul.mubr.bf16.gmra.mrb[0].mxu0 %v1469
    %v5893 = vpop.f32.mrb[0].mxu0
    %v5894 = vadd.f32 %v5854, %v5893
    %v5895 = vpop.f32.mrb[0].mxu0
    %v5896 = vpop.f32.mrb[0].mxu0
    %v5897 = vpop.f32.mrb[0].mxu0
    %5898 = vdwg.mxu0
    %5899 = vmatprep.subr.bf16.mxu0 0
    %5900 = vmatpush1.bf16.msra.mxu0 %v4339
    %5901 = vmatprep.subr.bf16.mxu0 0
    %5902 = vmatpush1.bf16.msra.mxu0 %v4340
    %5903 = vmatprep.subr.bf16.mxu0 0
    %5904 = vmatpush1.bf16.msra.mxu0 %v4341
    %5905 = vmatprep.subr.bf16.mxu0 0
    %5906 = vmatpush1.bf16.msra.mxu0 %v4342
    %5907 = vmatprep.subr.bf16.mxu0 0
    %5908 = vmatpush1.bf16.msra.mxu0 %v4343
    %5909 = vmatprep.subr.bf16.mxu0 0
    %5910 = vmatpush1.bf16.msra.mxu0 %v4344
    %5911 = vmatprep.subr.bf16.mxu0 0
    %5912 = vmatpush1.bf16.msra.mxu0 %v4345
    %5913 = vmatprep.subr.bf16.mxu0 0
    %5914 = vmatpush1.bf16.msra.mxu0 %v4346
    %5915 = vmatprep.subr.bf16.mxu0 0
    %5916 = vmatpush1.bf16.msra.mxu0 %v4347
    %5917 = vmatprep.subr.bf16.mxu0 0
    %5918 = vmatpush1.bf16.msra.mxu0 %v4348
    %5919 = vmatprep.subr.bf16.mxu0 0
    %5920 = vmatpush1.bf16.msra.mxu0 %v4349
    %5921 = vmatprep.subr.bf16.mxu0 0
    %5922 = vmatpush1.bf16.msra.mxu0 %v4350
    %5923 = vmatprep.subr.bf16.mxu0 0
    %5924 = vmatpush1.bf16.msra.mxu0 %v4351
    %5925 = vmatprep.subr.bf16.mxu0 0
    %5926 = vmatpush1.bf16.msra.mxu0 %v4352
    %5927 = vmatprep.subr.bf16.mxu0 0
    %5928 = vmatpush1.bf16.msra.mxu0 %v4353
    %5929 = vmatprep.subr.bf16.mxu0 0
    %5930 = vmatpush1.bf16.msra.mxu0 %v4354
    %5931 = vmatprep.mubr.bf16.mxu0 %v1493
    %5932 = vmatmul.mubr.bf16.gmra.mrb[0].mxu0 %v1491
    %v5933 = vpop.f32.mrb[0].mxu0
    %v5934 = vadd.f32 %v5894, %v5933
    %v5935 = vpop.f32.mrb[0].mxu0
    %v5936 = vpop.f32.mrb[0].mxu0
    %v5937 = vpop.f32.mrb[0].mxu0
    %5938 = vdwg.mxu0
    %5939 = vmatprep.subr.bf16.mxu0 0
    %5940 = vmatpush1.bf16.msra.mxu0 %v4355
    %5941 = vmatprep.subr.bf16.mxu0 0
    %5942 = vmatpush1.bf16.msra.mxu0 %v4356
    %5943 = vmatprep.subr.bf16.mxu0 0
    %5944 = vmatpush1.bf16.msra.mxu0 %v4357
    %5945 = vmatprep.subr.bf16.mxu0 0
    %5946 = vmatpush1.bf16.msra.mxu0 %v4358
    %5947 = vmatprep.subr.bf16.mxu0 0
    %5948 = vmatpush1.bf16.msra.mxu0 %v4359
    %5949 = vmatprep.subr.bf16.mxu0 0
    %5950 = vmatpush1.bf16.msra.mxu0 %v4360
    %5951 = vmatprep.subr.bf16.mxu0 0
    %5952 = vmatpush1.bf16.msra.mxu0 %v4361
    %5953 = vmatprep.subr.bf16.mxu0 0
    %5954 = vmatpush1.bf16.msra.mxu0 %v4362
    %5955 = vmatprep.subr.bf16.mxu0 0
    %5956 = vmatpush1.bf16.msra.mxu0 %v4363
    %5957 = vmatprep.subr.bf16.mxu0 0
    %5958 = vmatpush1.bf16.msra.mxu0 %v4364
    %5959 = vmatprep.subr.bf16.mxu0 0
    %5960 = vmatpush1.bf16.msra.mxu0 %v4365
    %5961 = vmatprep.subr.bf16.mxu0 0
    %5962 = vmatpush1.bf16.msra.mxu0 %v4366
    %5963 = vmatprep.subr.bf16.mxu0 0
    %5964 = vmatpush1.bf16.msra.mxu0 %v4367
    %5965 = vmatprep.subr.bf16.mxu0 0
    %5966 = vmatpush1.bf16.msra.mxu0 %v4368
    %5967 = vmatprep.subr.bf16.mxu0 0
    %5968 = vmatpush1.bf16.msra.mxu0 %v4369
    %5969 = vmatprep.subr.bf16.mxu0 0
    %5970 = vmatpush1.bf16.msra.mxu0 %v4370
    %5971 = vmatprep.mubr.bf16.mxu0 %v1490
    %5972 = vmatmul.mubr.bf16.gmra.mrb[0].mxu0 %v1476
    %v5973 = vpop.f32.mrb[0].mxu0
    %v5974 = vadd.f32 %v5934, %v5973
    %v5975 = vpop.f32.mrb[0].mxu0
    %v5976 = vpop.f32.mrb[0].mxu0
    %v5977 = vpop.f32.mrb[0].mxu0
    %5978 = vdwg.mxu0
    %5979 = vmatprep.subr.bf16.mxu0 0
    %5980 = vmatpush1.bf16.msra.mxu0 %v4371
    %5981 = vmatprep.subr.bf16.mxu0 0
    %5982 = vmatpush1.bf16.msra.mxu0 %v4372
    %5983 = vmatprep.subr.bf16.mxu0 0
    %5984 = vmatpush1.bf16.msra.mxu0 %v4373
    %5985 = vmatprep.subr.bf16.mxu0 0
    %5986 = vmatpush1.bf16.msra.mxu0 %v4374
    %5987 = vmatprep.subr.bf16.mxu0 0
    %5988 = vmatpush1.bf16.msra.mxu0 %v4375
    %5989 = vmatprep.subr.bf16.mxu0 0
    %5990 = vmatpush1.bf16.msra.mxu0 %v4376
    %5991 = vmatprep.subr.bf16.mxu0 0
    %5992 = vmatpush1.bf16.msra.mxu0 %v4377
    %5993 = vmatprep.subr.bf16.mxu0 0
    %5994 = vmatpush1.bf16.msra.mxu0 %v4378
    %5995 = vmatprep.subr.bf16.mxu0 0
    %5996 = vmatpush1.bf16.msra.mxu0 %v4379
    %5997 = vmatprep.subr.bf16.mxu0 0
    %5998 = vmatpush1.bf16.msra.mxu0 %v4380
    %5999 = vmatprep.subr.bf16.mxu0 0
    %6000 = vmatpush1.bf16.msra.mxu0 %v4381
    %6001 = vmatprep.subr.bf16.mxu0 0
    %6002 = vmatpush1.bf16.msra.mxu0 %v4382
    %6003 = vmatprep.subr.bf16.mxu0 0
    %6004 = vmatpush1.bf16.msra.mxu0 %v4383
    %6005 = vmatprep.subr.bf16.mxu0 0
    %6006 = vmatpush1.bf16.msra.mxu0 %v4384
    %6007 = vmatprep.subr.bf16.mxu0 0
    %6008 = vmatpush1.bf16.msra.mxu0 %v4385
    %6009 = vmatprep.subr.bf16.mxu0 0
    %6010 = vmatpush1.bf16.msra.mxu0 %v4386
    %6011 = vmatprep.mubr.bf16.mxu0 %v1494
    %6012 = vmatmul.mubr.bf16.gmra.mrb[0].mxu0 %v1492
    %v6013 = vpop.f32.mrb[0].mxu0
    %v6014 = vadd.f32 %v5974, %v6013
    %v6015 = vpop.f32.mrb[0].mxu0
    %v6016 = vpop.f32.mrb[0].mxu0
    %v6017 = vpop.f32.mrb[0].mxu0
    %6018 = vdwg.mxu0
    %6019 = vmatprep.subr.bf16.mxu0 0
    %6020 = vmatpush1.bf16.msra.mxu0 %v4387
    %6021 = vmatprep.subr.bf16.mxu0 0
    %6022 = vmatpush1.bf16.msra.mxu0 %v4388
    %6023 = vmatprep.subr.bf16.mxu0 0
    %6024 = vmatpush1.bf16.msra.mxu0 %v4389
    %6025 = vmatprep.subr.bf16.mxu0 0
    %6026 = vmatpush1.bf16.msra.mxu0 %v4390
    %6027 = vmatprep.subr.bf16.mxu0 0
    %6028 = vmatpush1.bf16.msra.mxu0 %v4391
    %6029 = vmatprep.subr.bf16.mxu0 0
    %6030 = vmatpush1.bf16.msra.mxu0 %v4392
    %6031 = vmatprep.subr.bf16.mxu0 0
    %6032 = vmatpush1.bf16.msra.mxu0 %v4393
    %6033 = vmatprep.subr.bf16.mxu0 0
    %6034 = vmatpush1.bf16.msra.mxu0 %v4394
    %6035 = vmatprep.subr.bf16.mxu0 0
    %6036 = vmatpush1.bf16.msra.mxu0 %v4395
    %6037 = vmatprep.subr.bf16.mxu0 0
    %6038 = vmatpush1.bf16.msra.mxu0 %v4396
    %6039 = vmatprep.subr.bf16.mxu0 0
    %6040 = vmatpush1.bf16.msra.mxu0 %v4397
    %6041 = vmatprep.subr.bf16.mxu0 0
    %6042 = vmatpush1.bf16.msra.mxu0 %v4398
    %6043 = vmatprep.subr.bf16.mxu0 0
    %6044 = vmatpush1.bf16.msra.mxu0 %v4399
    %6045 = vmatprep.subr.bf16.mxu0 0
    %6046 = vmatpush1.bf16.msra.mxu0 %v4400
    %6047 = vmatprep.subr.bf16.mxu0 0
    %6048 = vmatpush1.bf16.msra.mxu0 %v4401
    %6049 = vmatprep.subr.bf16.mxu0 0
    %6050 = vmatpush1.bf16.msra.mxu0 %v4402
    %6051 = vmatprep.mubr.bf16.mxu0 %v1532
    %6052 = vmatmul.mubr.bf16.gmra.mrb[0].mxu0 %v1518
    %v6053 = vpop.f32.mrb[0].mxu0
    %v6054 = vadd.f32 %v6014, %v6053
    %v6055 = vpop.f32.mrb[0].mxu0
    %v6056 = vpop.f32.mrb[0].mxu0
    %v6057 = vpop.f32.mrb[0].mxu0
    %6058 = vdwg.mxu0
    %6059 = vmatprep.subr.bf16.mxu0 0
    %6060 = vmatpush1.bf16.msra.mxu0 %v4403
    %6061 = vmatprep.subr.bf16.mxu0 0
    %6062 = vmatpush1.bf16.msra.mxu0 %v4404
    %6063 = vmatprep.subr.bf16.mxu0 0
    %6064 = vmatpush1.bf16.msra.mxu0 %v4405
    %6065 = vmatprep.subr.bf16.mxu0 0
    %6066 = vmatpush1.bf16.msra.mxu0 %v4406
    %6067 = vmatprep.subr.bf16.mxu0 0
    %6068 = vmatpush1.bf16.msra.mxu0 %v4407
    %6069 = vmatprep.subr.bf16.mxu0 0
    %6070 = vmatpush1.bf16.msra.mxu0 %v4408
    %6071 = vmatprep.subr.bf16.mxu0 0
    %6072 = vmatpush1.bf16.msra.mxu0 %v4409
    %6073 = vmatprep.subr.bf16.mxu0 0
    %6074 = vmatpush1.bf16.msra.mxu0 %v4410
    %6075 = vmatprep.subr.bf16.mxu0 0
    %6076 = vmatpush1.bf16.msra.mxu0 %v4411
    %6077 = vmatprep.subr.bf16.mxu0 0
    %6078 = vmatpush1.bf16.msra.mxu0 %v4412
    %6079 = vmatprep.subr.bf16.mxu0 0
    %6080 = vmatpush1.bf16.msra.mxu0 %v4413
    %6081 = vmatprep.subr.bf16.mxu0 0
    %6082 = vmatpush1.bf16.msra.mxu0 %v4414
    %6083 = vmatprep.subr.bf16.mxu0 0
    %6084 = vmatpush1.bf16.msra.mxu0 %v4415
    %6085 = vmatprep.subr.bf16.mxu0 0
    %6086 = vmatpush1.bf16.msra.mxu0 %v4416
    %6087 = vmatprep.subr.bf16.mxu0 0
    %6088 = vmatpush1.bf16.msra.mxu0 %v4417
    %6089 = vmatprep.subr.bf16.mxu0 0
    %6090 = vmatpush1.bf16.msra.mxu0 %v4418
    %6091 = vmatprep.mubr.bf16.mxu0 %v1542
    %6092 = vmatmul.mubr.bf16.gmra.mrb[0].mxu0 %v1540
    %v6093 = vpop.f32.mrb[0].mxu0
    %v6094 = vadd.f32 %v6054, %v6093
    %v6095 = vpop.f32.mrb[0].mxu0
    %v6096 = vpop.f32.mrb[0].mxu0
    %v6097 = vpop.f32.mrb[0].mxu0
    %6098 = vdwg.mxu0
    %6099 = vmatprep.subr.bf16.mxu0 0
    %6100 = vmatpush1.bf16.msra.mxu0 %v4419
    %6101 = vmatprep.subr.bf16.mxu0 0
    %6102 = vmatpush1.bf16.msra.mxu0 %v4420
    %6103 = vmatprep.subr.bf16.mxu0 0
    %6104 = vmatpush1.bf16.msra.mxu0 %v4421
    %6105 = vmatprep.subr.bf16.mxu0 0
    %6106 = vmatpush1.bf16.msra.mxu0 %v4422
    %6107 = vmatprep.subr.bf16.mxu0 0
    %6108 = vmatpush1.bf16.msra.mxu0 %v4423
    %6109 = vmatprep.subr.bf16.mxu0 0
    %6110 = vmatpush1.bf16.msra.mxu0 %v4424
    %6111 = vmatprep.subr.bf16.mxu0 0
    %6112 = vmatpush1.bf16.msra.mxu0 %v4425
    %6113 = vmatprep.subr.bf16.mxu0 0
    %6114 = vmatpush1.bf16.msra.mxu0 %v4426
    %6115 = vmatprep.subr.bf16.mxu0 0
    %6116 = vmatpush1.bf16.msra.mxu0 %v4427
    %6117 = vmatprep.subr.bf16.mxu0 0
    %6118 = vmatpush1.bf16.msra.mxu0 %v4428
    %6119 = vmatprep.subr.bf16.mxu0 0
    %6120 = vmatpush1.bf16.msra.mxu0 %v4429
    %6121 = vmatprep.subr.bf16.mxu0 0
    %6122 = vmatpush1.bf16.msra.mxu0 %v4430
    %6123 = vmatprep.subr.bf16.mxu0 0
    %6124 = vmatpush1.bf16.msra.mxu0 %v4431
    %6125 = vmatprep.subr.bf16.mxu0 0
    %6126 = vmatpush1.bf16.msra.mxu0 %v4432
    %6127 = vmatprep.subr.bf16.mxu0 0
    %6128 = vmatpush1.bf16.msra.mxu0 %v4433
    %6129 = vmatprep.subr.bf16.mxu0 0
    %6130 = vmatpush1.bf16.msra.mxu0 %v4434
    %6131 = vmatprep.mubr.bf16.mxu0 %v1539
    %6132 = vmatmul.mubr.bf16.gmra.mrb[0].mxu0 %v1525
    %v6133 = vpop.f32.mrb[0].mxu0
    %v6134 = vadd.f32 %v6094, %v6133
    %v6135 = vpop.f32.mrb[0].mxu0
    %v6136 = vpop.f32.mrb[0].mxu0
    %v6137 = vpop.f32.mrb[0].mxu0
    %6138 = vdwg.mxu0
    %6139 = vmatprep.subr.bf16.mxu0 0
    %6140 = vmatpush1.bf16.msra.mxu0 %v4435
    %6141 = vmatprep.subr.bf16.mxu0 0
    %6142 = vmatpush1.bf16.msra.mxu0 %v4436
    %6143 = vmatprep.subr.bf16.mxu0 0
    %6144 = vmatpush1.bf16.msra.mxu0 %v4437
    %6145 = vmatprep.subr.bf16.mxu0 0
    %6146 = vmatpush1.bf16.msra.mxu0 %v4438
    %6147 = vmatprep.subr.bf16.mxu0 0
    %6148 = vmatpush1.bf16.msra.mxu0 %v4439
    %6149 = vmatprep.subr.bf16.mxu0 0
    %6150 = vmatpush1.bf16.msra.mxu0 %v4440
    %6151 = vmatprep.subr.bf16.mxu0 0
    %6152 = vmatpush1.bf16.msra.mxu0 %v4441
    %6153 = vmatprep.subr.bf16.mxu0 0
    %6154 = vmatpush1.bf16.msra.mxu0 %v4442
    %6155 = vmatprep.subr.bf16.mxu0 0
    %6156 = vmatpush1.bf16.msra.mxu0 %v4443
    %6157 = vmatprep.subr.bf16.mxu0 0
    %6158 = vmatpush1.bf16.msra.mxu0 %v4444
    %6159 = vmatprep.subr.bf16.mxu0 0
    %6160 = vmatpush1.bf16.msra.mxu0 %v4445
    %6161 = vmatprep.subr.bf16.mxu0 0
    %6162 = vmatpush1.bf16.msra.mxu0 %v4446
    %6163 = vmatprep.subr.bf16.mxu0 0
    %6164 = vmatpush1.bf16.msra.mxu0 %v4447
    %6165 = vmatprep.subr.bf16.mxu0 0
    %6166 = vmatpush1.bf16.msra.mxu0 %v4448
    %6167 = vmatprep.subr.bf16.mxu0 0
    %6168 = vmatpush1.bf16.msra.mxu0 %v4449
    %6169 = vmatprep.subr.bf16.mxu0 0
    %6170 = vmatpush1.bf16.msra.mxu0 %v4450
    %6171 = vmatprep.mubr.bf16.mxu0 %v1543
    %6172 = vmatmul.mubr.bf16.gmra.mrb[0].mxu0 %v1541
    %v6173 = vpop.f32.mrb[0].mxu0
    %v6174 = vadd.f32 %v6134, %v6173
    %v6175 = vpop.f32.mrb[0].mxu0
    %v6176 = vpop.f32.mrb[0].mxu0
    %v6177 = vpop.f32.mrb[0].mxu0
    %6178 = vdwg.mxu0
    %6179 = vmatprep.subr.bf16.mxu0 0
    %6180 = vmatpush1.bf16.msra.mxu0 %v4451
    %6181 = vmatprep.subr.bf16.mxu0 0
    %6182 = vmatpush1.bf16.msra.mxu0 %v4452
    %6183 = vmatprep.subr.bf16.mxu0 0
    %6184 = vmatpush1.bf16.msra.mxu0 %v4453
    %6185 = vmatprep.subr.bf16.mxu0 0
    %6186 = vmatpush1.bf16.msra.mxu0 %v4454
    %6187 = vmatprep.subr.bf16.mxu0 0
    %6188 = vmatpush1.bf16.msra.mxu0 %v4455
    %6189 = vmatprep.subr.bf16.mxu0 0
    %6190 = vmatpush1.bf16.msra.mxu0 %v4456
    %6191 = vmatprep.subr.bf16.mxu0 0
    %6192 = vmatpush1.bf16.msra.mxu0 %v4457
    %6193 = vmatprep.subr.bf16.mxu0 0
    %6194 = vmatpush1.bf16.msra.mxu0 %v4458
    %6195 = vmatprep.subr.bf16.mxu0 0
    %6196 = vmatpush1.bf16.msra.mxu0 %v4459
    %6197 = vmatprep.subr.bf16.mxu0 0
    %6198 = vmatpush1.bf16.msra.mxu0 %v4460
    %6199 = vmatprep.subr.bf16.mxu0 0
    %6200 = vmatpush1.bf16.msra.mxu0 %v4461
    %6201 = vmatprep.subr.bf16.mxu0 0
    %6202 = vmatpush1.bf16.msra.mxu0 %v4462
    %6203 = vmatprep.subr.bf16.mxu0 0
    %6204 = vmatpush1.bf16.msra.mxu0 %v4463
    %6205 = vmatprep.subr.bf16.mxu0 0
    %6206 = vmatpush1.bf16.msra.mxu0 %v4464
    %6207 = vmatprep.subr.bf16.mxu0 0
    %6208 = vmatpush1.bf16.msra.mxu0 %v4465
    %6209 = vmatprep.subr.bf16.mxu0 0
    %6210 = vmatpush1.bf16.msra.mxu0 %v4466
    %6211 = vmatprep.mubr.bf16.mxu0 %v1581
    %6212 = vmatmul.mubr.bf16.gmra.mrb[0].mxu0 %v1567
    %v6213 = vpop.f32.mrb[0].mxu0
    %v6214 = vadd.f32 %v6174, %v6213
    %v6215 = vpop.f32.mrb[0].mxu0
    %v6216 = vpop.f32.mrb[0].mxu0
    %v6217 = vpop.f32.mrb[0].mxu0
    %6218 = vdwg.mxu0
    %6219 = vmatprep.subr.bf16.mxu0 0
    %6220 = vmatpush1.bf16.msra.mxu0 %v4467
    %6221 = vmatprep.subr.bf16.mxu0 0
    %6222 = vmatpush1.bf16.msra.mxu0 %v4468
    %6223 = vmatprep.subr.bf16.mxu0 0
    %6224 = vmatpush1.bf16.msra.mxu0 %v4469
    %6225 = vmatprep.subr.bf16.mxu0 0
    %6226 = vmatpush1.bf16.msra.mxu0 %v4470
    %6227 = vmatprep.subr.bf16.mxu0 0
    %6228 = vmatpush1.bf16.msra.mxu0 %v4471
    %6229 = vmatprep.subr.bf16.mxu0 0
    %6230 = vmatpush1.bf16.msra.mxu0 %v4472
    %6231 = vmatprep.subr.bf16.mxu0 0
    %6232 = vmatpush1.bf16.msra.mxu0 %v4473
    %6233 = vmatprep.subr.bf16.mxu0 0
    %6234 = vmatpush1.bf16.msra.mxu0 %v4474
    %6235 = vmatprep.subr.bf16.mxu0 0
    %6236 = vmatpush1.bf16.msra.mxu0 %v4475
    %6237 = vmatprep.subr.bf16.mxu0 0
    %6238 = vmatpush1.bf16.msra.mxu0 %v4476
    %6239 = vmatprep.subr.bf16.mxu0 0
    %6240 = vmatpush1.bf16.msra.mxu0 %v4477
    %6241 = vmatprep.subr.bf16.mxu0 0
    %6242 = vmatpush1.bf16.msra.mxu0 %v4478
    %6243 = vmatprep.subr.bf16.mxu0 0
    %6244 = vmatpush1.bf16.msra.mxu0 %v4479
    %6245 = vmatprep.subr.bf16.mxu0 0
    %6246 = vmatpush1.bf16.msra.mxu0 %v4480
    %6247 = vmatprep.subr.bf16.mxu0 0
    %6248 = vmatpush1.bf16.msra.mxu0 %v4481
    %6249 = vmatprep.subr.bf16.mxu0 0
    %6250 = vmatpush1.bf16.msra.mxu0 %v4482
    %6251 = vmatprep.mubr.bf16.mxu0 %v1591
    %6252 = vmatmul.mubr.bf16.gmra.mrb[0].mxu0 %v1589
    %v6253 = vpop.f32.mrb[0].mxu0
    %v6254 = vadd.f32 %v6214, %v6253
    %v6255 = vpop.f32.mrb[0].mxu0
    %v6256 = vpop.f32.mrb[0].mxu0
    %v6257 = vpop.f32.mrb[0].mxu0
    %6258 = vdwg.mxu0
    %6259 = vmatprep.subr.bf16.mxu0 0
    %6260 = vmatpush1.bf16.msra.mxu0 %v4483
    %6261 = vmatprep.subr.bf16.mxu0 0
    %6262 = vmatpush1.bf16.msra.mxu0 %v4484
    %6263 = vmatprep.subr.bf16.mxu0 0
    %6264 = vmatpush1.bf16.msra.mxu0 %v4485
    %6265 = vmatprep.subr.bf16.mxu0 0
    %6266 = vmatpush1.bf16.msra.mxu0 %v4486
    %6267 = vmatprep.subr.bf16.mxu0 0
    %6268 = vmatpush1.bf16.msra.mxu0 %v4487
    %6269 = vmatprep.subr.bf16.mxu0 0
    %6270 = vmatpush1.bf16.msra.mxu0 %v4488
    %6271 = vmatprep.subr.bf16.mxu0 0
    %6272 = vmatpush1.bf16.msra.mxu0 %v4489
    %6273 = vmatprep.subr.bf16.mxu0 0
    %6274 = vmatpush1.bf16.msra.mxu0 %v4490
    %6275 = vmatprep.subr.bf16.mxu0 0
    %6276 = vmatpush1.bf16.msra.mxu0 %v4491
    %6277 = vmatprep.subr.bf16.mxu0 0
    %6278 = vmatpush1.bf16.msra.mxu0 %v4492
    %6279 = vmatprep.subr.bf16.mxu0 0
    %6280 = vmatpush1.bf16.msra.mxu0 %v4493
    %6281 = vmatprep.subr.bf16.mxu0 0
    %6282 = vmatpush1.bf16.msra.mxu0 %v4494
    %6283 = vmatprep.subr.bf16.mxu0 0
    %6284 = vmatpush1.bf16.msra.mxu0 %v4495
    %6285 = vmatprep.subr.bf16.mxu0 0
    %6286 = vmatpush1.bf16.msra.mxu0 %v4496
    %6287 = vmatprep.subr.bf16.mxu0 0
    %6288 = vmatpush1.bf16.msra.mxu0 %v4497
    %6289 = vmatprep.subr.bf16.mxu0 0
    %6290 = vmatpush1.bf16.msra.mxu0 %v4498
    %6291 = vmatprep.mubr.bf16.mxu0 %v1588
    %6292 = vmatmul.mubr.bf16.gmra.mrb[0].mxu0 %v1574
    %v6293 = vpop.f32.mrb[0].mxu0
    %v6294 = vadd.f32 %v6254, %v6293
    %v6295 = vpop.f32.mrb[0].mxu0
    %v6296 = vpop.f32.mrb[0].mxu0
    %v6297 = vpop.f32.mrb[0].mxu0
    %6298 = vdwg.mxu0
    %6299 = vmatprep.subr.bf16.mxu0 0
    %6300 = vmatpush1.bf16.msra.mxu0 %v4499
    %6301 = vmatprep.subr.bf16.mxu0 0
    %6302 = vmatpush1.bf16.msra.mxu0 %v4500
    %6303 = vmatprep.subr.bf16.mxu0 0
    %6304 = vmatpush1.bf16.msra.mxu0 %v4501
    %6305 = vmatprep.subr.bf16.mxu0 0
    %6306 = vmatpush1.bf16.msra.mxu0 %v4502
    %6307 = vmatprep.subr.bf16.mxu0 0
    %6308 = vmatpush1.bf16.msra.mxu0 %v4503
    %6309 = vmatprep.subr.bf16.mxu0 0
    %6310 = vmatpush1.bf16.msra.mxu0 %v4504
    %6311 = vmatprep.subr.bf16.mxu0 0
    %6312 = vmatpush1.bf16.msra.mxu0 %v4505
    %6313 = vmatprep.subr.bf16.mxu0 0
    %6314 = vmatpush1.bf16.msra.mxu0 %v4506
    %6315 = vmatprep.subr.bf16.mxu0 0
    %6316 = vmatpush1.bf16.msra.mxu0 %v4507
    %6317 = vmatprep.subr.bf16.mxu0 0
    %6318 = vmatpush1.bf16.msra.mxu0 %v4508
    %6319 = vmatprep.subr.bf16.mxu0 0
    %6320 = vmatpush1.bf16.msra.mxu0 %v4509
    %6321 = vmatprep.subr.bf16.mxu0 0
    %6322 = vmatpush1.bf16.msra.mxu0 %v4510
    %6323 = vmatprep.subr.bf16.mxu0 0
    %6324 = vmatpush1.bf16.msra.mxu0 %v4511
    %6325 = vmatprep.subr.bf16.mxu0 0
    %6326 = vmatpush1.bf16.msra.mxu0 %v4512
    %6327 = vmatprep.subr.bf16.mxu0 0
    %6328 = vmatpush1.bf16.msra.mxu0 %v4513
    %6329 = vmatprep.subr.bf16.mxu0 0
    %6330 = vmatpush1.bf16.msra.mxu0 %v4514
    %6331 = vmatprep.mubr.bf16.mxu0 %v1592
    %6332 = vmatmul.mubr.bf16.gmra.mrb[0].mxu0 %v1590
    %v6333 = vpop.f32.mrb[0].mxu0
    %v6334 = vadd.f32 %v6294, %v6333
    %v6335 = vpop.f32.mrb[0].mxu0
    %v6336 = vpop.f32.mrb[0].mxu0
    %v6337 = vpop.f32.mrb[0].mxu0
    %6338 = vdwg.mxu0
    %6339 = vmatprep.subr.bf16.mxu0 0
    %6340 = vmatpush1.bf16.msra.mxu0 %v4515
    %6341 = vmatprep.subr.bf16.mxu0 0
    %6342 = vmatpush1.bf16.msra.mxu0 %v4516
    %6343 = vmatprep.subr.bf16.mxu0 0
    %6344 = vmatpush1.bf16.msra.mxu0 %v4517
    %6345 = vmatprep.subr.bf16.mxu0 0
    %6346 = vmatpush1.bf16.msra.mxu0 %v4518
    %6347 = vmatprep.subr.bf16.mxu0 0
    %6348 = vmatpush1.bf16.msra.mxu0 %v4519
    %6349 = vmatprep.subr.bf16.mxu0 0
    %6350 = vmatpush1.bf16.msra.mxu0 %v4520
    %6351 = vmatprep.subr.bf16.mxu0 0
    %6352 = vmatpush1.bf16.msra.mxu0 %v4521
    %6353 = vmatprep.subr.bf16.mxu0 0
    %6354 = vmatpush1.bf16.msra.mxu0 %v4522
    %6355 = vmatprep.subr.bf16.mxu0 0
    %6356 = vmatpush1.bf16.msra.mxu0 %v4523
    %6357 = vmatprep.subr.bf16.mxu0 0
    %6358 = vmatpush1.bf16.msra.mxu0 %v4524
    %6359 = vmatprep.subr.bf16.mxu0 0
    %6360 = vmatpush1.bf16.msra.mxu0 %v4525
    %6361 = vmatprep.subr.bf16.mxu0 0
    %6362 = vmatpush1.bf16.msra.mxu0 %v4526
    %6363 = vmatprep.subr.bf16.mxu0 0
    %6364 = vmatpush1.bf16.msra.mxu0 %v4527
    %6365 = vmatprep.subr.bf16.mxu0 0
    %6366 = vmatpush1.bf16.msra.mxu0 %v4528
    %6367 = vmatprep.subr.bf16.mxu0 0
    %6368 = vmatpush1.bf16.msra.mxu0 %v4529
    %6369 = vmatprep.subr.bf16.mxu0 0
    %6370 = vmatpush1.bf16.msra.mxu0 %v4530
    %6371 = vmatprep.mubr.bf16.mxu0 %v1630
    %6372 = vmatmul.mubr.bf16.gmra.mrb[0].mxu0 %v1616
    %v6373 = vpop.f32.mrb[0].mxu0
    %v6374 = vadd.f32 %v6334, %v6373
    %v6375 = vpop.f32.mrb[0].mxu0
    %v6376 = vpop.f32.mrb[0].mxu0
    %v6377 = vpop.f32.mrb[0].mxu0
    %6378 = vdwg.mxu0
    %6379 = vmatprep.subr.bf16.mxu0 0
    %6380 = vmatpush1.bf16.msra.mxu0 %v4531
    %6381 = vmatprep.subr.bf16.mxu0 0
    %6382 = vmatpush1.bf16.msra.mxu0 %v4532
    %6383 = vmatprep.subr.bf16.mxu0 0
    %6384 = vmatpush1.bf16.msra.mxu0 %v4533
    %6385 = vmatprep.subr.bf16.mxu0 0
    %6386 = vmatpush1.bf16.msra.mxu0 %v4534
    %6387 = vmatprep.subr.bf16.mxu0 0
    %6388 = vmatpush1.bf16.msra.mxu0 %v4535
    %6389 = vmatprep.subr.bf16.mxu0 0
    %6390 = vmatpush1.bf16.msra.mxu0 %v4536
    %6391 = vmatprep.subr.bf16.mxu0 0
    %6392 = vmatpush1.bf16.msra.mxu0 %v4537
    %6393 = vmatprep.subr.bf16.mxu0 0
    %6394 = vmatpush1.bf16.msra.mxu0 %v4538
    %6395 = vmatprep.subr.bf16.mxu0 0
    %6396 = vmatpush1.bf16.msra.mxu0 %v4539
    %6397 = vmatprep.subr.bf16.mxu0 0
    %6398 = vmatpush1.bf16.msra.mxu0 %v4540
    %6399 = vmatprep.subr.bf16.mxu0 0
    %6400 = vmatpush1.bf16.msra.mxu0 %v4541
    %6401 = vmatprep.subr.bf16.mxu0 0
    %6402 = vmatpush1.bf16.msra.mxu0 %v4542
    %6403 = vmatprep.subr.bf16.mxu0 0
    %6404 = vmatpush1.bf16.msra.mxu0 %v4543
    %6405 = vmatprep.subr.bf16.mxu0 0
    %6406 = vmatpush1.bf16.msra.mxu0 %v4544
    %6407 = vmatprep.subr.bf16.mxu0 0
    %6408 = vmatpush1.bf16.msra.mxu0 %v4545
    %6409 = vmatprep.subr.bf16.mxu0 0
    %6410 = vmatpush1.bf16.msra.mxu0 %v4546
    %6411 = vmatprep.mubr.bf16.mxu0 %v1640
    %6412 = vmatmul.mubr.bf16.gmra.mrb[0].mxu0 %v1638
    %v6413 = vpop.f32.mrb[0].mxu0
    %v6414 = vadd.f32 %v6374, %v6413
    %v6415 = vpop.f32.mrb[0].mxu0
    %v6416 = vpop.f32.mrb[0].mxu0
    %v6417 = vpop.f32.mrb[0].mxu0
    %6418 = vdwg.mxu0
    %6419 = vmatprep.subr.bf16.mxu0 0
    %6420 = vmatpush1.bf16.msra.mxu0 %v4547
    %6421 = vmatprep.subr.bf16.mxu0 0
    %6422 = vmatpush1.bf16.msra.mxu0 %v4548
    %6423 = vmatprep.subr.bf16.mxu0 0
    %6424 = vmatpush1.bf16.msra.mxu0 %v4549
    %6425 = vmatprep.subr.bf16.mxu0 0
    %6426 = vmatpush1.bf16.msra.mxu0 %v4550
    %6427 = vmatprep.subr.bf16.mxu0 0
    %6428 = vmatpush1.bf16.msra.mxu0 %v4551
    %6429 = vmatprep.subr.bf16.mxu0 0
    %6430 = vmatpush1.bf16.msra.mxu0 %v4552
    %6431 = vmatprep.subr.bf16.mxu0 0
    %6432 = vmatpush1.bf16.msra.mxu0 %v4553
    %6433 = vmatprep.subr.bf16.mxu0 0
    %6434 = vmatpush1.bf16.msra.mxu0 %v4554
    %6435 = vmatprep.subr.bf16.mxu0 0
    %6436 = vmatpush1.bf16.msra.mxu0 %v4555
    %6437 = vmatprep.subr.bf16.mxu0 0
    %6438 = vmatpush1.bf16.msra.mxu0 %v4556
    %6439 = vmatprep.subr.bf16.mxu0 0
    %6440 = vmatpush1.bf16.msra.mxu0 %v4557
    %6441 = vmatprep.subr.bf16.mxu0 0
    %6442 = vmatpush1.bf16.msra.mxu0 %v4558
    %6443 = vmatprep.subr.bf16.mxu0 0
    %6444 = vmatpush1.bf16.msra.mxu0 %v4559
    %6445 = vmatprep.subr.bf16.mxu0 0
    %6446 = vmatpush1.bf16.msra.mxu0 %v4560
    %6447 = vmatprep.subr.bf16.mxu0 0
    %6448 = vmatpush1.bf16.msra.mxu0 %v4561
    %6449 = vmatprep.subr.bf16.mxu0 0
    %6450 = vmatpush1.bf16.msra.mxu0 %v4562
    %6451 = vmatprep.mubr.bf16.mxu0 %v1637
    %6452 = vmatmul.mubr.bf16.gmra.mrb[0].mxu0 %v1623
    %v6453 = vpop.f32.mrb[0].mxu0
    %v6454 = vadd.f32 %v6414, %v6453
    %v6455 = vpop.f32.mrb[0].mxu0
    %v6456 = vpop.f32.mrb[0].mxu0
    %v6457 = vpop.f32.mrb[0].mxu0
    %6458 = vdwg.mxu0
    %6459 = vmatprep.subr.bf16.mxu0 0
    %6460 = vmatpush1.bf16.msra.mxu0 %v4563
    %6461 = vmatprep.subr.bf16.mxu0 0
    %6462 = vmatpush1.bf16.msra.mxu0 %v4564
    %6463 = vmatprep.subr.bf16.mxu0 0
    %6464 = vmatpush1.bf16.msra.mxu0 %v4565
    %6465 = vmatprep.subr.bf16.mxu0 0
    %6466 = vmatpush1.bf16.msra.mxu0 %v4566
    %6467 = vmatprep.subr.bf16.mxu0 0
    %6468 = vmatpush1.bf16.msra.mxu0 %v4567
    %6469 = vmatprep.subr.bf16.mxu0 0
    %6470 = vmatpush1.bf16.msra.mxu0 %v4568
    %6471 = vmatprep.subr.bf16.mxu0 0
    %6472 = vmatpush1.bf16.msra.mxu0 %v4569
    %6473 = vmatprep.subr.bf16.mxu0 0
    %6474 = vmatpush1.bf16.msra.mxu0 %v4570
    %6475 = vmatprep.subr.bf16.mxu0 0
    %6476 = vmatpush1.bf16.msra.mxu0 %v4571
    %6477 = vmatprep.subr.bf16.mxu0 0
    %6478 = vmatpush1.bf16.msra.mxu0 %v4572
    %6479 = vmatprep.subr.bf16.mxu0 0
    %6480 = vmatpush1.bf16.msra.mxu0 %v4573
    %6481 = vmatprep.subr.bf16.mxu0 0
    %6482 = vmatpush1.bf16.msra.mxu0 %v4574
    %6483 = vmatprep.subr.bf16.mxu0 0
    %6484 = vmatpush1.bf16.msra.mxu0 %v4575
    %6485 = vmatprep.subr.bf16.mxu0 0
    %6486 = vmatpush1.bf16.msra.mxu0 %v4576
    %6487 = vmatprep.subr.bf16.mxu0 0
    %6488 = vmatpush1.bf16.msra.mxu0 %v4577
    %6489 = vmatprep.subr.bf16.mxu0 0
    %6490 = vmatpush1.bf16.msra.mxu0 %v4578
    %6491 = vmatprep.mubr.bf16.mxu0 %v1641
    %6492 = vmatmul.mubr.bf16.gmra.mrb[0].mxu0 %v1639
    %v6493 = vpop.f32.mrb[0].mxu0
    %v6494 = vadd.f32 %v6454, %v6493
    %v6495 = vpop.f32.mrb[0].mxu0
    %v6496 = vpop.f32.mrb[0].mxu0
    %v6497 = vpop.f32.mrb[0].mxu0
    %6498 = vdwg.mxu0
    %6499 = vmatprep.subr.bf16.mxu0 0
    %6500 = vmatpush1.bf16.msra.mxu0 %v4579
    %6501 = vmatprep.subr.bf16.mxu0 0
    %6502 = vmatpush1.bf16.msra.mxu0 %v4580
    %6503 = vmatprep.subr.bf16.mxu0 0
    %6504 = vmatpush1.bf16.msra.mxu0 %v4581
    %6505 = vmatprep.subr.bf16.mxu0 0
    %6506 = vmatpush1.bf16.msra.mxu0 %v4582
    %6507 = vmatprep.subr.bf16.mxu0 0
    %6508 = vmatpush1.bf16.msra.mxu0 %v4583
    %6509 = vmatprep.subr.bf16.mxu0 0
    %6510 = vmatpush1.bf16.msra.mxu0 %v4584
    %6511 = vmatprep.subr.bf16.mxu0 0
    %6512 = vmatpush1.bf16.msra.mxu0 %v4585
    %6513 = vmatprep.subr.bf16.mxu0 0
    %6514 = vmatpush1.bf16.msra.mxu0 %v4586
    %6515 = vmatprep.subr.bf16.mxu0 0
    %6516 = vmatpush1.bf16.msra.mxu0 %v4587
    %6517 = vmatprep.subr.bf16.mxu0 0
    %6518 = vmatpush1.bf16.msra.mxu0 %v4588
    %6519 = vmatprep.subr.bf16.mxu0 0
    %6520 = vmatpush1.bf16.msra.mxu0 %v4589
    %6521 = vmatprep.subr.bf16.mxu0 0
    %6522 = vmatpush1.bf16.msra.mxu0 %v4590
    %6523 = vmatprep.subr.bf16.mxu0 0
    %6524 = vmatpush1.bf16.msra.mxu0 %v4591
    %6525 = vmatprep.subr.bf16.mxu0 0
    %6526 = vmatpush1.bf16.msra.mxu0 %v4592
    %6527 = vmatprep.subr.bf16.mxu0 0
    %6528 = vmatpush1.bf16.msra.mxu0 %v4593
    %6529 = vmatprep.subr.bf16.mxu0 0
    %6530 = vmatpush1.bf16.msra.mxu0 %v4594
    %6531 = vmatprep.mubr.bf16.mxu0 %v1679
    %6532 = vmatmul.mubr.bf16.gmra.mrb[0].mxu0 %v1665
    %v6533 = vpop.f32.mrb[0].mxu0
    %v6534 = vadd.f32 %v6494, %v6533
    %v6535 = vpop.f32.mrb[0].mxu0
    %v6536 = vpop.f32.mrb[0].mxu0
    %v6537 = vpop.f32.mrb[0].mxu0
    %6538 = vdwg.mxu0
    %6539 = vmatprep.subr.bf16.mxu0 0
    %6540 = vmatpush1.bf16.msra.mxu0 %v4595
    %6541 = vmatprep.subr.bf16.mxu0 0
    %6542 = vmatpush1.bf16.msra.mxu0 %v4596
    %6543 = vmatprep.subr.bf16.mxu0 0
    %6544 = vmatpush1.bf16.msra.mxu0 %v4597
    %6545 = vmatprep.subr.bf16.mxu0 0
    %6546 = vmatpush1.bf16.msra.mxu0 %v4598
    %6547 = vmatprep.subr.bf16.mxu0 0
    %6548 = vmatpush1.bf16.msra.mxu0 %v4599
    %6549 = vmatprep.subr.bf16.mxu0 0
    %6550 = vmatpush1.bf16.msra.mxu0 %v4600
    %6551 = vmatprep.subr.bf16.mxu0 0
    %6552 = vmatpush1.bf16.msra.mxu0 %v4601
    %6553 = vmatprep.subr.bf16.mxu0 0
    %6554 = vmatpush1.bf16.msra.mxu0 %v4602
    %6555 = vmatprep.subr.bf16.mxu0 0
    %6556 = vmatpush1.bf16.msra.mxu0 %v4603
    %6557 = vmatprep.subr.bf16.mxu0 0
    %6558 = vmatpush1.bf16.msra.mxu0 %v4604
    %6559 = vmatprep.subr.bf16.mxu0 0
    %6560 = vmatpush1.bf16.msra.mxu0 %v4605
    %6561 = vmatprep.subr.bf16.mxu0 0
    %6562 = vmatpush1.bf16.msra.mxu0 %v4606
    %6563 = vmatprep.subr.bf16.mxu0 0
    %6564 = vmatpush1.bf16.msra.mxu0 %v4607
    %6565 = vmatprep.subr.bf16.mxu0 0
    %6566 = vmatpush1.bf16.msra.mxu0 %v4608
    %6567 = vmatprep.subr.bf16.mxu0 0
    %6568 = vmatpush1.bf16.msra.mxu0 %v4609
    %6569 = vmatprep.subr.bf16.mxu0 0
    %6570 = vmatpush1.bf16.msra.mxu0 %v4610
    %6571 = vmatprep.mubr.bf16.mxu0 %v1689
    %6572 = vmatmul.mubr.bf16.gmra.mrb[0].mxu0 %v1687
    %v6573 = vpop.f32.mrb[0].mxu0
    %v6574 = vadd.f32 %v6534, %v6573
    %v6575 = vpop.f32.mrb[0].mxu0
    %v6576 = vpop.f32.mrb[0].mxu0
    %v6577 = vpop.f32.mrb[0].mxu0
    %6578 = vdwg.mxu0
    %6579 = vmatprep.subr.bf16.mxu0 0
    %6580 = vmatpush1.bf16.msra.mxu0 %v4611
    %6581 = vmatprep.subr.bf16.mxu0 0
    %6582 = vmatpush1.bf16.msra.mxu0 %v4612
    %6583 = vmatprep.subr.bf16.mxu0 0
    %6584 = vmatpush1.bf16.msra.mxu0 %v4613
    %6585 = vmatprep.subr.bf16.mxu0 0
    %6586 = vmatpush1.bf16.msra.mxu0 %v4614
    %6587 = vmatprep.subr.bf16.mxu0 0
    %6588 = vmatpush1.bf16.msra.mxu0 %v4615
    %6589 = vmatprep.subr.bf16.mxu0 0
    %6590 = vmatpush1.bf16.msra.mxu0 %v4616
    %6591 = vmatprep.subr.bf16.mxu0 0
    %6592 = vmatpush1.bf16.msra.mxu0 %v4617
    %6593 = vmatprep.subr.bf16.mxu0 0
    %6594 = vmatpush1.bf16.msra.mxu0 %v4618
    %6595 = vmatprep.subr.bf16.mxu0 0
    %6596 = vmatpush1.bf16.msra.mxu0 %v4619
    %6597 = vmatprep.subr.bf16.mxu0 0
    %6598 = vmatpush1.bf16.msra.mxu0 %v4620
    %6599 = vmatprep.subr.bf16.mxu0 0
    %6600 = vmatpush1.bf16.msra.mxu0 %v4621
    %6601 = vmatprep.subr.bf16.mxu0 0
    %6602 = vmatpush1.bf16.msra.mxu0 %v4622
    %6603 = vmatprep.subr.bf16.mxu0 0
    %6604 = vmatpush1.bf16.msra.mxu0 %v4623
    %6605 = vmatprep.subr.bf16.mxu0 0
    %6606 = vmatpush1.bf16.msra.mxu0 %v4624
    %6607 = vmatprep.subr.bf16.mxu0 0
    %6608 = vmatpush1.bf16.msra.mxu0 %v4625
    %6609 = vmatprep.subr.bf16.mxu0 0
    %6610 = vmatpush1.bf16.msra.mxu0 %v4626
    %6611 = vmatprep.mubr.bf16.mxu0 %v1686
    %6612 = vmatmul.mubr.bf16.gmra.mrb[0].mxu0 %v1672
    %v6613 = vpop.f32.mrb[0].mxu0
    %v6614 = vadd.f32 %v6574, %v6613
    %v6615 = vpop.f32.mrb[0].mxu0
    %v6616 = vpop.f32.mrb[0].mxu0
    %v6617 = vpop.f32.mrb[0].mxu0
    %6618 = vdwg.mxu0
    %6619 = vmatprep.subr.bf16.mxu0 0
    %6620 = vmatpush1.bf16.msra.mxu0 %v4627
    %6621 = vmatprep.subr.bf16.mxu0 0
    %6622 = vmatpush1.bf16.msra.mxu0 %v4628
    %6623 = vmatprep.subr.bf16.mxu0 0
    %6624 = vmatpush1.bf16.msra.mxu0 %v4629
    %6625 = vmatprep.subr.bf16.mxu0 0
    %6626 = vmatpush1.bf16.msra.mxu0 %v4630
    %6627 = vmatprep.subr.bf16.mxu0 0
    %6628 = vmatpush1.bf16.msra.mxu0 %v4631
    %6629 = vmatprep.subr.bf16.mxu0 0
    %6630 = vmatpush1.bf16.msra.mxu0 %v4632
    %6631 = vmatprep.subr.bf16.mxu0 0
    %6632 = vmatpush1.bf16.msra.mxu0 %v4633
    %6633 = vmatprep.subr.bf16.mxu0 0
    %6634 = vmatpush1.bf16.msra.mxu0 %v4634
    %6635 = vmatprep.subr.bf16.mxu0 0
    %6636 = vmatpush1.bf16.msra.mxu0 %v4635
    %6637 = vmatprep.subr.bf16.mxu0 0
    %6638 = vmatpush1.bf16.msra.mxu0 %v4636
    %6639 = vmatprep.subr.bf16.mxu0 0
    %6640 = vmatpush1.bf16.msra.mxu0 %v4637
    %6641 = vmatprep.subr.bf16.mxu0 0
    %6642 = vmatpush1.bf16.msra.mxu0 %v4638
    %6643 = vmatprep.subr.bf16.mxu0 0
    %6644 = vmatpush1.bf16.msra.mxu0 %v4639
    %6645 = vmatprep.subr.bf16.mxu0 0
    %6646 = vmatpush1.bf16.msra.mxu0 %v4640
    %6647 = vmatprep.subr.bf16.mxu0 0
    %6648 = vmatpush1.bf16.msra.mxu0 %v4641
    %6649 = vmatprep.subr.bf16.mxu0 0
    %6650 = vmatpush1.bf16.msra.mxu0 %v4642
    %6651 = vmatprep.mubr.bf16.mxu0 %v1690
    %6652 = vmatmul.mubr.bf16.gmra.mrb[0].mxu0 %v1688
    %v6653 = vpop.f32.mrb[0].mxu0
    %v6654 = vadd.f32 %v6614, %v6653
    %v6655 = vpop.f32.mrb[0].mxu0
    %v6656 = vpop.f32.mrb[0].mxu0
    %v6657 = vpop.f32.mrb[0].mxu0
    %6658 = vdwg.mxu0
    %v6659 = vmax.f32 %v6654, 0.0
    %v6660 = vpack.c.bf16 %v6659, %v6659
    %v6661 = vld [vmem:[#allocation7] sm:$0xf]
    %v6662 = vld [vmem:[#allocation7 + $0x4] sm:$0xf]
    %v6663 = vld [vmem:[#allocation7 + $0x8] sm:$0xf]
    %v6664 = vld [vmem:[#allocation7 + $0xc] sm:$0xf]
    %v6665 = vld [vmem:[#allocation7 + $0x10] sm:$0xf]
    %v6666 = vld [vmem:[#allocation7 + $0x14] sm:$0xf]
    %v6667 = vld [vmem:[#allocation7 + $0x18] sm:$0xf]
    %v6668 = vld [vmem:[#allocation7 + $0x1c] sm:$0xf]
    %v6669 = vld [vmem:[#allocation7 + $0x20] sm:$0xf]
    %v6670 = vld [vmem:[#allocation7 + $0x24] sm:$0xf]
    %v6671 = vld [vmem:[#allocation7 + $0x28] sm:$0xf]
    %v6672 = vld [vmem:[#allocation7 + $0x2c] sm:$0xf]
    %v6673 = vld [vmem:[#allocation7 + $0x30] sm:$0xf]
    %v6674 = vld [vmem:[#allocation7 + $0x34] sm:$0xf]
    %v6675 = vld [vmem:[#allocation7 + $0x38] sm:$0xf]
    %v6676 = vld [vmem:[#allocation7 + $0x3c] sm:$0xf]
    %v6677 = vld [vmem:[#allocation8] sm:$0x1]
    %v6679 = vlaneseq
    %v6680 = vshrl.u32 %v6679, 7
    %v6681 = vsub.s32 0, %v6680
    %v6682 = vrot.slane %v6677, %v6681
    %v6700 = vunpack.c.l.b16 %v6661
    %v6701 = vunpack.c.l.b16 %v6662
    %v6702 = vunpack.c.l.b16 %v6663
    %v6703 = vunpack.c.l.b16 %v6664
    %v6704 = vunpack.c.l.b16 %v6665
    %v6705 = vunpack.c.l.b16 %v6666
    %v6706 = vunpack.c.l.b16 %v6667
    %v6707 = vunpack.c.l.b16 %v6668
    %v6708 = vunpack.c.l.b16 %v6669
    %v6709 = vunpack.c.l.b16 %v6670
    %v6710 = vunpack.c.l.b16 %v6671
    %v6711 = vunpack.c.l.b16 %v6672
    %v6712 = vunpack.c.l.b16 %v6673
    %v6713 = vunpack.c.l.b16 %v6674
    %v6714 = vunpack.c.l.b16 %v6675
    %v6715 = vunpack.c.l.b16 %v6676
    %v6716 = vpack.c.b16 %v6701, %v6700
    %v6717 = vpack.c.b16 %v6703, %v6702
    %v6718 = vpack.c.b16 %v6705, %v6704
    %v6719 = vpack.c.b16 %v6707, %v6706
    %v6720 = vpack.c.b16 %v6709, %v6708
    %v6721 = vpack.c.b16 %v6711, %v6710
    %v6722 = vpack.c.b16 %v6713, %v6712
    %v6723 = vpack.c.b16 %v6715, %v6714
    %6732 = vmatprep.subr.bf16.mxu0 0
    %6733 = vmatpush1.bf16.msra.mxu0 %v6716
    %6734 = vmatprep.subr.bf16.mxu0 0
    %6735 = vmatpush1.bf16.msra.mxu0 %v6717
    %6736 = vmatprep.subr.bf16.mxu0 0
    %6737 = vmatpush1.bf16.msra.mxu0 %v6718
    %6738 = vmatprep.subr.bf16.mxu0 0
    %6739 = vmatpush1.bf16.msra.mxu0 %v6719
    %6740 = vmatprep.subr.bf16.mxu0 0
    %6741 = vmatpush1.bf16.msra.mxu0 %v6720
    %6742 = vmatprep.subr.bf16.mxu0 0
    %6743 = vmatpush1.bf16.msra.mxu0 %v6721
    %6744 = vmatprep.subr.bf16.mxu0 0
    %6745 = vmatpush1.bf16.msra.mxu0 %v6722
    %6746 = vmatprep.subr.bf16.mxu0 0
    %6747 = vmatpush1.bf16.msra.mxu0 %v6723
    %6748 = vmatprep.subr.bf16.mxu0 0
    %6749 = vmatpush1.bf16.msra.mxu0 0
    %6750 = vmatprep.subr.bf16.mxu0 0
    %6751 = vmatpush1.bf16.msra.mxu0 0
    %6752 = vmatprep.subr.bf16.mxu0 0
    %6753 = vmatpush1.bf16.msra.mxu0 0
    %6754 = vmatprep.subr.bf16.mxu0 0
    %6755 = vmatpush1.bf16.msra.mxu0 0
    %6756 = vmatprep.subr.bf16.mxu0 0
    %6757 = vmatpush1.bf16.msra.mxu0 0
    %6758 = vmatprep.subr.bf16.mxu0 0
    %6759 = vmatpush1.bf16.msra.mxu0 0
    %6760 = vmatprep.subr.bf16.mxu0 0
    %6761 = vmatpush1.bf16.msra.mxu0 0
    %6762 = vmatprep.subr.bf16.mxu0 0
    %6763 = vmatpush1.bf16.msra.mxu0 0
    %6764 = vmatprep.mubr.bf16.mxu0 0
    %6765 = vmatmul.mubr.bf16.gmra.mrb[0].mxu0 %v6660
    %v6766 = vpop.f32.mrb[0].mxu0
    %v6767 = vadd.f32 %v6682, %v6766
    %v6768 = vpop.f32.mrb[0].mxu0
    %v6769 = vpop.f32.mrb[0].mxu0
    %v6770 = vpop.f32.mrb[0].mxu0
    %6771 = vdwg.mxu0
    %vm6772 = vcmask 1041408
    %v6773 = vsel %vm6772, %v6767, -inf
    %6774 = vmax.xlane.f32.xlu0 %v6773
    %v6775 = vpop.xlane.xlu0 %6774
    %v6776 = vsub.f32 %v6767, %v6775
    %v6777 = vmul.f32 %v6776, 1.442695
    %v6778 = vpow.pop %v6777
    %v6779 = vsel %vm6772, %v6778, 0.0
    %6780 = vadd.xlane.f32.xlu0 %v6779
    %v6781 = vpop.xlane.xlu0 %6780
    %v6782 = vlog2.pop %v6781
    %v6783 = vmul.f32 %v6782, 0.6931472
    %v6784 = vsub.f32 %v6776, %v6783
    %6785 = vst [vmem:[#allocation10] sm:$0x3] %v6784
    // Predicated region
    $region38: #{net_forward.3} parent=1 // pred_check
      _
    $region39: #{net_forward.3} parent=1 // pred_check_branch
      %6787 = sbr.rel (0) target = $region41
    $region40: #{net_forward.3} parent=1 // pred_region
      %s6789 = ssub.s32 32, 32
      %6790 = vsyncadd [#allocation4], %s6789
      %s6792 = sshll.u32 [#allocation10], 4
      %s6793 = int_to_ptr.vmem [resolvable:$true] %s6792
      %6795 = dma.vmem_to_hbm [thread:$0]  %s6793, 32, %s5, [#allocation4]
    $region41: #{net_forward.3} parent=1 // pred_fallthru
      _
    // Predicated region
    $region42: #{net_forward.3} parent=1 // pred_check
      _
    $region43: #{net_forward.3} parent=1 // pred_check_branch
      %6797 = sbr.rel (0) target = $region45
    $region44: #{net_forward.3} parent=1 // pred_region
      %6798 = dma.done [#allocation4], 32
    $region45: #{net_forward.3} parent=1 // pred_fallthru
      _
    %6799 = vsyncpa [#allocation3], 1
    %6800 = vsyncpa [#allocation6], 1
    %6801 = vsyncpa [#allocation9], 1
    %6802 = vsyncpa [#allocation4], 1

</llo_original>
